<compile_context>
chip_gen: v7x
topology: tpu7x:2x2x1
jax: 0.10.0
libtpu: 0.0.40
codegen_flags: <defaults>
</compile_context>

<pallas_src>
import functools

import jax
import jax.numpy as jnp
from jax.experimental import pallas as pl
from jax.experimental.pallas import tpu as pltpu


# Lane-dense (128-multiple) padded channel counts.
_C1 = 128          # conv1 out (logical 64)
_C2 = 128          # conv2 out
_C3 = 256          # conv3 out (logical 192)
_OUT_PAD = 128     # final linear out (logical 3)
N_CLASSES = 3


def _vmem_limit_bytes():
    """Generation-aware VMEM limit: ~75% of per-core VMEM, capped at 100 MiB."""
    cap = 128 * 1024 * 1024
    try:
        cap = int(pltpu.get_tpu_info().vmem_capacity_bytes)
    except Exception:
        pass
    return int(min(cap * 3 // 4, 100 * 1024 * 1024))


def _silu(x):
    return x * jax.nn.sigmoid(x)


# -----------------------------------------------------------------------------
# Kernel 1: fused conv stack + SiLU + global max pool, Bt sequences / grid step.
# -----------------------------------------------------------------------------
def _conv_stack_pool_kernel(x_ref, w1_ref, b1_ref, w2_ref, b2_ref,
                            w3_ref, b3_ref, o_ref,
                            xpad_ref, h1_ref, h2_ref,
                            *, Bt, L, K1, K2, K3):
    p1, p2, p3 = (K1 - 1) // 2, (K2 - 1) // 2, (K3 - 1) // 2
    S1, S2, S3 = L + 2 * p1, L + 2 * p2, L + 2 * p3

    def zero_halos(ref, S, pad):
        # Per-sequence 'same' padding halos kept directly in the VMEM scratch.
        # Re-zeroed every step: scratch is uninitialized on the second core
        # under megacore 'parallel' partitioning, so we cannot rely on a
        # program_id==0 one-time init.  Cost: a few tiny stores per step.
        if pad == 0:
            return
        C = ref.shape[-1]
        zp = jnp.zeros((pad, C), ref.dtype)
        ref[0:pad, :] = zp
        ref[Bt * S - pad:Bt * S, :] = zp
        if Bt > 1:
            z2 = jnp.zeros((2 * pad, C), ref.dtype)
            for i in range(1, Bt):   # adjacent end/start halos are contiguous
                ref[i * S - pad:i * S + pad, :] = z2

    zero_halos(xpad_ref, S1, p1)
    zero_halos(h1_ref, S2, p2)
    zero_halos(h2_ref, S3, p3)

    # Stage the bf16 conv1 inputs into their per-sequence halo slots.
    for i in range(Bt):
        xpad_ref[i * S1 + p1:i * S1 + p1 + L, :] = x_ref[i]

    def conv_silu(inp_ref, w_ref, b_ref, K, S):
        # Per-tap accumulating MXU dots fed straight from the halo scratch —
        # no materialized im2col temporary.  Rows that straddle a sequence
        # boundary are garbage but finite and never read downstream.
        M = Bt * S - (K - 1)
        acc = jnp.dot(inp_ref[0:M, :], w_ref[0],
                      preferred_element_type=jnp.float32)
        for k in range(1, K):
            acc = acc + jnp.dot(inp_ref[k:k + M, :], w_ref[k],
                                preferred_element_type=jnp.float32)
        acc = acc + b_ref[...]          # f32 bias
        return _silu(acc)               # f32 activation (EUP sigmoid + VPU mul)

    # TODO(synk): tile the L axis (K-1 halo + running max) for very long L.
    y1 = conv_silu(xpad_ref, w1_ref, b1_ref, K1, S1)      # (Bt*S1-2p1, 128) f32
    for i in range(Bt):
        h1_ref[i * S2 + p2:i * S2 + p2 + L, :] = (
            y1[i * S1:i * S1 + L, :].astype(h1_ref.dtype))

    y2 = conv_silu(h1_ref, w2_ref, b2_ref, K2, S2)        # (Bt*S2-2p2, 128) f32
    for i in range(Bt):
        h2_ref[i * S3 + p3:i * S3 + p3 + L, :] = (
            y2[i * S2:i * S2 + L, :].astype(h2_ref.dtype))

    y3 = conv_silu(h2_ref, w3_ref, b3_ref, K3, S3)        # (Bt*S3-2p3, 256) f32

    # AdaptiveMaxPool1d(1): per-sequence max over the valid rows, emitted as a
    # single lane-dense, multi-sublane (Bt, 256) store.
    pooled = jnp.concatenate(
        [jnp.max(y3[i * S3:i * S3 + L, :], axis=0, keepdims=True)
         for i in range(Bt)], axis=0)
    o_ref[...] = pooled


def conv_stack_and_pool(x, p, *, block_b=8):
    """x: (B, L, E) bf16 embeddings -> pooled (B, _C3) f32."""
    B, L, C0 = x.shape
    Bt = B if B < block_b else block_b
    B_pad = pl.cdiv(B, Bt) * Bt
    if B_pad != B:
        # Pad batch with zero sequences (results sliced off below).
        x = jnp.pad(x, ((0, B_pad - B), (0, 0), (0, 0)))

    K1 = p["conv1_w"].shape[0]
    K2 = p["conv2_w"].shape[0]
    K3 = p["conv3_w"].shape[0]
    for K in (K1, K2, K3):
        assert K % 2 == 1, "symmetric 'same' padding requires odd kernel size"

    kernel = functools.partial(_conv_stack_pool_kernel,
                               Bt=Bt, L=L, K1=K1, K2=K2, K3=K3)
    out = pl.pallas_call(
        kernel,
        out_shape=jax.ShapeDtypeStruct((B_pad, _C3), jnp.float32),
        grid=(B_pad // Bt,),
        in_specs=[
            pl.BlockSpec((Bt, L, C0), lambda b: (b, 0, 0)),
            pl.BlockSpec((K1, C0, _C1), lambda b: (0, 0, 0)),
            pl.BlockSpec((1, _C1), lambda b: (0, 0)),
            pl.BlockSpec((K2, _C1, _C2), lambda b: (0, 0, 0)),
            pl.BlockSpec((1, _C2), lambda b: (0, 0)),
            pl.BlockSpec((K3, _C2, _C3), lambda b: (0, 0, 0)),
            pl.BlockSpec((1, _C3), lambda b: (0, 0)),
        ],
        out_specs=pl.BlockSpec((Bt, _C3), lambda b: (b, 0)),
        scratch_shapes=[
            pltpu.VMEM((Bt * (L + K1 - 1), C0), jnp.bfloat16),   # conv1 input
            pltpu.VMEM((Bt * (L + K2 - 1), _C1), jnp.bfloat16),  # conv1 output
            pltpu.VMEM((Bt * (L + K3 - 1), _C2), jnp.bfloat16),  # conv2 output
        ],
        compiler_params=pltpu.CompilerParams(
            dimension_semantics=("parallel",),
            vmem_limit_bytes=_vmem_limit_bytes()),
    )(x, p["conv1_w"], p["conv1_b"], p["conv2_w"], p["conv2_b"],
      p["conv3_w"], p["conv3_b"])
    return out[:B]


# -----------------------------------------------------------------------------
# Kernel 2: fused 4-layer MLP head (mlp1/mlp2/mlp3 + output + sigmoid).
# -----------------------------------------------------------------------------
def _mlp_head_kernel(x_ref, w1_ref, b1_ref, w2_ref, b2_ref,
                     w3_ref, b3_ref, w4_ref, b4_ref, o_ref):
    def dense(h, w_ref, b_ref):
        return jnp.dot(h.astype(w_ref.dtype), w_ref[...],
                       preferred_element_type=jnp.float32) + b_ref[...]

    h = x_ref[...]                                   # (Bt, 256) f32
    h = _silu(dense(h, w1_ref, b1_ref))              # (Bt, 1024)
    h = _silu(dense(h, w2_ref, b2_ref))              # (Bt, 1024)
    h = _silu(dense(h, w3_ref, b3_ref))              # (Bt, 512)
    o_ref[...] = jax.nn.sigmoid(dense(h, w4_ref, b4_ref))   # (Bt, 128)


def _pick_batch_tile(B, cap=256):
    # <=8: single tile equal to B (block == full dim satisfies the (8,128)
    # rule).  Otherwise: at least 2 tiles (so a v7x megacore can split the
    # 'parallel' axis), multiple of 8, capped at 256 rows to fill the MXU.
    if B <= 8:
        return B
    half = pl.cdiv(B, 2)
    return max(8, min(cap, ((half + 7) // 8) * 8))


def mlp_head(x, p):
    B, Fin = x.shape
    bt = _pick_batch_tile(B)
    grid = (pl.cdiv(B, bt),)
    # Note: when B is not a multiple of bt the last tile pushes junk rows
    # through the MLP; those output rows are clipped by the caller.

    def full(a):
        return pl.BlockSpec(a.shape, lambda i: (0,) * a.ndim)

    return pl.pallas_call(
        _mlp_head_kernel,
        out_shape=jax.ShapeDtypeStruct((B, _OUT_PAD), jnp.float32),
        grid=grid,
        in_specs=[
            pl.BlockSpec((bt, Fin), lambda i: (i, 0)),
            full(p["mlp1_w"]), full(p["mlp1_b"]),
            full(p["mlp2_w"]), full(p["mlp2_b"]),
            full(p["mlp3_w"]), full(p["mlp3_b"]),
            full(p["out_w"]), full(p["out_b"]),
        ],
        out_specs=pl.BlockSpec((bt, _OUT_PAD), lambda i: (i, 0)),
        compiler_params=pltpu.CompilerParams(
            dimension_semantics=("parallel",),
            vmem_limit_bytes=_vmem_limit_bytes()),
    )(x, p["mlp1_w"], p["mlp1_b"], p["mlp2_w"], p["mlp2_b"],
      p["mlp3_w"], p["mlp3_b"], p["out_w"], p["out_b"])


# -----------------------------------------------------------------------------
# Parameters: logical (PyTorch-shaped) init + packing into the kernel layout.
# -----------------------------------------------------------------------------
def init_raw_params(key, vocab_size, embedding_dim=64):
    ks = jax.random.split(key, 16)

    def w(k, shape, fan_in):
        return (fan_in ** -0.5) * jax.random.normal(k, shape, jnp.float32)

    def b(k, shape):
        return 0.1 * jax.random.normal(k, shape, jnp.float32)

    return {
        "embedding": jax.random.normal(ks[0], (vocab_size, embedding_dim),
                                       jnp.float32),
        # conv weights stored (K, Cin, Cout)
        "conv1_w": w(ks[1], (19, embedding_dim, 64), 19 * embedding_dim),
        "conv1_b": b(ks[2], (64,)),
        "conv2_w": w(ks[3], (9, 64, 128), 9 * 64),
        "conv2_b": b(ks[4], (128,)),
        "conv3_w": w(ks[5], (3, 128, 192), 3 * 128),
        "conv3_b": b(ks[6], (192,)),
        # linear weights stored (Fin, Fout)
        "mlp1_w": w(ks[7], (192, 1024), 192),
        "mlp1_b": b(ks[8], (1024,)),
        "mlp2_w": w(ks[9], (1024, 1024), 1024),
        "mlp2_b": b(ks[10], (1024,)),
        "mlp3_w": w(ks[11], (1024, 512), 1024),
        "mlp3_b": b(ks[12], (512,)),
        "out_w": w(ks[13], (512, 3), 512),
        "out_b": b(ks[14], (3,)),
    }


def prepare_params(raw):
    """Pack logical params into lane-dense, bf16, per-tap conv layout."""

    def pad_to(a, axis, target):
        extra = target - a.shape[axis]
        assert extra >= 0
        cfg = [(0, 0)] * a.ndim
        cfg[axis] = (0, extra)
        return jnp.pad(a, cfg)

    def pack_conv(w, b, cin_pad, cout_pad):
        K, cin, cout = w.shape
        assert K % 2 == 1, "even kernel sizes would shift 'same' semantics"
        w = pad_to(w, 1, cin_pad)
        w = pad_to(w, 2, cout_pad)
        b = pad_to(b, 0, cout_pad)
        return (w.astype(jnp.bfloat16),                    # (K, Cin_pad, Cout_pad)
                b.reshape(1, cout_pad).astype(jnp.float32))

    e_dim = raw["conv1_w"].shape[1]
    p = {"embedding": raw["embedding"].astype(jnp.bfloat16)}
    # conv1 input channels stay at 64: per-tap dots need no lane alignment and
    # zero-padding the depth would add no useful MXU work.
    p["conv1_w"], p["conv1_b"] = pack_conv(raw["conv1_w"], raw["conv1_b"],
                                           e_dim, _C1)
    p["conv2_w"], p["conv2_b"] = pack_conv(raw["conv2_w"], raw["conv2_b"],
                                           _C1, _C2)
    p["conv3_w"], p["conv3_b"] = pack_conv(raw["conv3_w"], raw["conv3_b"],
                                           _C2, _C3)
    # Fold the conv3 channel padding into mlp1's (zero) extra weight rows.
    p["mlp1_w"] = pad_to(raw["mlp1_w"], 0, _C3).astype(jnp.bfloat16)
    p["mlp1_b"] = raw["mlp1_b"].reshape(1, -1).astype(jnp.float32)
    p["mlp2_w"] = raw["mlp2_w"].astype(jnp.bfloat16)
    p["mlp2_b"] = raw["mlp2_b"].reshape(1, -1).astype(jnp.float32)
    p["mlp3_w"] = raw["mlp3_w"].astype(jnp.bfloat16)
    p["mlp3_b"] = raw["mlp3_b"].reshape(1, -1).astype(jnp.float32)
    p["out_w"] = pad_to(raw["out_w"], 1, _OUT_PAD).astype(jnp.bfloat16)
    p["out_b"] = pad_to(raw["out_b"], 0, _OUT_PAD).reshape(1, -1).astype(
        jnp.float32)
    return p


# -----------------------------------------------------------------------------
# Forward pass (dropout = identity in eval mode).
# -----------------------------------------------------------------------------
def cnn1d_without_gru_forward(params, token_ids):
    # Embedding lookup kept as glue; table is bf16 so the streamed activation
    # DMA into kernel 1 is half-width.
    x = jnp.take(params["embedding"], token_ids, axis=0)      # (B, L, E) bf16
    pooled = conv_stack_and_pool(x, params)                   # (B, 256) f32
    logits = mlp_head(pooled, params)                         # (B, 128) f32
    return logits[:, :N_CLASSES]                              # (B, 3)


# -----------------------------------------------------------------------------
# Pure-JAX reference (same bf16 weight/embedding rounding) for a sanity check.
# -----------------------------------------------------------------------------
def reference_forward(raw, token_ids):
    q = lambda w: w.astype(jnp.bfloat16).astype(jnp.float32)
    x = jnp.take(q(raw["embedding"]), token_ids, axis=0)

    def conv_silu(x, w, b):
        K = w.shape[0]
        pad = (K - 1) // 2
        L = x.shape[1]
        xp = jnp.pad(x, ((0, 0), (pad, pad), (0, 0)))
        acc = jnp.zeros(x.shape[:2] + (w.shape[2],), jnp.float32) + b
        for k in range(K):
            acc = acc + jnp.einsum("blc,cd->bld", xp[:, k:k + L, :], q(w[k]))
        return acc * jax.nn.sigmoid(acc)

    x = conv_silu(x, raw["conv1_w"], raw["conv1_b"])
    x = conv_silu(x, raw["conv2_w"], raw["conv2_b"])
    x = conv_silu(x, raw["conv3_w"], raw["conv3_b"])
    x = jnp.max(x, axis=1)

    def dense(x, w, b):
        return jnp.dot(x, q(w)) + b

    x = _silu(dense(x, raw["mlp1_w"], raw["mlp1_b"]))
    x = _silu(dense(x, raw["mlp2_w"], raw["mlp2_b"]))
    x = _silu(dense(x, raw["mlp3_w"], raw["mlp3_b"]))
    return jax.nn.sigmoid(dense(x, raw["out_w"], raw["out_b"]))


if __name__ == "__main__":
    key = jax.random.PRNGKey(0)
    k_param, k_data = jax.random.split(key)

    VOCAB = 100
    B, L = 2, 16

    raw = init_raw_params(k_param, VOCAB, embedding_dim=64)
    params = prepare_params(raw)
    token_ids = jax.random.randint(k_data, (B, L), 0, VOCAB, dtype=jnp.int32)

    out = jax.block_until_ready(
        jax.jit(cnn1d_without_gru_forward)(params, token_ids))

    assert out.shape == (B, 3), out.shape
    assert bool(jnp.all(jnp.isfinite(out)))

    ref = reference_forward(raw, token_ids)
    err = float(jnp.max(jnp.abs(out - ref)))
    assert err < 5e-2, f"mismatch vs reference: max abs err = {err}"

    print("KERNEL_OK")
</pallas_src>

<mosaic_0001>
module attributes {stable_mosaic.version = 11 : i64} {
  func.func @_mlp_head_kernel(%arg0: i32, %arg1: memref<2x256xf32, #tpu.memory_space<vmem>>, %arg2: memref<256x1024xbf16, #tpu.memory_space<vmem>>, %arg3: memref<1x1024xf32, #tpu.memory_space<vmem>>, %arg4: memref<1024x1024xbf16, #tpu.memory_space<vmem>>, %arg5: memref<1x1024xf32, #tpu.memory_space<vmem>>, %arg6: memref<1024x512xbf16, #tpu.memory_space<vmem>>, %arg7: memref<1x512xf32, #tpu.memory_space<vmem>>, %arg8: memref<512x128xbf16, #tpu.memory_space<vmem>>, %arg9: memref<1x128xf32, #tpu.memory_space<vmem>>, %arg10: memref<2x128xf32, #tpu.memory_space<vmem>>) attributes {dimension_semantics = [#tpu.dimension_semantics<parallel>], iteration_bounds = array<i64: 1>, scalar_prefetch = 0 : i64, scratch_operands = 0 : i64, tpu.core_type = #tpu.core_type<tc>, window_params = [{transform_indices = @transform_0, window_bounds = array<i64: 2, 256>}, {pipeline_mode = #tpu.pipeline_mode<synchronous>, transform_indices = @transform_1, window_bounds = array<i64: 256, 1024>}, {pipeline_mode = #tpu.pipeline_mode<synchronous>, transform_indices = @transform_2, window_bounds = array<i64: 1, 1024>}, {pipeline_mode = #tpu.pipeline_mode<synchronous>, transform_indices = @transform_3, window_bounds = array<i64: 1024, 1024>}, {pipeline_mode = #tpu.pipeline_mode<synchronous>, transform_indices = @transform_4, window_bounds = array<i64: 1, 1024>}, {pipeline_mode = #tpu.pipeline_mode<synchronous>, transform_indices = @transform_5, window_bounds = array<i64: 1024, 512>}, {pipeline_mode = #tpu.pipeline_mode<synchronous>, transform_indices = @transform_6, window_bounds = array<i64: 1, 512>}, {pipeline_mode = #tpu.pipeline_mode<synchronous>, transform_indices = @transform_7, window_bounds = array<i64: 512, 128>}, {pipeline_mode = #tpu.pipeline_mode<synchronous>, transform_indices = @transform_8, window_bounds = array<i64: 1, 128>}, {transform_indices = @transform_9, window_bounds = array<i64: 2, 128>}]} {
    %c0 = arith.constant 0 : index
    %c0_0 = arith.constant 0 : index
    %0 = vector.load %arg1[%c0, %c0_0] : memref<2x256xf32, #tpu.memory_space<vmem>>, vector<2x256xf32>
    %1 = arith.truncf %0 : vector<2x256xf32> to vector<2x256xbf16>
    %c0_1 = arith.constant 0 : index
    %c0_2 = arith.constant 0 : index
    %2 = vector.load %arg2[%c0_1, %c0_2] : memref<256x1024xbf16, #tpu.memory_space<vmem>>, vector<256x1024xbf16>
    %cst = arith.constant dense<0.000000e+00> : vector<2x1024xf32>
    %3 = tpu.matmul %1, %2, %cst {dimension_numbers = #tpu.dot_dimension_numbers<[1], [0], [0], [1], [0, 0, 1, 1], [], []>} : vector<2x256xbf16>, vector<256x1024xbf16>, vector<2x1024xf32> -> vector<2x1024xf32>
    %c0_3 = arith.constant 0 : index
    %c0_4 = arith.constant 0 : index
    %4 = vector.load %arg3[%c0_3, %c0_4] : memref<1x1024xf32, #tpu.memory_space<vmem>>, vector<1x1024xf32>
    %5 = vector.broadcast %4 : vector<1x1024xf32> to vector<2x1024xf32>
    %6 = arith.addf %3, %5 : vector<2x1024xf32>
    %7 = arith.negf %6 : vector<2x1024xf32>
    %8 = math.exp %7 : vector<2x1024xf32>
    %cst_5 = arith.constant 1.000000e+00 : f32
    %9 = vector.broadcast %cst_5 : f32 to vector<2x1024xf32>
    %10 = arith.addf %9, %8 : vector<2x1024xf32>
    %11 = arith.divf %9, %10 : vector<2x1024xf32>
    %12 = arith.mulf %6, %11 : vector<2x1024xf32>
    %13 = arith.truncf %12 : vector<2x1024xf32> to vector<2x1024xbf16>
    %c0_6 = arith.constant 0 : index
    %c0_7 = arith.constant 0 : index
    %14 = vector.load %arg4[%c0_6, %c0_7] : memref<1024x1024xbf16, #tpu.memory_space<vmem>>, vector<1024x1024xbf16>
    %cst_8 = arith.constant dense<0.000000e+00> : vector<2x1024xf32>
    %15 = tpu.matmul %13, %14, %cst_8 {dimension_numbers = #tpu.dot_dimension_numbers<[1], [0], [0], [1], [0, 0, 1, 1], [], []>} : vector<2x1024xbf16>, vector<1024x1024xbf16>, vector<2x1024xf32> -> vector<2x1024xf32>
    %c0_9 = arith.constant 0 : index
    %c0_10 = arith.constant 0 : index
    %16 = vector.load %arg5[%c0_9, %c0_10] : memref<1x1024xf32, #tpu.memory_space<vmem>>, vector<1x1024xf32>
    %17 = vector.broadcast %16 : vector<1x1024xf32> to vector<2x1024xf32>
    %18 = arith.addf %15, %17 : vector<2x1024xf32>
    %19 = arith.negf %18 : vector<2x1024xf32>
    %20 = math.exp %19 : vector<2x1024xf32>
    %cst_11 = arith.constant 1.000000e+00 : f32
    %21 = vector.broadcast %cst_11 : f32 to vector<2x1024xf32>
    %22 = arith.addf %21, %20 : vector<2x1024xf32>
    %23 = arith.divf %21, %22 : vector<2x1024xf32>
    %24 = arith.mulf %18, %23 : vector<2x1024xf32>
    %25 = arith.truncf %24 : vector<2x1024xf32> to vector<2x1024xbf16>
    %c0_12 = arith.constant 0 : index
    %c0_13 = arith.constant 0 : index
    %26 = vector.load %arg6[%c0_12, %c0_13] : memref<1024x512xbf16, #tpu.memory_space<vmem>>, vector<1024x512xbf16>
    %cst_14 = arith.constant dense<0.000000e+00> : vector<2x512xf32>
    %27 = tpu.matmul %25, %26, %cst_14 {dimension_numbers = #tpu.dot_dimension_numbers<[1], [0], [0], [1], [0, 0, 1, 1], [], []>} : vector<2x1024xbf16>, vector<1024x512xbf16>, vector<2x512xf32> -> vector<2x512xf32>
    %c0_15 = arith.constant 0 : index
    %c0_16 = arith.constant 0 : index
    %28 = vector.load %arg7[%c0_15, %c0_16] : memref<1x512xf32, #tpu.memory_space<vmem>>, vector<1x512xf32>
    %29 = vector.broadcast %28 : vector<1x512xf32> to vector<2x512xf32>
    %30 = arith.addf %27, %29 : vector<2x512xf32>
    %31 = arith.negf %30 : vector<2x512xf32>
    %32 = math.exp %31 : vector<2x512xf32>
    %cst_17 = arith.constant 1.000000e+00 : f32
    %33 = vector.broadcast %cst_17 : f32 to vector<2x512xf32>
    %34 = arith.addf %33, %32 : vector<2x512xf32>
    %35 = arith.divf %33, %34 : vector<2x512xf32>
    %36 = arith.mulf %30, %35 : vector<2x512xf32>
    %37 = arith.truncf %36 : vector<2x512xf32> to vector<2x512xbf16>
    %c0_18 = arith.constant 0 : index
    %c0_19 = arith.constant 0 : index
    %38 = vector.load %arg8[%c0_18, %c0_19] : memref<512x128xbf16, #tpu.memory_space<vmem>>, vector<512x128xbf16>
    %cst_20 = arith.constant dense<0.000000e+00> : vector<2x128xf32>
    %39 = tpu.matmul %37, %38, %cst_20 {dimension_numbers = #tpu.dot_dimension_numbers<[1], [0], [0], [1], [0, 0, 1, 1], [], []>} : vector<2x512xbf16>, vector<512x128xbf16>, vector<2x128xf32> -> vector<2x128xf32>
    %c0_21 = arith.constant 0 : index
    %c0_22 = arith.constant 0 : index
    %40 = vector.load %arg9[%c0_21, %c0_22] : memref<1x128xf32, #tpu.memory_space<vmem>>, vector<1x128xf32>
    %41 = vector.broadcast %40 : vector<1x128xf32> to vector<2x128xf32>
    %42 = arith.addf %39, %41 : vector<2x128xf32>
    %43 = arith.negf %42 : vector<2x128xf32>
    %44 = math.exp %43 : vector<2x128xf32>
    %cst_23 = arith.constant 1.000000e+00 : f32
    %45 = vector.broadcast %cst_23 : f32 to vector<2x128xf32>
    %46 = arith.addf %45, %44 : vector<2x128xf32>
    %47 = arith.divf %45, %46 : vector<2x128xf32>
    %c0_24 = arith.constant 0 : index
    %c0_25 = arith.constant 0 : index
    %48 = vector.load %arg10[%c0_24, %c0_25] : memref<2x128xf32, #tpu.memory_space<vmem>>, vector<2x128xf32>
    tpu.vector_store %arg10[%c0_24, %c0_25], %47 {strides = array<i32>} : memref<2x128xf32, #tpu.memory_space<vmem>>, vector<2x128xf32>,
    return
  }
  func.func @transform_0(%arg0: i32) -> (i32, i32) {
    %c0_i32 = arith.constant 0 : i32
    %c0_i32_0 = arith.constant 0 : i32
    return %arg0, %c0_i32 : i32, i32
  }
  func.func @transform_1(%arg0: i32) -> (i32, i32) {
    %c0_i32 = arith.constant 0 : i32
    %c0_i32_0 = arith.constant 0 : i32
    %c0_i32_1 = arith.constant 0 : i32
    return %c0_i32, %c0_i32_0 : i32, i32
  }
  func.func @transform_2(%arg0: i32) -> (i32, i32) {
    %c0_i32 = arith.constant 0 : i32
    %c0_i32_0 = arith.constant 0 : i32
    %c0_i32_1 = arith.constant 0 : i32
    return %c0_i32, %c0_i32_0 : i32, i32
  }
  func.func @transform_3(%arg0: i32) -> (i32, i32) {
    %c0_i32 = arith.constant 0 : i32
    %c0_i32_0 = arith.constant 0 : i32
    %c0_i32_1 = arith.constant 0 : i32
    return %c0_i32, %c0_i32_0 : i32, i32
  }
  func.func @transform_4(%arg0: i32) -> (i32, i32) {
    %c0_i32 = arith.constant 0 : i32
    %c0_i32_0 = arith.constant 0 : i32
    %c0_i32_1 = arith.constant 0 : i32
    return %c0_i32, %c0_i32_0 : i32, i32
  }
  func.func @transform_5(%arg0: i32) -> (i32, i32) {
    %c0_i32 = arith.constant 0 : i32
    %c0_i32_0 = arith.constant 0 : i32
    %c0_i32_1 = arith.constant 0 : i32
    return %c0_i32, %c0_i32_0 : i32, i32
  }
  func.func @transform_6(%arg0: i32) -> (i32, i32) {
    %c0_i32 = arith.constant 0 : i32
    %c0_i32_0 = arith.constant 0 : i32
    %c0_i32_1 = arith.constant 0 : i32
    return %c0_i32, %c0_i32_0 : i32, i32
  }
  func.func @transform_7(%arg0: i32) -> (i32, i32) {
    %c0_i32 = arith.constant 0 : i32
    %c0_i32_0 = arith.constant 0 : i32
    %c0_i32_1 = arith.constant 0 : i32
    return %c0_i32, %c0_i32_0 : i32, i32
  }
  func.func @transform_8(%arg0: i32) -> (i32, i32) {
    %c0_i32 = arith.constant 0 : i32
    %c0_i32_0 = arith.constant 0 : i32
    %c0_i32_1 = arith.constant 0 : i32
    return %c0_i32, %c0_i32_0 : i32, i32
  }
  func.func @transform_9(%arg0: i32) -> (i32, i32) {
    %c0_i32 = arith.constant 0 : i32
    %c0_i32_0 = arith.constant 0 : i32
    return %arg0, %c0_i32 : i32, i32
  }
}

module attributes {stable_mosaic.version = 11 : i64} {
  func.func @_conv_stack_pool_kernel(%arg0: i32, %arg1: memref<2x16x64xbf16, #tpu.memory_space<vmem>>, %arg2: memref<19x64x128xbf16, #tpu.memory_space<vmem>>, %arg3: memref<1x128xf32, #tpu.memory_space<vmem>>, %arg4: memref<9x128x128xbf16, #tpu.memory_space<vmem>>, %arg5: memref<1x128xf32, #tpu.memory_space<vmem>>, %arg6: memref<3x128x256xbf16, #tpu.memory_space<vmem>>, %arg7: memref<1x256xf32, #tpu.memory_space<vmem>>, %arg8: memref<2x256xf32, #tpu.memory_space<vmem>>, %arg9: memref<68x64xbf16, #tpu.memory_space<vmem>>, %arg10: memref<48x128xbf16, #tpu.memory_space<vmem>>, %arg11: memref<36x128xbf16, #tpu.memory_space<vmem>>) attributes {dimension_semantics = [#tpu.dimension_semantics<parallel>], iteration_bounds = array<i64: 1>, scalar_prefetch = 0 : i64, scratch_operands = 3 : i64, tpu.core_type = #tpu.core_type<tc>, window_params = [{transform_indices = @transform_0, window_bounds = array<i64: 2, 16, 64>}, {pipeline_mode = #tpu.pipeline_mode<synchronous>, transform_indices = @transform_1, window_bounds = array<i64: 19, 64, 128>}, {pipeline_mode = #tpu.pipeline_mode<synchronous>, transform_indices = @transform_2, window_bounds = array<i64: 1, 128>}, {pipeline_mode = #tpu.pipeline_mode<synchronous>, transform_indices = @transform_3, window_bounds = array<i64: 9, 128, 128>}, {pipeline_mode = #tpu.pipeline_mode<synchronous>, transform_indices = @transform_4, window_bounds = array<i64: 1, 128>}, {pipeline_mode = #tpu.pipeline_mode<synchronous>, transform_indices = @transform_5, window_bounds = array<i64: 3, 128, 256>}, {pipeline_mode = #tpu.pipeline_mode<synchronous>, transform_indices = @transform_6, window_bounds = array<i64: 1, 256>}, {transform_indices = @transform_7, window_bounds = array<i64: 2, 256>}]} {
    %cst = arith.constant 0.000000e+00 : bf16
    %0 = vector.broadcast %cst : bf16 to vector<9x64xbf16>
    %c0 = arith.constant 0 : index
    %c0_0 = arith.constant 0 : index
    %1 = vector.load %arg9[%c0, %c0_0] : memref<68x64xbf16, #tpu.memory_space<vmem>>, vector<9x64xbf16>
    tpu.vector_store %arg9[%c0, %c0_0], %0 {strides = array<i32>} : memref<68x64xbf16, #tpu.memory_space<vmem>>, vector<9x64xbf16>,
    %c59 = arith.constant 59 : index
    %c0_1 = arith.constant 0 : index
    %2 = vector.load %arg9[%c59, %c0_1] : memref<68x64xbf16, #tpu.memory_space<vmem>>, vector<9x64xbf16>
    tpu.vector_store %arg9[%c59, %c0_1], %0 {strides = array<i32>} : memref<68x64xbf16, #tpu.memory_space<vmem>>, vector<9x64xbf16>,
    %cst_2 = arith.constant 0.000000e+00 : bf16
    %3 = vector.broadcast %cst_2 : bf16 to vector<18x64xbf16>
    %c25 = arith.constant 25 : index
    %c0_3 = arith.constant 0 : index
    %4 = vector.load %arg9[%c25, %c0_3] : memref<68x64xbf16, #tpu.memory_space<vmem>>, vector<18x64xbf16>
    tpu.vector_store %arg9[%c25, %c0_3], %3 {strides = array<i32>} : memref<68x64xbf16, #tpu.memory_space<vmem>>, vector<18x64xbf16>,
    %cst_4 = arith.constant 0.000000e+00 : bf16
    %5 = vector.broadcast %cst_4 : bf16 to vector<4x128xbf16>
    %c0_5 = arith.constant 0 : index
    %c0_6 = arith.constant 0 : index
    %6 = vector.load %arg10[%c0_5, %c0_6] : memref<48x128xbf16, #tpu.memory_space<vmem>>, vector<4x128xbf16>
    tpu.vector_store %arg10[%c0_5, %c0_6], %5 {strides = array<i32>} : memref<48x128xbf16, #tpu.memory_space<vmem>>, vector<4x128xbf16>,
    %c44 = arith.constant 44 : index
    %c0_7 = arith.constant 0 : index
    %7 = vector.load %arg10[%c44, %c0_7] : memref<48x128xbf16, #tpu.memory_space<vmem>>, vector<4x128xbf16>
    tpu.vector_store %arg10[%c44, %c0_7], %5 {strides = array<i32>} : memref<48x128xbf16, #tpu.memory_space<vmem>>, vector<4x128xbf16>,
    %cst_8 = arith.constant 0.000000e+00 : bf16
    %8 = vector.broadcast %cst_8 : bf16 to vector<8x128xbf16>
    %c20 = arith.constant 20 : index
    %c0_9 = arith.constant 0 : index
    %9 = vector.load %arg10[%c20, %c0_9] : memref<48x128xbf16, #tpu.memory_space<vmem>>, vector<8x128xbf16>
    tpu.vector_store %arg10[%c20, %c0_9], %8 {strides = array<i32>} : memref<48x128xbf16, #tpu.memory_space<vmem>>, vector<8x128xbf16>,
    %cst_10 = arith.constant 0.000000e+00 : bf16
    %10 = vector.broadcast %cst_10 : bf16 to vector<1x128xbf16>
    %c0_11 = arith.constant 0 : index
    %c0_12 = arith.constant 0 : index
    %11 = vector.load %arg11[%c0_11, %c0_12] : memref<36x128xbf16, #tpu.memory_space<vmem>>, vector<1x128xbf16>
    tpu.vector_store %arg11[%c0_11, %c0_12], %10 {strides = array<i32>} : memref<36x128xbf16, #tpu.memory_space<vmem>>, vector<1x128xbf16>,
    %c35 = arith.constant 35 : index
    %c0_13 = arith.constant 0 : index
    %12 = vector.load %arg11[%c35, %c0_13] : memref<36x128xbf16, #tpu.memory_space<vmem>>, vector<1x128xbf16>
    tpu.vector_store %arg11[%c35, %c0_13], %10 {strides = array<i32>} : memref<36x128xbf16, #tpu.memory_space<vmem>>, vector<1x128xbf16>,
    %cst_14 = arith.constant 0.000000e+00 : bf16
    %13 = vector.broadcast %cst_14 : bf16 to vector<2x128xbf16>
    %c17 = arith.constant 17 : index
    %c0_15 = arith.constant 0 : index
    %14 = vector.load %arg11[%c17, %c0_15] : memref<36x128xbf16, #tpu.memory_space<vmem>>, vector<2x128xbf16>
    tpu.vector_store %arg11[%c17, %c0_15], %13 {strides = array<i32>} : memref<36x128xbf16, #tpu.memory_space<vmem>>, vector<2x128xbf16>,
    %c0_16 = arith.constant 0 : index
    %c0_17 = arith.constant 0 : index
    %c0_18 = arith.constant 0 : index
    %15 = vector.load %arg1[%c0_16, %c0_17, %c0_18] : memref<2x16x64xbf16, #tpu.memory_space<vmem>>, vector<1x16x64xbf16>
    %16 = vector.shape_cast %15 : vector<1x16x64xbf16> to vector<16x64xbf16>
    %c9 = arith.constant 9 : index
    %c0_19 = arith.constant 0 : index
    %17 = vector.load %arg9[%c9, %c0_19] : memref<68x64xbf16, #tpu.memory_space<vmem>>, vector<16x64xbf16>
    tpu.vector_store %arg9[%c9, %c0_19], %16 {strides = array<i32>} : memref<68x64xbf16, #tpu.memory_space<vmem>>, vector<16x64xbf16>,
    %c1 = arith.constant 1 : index
    %c0_20 = arith.constant 0 : index
    %c0_21 = arith.constant 0 : index
    %18 = vector.load %arg1[%c1, %c0_20, %c0_21] : memref<2x16x64xbf16, #tpu.memory_space<vmem>>, vector<1x16x64xbf16>
    %19 = vector.shape_cast %18 : vector<1x16x64xbf16> to vector<16x64xbf16>
    %c43 = arith.constant 43 : index
    %c0_22 = arith.constant 0 : index
    %20 = vector.load %arg9[%c43, %c0_22] : memref<68x64xbf16, #tpu.memory_space<vmem>>, vector<16x64xbf16>
    tpu.vector_store %arg9[%c43, %c0_22], %19 {strides = array<i32>} : memref<68x64xbf16, #tpu.memory_space<vmem>>, vector<16x64xbf16>,
    %c0_23 = arith.constant 0 : index
    %c0_24 = arith.constant 0 : index
    %21 = vector.load %arg9[%c0_23, %c0_24] : memref<68x64xbf16, #tpu.memory_space<vmem>>, vector<50x64xbf16>
    %c0_25 = arith.constant 0 : index
    %c0_26 = arith.constant 0 : index
    %c0_27 = arith.constant 0 : index
    %22 = vector.load %arg2[%c0_25, %c0_26, %c0_27] : memref<19x64x128xbf16, #tpu.memory_space<vmem>>, vector<1x64x128xbf16>
    %23 = vector.shape_cast %22 : vector<1x64x128xbf16> to vector<64x128xbf16>
    %cst_28 = arith.constant dense<0.000000e+00> : vector<50x128xf32>
    %24 = tpu.matmul %21, %23, %cst_28 {dimension_numbers = #tpu.dot_dimension_numbers<[1], [0], [0], [1], [0, 0, 1, 1], [], []>} : vector<50x64xbf16>, vector<64x128xbf16>, vector<50x128xf32> -> vector<50x128xf32>
    %c1_29 = arith.constant 1 : index
    %c0_30 = arith.constant 0 : index
    %25 = vector.load %arg9[%c1_29, %c0_30] : memref<68x64xbf16, #tpu.memory_space<vmem>>, vector<50x64xbf16>
    %c1_31 = arith.constant 1 : index
    %c0_32 = arith.constant 0 : index
    %c0_33 = arith.constant 0 : index
    %26 = vector.load %arg2[%c1_31, %c0_32, %c0_33] : memref<19x64x128xbf16, #tpu.memory_space<vmem>>, vector<1x64x128xbf16>
    %27 = vector.shape_cast %26 : vector<1x64x128xbf16> to vector<64x128xbf16>
    %cst_34 = arith.constant dense<0.000000e+00> : vector<50x128xf32>
    %28 = tpu.matmul %25, %27, %cst_34 {dimension_numbers = #tpu.dot_dimension_numbers<[1], [0], [0], [1], [0, 0, 1, 1], [], []>} : vector<50x64xbf16>, vector<64x128xbf16>, vector<50x128xf32> -> vector<50x128xf32>
    %29 = arith.addf %24, %28 : vector<50x128xf32>
    %c2 = arith.constant 2 : index
    %c0_35 = arith.constant 0 : index
    %30 = vector.load %arg9[%c2, %c0_35] : memref<68x64xbf16, #tpu.memory_space<vmem>>, vector<50x64xbf16>
    %c2_36 = arith.constant 2 : index
    %c0_37 = arith.constant 0 : index
    %c0_38 = arith.constant 0 : index
    %31 = vector.load %arg2[%c2_36, %c0_37, %c0_38] : memref<19x64x128xbf16, #tpu.memory_space<vmem>>, vector<1x64x128xbf16>
    %32 = vector.shape_cast %31 : vector<1x64x128xbf16> to vector<64x128xbf16>
    %cst_39 = arith.constant dense<0.000000e+00> : vector<50x128xf32>
    %33 = tpu.matmul %30, %32, %cst_39 {dimension_numbers = #tpu.dot_dimension_numbers<[1], [0], [0], [1], [0, 0, 1, 1], [], []>} : vector<50x64xbf16>, vector<64x128xbf16>, vector<50x128xf32> -> vector<50x128xf32>
    %34 = arith.addf %29, %33 : vector<50x128xf32>
    %c3 = arith.constant 3 : index
    %c0_40 = arith.constant 0 : index
    %35 = vector.load %arg9[%c3, %c0_40] : memref<68x64xbf16, #tpu.memory_space<vmem>>, vector<50x64xbf16>
    %c3_41 = arith.constant 3 : index
    %c0_42 = arith.constant 0 : index
    %c0_43 = arith.constant 0 : index
    %36 = vector.load %arg2[%c3_41, %c0_42, %c0_43] : memref<19x64x128xbf16, #tpu.memory_space<vmem>>, vector<1x64x128xbf16>
    %37 = vector.shape_cast %36 : vector<1x64x128xbf16> to vector<64x128xbf16>
    %cst_44 = arith.constant dense<0.000000e+00> : vector<50x128xf32>
    %38 = tpu.matmul %35, %37, %cst_44 {dimension_numbers = #tpu.dot_dimension_numbers<[1], [0], [0], [1], [0, 0, 1, 1], [], []>} : vector<50x64xbf16>, vector<64x128xbf16>, vector<50x128xf32> -> vector<50x128xf32>
    %39 = arith.addf %34, %38 : vector<50x128xf32>
    %c4 = arith.constant 4 : index
    %c0_45 = arith.constant 0 : index
    %40 = vector.load %arg9[%c4, %c0_45] : memref<68x64xbf16, #tpu.memory_space<vmem>>, vector<50x64xbf16>
    %c4_46 = arith.constant 4 : index
    %c0_47 = arith.constant 0 : index
    %c0_48 = arith.constant 0 : index
    %41 = vector.load %arg2[%c4_46, %c0_47, %c0_48] : memref<19x64x128xbf16, #tpu.memory_space<vmem>>, vector<1x64x128xbf16>
    %42 = vector.shape_cast %41 : vector<1x64x128xbf16> to vector<64x128xbf16>
    %cst_49 = arith.constant dense<0.000000e+00> : vector<50x128xf32>
    %43 = tpu.matmul %40, %42, %cst_49 {dimension_numbers = #tpu.dot_dimension_numbers<[1], [0], [0], [1], [0, 0, 1, 1], [], []>} : vector<50x64xbf16>, vector<64x128xbf16>, vector<50x128xf32> -> vector<50x128xf32>
    %44 = arith.addf %39, %43 : vector<50x128xf32>
    %c5 = arith.constant 5 : index
    %c0_50 = arith.constant 0 : index
    %45 = vector.load %arg9[%c5, %c0_50] : memref<68x64xbf16, #tpu.memory_space<vmem>>, vector<50x64xbf16>
    %c5_51 = arith.constant 5 : index
    %c0_52 = arith.constant 0 : index
    %c0_53 = arith.constant 0 : index
    %46 = vector.load %arg2[%c5_51, %c0_52, %c0_53] : memref<19x64x128xbf16, #tpu.memory_space<vmem>>, vector<1x64x128xbf16>
    %47 = vector.shape_cast %46 : vector<1x64x128xbf16> to vector<64x128xbf16>
    %cst_54 = arith.constant dense<0.000000e+00> : vector<50x128xf32>
    %48 = tpu.matmul %45, %47, %cst_54 {dimension_numbers = #tpu.dot_dimension_numbers<[1], [0], [0], [1], [0, 0, 1, 1], [], []>} : vector<50x64xbf16>, vector<64x128xbf16>, vector<50x128xf32> -> vector<50x128xf32>
    %49 = arith.addf %44, %48 : vector<50x128xf32>
    %c6 = arith.constant 6 : index
    %c0_55 = arith.constant 0 : index
    %50 = vector.load %arg9[%c6, %c0_55] : memref<68x64xbf16, #tpu.memory_space<vmem>>, vector<50x64xbf16>
    %c6_56 = arith.constant 6 : index
    %c0_57 = arith.constant 0 : index
    %c0_58 = arith.constant 0 : index
    %51 = vector.load %arg2[%c6_56, %c0_57, %c0_58] : memref<19x64x128xbf16, #tpu.memory_space<vmem>>, vector<1x64x128xbf16>
    %52 = vector.shape_cast %51 : vector<1x64x128xbf16> to vector<64x128xbf16>
    %cst_59 = arith.constant dense<0.000000e+00> : vector<50x128xf32>
    %53 = tpu.matmul %50, %52, %cst_59 {dimension_numbers = #tpu.dot_dimension_numbers<[1], [0], [0], [1], [0, 0, 1, 1], [], []>} : vector<50x64xbf16>, vector<64x128xbf16>, vector<50x128xf32> -> vector<50x128xf32>
    %54 = arith.addf %49, %53 : vector<50x128xf32>
    %c7 = arith.constant 7 : index
    %c0_60 = arith.constant 0 : index
    %55 = vector.load %arg9[%c7, %c0_60] : memref<68x64xbf16, #tpu.memory_space<vmem>>, vector<50x64xbf16>
    %c7_61 = arith.constant 7 : index
    %c0_62 = arith.constant 0 : index
    %c0_63 = arith.constant 0 : index
    %56 = vector.load %arg2[%c7_61, %c0_62, %c0_63] : memref<19x64x128xbf16, #tpu.memory_space<vmem>>, vector<1x64x128xbf16>
    %57 = vector.shape_cast %56 : vector<1x64x128xbf16> to vector<64x128xbf16>
    %cst_64 = arith.constant dense<0.000000e+00> : vector<50x128xf32>
    %58 = tpu.matmul %55, %57, %cst_64 {dimension_numbers = #tpu.dot_dimension_numbers<[1], [0], [0], [1], [0, 0, 1, 1], [], []>} : vector<50x64xbf16>, vector<64x128xbf16>, vector<50x128xf32> -> vector<50x128xf32>
    %59 = arith.addf %54, %58 : vector<50x128xf32>
    %c8 = arith.constant 8 : index
    %c0_65 = arith.constant 0 : index
    %60 = vector.load %arg9[%c8, %c0_65] : memref<68x64xbf16, #tpu.memory_space<vmem>>, vector<50x64xbf16>
    %c8_66 = arith.constant 8 : index
    %c0_67 = arith.constant 0 : index
    %c0_68 = arith.constant 0 : index
    %61 = vector.load %arg2[%c8_66, %c0_67, %c0_68] : memref<19x64x128xbf16, #tpu.memory_space<vmem>>, vector<1x64x128xbf16>
    %62 = vector.shape_cast %61 : vector<1x64x128xbf16> to vector<64x128xbf16>
    %cst_69 = arith.constant dense<0.000000e+00> : vector<50x128xf32>
    %63 = tpu.matmul %60, %62, %cst_69 {dimension_numbers = #tpu.dot_dimension_numbers<[1], [0], [0], [1], [0, 0, 1, 1], [], []>} : vector<50x64xbf16>, vector<64x128xbf16>, vector<50x128xf32> -> vector<50x128xf32>
    %64 = arith.addf %59, %63 : vector<50x128xf32>
    %c9_70 = arith.constant 9 : index
    %c0_71 = arith.constant 0 : index
    %65 = vector.load %arg9[%c9_70, %c0_71] : memref<68x64xbf16, #tpu.memory_space<vmem>>, vector<50x64xbf16>
    %c9_72 = arith.constant 9 : index
    %c0_73 = arith.constant 0 : index
    %c0_74 = arith.constant 0 : index
    %66 = vector.load %arg2[%c9_72, %c0_73, %c0_74] : memref<19x64x128xbf16, #tpu.memory_space<vmem>>, vector<1x64x128xbf16>
    %67 = vector.shape_cast %66 : vector<1x64x128xbf16> to vector<64x128xbf16>
    %cst_75 = arith.constant dense<0.000000e+00> : vector<50x128xf32>
    %68 = tpu.matmul %65, %67, %cst_75 {dimension_numbers = #tpu.dot_dimension_numbers<[1], [0], [0], [1], [0, 0, 1, 1], [], []>} : vector<50x64xbf16>, vector<64x128xbf16>, vector<50x128xf32> -> vector<50x128xf32>
    %69 = arith.addf %64, %68 : vector<50x128xf32>
    %c10 = arith.constant 10 : index
    %c0_76 = arith.constant 0 : index
    %70 = vector.load %arg9[%c10, %c0_76] : memref<68x64xbf16, #tpu.memory_space<vmem>>, vector<50x64xbf16>
    %c10_77 = arith.constant 10 : index
    %c0_78 = arith.constant 0 : index
    %c0_79 = arith.constant 0 : index
    %71 = vector.load %arg2[%c10_77, %c0_78, %c0_79] : memref<19x64x128xbf16, #tpu.memory_space<vmem>>, vector<1x64x128xbf16>
    %72 = vector.shape_cast %71 : vector<1x64x128xbf16> to vector<64x128xbf16>
    %cst_80 = arith.constant dense<0.000000e+00> : vector<50x128xf32>
    %73 = tpu.matmul %70, %72, %cst_80 {dimension_numbers = #tpu.dot_dimension_numbers<[1], [0], [0], [1], [0, 0, 1, 1], [], []>} : vector<50x64xbf16>, vector<64x128xbf16>, vector<50x128xf32> -> vector<50x128xf32>
    %74 = arith.addf %69, %73 : vector<50x128xf32>
    %c11 = arith.constant 11 : index
    %c0_81 = arith.constant 0 : index
    %75 = vector.load %arg9[%c11, %c0_81] : memref<68x64xbf16, #tpu.memory_space<vmem>>, vector<50x64xbf16>
    %c11_82 = arith.constant 11 : index
    %c0_83 = arith.constant 0 : index
    %c0_84 = arith.constant 0 : index
    %76 = vector.load %arg2[%c11_82, %c0_83, %c0_84] : memref<19x64x128xbf16, #tpu.memory_space<vmem>>, vector<1x64x128xbf16>
    %77 = vector.shape_cast %76 : vector<1x64x128xbf16> to vector<64x128xbf16>
    %cst_85 = arith.constant dense<0.000000e+00> : vector<50x128xf32>
    %78 = tpu.matmul %75, %77, %cst_85 {dimension_numbers = #tpu.dot_dimension_numbers<[1], [0], [0], [1], [0, 0, 1, 1], [], []>} : vector<50x64xbf16>, vector<64x128xbf16>, vector<50x128xf32> -> vector<50x128xf32>
    %79 = arith.addf %74, %78 : vector<50x128xf32>
    %c12 = arith.constant 12 : index
    %c0_86 = arith.constant 0 : index
    %80 = vector.load %arg9[%c12, %c0_86] : memref<68x64xbf16, #tpu.memory_space<vmem>>, vector<50x64xbf16>
    %c12_87 = arith.constant 12 : index
    %c0_88 = arith.constant 0 : index
    %c0_89 = arith.constant 0 : index
    %81 = vector.load %arg2[%c12_87, %c0_88, %c0_89] : memref<19x64x128xbf16, #tpu.memory_space<vmem>>, vector<1x64x128xbf16>
    %82 = vector.shape_cast %81 : vector<1x64x128xbf16> to vector<64x128xbf16>
    %cst_90 = arith.constant dense<0.000000e+00> : vector<50x128xf32>
    %83 = tpu.matmul %80, %82, %cst_90 {dimension_numbers = #tpu.dot_dimension_numbers<[1], [0], [0], [1], [0, 0, 1, 1], [], []>} : vector<50x64xbf16>, vector<64x128xbf16>, vector<50x128xf32> -> vector<50x128xf32>
    %84 = arith.addf %79, %83 : vector<50x128xf32>
    %c13 = arith.constant 13 : index
    %c0_91 = arith.constant 0 : index
    %85 = vector.load %arg9[%c13, %c0_91] : memref<68x64xbf16, #tpu.memory_space<vmem>>, vector<50x64xbf16>
    %c13_92 = arith.constant 13 : index
    %c0_93 = arith.constant 0 : index
    %c0_94 = arith.constant 0 : index
    %86 = vector.load %arg2[%c13_92, %c0_93, %c0_94] : memref<19x64x128xbf16, #tpu.memory_space<vmem>>, vector<1x64x128xbf16>
    %87 = vector.shape_cast %86 : vector<1x64x128xbf16> to vector<64x128xbf16>
    %cst_95 = arith.constant dense<0.000000e+00> : vector<50x128xf32>
    %88 = tpu.matmul %85, %87, %cst_95 {dimension_numbers = #tpu.dot_dimension_numbers<[1], [0], [0], [1], [0, 0, 1, 1], [], []>} : vector<50x64xbf16>, vector<64x128xbf16>, vector<50x128xf32> -> vector<50x128xf32>
    %89 = arith.addf %84, %88 : vector<50x128xf32>
    %c14 = arith.constant 14 : index
    %c0_96 = arith.constant 0 : index
    %90 = vector.load %arg9[%c14, %c0_96] : memref<68x64xbf16, #tpu.memory_space<vmem>>, vector<50x64xbf16>
    %c14_97 = arith.constant 14 : index
    %c0_98 = arith.constant 0 : index
    %c0_99 = arith.constant 0 : index
    %91 = vector.load %arg2[%c14_97, %c0_98, %c0_99] : memref<19x64x128xbf16, #tpu.memory_space<vmem>>, vector<1x64x128xbf16>
    %92 = vector.shape_cast %91 : vector<1x64x128xbf16> to vector<64x128xbf16>
    %cst_100 = arith.constant dense<0.000000e+00> : vector<50x128xf32>
    %93 = tpu.matmul %90, %92, %cst_100 {dimension_numbers = #tpu.dot_dimension_numbers<[1], [0], [0], [1], [0, 0, 1, 1], [], []>} : vector<50x64xbf16>, vector<64x128xbf16>, vector<50x128xf32> -> vector<50x128xf32>
    %94 = arith.addf %89, %93 : vector<50x128xf32>
    %c15 = arith.constant 15 : index
    %c0_101 = arith.constant 0 : index
    %95 = vector.load %arg9[%c15, %c0_101] : memref<68x64xbf16, #tpu.memory_space<vmem>>, vector<50x64xbf16>
    %c15_102 = arith.constant 15 : index
    %c0_103 = arith.constant 0 : index
    %c0_104 = arith.constant 0 : index
    %96 = vector.load %arg2[%c15_102, %c0_103, %c0_104] : memref<19x64x128xbf16, #tpu.memory_space<vmem>>, vector<1x64x128xbf16>
    %97 = vector.shape_cast %96 : vector<1x64x128xbf16> to vector<64x128xbf16>
    %cst_105 = arith.constant dense<0.000000e+00> : vector<50x128xf32>
    %98 = tpu.matmul %95, %97, %cst_105 {dimension_numbers = #tpu.dot_dimension_numbers<[1], [0], [0], [1], [0, 0, 1, 1], [], []>} : vector<50x64xbf16>, vector<64x128xbf16>, vector<50x128xf32> -> vector<50x128xf32>
    %99 = arith.addf %94, %98 : vector<50x128xf32>
    %c16 = arith.constant 16 : index
    %c0_106 = arith.constant 0 : index
    %100 = vector.load %arg9[%c16, %c0_106] : memref<68x64xbf16, #tpu.memory_space<vmem>>, vector<50x64xbf16>
    %c16_107 = arith.constant 16 : index
    %c0_108 = arith.constant 0 : index
    %c0_109 = arith.constant 0 : index
    %101 = vector.load %arg2[%c16_107, %c0_108, %c0_109] : memref<19x64x128xbf16, #tpu.memory_space<vmem>>, vector<1x64x128xbf16>
    %102 = vector.shape_cast %101 : vector<1x64x128xbf16> to vector<64x128xbf16>
    %cst_110 = arith.constant dense<0.000000e+00> : vector<50x128xf32>
    %103 = tpu.matmul %100, %102, %cst_110 {dimension_numbers = #tpu.dot_dimension_numbers<[1], [0], [0], [1], [0, 0, 1, 1], [], []>} : vector<50x64xbf16>, vector<64x128xbf16>, vector<50x128xf32> -> vector<50x128xf32>
    %104 = arith.addf %99, %103 : vector<50x128xf32>
    %c17_111 = arith.constant 17 : index
    %c0_112 = arith.constant 0 : index
    %105 = vector.load %arg9[%c17_111, %c0_112] : memref<68x64xbf16, #tpu.memory_space<vmem>>, vector<50x64xbf16>
    %c17_113 = arith.constant 17 : index
    %c0_114 = arith.constant 0 : index
    %c0_115 = arith.constant 0 : index
    %106 = vector.load %arg2[%c17_113, %c0_114, %c0_115] : memref<19x64x128xbf16, #tpu.memory_space<vmem>>, vector<1x64x128xbf16>
    %107 = vector.shape_cast %106 : vector<1x64x128xbf16> to vector<64x128xbf16>
    %cst_116 = arith.constant dense<0.000000e+00> : vector<50x128xf32>
    %108 = tpu.matmul %105, %107, %cst_116 {dimension_numbers = #tpu.dot_dimension_numbers<[1], [0], [0], [1], [0, 0, 1, 1], [], []>} : vector<50x64xbf16>, vector<64x128xbf16>, vector<50x128xf32> -> vector<50x128xf32>
    %109 = arith.addf %104, %108 : vector<50x128xf32>
    %c18 = arith.constant 18 : index
    %c0_117 = arith.constant 0 : index
    %110 = vector.load %arg9[%c18, %c0_117] : memref<68x64xbf16, #tpu.memory_space<vmem>>, vector<50x64xbf16>
    %c18_118 = arith.constant 18 : index
    %c0_119 = arith.constant 0 : index
    %c0_120 = arith.constant 0 : index
    %111 = vector.load %arg2[%c18_118, %c0_119, %c0_120] : memref<19x64x128xbf16, #tpu.memory_space<vmem>>, vector<1x64x128xbf16>
    %112 = vector.shape_cast %111 : vector<1x64x128xbf16> to vector<64x128xbf16>
    %cst_121 = arith.constant dense<0.000000e+00> : vector<50x128xf32>
    %113 = tpu.matmul %110, %112, %cst_121 {dimension_numbers = #tpu.dot_dimension_numbers<[1], [0], [0], [1], [0, 0, 1, 1], [], []>} : vector<50x64xbf16>, vector<64x128xbf16>, vector<50x128xf32> -> vector<50x128xf32>
    %114 = arith.addf %109, %113 : vector<50x128xf32>
    %c0_122 = arith.constant 0 : index
    %c0_123 = arith.constant 0 : index
    %115 = vector.load %arg3[%c0_122, %c0_123] : memref<1x128xf32, #tpu.memory_space<vmem>>, vector<1x128xf32>
    %116 = vector.broadcast %115 : vector<1x128xf32> to vector<50x128xf32>
    %117 = arith.addf %114, %116 : vector<50x128xf32>
    %118 = arith.negf %117 : vector<50x128xf32>
    %119 = math.exp %118 : vector<50x128xf32>
    %cst_124 = arith.constant 1.000000e+00 : f32
    %120 = vector.broadcast %cst_124 : f32 to vector<50x128xf32>
    %121 = arith.addf %120, %119 : vector<50x128xf32>
    %122 = arith.divf %120, %121 : vector<50x128xf32>
    %123 = arith.mulf %117, %122 : vector<50x128xf32>
    %124 = vector.extract_strided_slice %123 {offsets = [0, 0], sizes = [16, 128], strides = [1, 1]} : vector<50x128xf32> to vector<16x128xf32>
    %125 = arith.truncf %124 : vector<16x128xf32> to vector<16x128xbf16>
    %c4_125 = arith.constant 4 : index
    %c0_126 = arith.constant 0 : index
    %126 = vector.load %arg10[%c4_125, %c0_126] : memref<48x128xbf16, #tpu.memory_space<vmem>>, vector<16x128xbf16>
    tpu.vector_store %arg10[%c4_125, %c0_126], %125 {strides = array<i32>} : memref<48x128xbf16, #tpu.memory_space<vmem>>, vector<16x128xbf16>,
    %127 = vector.extract_strided_slice %123 {offsets = [34, 0], sizes = [16, 128], strides = [1, 1]} : vector<50x128xf32> to vector<16x128xf32>
    %128 = arith.truncf %127 : vector<16x128xf32> to vector<16x128xbf16>
    %c28 = arith.constant 28 : index
    %c0_127 = arith.constant 0 : index
    %129 = vector.load %arg10[%c28, %c0_127] : memref<48x128xbf16, #tpu.memory_space<vmem>>, vector<16x128xbf16>
    tpu.vector_store %arg10[%c28, %c0_127], %128 {strides = array<i32>} : memref<48x128xbf16, #tpu.memory_space<vmem>>, vector<16x128xbf16>,
    %c0_128 = arith.constant 0 : index
    %c0_129 = arith.constant 0 : index
    %130 = vector.load %arg10[%c0_128, %c0_129] : memref<48x128xbf16, #tpu.memory_space<vmem>>, vector<40x128xbf16>
    %c0_130 = arith.constant 0 : index
    %c0_131 = arith.constant 0 : index
    %c0_132 = arith.constant 0 : index
    %131 = vector.load %arg4[%c0_130, %c0_131, %c0_132] : memref<9x128x128xbf16, #tpu.memory_space<vmem>>, vector<1x128x128xbf16>
    %132 = vector.shape_cast %131 : vector<1x128x128xbf16> to vector<128x128xbf16>
    %cst_133 = arith.constant dense<0.000000e+00> : vector<40x128xf32>
    %133 = tpu.matmul %130, %132, %cst_133 {dimension_numbers = #tpu.dot_dimension_numbers<[1], [0], [0], [1], [0, 0, 1, 1], [], []>} : vector<40x128xbf16>, vector<128x128xbf16>, vector<40x128xf32> -> vector<40x128xf32>
    %c1_134 = arith.constant 1 : index
    %c0_135 = arith.constant 0 : index
    %134 = vector.load %arg10[%c1_134, %c0_135] : memref<48x128xbf16, #tpu.memory_space<vmem>>, vector<40x128xbf16>
    %c1_136 = arith.constant 1 : index
    %c0_137 = arith.constant 0 : index
    %c0_138 = arith.constant 0 : index
    %135 = vector.load %arg4[%c1_136, %c0_137, %c0_138] : memref<9x128x128xbf16, #tpu.memory_space<vmem>>, vector<1x128x128xbf16>
    %136 = vector.shape_cast %135 : vector<1x128x128xbf16> to vector<128x128xbf16>
    %cst_139 = arith.constant dense<0.000000e+00> : vector<40x128xf32>
    %137 = tpu.matmul %134, %136, %cst_139 {dimension_numbers = #tpu.dot_dimension_numbers<[1], [0], [0], [1], [0, 0, 1, 1], [], []>} : vector<40x128xbf16>, vector<128x128xbf16>, vector<40x128xf32> -> vector<40x128xf32>
    %138 = arith.addf %133, %137 : vector<40x128xf32>
    %c2_140 = arith.constant 2 : index
    %c0_141 = arith.constant 0 : index
    %139 = vector.load %arg10[%c2_140, %c0_141] : memref<48x128xbf16, #tpu.memory_space<vmem>>, vector<40x128xbf16>
    %c2_142 = arith.constant 2 : index
    %c0_143 = arith.constant 0 : index
    %c0_144 = arith.constant 0 : index
    %140 = vector.load %arg4[%c2_142, %c0_143, %c0_144] : memref<9x128x128xbf16, #tpu.memory_space<vmem>>, vector<1x128x128xbf16>
    %141 = vector.shape_cast %140 : vector<1x128x128xbf16> to vector<128x128xbf16>
    %cst_145 = arith.constant dense<0.000000e+00> : vector<40x128xf32>
    %142 = tpu.matmul %139, %141, %cst_145 {dimension_numbers = #tpu.dot_dimension_numbers<[1], [0], [0], [1], [0, 0, 1, 1], [], []>} : vector<40x128xbf16>, vector<128x128xbf16>, vector<40x128xf32> -> vector<40x128xf32>
    %143 = arith.addf %138, %142 : vector<40x128xf32>
    %c3_146 = arith.constant 3 : index
    %c0_147 = arith.constant 0 : index
    %144 = vector.load %arg10[%c3_146, %c0_147] : memref<48x128xbf16, #tpu.memory_space<vmem>>, vector<40x128xbf16>
    %c3_148 = arith.constant 3 : index
    %c0_149 = arith.constant 0 : index
    %c0_150 = arith.constant 0 : index
    %145 = vector.load %arg4[%c3_148, %c0_149, %c0_150] : memref<9x128x128xbf16, #tpu.memory_space<vmem>>, vector<1x128x128xbf16>
    %146 = vector.shape_cast %145 : vector<1x128x128xbf16> to vector<128x128xbf16>
    %cst_151 = arith.constant dense<0.000000e+00> : vector<40x128xf32>
    %147 = tpu.matmul %144, %146, %cst_151 {dimension_numbers = #tpu.dot_dimension_numbers<[1], [0], [0], [1], [0, 0, 1, 1], [], []>} : vector<40x128xbf16>, vector<128x128xbf16>, vector<40x128xf32> -> vector<40x128xf32>
    %148 = arith.addf %143, %147 : vector<40x128xf32>
    %c4_152 = arith.constant 4 : index
    %c0_153 = arith.constant 0 : index
    %149 = vector.load %arg10[%c4_152, %c0_153] : memref<48x128xbf16, #tpu.memory_space<vmem>>, vector<40x128xbf16>
    %c4_154 = arith.constant 4 : index
    %c0_155 = arith.constant 0 : index
    %c0_156 = arith.constant 0 : index
    %150 = vector.load %arg4[%c4_154, %c0_155, %c0_156] : memref<9x128x128xbf16, #tpu.memory_space<vmem>>, vector<1x128x128xbf16>
    %151 = vector.shape_cast %150 : vector<1x128x128xbf16> to vector<128x128xbf16>
    %cst_157 = arith.constant dense<0.000000e+00> : vector<40x128xf32>
    %152 = tpu.matmul %149, %151, %cst_157 {dimension_numbers = #tpu.dot_dimension_numbers<[1], [0], [0], [1], [0, 0, 1, 1], [], []>} : vector<40x128xbf16>, vector<128x128xbf16>, vector<40x128xf32> -> vector<40x128xf32>
    %153 = arith.addf %148, %152 : vector<40x128xf32>
    %c5_158 = arith.constant 5 : index
    %c0_159 = arith.constant 0 : index
    %154 = vector.load %arg10[%c5_158, %c0_159] : memref<48x128xbf16, #tpu.memory_space<vmem>>, vector<40x128xbf16>
    %c5_160 = arith.constant 5 : index
    %c0_161 = arith.constant 0 : index
    %c0_162 = arith.constant 0 : index
    %155 = vector.load %arg4[%c5_160, %c0_161, %c0_162] : memref<9x128x128xbf16, #tpu.memory_space<vmem>>, vector<1x128x128xbf16>
    %156 = vector.shape_cast %155 : vector<1x128x128xbf16> to vector<128x128xbf16>
    %cst_163 = arith.constant dense<0.000000e+00> : vector<40x128xf32>
    %157 = tpu.matmul %154, %156, %cst_163 {dimension_numbers = #tpu.dot_dimension_numbers<[1], [0], [0], [1], [0, 0, 1, 1], [], []>} : vector<40x128xbf16>, vector<128x128xbf16>, vector<40x128xf32> -> vector<40x128xf32>
    %158 = arith.addf %153, %157 : vector<40x128xf32>
    %c6_164 = arith.constant 6 : index
    %c0_165 = arith.constant 0 : index
    %159 = vector.load %arg10[%c6_164, %c0_165] : memref<48x128xbf16, #tpu.memory_space<vmem>>, vector<40x128xbf16>
    %c6_166 = arith.constant 6 : index
    %c0_167 = arith.constant 0 : index
    %c0_168 = arith.constant 0 : index
    %160 = vector.load %arg4[%c6_166, %c0_167, %c0_168] : memref<9x128x128xbf16, #tpu.memory_space<vmem>>, vector<1x128x128xbf16>
    %161 = vector.shape_cast %160 : vector<1x128x128xbf16> to vector<128x128xbf16>
    %cst_169 = arith.constant dense<0.000000e+00> : vector<40x128xf32>
    %162 = tpu.matmul %159, %161, %cst_169 {dimension_numbers = #tpu.dot_dimension_numbers<[1], [0], [0], [1], [0, 0, 1, 1], [], []>} : vector<40x128xbf16>, vector<128x128xbf16>, vector<40x128xf32> -> vector<40x128xf32>
    %163 = arith.addf %158, %162 : vector<40x128xf32>
    %c7_170 = arith.constant 7 : index
    %c0_171 = arith.constant 0 : index
    %164 = vector.load %arg10[%c7_170, %c0_171] : memref<48x128xbf16, #tpu.memory_space<vmem>>, vector<40x128xbf16>
    %c7_172 = arith.constant 7 : index
    %c0_173 = arith.constant 0 : index
    %c0_174 = arith.constant 0 : index
    %165 = vector.load %arg4[%c7_172, %c0_173, %c0_174] : memref<9x128x128xbf16, #tpu.memory_space<vmem>>, vector<1x128x128xbf16>
    %166 = vector.shape_cast %165 : vector<1x128x128xbf16> to vector<128x128xbf16>
    %cst_175 = arith.constant dense<0.000000e+00> : vector<40x128xf32>
    %167 = tpu.matmul %164, %166, %cst_175 {dimension_numbers = #tpu.dot_dimension_numbers<[1], [0], [0], [1], [0, 0, 1, 1], [], []>} : vector<40x128xbf16>, vector<128x128xbf16>, vector<40x128xf32> -> vector<40x128xf32>
    %168 = arith.addf %163, %167 : vector<40x128xf32>
    %c8_176 = arith.constant 8 : index
    %c0_177 = arith.constant 0 : index
    %169 = vector.load %arg10[%c8_176, %c0_177] : memref<48x128xbf16, #tpu.memory_space<vmem>>, vector<40x128xbf16>
    %c8_178 = arith.constant 8 : index
    %c0_179 = arith.constant 0 : index
    %c0_180 = arith.constant 0 : index
    %170 = vector.load %arg4[%c8_178, %c0_179, %c0_180] : memref<9x128x128xbf16, #tpu.memory_space<vmem>>, vector<1x128x128xbf16>
    %171 = vector.shape_cast %170 : vector<1x128x128xbf16> to vector<128x128xbf16>
    %cst_181 = arith.constant dense<0.000000e+00> : vector<40x128xf32>
    %172 = tpu.matmul %169, %171, %cst_181 {dimension_numbers = #tpu.dot_dimension_numbers<[1], [0], [0], [1], [0, 0, 1, 1], [], []>} : vector<40x128xbf16>, vector<128x128xbf16>, vector<40x128xf32> -> vector<40x128xf32>
    %173 = arith.addf %168, %172 : vector<40x128xf32>
    %c0_182 = arith.constant 0 : index
    %c0_183 = arith.constant 0 : index
    %174 = vector.load %arg5[%c0_182, %c0_183] : memref<1x128xf32, #tpu.memory_space<vmem>>, vector<1x128xf32>
    %175 = vector.broadcast %174 : vector<1x128xf32> to vector<40x128xf32>
    %176 = arith.addf %173, %175 : vector<40x128xf32>
    %177 = arith.negf %176 : vector<40x128xf32>
    %178 = math.exp %177 : vector<40x128xf32>
    %cst_184 = arith.constant 1.000000e+00 : f32
    %179 = vector.broadcast %cst_184 : f32 to vector<40x128xf32>
    %180 = arith.addf %179, %178 : vector<40x128xf32>
    %181 = arith.divf %179, %180 : vector<40x128xf32>
    %182 = arith.mulf %176, %181 : vector<40x128xf32>
    %183 = vector.extract_strided_slice %182 {offsets = [0, 0], sizes = [16, 128], strides = [1, 1]} : vector<40x128xf32> to vector<16x128xf32>
    %184 = arith.truncf %183 : vector<16x128xf32> to vector<16x128xbf16>
    %c1_185 = arith.constant 1 : index
    %c0_186 = arith.constant 0 : index
    %185 = vector.load %arg11[%c1_185, %c0_186] : memref<36x128xbf16, #tpu.memory_space<vmem>>, vector<16x128xbf16>
    tpu.vector_store %arg11[%c1_185, %c0_186], %184 {strides = array<i32>} : memref<36x128xbf16, #tpu.memory_space<vmem>>, vector<16x128xbf16>,
    %186 = vector.extract_strided_slice %182 {offsets = [24, 0], sizes = [16, 128], strides = [1, 1]} : vector<40x128xf32> to vector<16x128xf32>
    %187 = arith.truncf %186 : vector<16x128xf32> to vector<16x128xbf16>
    %c19 = arith.constant 19 : index
    %c0_187 = arith.constant 0 : index
    %188 = vector.load %arg11[%c19, %c0_187] : memref<36x128xbf16, #tpu.memory_space<vmem>>, vector<16x128xbf16>
    tpu.vector_store %arg11[%c19, %c0_187], %187 {strides = array<i32>} : memref<36x128xbf16, #tpu.memory_space<vmem>>, vector<16x128xbf16>,
    %c0_188 = arith.constant 0 : index
    %c0_189 = arith.constant 0 : index
    %189 = vector.load %arg11[%c0_188, %c0_189] : memref<36x128xbf16, #tpu.memory_space<vmem>>, vector<34x128xbf16>
    %c0_190 = arith.constant 0 : index
    %c0_191 = arith.constant 0 : index
    %c0_192 = arith.constant 0 : index
    %190 = vector.load %arg6[%c0_190, %c0_191, %c0_192] : memref<3x128x256xbf16, #tpu.memory_space<vmem>>, vector<1x128x256xbf16>
    %191 = vector.shape_cast %190 : vector<1x128x256xbf16> to vector<128x256xbf16>
    %cst_193 = arith.constant dense<0.000000e+00> : vector<34x256xf32>
    %192 = tpu.matmul %189, %191, %cst_193 {dimension_numbers = #tpu.dot_dimension_numbers<[1], [0], [0], [1], [0, 0, 1, 1], [], []>} : vector<34x128xbf16>, vector<128x256xbf16>, vector<34x256xf32> -> vector<34x256xf32>
    %c1_194 = arith.constant 1 : index
    %c0_195 = arith.constant 0 : index
    %193 = vector.load %arg11[%c1_194, %c0_195] : memref<36x128xbf16, #tpu.memory_space<vmem>>, vector<34x128xbf16>
    %c1_196 = arith.constant 1 : index
    %c0_197 = arith.constant 0 : index
    %c0_198 = arith.constant 0 : index
    %194 = vector.load %arg6[%c1_196, %c0_197, %c0_198] : memref<3x128x256xbf16, #tpu.memory_space<vmem>>, vector<1x128x256xbf16>
    %195 = vector.shape_cast %194 : vector<1x128x256xbf16> to vector<128x256xbf16>
    %cst_199 = arith.constant dense<0.000000e+00> : vector<34x256xf32>
    %196 = tpu.matmul %193, %195, %cst_199 {dimension_numbers = #tpu.dot_dimension_numbers<[1], [0], [0], [1], [0, 0, 1, 1], [], []>} : vector<34x128xbf16>, vector<128x256xbf16>, vector<34x256xf32> -> vector<34x256xf32>
    %197 = arith.addf %192, %196 : vector<34x256xf32>
    %c2_200 = arith.constant 2 : index
    %c0_201 = arith.constant 0 : index
    %198 = vector.load %arg11[%c2_200, %c0_201] : memref<36x128xbf16, #tpu.memory_space<vmem>>, vector<34x128xbf16>
    %c2_202 = arith.constant 2 : index
    %c0_203 = arith.constant 0 : index
    %c0_204 = arith.constant 0 : index
    %199 = vector.load %arg6[%c2_202, %c0_203, %c0_204] : memref<3x128x256xbf16, #tpu.memory_space<vmem>>, vector<1x128x256xbf16>
    %200 = vector.shape_cast %199 : vector<1x128x256xbf16> to vector<128x256xbf16>
    %cst_205 = arith.constant dense<0.000000e+00> : vector<34x256xf32>
    %201 = tpu.matmul %198, %200, %cst_205 {dimension_numbers = #tpu.dot_dimension_numbers<[1], [0], [0], [1], [0, 0, 1, 1], [], []>} : vector<34x128xbf16>, vector<128x256xbf16>, vector<34x256xf32> -> vector<34x256xf32>
    %202 = arith.addf %197, %201 : vector<34x256xf32>
    %c0_206 = arith.constant 0 : index
    %c0_207 = arith.constant 0 : index
    %203 = vector.load %arg7[%c0_206, %c0_207] : memref<1x256xf32, #tpu.memory_space<vmem>>, vector<1x256xf32>
    %204 = vector.broadcast %203 : vector<1x256xf32> to vector<34x256xf32>
    %205 = arith.addf %202, %204 : vector<34x256xf32>
    %206 = arith.negf %205 : vector<34x256xf32>
    %207 = math.exp %206 : vector<34x256xf32>
    %cst_208 = arith.constant 1.000000e+00 : f32
    %208 = vector.broadcast %cst_208 : f32 to vector<34x256xf32>
    %209 = arith.addf %208, %207 : vector<34x256xf32>
    %210 = arith.divf %208, %209 : vector<34x256xf32>
    %211 = arith.mulf %205, %210 : vector<34x256xf32>
    %212 = vector.extract_strided_slice %211 {offsets = [0, 0], sizes = [16, 256], strides = [1, 1]} : vector<34x256xf32> to vector<16x256xf32>
    %cst_209 = arith.constant dense<0xFF800000> : vector<256xf32>
    %213 = vector.multi_reduction <maximumf>, %212, %cst_209 [0] : vector<16x256xf32> to vector<256xf32>
    %214 = vector.shape_cast %213 : vector<256xf32> to vector<1x256xf32>
    %215 = vector.extract_strided_slice %211 {offsets = [18, 0], sizes = [16, 256], strides = [1, 1]} : vector<34x256xf32> to vector<16x256xf32>
    %cst_210 = arith.constant dense<0xFF800000> : vector<256xf32>
    %216 = vector.multi_reduction <maximumf>, %215, %cst_210 [0] : vector<16x256xf32> to vector<256xf32>
    %217 = vector.shape_cast %216 : vector<256xf32> to vector<1x256xf32>
    %218 = tpu.concatenate %214, %217 in 0 : vector<1x256xf32>, vector<1x256xf32> -> vector<2x256xf32>
    %c0_211 = arith.constant 0 : index
    %c0_212 = arith.constant 0 : index
    %219 = vector.load %arg8[%c0_211, %c0_212] : memref<2x256xf32, #tpu.memory_space<vmem>>, vector<2x256xf32>
    tpu.vector_store %arg8[%c0_211, %c0_212], %218 {strides = array<i32>} : memref<2x256xf32, #tpu.memory_space<vmem>>, vector<2x256xf32>,
    return
  }
  func.func @transform_0(%arg0: i32) -> (i32, i32, i32) {
    %c0_i32 = arith.constant 0 : i32
    %c0_i32_0 = arith.constant 0 : i32
    %c0_i32_1 = arith.constant 0 : i32
    return %arg0, %c0_i32, %c0_i32_0 : i32, i32, i32
  }
  func.func @transform_1(%arg0: i32) -> (i32, i32, i32) {
    %c0_i32 = arith.constant 0 : i32
    %c0_i32_0 = arith.constant 0 : i32
    %c0_i32_1 = arith.constant 0 : i32
    %c0_i32_2 = arith.constant 0 : i32
    return %c0_i32, %c0_i32_0, %c0_i32_1 : i32, i32, i32
  }
  func.func @transform_2(%arg0: i32) -> (i32, i32) {
    %c0_i32 = arith.constant 0 : i32
    %c0_i32_0 = arith.constant 0 : i32
    %c0_i32_1 = arith.constant 0 : i32
    return %c0_i32, %c0_i32_0 : i32, i32
  }
  func.func @transform_3(%arg0: i32) -> (i32, i32, i32) {
    %c0_i32 = arith.constant 0 : i32
    %c0_i32_0 = arith.constant 0 : i32
    %c0_i32_1 = arith.constant 0 : i32
    %c0_i32_2 = arith.constant 0 : i32
    return %c0_i32, %c0_i32_0, %c0_i32_1 : i32, i32, i32
  }
  func.func @transform_4(%arg0: i32) -> (i32, i32) {
    %c0_i32 = arith.constant 0 : i32
    %c0_i32_0 = arith.constant 0 : i32
    %c0_i32_1 = arith.constant 0 : i32
    return %c0_i32, %c0_i32_0 : i32, i32
  }
  func.func @transform_5(%arg0: i32) -> (i32, i32, i32) {
    %c0_i32 = arith.constant 0 : i32
    %c0_i32_0 = arith.constant 0 : i32
    %c0_i32_1 = arith.constant 0 : i32
    %c0_i32_2 = arith.constant 0 : i32
    return %c0_i32, %c0_i32_0, %c0_i32_1 : i32, i32, i32
  }
  func.func @transform_6(%arg0: i32) -> (i32, i32) {
    %c0_i32 = arith.constant 0 : i32
    %c0_i32_0 = arith.constant 0 : i32
    %c0_i32_1 = arith.constant 0 : i32
    return %c0_i32, %c0_i32_0 : i32, i32
  }
  func.func @transform_7(%arg0: i32) -> (i32, i32) {
    %c0_i32 = arith.constant 0 : i32
    %c0_i32_0 = arith.constant 0 : i32
    return %arg0, %c0_i32 : i32, i32
  }
}

</mosaic_0001>

<llo_original>
// kernel: cnn1d_without_gru_forward.2
$region0: #{cnn1d_without_gru_forward.2}
  #allocation0 [shape = 'u32[]', space=smem, size = 0x4, offset = 0x4, fixed_abs, tag = 'smem constant byte address 0x4 - core index']
  #allocation1 [shape = 'u32[144,128]{1,0:T(1,128)}', space=vmem, size = 0x12000, scoped, tag = 'internal scratch']
  #allocation2 [shape = 'bf16[68,64]{1,0:T(8,128)(2,1)}', space=vmem, size = 0x4800, scoped, tag = 'scratch operand']
  #allocation3 [shape = 'bf16[48,128]{1,0:T(16,128)(2,1)}', space=vmem, size = 0x3000, scoped, tag = 'scratch operand']
  #allocation4 [shape = 'bf16[36,128]{1,0:T(8,128)(2,1)}', space=vmem, size = 0x2800, scoped, tag = 'scratch operand']
  %s0 = inlined_call_operand.hbm [shape: bf16[2,16,64], index: 0, kind: input, shape index: {}]
  %s1 = inlined_call_operand.hbm [shape: bf16[19,64,128], index: 1, kind: input, shape index: {}]
  %s2 = inlined_call_operand.hbm [shape: f32[1,128], index: 2, kind: input, shape index: {}]
  %s3 = inlined_call_operand.hbm [shape: bf16[9,128,128], index: 3, kind: input, shape index: {}]
  %s4 = inlined_call_operand.hbm [shape: f32[1,128], index: 4, kind: input, shape index: {}]
  %s5 = inlined_call_operand.hbm [shape: bf16[3,128,256], index: 5, kind: input, shape index: {}]
  %s6 = inlined_call_operand.hbm [shape: f32[1,256], index: 6, kind: input, shape index: {}]
  %s7 = inlined_call_operand.hbm [shape: f32[2,256], index: 7, kind: output, shape index: {}]
  %s8 = sld [smem:[#allocation0]]
  $region66: #{cnn1d_without_gru_forward.2} parent=0
    _
  %s10 = ssub.s32 1, %s8
  %s11 = scalar_select 0, %s10, %s8
  $region1: #{cnn1d_without_gru_forward.2} parent=0
    #allocation5 [shape = 'u8[8192]{0}', space=vmem, size = 0x2000, scoped, tag = 'input window, operand 0, single buffered']
    #allocation6 [shape = 's32[1]{0}', space=sflag, size = 0x4, scoped, tag = 'scoped memory for cnn1d_without_gru_forward.2']
    #allocation7 [shape = 's32[1]{0}', space=sflag, size = 0x4, scoped, tag = 'scoped memory for cnn1d_without_gru_forward.2']
    #allocation8 [shape = 'u8[311296]{0}', space=vmem, size = 0x4c000, scoped, tag = 'input window, operand 1, single buffered']
    #allocation9 [shape = 's32[1]{0}', space=sflag, size = 0x4, scoped, tag = 'scoped memory for cnn1d_without_gru_forward.2']
    #allocation10 [shape = 'u8[512]{0}', space=vmem, size = 0x400, scoped, tag = 'input window, operand 2, single buffered']
    #allocation11 [shape = 'u8[294912]{0}', space=vmem, size = 0x48000, scoped, tag = 'input window, operand 3, single buffered']
    #allocation12 [shape = 's32[1]{0}', space=sflag, size = 0x4, scoped, tag = 'scoped memory for cnn1d_without_gru_forward.2']
    #allocation13 [shape = 'u8[512]{0}', space=vmem, size = 0x400, scoped, tag = 'input window, operand 4, single buffered']
    #allocation14 [shape = 'u8[196608]{0}', space=vmem, size = 0x30000, scoped, tag = 'input window, operand 5, single buffered']
    #allocation15 [shape = 's32[1]{0}', space=sflag, size = 0x4, scoped, tag = 'scoped memory for cnn1d_without_gru_forward.2']
    #allocation16 [shape = 'u8[1024]{0}', space=vmem, size = 0x400, scoped, tag = 'input window, operand 6, single buffered']
    #allocation17 [shape = 'u8[2048]{0}', space=vmem, size = 0x800, scoped, tag = 'output window, operand 0, single buffered']
    %12 = vsyncpa [#allocation6], 0
    %13 = vsyncpa [#allocation9], 0
    %14 = vsyncpa [#allocation12], 0
    %15 = vsyncpa [#allocation15], 0
    %16 = vsyncpa [#allocation7], 0
    // Predicated region
    $region2: #{cnn1d_without_gru_forward.2} parent=1 // pred_check
      _
    $region3: #{cnn1d_without_gru_forward.2} parent=1 // pred_check_branch
      %18 = sbr.rel (0) target = $region5
    $region4: #{cnn1d_without_gru_forward.2} parent=1 // pred_region
      %s20 = ssub.s32 256, 256
      %21 = vsyncadd [#allocation6], %s20
      %s22 = sshll.u32 [#allocation5], 4
      %s23 = int_to_ptr.vmem [resolvable:$true] %s22
      %28 = dma.hbm_to_vmem [thread:$0]  %s0, 256, %s23, [#allocation6], 64, 64, 4
    $region5: #{cnn1d_without_gru_forward.2} parent=1 // pred_fallthru
      _
    // Predicated region
    $region6: #{cnn1d_without_gru_forward.2} parent=1 // pred_check
      _
    $region7: #{cnn1d_without_gru_forward.2} parent=1 // pred_check_branch
      %30 = sbr.rel (0) target = $region9
    $region8: #{cnn1d_without_gru_forward.2} parent=1 // pred_region
      %s32 = ssub.s32 9728, 9728
      %33 = vsyncadd [#allocation9], %s32
      %s34 = sshll.u32 [#allocation8], 4
      %s35 = int_to_ptr.vmem [resolvable:$true] %s34
      %40 = dma.hbm_to_vmem [thread:$0]  %s1, 9728, %s35, [#allocation9], 64, 64, 4
    $region9: #{cnn1d_without_gru_forward.2} parent=1 // pred_fallthru
      _
    // Predicated region
    $region10: #{cnn1d_without_gru_forward.2} parent=1 // pred_check
      _
    $region11: #{cnn1d_without_gru_forward.2} parent=1 // pred_check_branch
      %42 = sbr.rel (0) target = $region13
    $region12: #{cnn1d_without_gru_forward.2} parent=1 // pred_region
      %s44 = ssub.s32 16, 16
      %45 = vsyncadd [#allocation9], %s44
      %s47 = sshll.u32 [#allocation10], 4
      %s48 = int_to_ptr.vmem [resolvable:$true] %s47
      %50 = dma.hbm_to_vmem [thread:$0]  %s2, 16, %s48, [#allocation9]
    $region13: #{cnn1d_without_gru_forward.2} parent=1 // pred_fallthru
      _
    // Predicated region
    $region14: #{cnn1d_without_gru_forward.2} parent=1 // pred_check
      _
    $region15: #{cnn1d_without_gru_forward.2} parent=1 // pred_check_branch
      %52 = sbr.rel (0) target = $region17
    $region16: #{cnn1d_without_gru_forward.2} parent=1 // pred_region
      %s54 = ssub.s32 9216, 9216
      %55 = vsyncadd [#allocation12], %s54
      %s56 = sshll.u32 [#allocation11], 4
      %s57 = int_to_ptr.vmem [resolvable:$true] %s56
      %62 = dma.hbm_to_vmem [thread:$0]  %s3, 9216, %s57, [#allocation12], 64, 64, 4
    $region17: #{cnn1d_without_gru_forward.2} parent=1 // pred_fallthru
      _
    // Predicated region
    $region18: #{cnn1d_without_gru_forward.2} parent=1 // pred_check
      _
    $region19: #{cnn1d_without_gru_forward.2} parent=1 // pred_check_branch
      %64 = sbr.rel (0) target = $region21
    $region20: #{cnn1d_without_gru_forward.2} parent=1 // pred_region
      %s66 = ssub.s32 16, 16
      %67 = vsyncadd [#allocation12], %s66
      %s69 = sshll.u32 [#allocation13], 4
      %s70 = int_to_ptr.vmem [resolvable:$true] %s69
      %72 = dma.hbm_to_vmem [thread:$0]  %s4, 16, %s70, [#allocation12]
    $region21: #{cnn1d_without_gru_forward.2} parent=1 // pred_fallthru
      _
    // Predicated region
    $region22: #{cnn1d_without_gru_forward.2} parent=1 // pred_check
      _
    $region23: #{cnn1d_without_gru_forward.2} parent=1 // pred_check_branch
      %74 = sbr.rel (0) target = $region25
    $region24: #{cnn1d_without_gru_forward.2} parent=1 // pred_region
      %s76 = ssub.s32 6144, 6144
      %77 = vsyncadd [#allocation15], %s76
      %s78 = sshll.u32 [#allocation14], 4
      %s79 = int_to_ptr.vmem [resolvable:$true] %s78
      %84 = dma.hbm_to_vmem [thread:$0]  %s5, 6144, %s79, [#allocation15], 128, 128, 8
    $region25: #{cnn1d_without_gru_forward.2} parent=1 // pred_fallthru
      _
    // Predicated region
    $region26: #{cnn1d_without_gru_forward.2} parent=1 // pred_check
      _
    $region27: #{cnn1d_without_gru_forward.2} parent=1 // pred_check_branch
      %86 = sbr.rel (0) target = $region29
    $region28: #{cnn1d_without_gru_forward.2} parent=1 // pred_region
      %s88 = ssub.s32 32, 32
      %89 = vsyncadd [#allocation15], %s88
      %s91 = sshll.u32 [#allocation16], 4
      %s92 = int_to_ptr.vmem [resolvable:$true] %s91
      %94 = dma.hbm_to_vmem [thread:$0]  %s6, 32, %s92, [#allocation15]
    $region29: #{cnn1d_without_gru_forward.2} parent=1 // pred_fallthru
      _
    // Predicated region
    $region30: #{cnn1d_without_gru_forward.2} parent=1 // pred_check
      _
    $region31: #{cnn1d_without_gru_forward.2} parent=1 // pred_check_branch
      %96 = sbr.rel (0) target = $region33
    $region32: #{cnn1d_without_gru_forward.2} parent=1 // pred_region
      %97 = dma.done [#allocation6], 256
    $region33: #{cnn1d_without_gru_forward.2} parent=1 // pred_fallthru
      _
    // Predicated region
    $region34: #{cnn1d_without_gru_forward.2} parent=1 // pred_check
      _
    $region35: #{cnn1d_without_gru_forward.2} parent=1 // pred_check_branch
      %99 = sbr.rel (0) target = $region37
    $region36: #{cnn1d_without_gru_forward.2} parent=1 // pred_region
      %100 = dma.done [#allocation9], 9728
    $region37: #{cnn1d_without_gru_forward.2} parent=1 // pred_fallthru
      _
    // Predicated region
    $region38: #{cnn1d_without_gru_forward.2} parent=1 // pred_check
      _
    $region39: #{cnn1d_without_gru_forward.2} parent=1 // pred_check_branch
      %102 = sbr.rel (0) target = $region41
    $region40: #{cnn1d_without_gru_forward.2} parent=1 // pred_region
      %103 = dma.done [#allocation9], 16
    $region41: #{cnn1d_without_gru_forward.2} parent=1 // pred_fallthru
      _
    // Predicated region
    $region42: #{cnn1d_without_gru_forward.2} parent=1 // pred_check
      _
    $region43: #{cnn1d_without_gru_forward.2} parent=1 // pred_check_branch
      %105 = sbr.rel (0) target = $region45
    $region44: #{cnn1d_without_gru_forward.2} parent=1 // pred_region
      %106 = dma.done [#allocation12], 9216
    $region45: #{cnn1d_without_gru_forward.2} parent=1 // pred_fallthru
      _
    // Predicated region
    $region46: #{cnn1d_without_gru_forward.2} parent=1 // pred_check
      _
    $region47: #{cnn1d_without_gru_forward.2} parent=1 // pred_check_branch
      %108 = sbr.rel (0) target = $region49
    $region48: #{cnn1d_without_gru_forward.2} parent=1 // pred_region
      %109 = dma.done [#allocation12], 16
    $region49: #{cnn1d_without_gru_forward.2} parent=1 // pred_fallthru
      _
    // Predicated region
    $region50: #{cnn1d_without_gru_forward.2} parent=1 // pred_check
      _
    $region51: #{cnn1d_without_gru_forward.2} parent=1 // pred_check_branch
      %111 = sbr.rel (0) target = $region53
    $region52: #{cnn1d_without_gru_forward.2} parent=1 // pred_region
      %112 = dma.done [#allocation15], 6144
    $region53: #{cnn1d_without_gru_forward.2} parent=1 // pred_fallthru
      _
    // Predicated region
    $region54: #{cnn1d_without_gru_forward.2} parent=1 // pred_check
      _
    $region55: #{cnn1d_without_gru_forward.2} parent=1 // pred_check_branch
      %114 = sbr.rel (0) target = $region57
    $region56: #{cnn1d_without_gru_forward.2} parent=1 // pred_region
      %115 = dma.done [#allocation15], 32
    $region57: #{cnn1d_without_gru_forward.2} parent=1 // pred_fallthru
      _
    %vm117 = vcmask 519168
    %118 = vst.msk [vmem:[#allocation2] sm:$0xf] %vm117, 0
    %vm119 = vcmask 516096
    %vm120 = vsmask.f32 256
    %vm121 = vmand %vm119, %vm120
    %v122 = vld [vmem:[#allocation2 + $0x4] sm:$0x1]
    %v123 = vsel %vm121, 0, %v122
    %124 = vst [vmem:[#allocation2 + $0x4] sm:$0x1] %v123
    %vm125 = vcmask 519169
    %vm126 = vsmask.f32 7942
    %vm127 = vmand %vm125, %vm126
    %v128 = vld [vmem:[#allocation2 + $0x1c] sm:$0xe]
    %v129 = vsel %vm127, 0, %v128
    %130 = vst [vmem:[#allocation2 + $0x1c] sm:$0xe] %v129
    %vm131 = vcmask 517120
    %132 = vst.msk [vmem:[#allocation2 + $0x20] sm:$0x3] %vm131, 0
    %vm133 = vcmask 519168
    %vm134 = vsmask.f32 7938
    %vm135 = vmand %vm133, %vm134
    %v136 = vld [vmem:[#allocation2 + $0xc] sm:$0xf]
    %v137 = vsel %vm135, 0, %v136
    %138 = vst [vmem:[#allocation2 + $0xc] sm:$0xf] %v137
    %139 = vst.msk [vmem:[#allocation2 + $0x10] sm:$0xf] %vm117, 0
    %vm140 = vcmask 517120
    %vm141 = vsmask.f32 1280
    %vm142 = vmand %vm140, %vm141
    %v143 = vld [vmem:[#allocation2 + $0x14] sm:$0x3]
    %v144 = vsel %vm142, 0, %v143
    %145 = vst [vmem:[#allocation2 + $0x14] sm:$0x3] %v144
    %146 = vst [vmem:[#allocation3] sm:$0x3] 0
    %147 = vst [vmem:[#allocation3 + $0x10] sm:$0xc0] 0
    %148 = vst [vmem:[#allocation3 + $0x8] sm:$0x3c] 0
    %vm149 = vcmask 1040384
    %vm150 = vmand %vm149, %vm120
    %v151 = vld [vmem:[#allocation4] sm:$0x1]
    %v152 = vsel %vm150, 0, %v151
    %153 = vst [vmem:[#allocation4] sm:$0x1] %v152
    %vm154 = vcmask 1041409
    %vm155 = vmand %vm154, %vm126
    %v156 = vld [vmem:[#allocation4 + $0x10] sm:$0x2]
    %v157 = vsel %vm155, 0, %v156
    %158 = vst [vmem:[#allocation4 + $0x10] sm:$0x2] %v157
    %vm159 = vcmask 1041408
    %vm160 = vsmask.f32 1282
    %vm161 = vmand %vm159, %vm160
    %v162 = vld [vmem:[#allocation4 + $0x8] sm:$0x3]
    %v163 = vsel %vm161, 0, %v162
    %164 = vst [vmem:[#allocation4 + $0x8] sm:$0x3] %v163
    %v165 = vld [vmem:[#allocation5] sm:$0xf]
    %v166 = vld [vmem:[#allocation5 + $0x4] sm:$0xf]
    %vm167 = vsmask.f32 4368
    %vm168 = vmor %vm120, %vm167
    %v170 = vshrl.u32 %v165, 16
    %v172 = vrot.slane %v170, 7
    %v173 = vshll.u32 %v165, 16
    %v175 = vor.u32 %v172, %v173
    %v176 = vrot.slane %v172, 4
    %v178 = vshrl.u32 %v166, 16
    %v180 = vrot.slane %v178, 7
    %v181 = vshll.u32 %v166, 16
    %v183 = vor.u32 %v180, %v181
    %v184 = vsel %vm168, %v176, %v183
    %v185 = vrot.slane %v180, 4
    %v189 = vld [vmem:[#allocation2 + $0x4] sm:$0xf]
    %v190 = vsel %vm135, %v175, %v189
    %191 = vst [vmem:[#allocation2 + $0x4] sm:$0xf] %v190
    %192 = vst.msk [vmem:[#allocation2 + $0x8] sm:$0xf] %vm117, %v184
    %v193 = vld [vmem:[#allocation2 + $0xc] sm:$0x1]
    %v194 = vsel %vm121, %v185, %v193
    %195 = vst [vmem:[#allocation2 + $0xc] sm:$0x1] %v194
    %s196 = scalar_lea.vmem [#allocation5], 8
    %v197 = vld [vmem:[%s196] sm:$0xf]
    %v198 = vld [vmem:[%s196 + $0x4] sm:$0xf]
    %vm199 = vsmask.f32 5392
    %vm200 = vmor %vm141, %vm199
    %v202 = vshrl.u32 %v197, 16
    %v204 = vrot.slane %v202, 6
    %v205 = vshll.u32 %v197, 16
    %v207 = vrot.slane %v205, 7
    %v208 = vor.u32 %v204, %v207
    %v209 = vrot.slane %v208, 4
    %v211 = vshrl.u32 %v198, 16
    %v213 = vrot.slane %v211, 6
    %v214 = vshll.u32 %v198, 16
    %v216 = vrot.slane %v214, 7
    %v217 = vor.u32 %v213, %v216
    %v218 = vsel %vm200, %v209, %v217
    %v219 = vrot.slane %v217, 4
    %v223 = vld [vmem:[#allocation2 + $0x14] sm:$0xe]
    %v224 = vsel %vm127, %v208, %v223
    %225 = vst [vmem:[#allocation2 + $0x14] sm:$0xe] %v224
    %226 = vst.msk [vmem:[#allocation2 + $0x18] sm:$0xf] %vm117, %v218
    %v227 = vld [vmem:[#allocation2 + $0x1c] sm:$0x3]
    %v228 = vsel %vm142, %v219, %v227
    %229 = vst [vmem:[#allocation2 + $0x1c] sm:$0x3] %v228
    %v230 = vld [vmem:[#allocation2] sm:$0xf]
    %v231 = vld [vmem:[#allocation2 + $0x4] sm:$0xf]
    %v232 = vld [vmem:[#allocation2 + $0x8] sm:$0xf]
    %v233 = vld [vmem:[#allocation2 + $0xc] sm:$0xf]
    %v234 = vld [vmem:[#allocation2 + $0x10] sm:$0xf]
    %v235 = vld [vmem:[#allocation2 + $0x14] sm:$0xf]
    %v236 = vld [vmem:[#allocation2 + $0x18] sm:$0x1]
    %v237 = vld [vmem:[#allocation8] sm:$0xf]
    %v238 = vld [vmem:[#allocation8 + $0x4] sm:$0xf]
    %v239 = vld [vmem:[#allocation8 + $0x8] sm:$0xf]
    %v240 = vld [vmem:[#allocation8 + $0xc] sm:$0xf]
    %v241 = vld [vmem:[#allocation8 + $0x10] sm:$0xf]
    %v242 = vld [vmem:[#allocation8 + $0x14] sm:$0xf]
    %v243 = vld [vmem:[#allocation8 + $0x18] sm:$0xf]
    %v244 = vld [vmem:[#allocation8 + $0x1c] sm:$0xf]
    %v245 = vld [vmem:[#allocation2 + $0x18] sm:$0x3]
    %s246 = scalar_lea.vmem [#allocation8], 32
    %v247 = vld [vmem:[%s246] sm:$0xf]
    %v248 = vld [vmem:[%s246 + $0x4] sm:$0xf]
    %v249 = vld [vmem:[%s246 + $0x8] sm:$0xf]
    %v250 = vld [vmem:[%s246 + $0xc] sm:$0xf]
    %v251 = vld [vmem:[%s246 + $0x10] sm:$0xf]
    %v252 = vld [vmem:[%s246 + $0x14] sm:$0xf]
    %v253 = vld [vmem:[%s246 + $0x18] sm:$0xf]
    %v254 = vld [vmem:[%s246 + $0x1c] sm:$0xf]
    %v262 = vunpack.c.l.b16 %v230
    %v263 = vunpack.c.l.b16 %v231
    %v264 = vunpack.c.l.b16 %v232
    %v265 = vunpack.c.l.b16 %v233
    %v266 = vunpack.c.l.b16 %v234
    %v267 = vunpack.c.l.b16 %v235
    %v268 = vunpack.c.l.b16 %v245
    %v269 = vpack.c.b16 %v263, %v262
    %v270 = vpack.c.b16 %v265, %v264
    %v271 = vpack.c.b16 %v267, %v266
    %v272 = vpack.c.b16 %v268, %v268
    %vm273 = vsmask.f32 7424
    %v275 = vshrl.u32 %v269, 16
    %v277 = vshll.u32 %v269, 16
    %v279 = vrot.slane %v277, 1
    %v280 = vor.u32 %v275, %v279
    %v282 = vshll.u32 %v270, 16
    %v284 = vrot.slane %v282, 1
    %v285 = vsel %vm273, %v280, %v284
    %v286 = vshrl.u32 %v270, 16
    %v288 = vor.u32 %v286, %v284
    %v290 = vshll.u32 %v271, 16
    %v292 = vrot.slane %v290, 1
    %v293 = vsel %vm273, %v288, %v292
    %v294 = vshrl.u32 %v271, 16
    %v296 = vor.u32 %v294, %v292
    %v298 = vshll.u32 %v272, 16
    %v300 = vrot.slane %v298, 1
    %v301 = vsel %vm273, %v296, %v300
    %v302 = vshrl.u32 %v272, 16
    %v304 = vor.u32 %v302, %v300
    %v313 = vunpack.c.l.b16 %v247
    %v314 = vunpack.c.l.b16 %v248
    %v315 = vunpack.c.l.b16 %v249
    %v316 = vunpack.c.l.b16 %v250
    %v317 = vunpack.c.l.b16 %v251
    %v318 = vunpack.c.l.b16 %v252
    %v319 = vunpack.c.l.b16 %v253
    %v320 = vunpack.c.l.b16 %v254
    %v321 = vpack.c.b16 %v314, %v313
    %v322 = vpack.c.b16 %v316, %v315
    %v323 = vpack.c.b16 %v318, %v317
    %v324 = vpack.c.b16 %v320, %v319
    %vm329 = vcmask 523264
    %v331 = vsel %vm329, %v285, 0
    %v334 = vsel %vm329, %v293, 0
    %v337 = vsel %vm329, %v301, 0
    %v340 = vsel %vm329, %v304, 0
    %342 = vmatprep.subr.bf16.mxu0 0
    %343 = vmatpush1.bf16.msra.mxu0 %v321
    %344 = vmatprep.subr.bf16.mxu0 0
    %345 = vmatpush1.bf16.msra.mxu0 %v322
    %346 = vmatprep.subr.bf16.mxu0 0
    %347 = vmatpush1.bf16.msra.mxu0 %v323
    %348 = vmatprep.subr.bf16.mxu0 0
    %349 = vmatpush1.bf16.msra.mxu0 %v324
    %350 = vmatprep.subr.bf16.mxu0 0
    %351 = vmatpush1.bf16.msra.mxu0 0
    %352 = vmatprep.subr.bf16.mxu0 0
    %353 = vmatpush1.bf16.msra.mxu0 0
    %354 = vmatprep.subr.bf16.mxu0 0
    %355 = vmatpush1.bf16.msra.mxu0 0
    %356 = vmatprep.subr.bf16.mxu0 0
    %357 = vmatpush1.bf16.msra.mxu0 0
    %358 = vmatprep.subr.bf16.mxu0 0
    %359 = vmatpush1.bf16.msra.mxu0 0
    %360 = vmatprep.subr.bf16.mxu0 0
    %361 = vmatpush1.bf16.msra.mxu0 0
    %362 = vmatprep.subr.bf16.mxu0 0
    %363 = vmatpush1.bf16.msra.mxu0 0
    %364 = vmatprep.subr.bf16.mxu0 0
    %365 = vmatpush1.bf16.msra.mxu0 0
    %366 = vmatprep.subr.bf16.mxu0 0
    %367 = vmatpush1.bf16.msra.mxu0 0
    %368 = vmatprep.subr.bf16.mxu0 0
    %369 = vmatpush1.bf16.msra.mxu0 0
    %370 = vmatprep.subr.bf16.mxu0 0
    %371 = vmatpush1.bf16.msra.mxu0 0
    %372 = vmatprep.subr.bf16.mxu0 0
    %373 = vmatpush1.bf16.msra.mxu0 0
    %374 = vmatprep.mubr.bf16.mxu0 0
    %375 = vmatmul.mubr.bf16.gmra.mrb[0].mxu0 %v331
    %v376 = vpop.f32.mrb[0].mxu0
    %v377 = vadd.f32 0.0, %v376
    %v378 = vpop.f32.mrb[0].mxu0
    %v379 = vpop.f32.mrb[0].mxu0
    %v380 = vadd.f32 0.0, %v379
    %v381 = vpop.f32.mrb[0].mxu0
    %382 = vmatprep.mubr.bf16.mxu0 0
    %383 = vmatmul.mubr.bf16.gmra.mrb[0].mxu0 %v334
    %v384 = vpop.f32.mrb[0].mxu0
    %v385 = vpop.f32.mrb[0].mxu0
    %v386 = vpop.f32.mrb[0].mxu0
    %v387 = vpop.f32.mrb[0].mxu0
    %388 = vmatprep.mubr.bf16.mxu0 0
    %389 = vmatmul.mubr.bf16.gmra.mrb[0].mxu0 %v337
    %v390 = vpop.f32.mrb[0].mxu0
    %v391 = vadd.f32 0.0, %v390
    %v392 = vpop.f32.mrb[0].mxu0
    %v393 = vpop.f32.mrb[0].mxu0
    %v394 = vadd.f32 0.0, %v393
    %v395 = vpop.f32.mrb[0].mxu0
    %396 = vmatprep.mubr.bf16.mxu0 0
    %397 = vmatmul.mubr.bf16.gmra.mrb[0].mxu0 %v340
    %v398 = vpop.f32.mrb[0].mxu0
    %v399 = vadd.f32 0.0, %v398
    %v400 = vpop.f32.mrb[0].mxu0
    %v401 = vpop.f32.mrb[0].mxu0
    %v402 = vpop.f32.mrb[0].mxu0
    %403 = vdwg.mxu0
    %v405 = vunpack.c.l.b16 %v236
    %v406 = vpack.c.b16 %v405, %v405
    %v415 = vunpack.c.l.b16 %v237
    %v416 = vunpack.c.l.b16 %v238
    %v417 = vunpack.c.l.b16 %v239
    %v418 = vunpack.c.l.b16 %v240
    %v419 = vunpack.c.l.b16 %v241
    %v420 = vunpack.c.l.b16 %v242
    %v421 = vunpack.c.l.b16 %v243
    %v422 = vunpack.c.l.b16 %v244
    %v423 = vpack.c.b16 %v416, %v415
    %v424 = vpack.c.b16 %v418, %v417
    %v425 = vpack.c.b16 %v420, %v419
    %v426 = vpack.c.b16 %v422, %v421
    %v431 = vsel %vm329, %v269, 0
    %v433 = vsel %vm329, %v270, 0
    %v435 = vsel %vm329, %v271, 0
    %v438 = vsel %vm329, %v406, 0
    %440 = vmatprep.subr.bf16.mxu0 0
    %441 = vmatpush1.bf16.msra.mxu0 %v423
    %442 = vmatprep.subr.bf16.mxu0 0
    %443 = vmatpush1.bf16.msra.mxu0 %v424
    %444 = vmatprep.subr.bf16.mxu0 0
    %445 = vmatpush1.bf16.msra.mxu0 %v425
    %446 = vmatprep.subr.bf16.mxu0 0
    %447 = vmatpush1.bf16.msra.mxu0 %v426
    %448 = vmatprep.subr.bf16.mxu0 0
    %449 = vmatpush1.bf16.msra.mxu0 0
    %450 = vmatprep.subr.bf16.mxu0 0
    %451 = vmatpush1.bf16.msra.mxu0 0
    %452 = vmatprep.subr.bf16.mxu0 0
    %453 = vmatpush1.bf16.msra.mxu0 0
    %454 = vmatprep.subr.bf16.mxu0 0
    %455 = vmatpush1.bf16.msra.mxu0 0
    %456 = vmatprep.subr.bf16.mxu0 0
    %457 = vmatpush1.bf16.msra.mxu0 0
    %458 = vmatprep.subr.bf16.mxu0 0
    %459 = vmatpush1.bf16.msra.mxu0 0
    %460 = vmatprep.subr.bf16.mxu0 0
    %461 = vmatpush1.bf16.msra.mxu0 0
    %462 = vmatprep.subr.bf16.mxu0 0
    %463 = vmatpush1.bf16.msra.mxu0 0
    %464 = vmatprep.subr.bf16.mxu0 0
    %465 = vmatpush1.bf16.msra.mxu0 0
    %466 = vmatprep.subr.bf16.mxu0 0
    %467 = vmatpush1.bf16.msra.mxu0 0
    %468 = vmatprep.subr.bf16.mxu0 0
    %469 = vmatpush1.bf16.msra.mxu0 0
    %470 = vmatprep.subr.bf16.mxu0 0
    %471 = vmatpush1.bf16.msra.mxu0 0
    %472 = vmatprep.mubr.bf16.mxu0 0
    %473 = vmatmul.mubr.bf16.gmra.mrb[0].mxu0 %v431
    %v474 = vpop.f32.mrb[0].mxu0
    %v475 = vadd.f32 %v377, %v474
    %v476 = vpop.f32.mrb[0].mxu0
    %v477 = vpop.f32.mrb[0].mxu0
    %v478 = vadd.f32 %v380, %v477
    %v479 = vpop.f32.mrb[0].mxu0
    %480 = vmatprep.mubr.bf16.mxu0 0
    %481 = vmatmul.mubr.bf16.gmra.mrb[0].mxu0 %v433
    %v482 = vpop.f32.mrb[0].mxu0
    %v483 = vpop.f32.mrb[0].mxu0
    %v484 = vpop.f32.mrb[0].mxu0
    %v485 = vpop.f32.mrb[0].mxu0
    %486 = vmatprep.mubr.bf16.mxu0 0
    %487 = vmatmul.mubr.bf16.gmra.mrb[0].mxu0 %v435
    %v488 = vpop.f32.mrb[0].mxu0
    %v489 = vadd.f32 %v391, %v488
    %v490 = vpop.f32.mrb[0].mxu0
    %v491 = vpop.f32.mrb[0].mxu0
    %v492 = vadd.f32 %v394, %v491
    %v493 = vpop.f32.mrb[0].mxu0
    %494 = vmatprep.mubr.bf16.mxu0 0
    %495 = vmatmul.mubr.bf16.gmra.mrb[0].mxu0 %v438
    %v496 = vpop.f32.mrb[0].mxu0
    %v497 = vadd.f32 %v399, %v496
    %v498 = vpop.f32.mrb[0].mxu0
    %v499 = vpop.f32.mrb[0].mxu0
    %v500 = vpop.f32.mrb[0].mxu0
    %501 = vdwg.mxu0
    %v502 = vld [vmem:[#allocation2] sm:$0xe]
    %s503 = scalar_lea.vmem [#allocation8], 64
    %v504 = vld [vmem:[%s503] sm:$0xf]
    %v505 = vld [vmem:[%s503 + $0x4] sm:$0xf]
    %v506 = vld [vmem:[%s503 + $0x8] sm:$0xf]
    %v507 = vld [vmem:[%s503 + $0xc] sm:$0xf]
    %v508 = vld [vmem:[%s503 + $0x10] sm:$0xf]
    %v509 = vld [vmem:[%s503 + $0x14] sm:$0xf]
    %v510 = vld [vmem:[%s503 + $0x18] sm:$0xf]
    %v511 = vld [vmem:[%s503 + $0x1c] sm:$0xf]
    %v513 = vunpack.c.l.b16 %v502
    %v514 = vpack.c.b16 %v263, %v513
    %vm515 = vcmask 1046528
    %v516 = vrot.slane %v514, 1
    %v517 = vrot.slane %v270, 1
    %v518 = vsel %vm515, %v516, %v517
    %v519 = vrot.slane %v271, 1
    %v520 = vsel %vm515, %v517, %v519
    %v521 = vrot.slane %v272, 1
    %v522 = vsel %vm515, %v519, %v521
    %v531 = vunpack.c.l.b16 %v504
    %v532 = vunpack.c.l.b16 %v505
    %v533 = vunpack.c.l.b16 %v506
    %v534 = vunpack.c.l.b16 %v507
    %v535 = vunpack.c.l.b16 %v508
    %v536 = vunpack.c.l.b16 %v509
    %v537 = vunpack.c.l.b16 %v510
    %v538 = vunpack.c.l.b16 %v511
    %v539 = vpack.c.b16 %v532, %v531
    %v540 = vpack.c.b16 %v534, %v533
    %v541 = vpack.c.b16 %v536, %v535
    %v542 = vpack.c.b16 %v538, %v537
    %v548 = vsel %vm329, %v518, 0
    %v551 = vsel %vm329, %v520, 0
    %v554 = vsel %vm329, %v522, 0
    %v557 = vsel %vm329, %v521, 0
    %559 = vmatprep.subr.bf16.mxu0 0
    %560 = vmatpush1.bf16.msra.mxu0 %v539
    %561 = vmatprep.subr.bf16.mxu0 0
    %562 = vmatpush1.bf16.msra.mxu0 %v540
    %563 = vmatprep.subr.bf16.mxu0 0
    %564 = vmatpush1.bf16.msra.mxu0 %v541
    %565 = vmatprep.subr.bf16.mxu0 0
    %566 = vmatpush1.bf16.msra.mxu0 %v542
    %567 = vmatprep.subr.bf16.mxu0 0
    %568 = vmatpush1.bf16.msra.mxu0 0
    %569 = vmatprep.subr.bf16.mxu0 0
    %570 = vmatpush1.bf16.msra.mxu0 0
    %571 = vmatprep.subr.bf16.mxu0 0
    %572 = vmatpush1.bf16.msra.mxu0 0
    %573 = vmatprep.subr.bf16.mxu0 0
    %574 = vmatpush1.bf16.msra.mxu0 0
    %575 = vmatprep.subr.bf16.mxu0 0
    %576 = vmatpush1.bf16.msra.mxu0 0
    %577 = vmatprep.subr.bf16.mxu0 0
    %578 = vmatpush1.bf16.msra.mxu0 0
    %579 = vmatprep.subr.bf16.mxu0 0
    %580 = vmatpush1.bf16.msra.mxu0 0
    %581 = vmatprep.subr.bf16.mxu0 0
    %582 = vmatpush1.bf16.msra.mxu0 0
    %583 = vmatprep.subr.bf16.mxu0 0
    %584 = vmatpush1.bf16.msra.mxu0 0
    %585 = vmatprep.subr.bf16.mxu0 0
    %586 = vmatpush1.bf16.msra.mxu0 0
    %587 = vmatprep.subr.bf16.mxu0 0
    %588 = vmatpush1.bf16.msra.mxu0 0
    %589 = vmatprep.subr.bf16.mxu0 0
    %590 = vmatpush1.bf16.msra.mxu0 0
    %591 = vmatprep.mubr.bf16.mxu0 0
    %592 = vmatmul.mubr.bf16.gmra.mrb[0].mxu0 %v548
    %v593 = vpop.f32.mrb[0].mxu0
    %v594 = vadd.f32 0.0, %v593
    %v595 = vpop.f32.mrb[0].mxu0
    %v596 = vpop.f32.mrb[0].mxu0
    %v597 = vadd.f32 0.0, %v596
    %v598 = vpop.f32.mrb[0].mxu0
    %599 = vmatprep.mubr.bf16.mxu0 0
    %600 = vmatmul.mubr.bf16.gmra.mrb[0].mxu0 %v551
    %v601 = vpop.f32.mrb[0].mxu0
    %v602 = vpop.f32.mrb[0].mxu0
    %v603 = vpop.f32.mrb[0].mxu0
    %v604 = vpop.f32.mrb[0].mxu0
    %605 = vmatprep.mubr.bf16.mxu0 0
    %606 = vmatmul.mubr.bf16.gmra.mrb[0].mxu0 %v554
    %v607 = vpop.f32.mrb[0].mxu0
    %v608 = vadd.f32 0.0, %v607
    %v609 = vpop.f32.mrb[0].mxu0
    %v610 = vpop.f32.mrb[0].mxu0
    %v611 = vadd.f32 0.0, %v610
    %v612 = vpop.f32.mrb[0].mxu0
    %613 = vmatprep.mubr.bf16.mxu0 0
    %614 = vmatmul.mubr.bf16.gmra.mrb[0].mxu0 %v557
    %v615 = vpop.f32.mrb[0].mxu0
    %v616 = vadd.f32 0.0, %v615
    %v617 = vpop.f32.mrb[0].mxu0
    %v618 = vpop.f32.mrb[0].mxu0
    %v619 = vpop.f32.mrb[0].mxu0
    %620 = vdwg.mxu0
    %v621 = vadd.f32 %v475, %v594
    %v622 = vadd.f32 %v478, %v597
    %v623 = vadd.f32 %v489, %v608
    %v624 = vadd.f32 %v492, %v611
    %v625 = vadd.f32 %v497, %v616
    %v626 = vld [vmem:[#allocation2 + $0x18] sm:$0x7]
    %s627 = scalar_lea.vmem [#allocation8], 96
    %v628 = vld [vmem:[%s627] sm:$0xf]
    %v629 = vld [vmem:[%s627 + $0x4] sm:$0xf]
    %v630 = vld [vmem:[%s627 + $0x8] sm:$0xf]
    %v631 = vld [vmem:[%s627 + $0xc] sm:$0xf]
    %v632 = vld [vmem:[%s627 + $0x10] sm:$0xf]
    %v633 = vld [vmem:[%s627 + $0x14] sm:$0xf]
    %v634 = vld [vmem:[%s627 + $0x18] sm:$0xf]
    %v635 = vld [vmem:[%s627 + $0x1c] sm:$0xf]
    %v637 = vunpack.c.l.b16 %v626
    %v638 = vpack.c.b16 %v637, %v637
    %vm639 = vsmask.f32 6400
    %v641 = vshrl.u32 %v514, 16
    %v643 = vrot.slane %v641, 1
    %v644 = vshll.u32 %v514, 16
    %v646 = vrot.slane %v644, 2
    %v647 = vor.u32 %v643, %v646
    %v648 = vrot.slane %v286, 1
    %v649 = vrot.slane %v282, 2
    %v650 = vor.u32 %v648, %v649
    %v651 = vsel %vm639, %v647, %v650
    %v652 = vrot.slane %v294, 1
    %v653 = vrot.slane %v290, 2
    %v654 = vor.u32 %v652, %v653
    %v655 = vsel %vm639, %v650, %v654
    %v657 = vshrl.u32 %v638, 16
    %v659 = vrot.slane %v657, 1
    %v660 = vshll.u32 %v638, 16
    %v662 = vrot.slane %v660, 2
    %v663 = vor.u32 %v659, %v662
    %v664 = vsel %vm639, %v654, %v663
    %v673 = vunpack.c.l.b16 %v628
    %v674 = vunpack.c.l.b16 %v629
    %v675 = vunpack.c.l.b16 %v630
    %v676 = vunpack.c.l.b16 %v631
    %v677 = vunpack.c.l.b16 %v632
    %v678 = vunpack.c.l.b16 %v633
    %v679 = vunpack.c.l.b16 %v634
    %v680 = vunpack.c.l.b16 %v635
    %v681 = vpack.c.b16 %v674, %v673
    %v682 = vpack.c.b16 %v676, %v675
    %v683 = vpack.c.b16 %v678, %v677
    %v684 = vpack.c.b16 %v680, %v679
    %v690 = vsel %vm329, %v651, 0
    %v693 = vsel %vm329, %v655, 0
    %v696 = vsel %vm329, %v664, 0
    %v699 = vsel %vm329, %v663, 0
    %701 = vmatprep.subr.bf16.mxu0 0
    %702 = vmatpush1.bf16.msra.mxu0 %v681
    %703 = vmatprep.subr.bf16.mxu0 0
    %704 = vmatpush1.bf16.msra.mxu0 %v682
    %705 = vmatprep.subr.bf16.mxu0 0
    %706 = vmatpush1.bf16.msra.mxu0 %v683
    %707 = vmatprep.subr.bf16.mxu0 0
    %708 = vmatpush1.bf16.msra.mxu0 %v684
    %709 = vmatprep.subr.bf16.mxu0 0
    %710 = vmatpush1.bf16.msra.mxu0 0
    %711 = vmatprep.subr.bf16.mxu0 0
    %712 = vmatpush1.bf16.msra.mxu0 0
    %713 = vmatprep.subr.bf16.mxu0 0
    %714 = vmatpush1.bf16.msra.mxu0 0
    %715 = vmatprep.subr.bf16.mxu0 0
    %716 = vmatpush1.bf16.msra.mxu0 0
    %717 = vmatprep.subr.bf16.mxu0 0
    %718 = vmatpush1.bf16.msra.mxu0 0
    %719 = vmatprep.subr.bf16.mxu0 0
    %720 = vmatpush1.bf16.msra.mxu0 0
    %721 = vmatprep.subr.bf16.mxu0 0
    %722 = vmatpush1.bf16.msra.mxu0 0
    %723 = vmatprep.subr.bf16.mxu0 0
    %724 = vmatpush1.bf16.msra.mxu0 0
    %725 = vmatprep.subr.bf16.mxu0 0
    %726 = vmatpush1.bf16.msra.mxu0 0
    %727 = vmatprep.subr.bf16.mxu0 0
    %728 = vmatpush1.bf16.msra.mxu0 0
    %729 = vmatprep.subr.bf16.mxu0 0
    %730 = vmatpush1.bf16.msra.mxu0 0
    %731 = vmatprep.subr.bf16.mxu0 0
    %732 = vmatpush1.bf16.msra.mxu0 0
    %733 = vmatprep.mubr.bf16.mxu0 0
    %734 = vmatmul.mubr.bf16.gmra.mrb[0].mxu0 %v690
    %v735 = vpop.f32.mrb[0].mxu0
    %v736 = vadd.f32 0.0, %v735
    %v737 = vpop.f32.mrb[0].mxu0
    %v738 = vpop.f32.mrb[0].mxu0
    %v739 = vadd.f32 0.0, %v738
    %v740 = vpop.f32.mrb[0].mxu0
    %741 = vmatprep.mubr.bf16.mxu0 0
    %742 = vmatmul.mubr.bf16.gmra.mrb[0].mxu0 %v693
    %v743 = vpop.f32.mrb[0].mxu0
    %v744 = vpop.f32.mrb[0].mxu0
    %v745 = vpop.f32.mrb[0].mxu0
    %v746 = vpop.f32.mrb[0].mxu0
    %747 = vmatprep.mubr.bf16.mxu0 0
    %748 = vmatmul.mubr.bf16.gmra.mrb[0].mxu0 %v696
    %v749 = vpop.f32.mrb[0].mxu0
    %v750 = vadd.f32 0.0, %v749
    %v751 = vpop.f32.mrb[0].mxu0
    %v752 = vpop.f32.mrb[0].mxu0
    %v753 = vadd.f32 0.0, %v752
    %v754 = vpop.f32.mrb[0].mxu0
    %755 = vmatprep.mubr.bf16.mxu0 0
    %756 = vmatmul.mubr.bf16.gmra.mrb[0].mxu0 %v699
    %v757 = vpop.f32.mrb[0].mxu0
    %v758 = vadd.f32 0.0, %v757
    %v759 = vpop.f32.mrb[0].mxu0
    %v760 = vpop.f32.mrb[0].mxu0
    %v761 = vpop.f32.mrb[0].mxu0
    %762 = vdwg.mxu0
    %v763 = vadd.f32 %v621, %v736
    %v764 = vadd.f32 %v622, %v739
    %v765 = vadd.f32 %v623, %v750
    %v766 = vadd.f32 %v624, %v753
    %v767 = vadd.f32 %v625, %v758
    %v768 = vld [vmem:[#allocation2] sm:$0xc]
    %s769 = scalar_lea.vmem [#allocation8], 128
    %v770 = vld [vmem:[%s769] sm:$0xf]
    %v771 = vld [vmem:[%s769 + $0x4] sm:$0xf]
    %v772 = vld [vmem:[%s769 + $0x8] sm:$0xf]
    %v773 = vld [vmem:[%s769 + $0xc] sm:$0xf]
    %v774 = vld [vmem:[%s769 + $0x10] sm:$0xf]
    %v775 = vld [vmem:[%s769 + $0x14] sm:$0xf]
    %v776 = vld [vmem:[%s769 + $0x18] sm:$0xf]
    %v777 = vld [vmem:[%s769 + $0x1c] sm:$0xf]
    %v779 = vunpack.c.l.b16 %v768
    %v780 = vpack.c.b16 %v263, %v779
    %vm781 = vcmask 1045504
    %v782 = vrot.slane %v780, 2
    %v783 = vrot.slane %v270, 2
    %v784 = vsel %vm781, %v782, %v783
    %v785 = vrot.slane %v271, 2
    %v786 = vsel %vm781, %v783, %v785
    %v787 = vrot.slane %v638, 2
    %v788 = vsel %vm781, %v785, %v787
    %v797 = vunpack.c.l.b16 %v770
    %v798 = vunpack.c.l.b16 %v771
    %v799 = vunpack.c.l.b16 %v772
    %v800 = vunpack.c.l.b16 %v773
    %v801 = vunpack.c.l.b16 %v774
    %v802 = vunpack.c.l.b16 %v775
    %v803 = vunpack.c.l.b16 %v776
    %v804 = vunpack.c.l.b16 %v777
    %v805 = vpack.c.b16 %v798, %v797
    %v806 = vpack.c.b16 %v800, %v799
    %v807 = vpack.c.b16 %v802, %v801
    %v808 = vpack.c.b16 %v804, %v803
    %v814 = vsel %vm329, %v784, 0
    %v817 = vsel %vm329, %v786, 0
    %v820 = vsel %vm329, %v788, 0
    %v823 = vsel %vm329, %v787, 0
    %825 = vmatprep.subr.bf16.mxu0 0
    %826 = vmatpush1.bf16.msra.mxu0 %v805
    %827 = vmatprep.subr.bf16.mxu0 0
    %828 = vmatpush1.bf16.msra.mxu0 %v806
    %829 = vmatprep.subr.bf16.mxu0 0
    %830 = vmatpush1.bf16.msra.mxu0 %v807
    %831 = vmatprep.subr.bf16.mxu0 0
    %832 = vmatpush1.bf16.msra.mxu0 %v808
    %833 = vmatprep.subr.bf16.mxu0 0
    %834 = vmatpush1.bf16.msra.mxu0 0
    %835 = vmatprep.subr.bf16.mxu0 0
    %836 = vmatpush1.bf16.msra.mxu0 0
    %837 = vmatprep.subr.bf16.mxu0 0
    %838 = vmatpush1.bf16.msra.mxu0 0
    %839 = vmatprep.subr.bf16.mxu0 0
    %840 = vmatpush1.bf16.msra.mxu0 0
    %841 = vmatprep.subr.bf16.mxu0 0
    %842 = vmatpush1.bf16.msra.mxu0 0
    %843 = vmatprep.subr.bf16.mxu0 0
    %844 = vmatpush1.bf16.msra.mxu0 0
    %845 = vmatprep.subr.bf16.mxu0 0
    %846 = vmatpush1.bf16.msra.mxu0 0
    %847 = vmatprep.subr.bf16.mxu0 0
    %848 = vmatpush1.bf16.msra.mxu0 0
    %849 = vmatprep.subr.bf16.mxu0 0
    %850 = vmatpush1.bf16.msra.mxu0 0
    %851 = vmatprep.subr.bf16.mxu0 0
    %852 = vmatpush1.bf16.msra.mxu0 0
    %853 = vmatprep.subr.bf16.mxu0 0
    %854 = vmatpush1.bf16.msra.mxu0 0
    %855 = vmatprep.subr.bf16.mxu0 0
    %856 = vmatpush1.bf16.msra.mxu0 0
    %857 = vmatprep.mubr.bf16.mxu0 0
    %858 = vmatmul.mubr.bf16.gmra.mrb[0].mxu0 %v814
    %v859 = vpop.f32.mrb[0].mxu0
    %v860 = vadd.f32 0.0, %v859
    %v861 = vpop.f32.mrb[0].mxu0
    %v862 = vpop.f32.mrb[0].mxu0
    %v863 = vadd.f32 0.0, %v862
    %v864 = vpop.f32.mrb[0].mxu0
    %865 = vmatprep.mubr.bf16.mxu0 0
    %866 = vmatmul.mubr.bf16.gmra.mrb[0].mxu0 %v817
    %v867 = vpop.f32.mrb[0].mxu0
    %v868 = vpop.f32.mrb[0].mxu0
    %v869 = vpop.f32.mrb[0].mxu0
    %v870 = vpop.f32.mrb[0].mxu0
    %871 = vmatprep.mubr.bf16.mxu0 0
    %872 = vmatmul.mubr.bf16.gmra.mrb[0].mxu0 %v820
    %v873 = vpop.f32.mrb[0].mxu0
    %v874 = vadd.f32 0.0, %v873
    %v875 = vpop.f32.mrb[0].mxu0
    %v876 = vpop.f32.mrb[0].mxu0
    %v877 = vadd.f32 0.0, %v876
    %v878 = vpop.f32.mrb[0].mxu0
    %879 = vmatprep.mubr.bf16.mxu0 0
    %880 = vmatmul.mubr.bf16.gmra.mrb[0].mxu0 %v823
    %v881 = vpop.f32.mrb[0].mxu0
    %v882 = vadd.f32 0.0, %v881
    %v883 = vpop.f32.mrb[0].mxu0
    %v884 = vpop.f32.mrb[0].mxu0
    %v885 = vpop.f32.mrb[0].mxu0
    %886 = vdwg.mxu0
    %v887 = vadd.f32 %v763, %v860
    %v888 = vadd.f32 %v764, %v863
    %v889 = vadd.f32 %v765, %v874
    %v890 = vadd.f32 %v766, %v877
    %v891 = vadd.f32 %v767, %v882
    %v892 = vld [vmem:[#allocation2 + $0x18] sm:$0xf]
    %s893 = scalar_lea.vmem [#allocation8], 160
    %v894 = vld [vmem:[%s893] sm:$0xf]
    %v895 = vld [vmem:[%s893 + $0x4] sm:$0xf]
    %v896 = vld [vmem:[%s893 + $0x8] sm:$0xf]
    %v897 = vld [vmem:[%s893 + $0xc] sm:$0xf]
    %v898 = vld [vmem:[%s893 + $0x10] sm:$0xf]
    %v899 = vld [vmem:[%s893 + $0x14] sm:$0xf]
    %v900 = vld [vmem:[%s893 + $0x18] sm:$0xf]
    %v901 = vld [vmem:[%s893 + $0x1c] sm:$0xf]
    %v903 = vunpack.c.l.b16 %v892
    %v904 = vpack.c.b16 %v903, %v903
    %vm905 = vsmask.f32 5376
    %v907 = vshrl.u32 %v780, 16
    %v909 = vrot.slane %v907, 2
    %v910 = vshll.u32 %v780, 16
    %v912 = vrot.slane %v910, 3
    %v913 = vor.u32 %v909, %v912
    %v914 = vrot.slane %v286, 2
    %v915 = vrot.slane %v282, 3
    %v916 = vor.u32 %v914, %v915
    %v917 = vsel %vm905, %v913, %v916
    %v918 = vrot.slane %v294, 2
    %v919 = vrot.slane %v290, 3
    %v920 = vor.u32 %v918, %v919
    %v921 = vsel %vm905, %v916, %v920
    %v923 = vshrl.u32 %v904, 16
    %v925 = vrot.slane %v923, 2
    %v926 = vshll.u32 %v904, 16
    %v928 = vrot.slane %v926, 3
    %v929 = vor.u32 %v925, %v928
    %v930 = vsel %vm905, %v920, %v929
    %v939 = vunpack.c.l.b16 %v894
    %v940 = vunpack.c.l.b16 %v895
    %v941 = vunpack.c.l.b16 %v896
    %v942 = vunpack.c.l.b16 %v897
    %v943 = vunpack.c.l.b16 %v898
    %v944 = vunpack.c.l.b16 %v899
    %v945 = vunpack.c.l.b16 %v900
    %v946 = vunpack.c.l.b16 %v901
    %v947 = vpack.c.b16 %v940, %v939
    %v948 = vpack.c.b16 %v942, %v941
    %v949 = vpack.c.b16 %v944, %v943
    %v950 = vpack.c.b16 %v946, %v945
    %v956 = vsel %vm329, %v917, 0
    %v959 = vsel %vm329, %v921, 0
    %v962 = vsel %vm329, %v930, 0
    %v965 = vsel %vm329, %v929, 0
    %967 = vmatprep.subr.bf16.mxu0 0
    %968 = vmatpush1.bf16.msra.mxu0 %v947
    %969 = vmatprep.subr.bf16.mxu0 0
    %970 = vmatpush1.bf16.msra.mxu0 %v948
    %971 = vmatprep.subr.bf16.mxu0 0
    %972 = vmatpush1.bf16.msra.mxu0 %v949
    %973 = vmatprep.subr.bf16.mxu0 0
    %974 = vmatpush1.bf16.msra.mxu0 %v950
    %975 = vmatprep.subr.bf16.mxu0 0
    %976 = vmatpush1.bf16.msra.mxu0 0
    %977 = vmatprep.subr.bf16.mxu0 0
    %978 = vmatpush1.bf16.msra.mxu0 0
    %979 = vmatprep.subr.bf16.mxu0 0
    %980 = vmatpush1.bf16.msra.mxu0 0
    %981 = vmatprep.subr.bf16.mxu0 0
    %982 = vmatpush1.bf16.msra.mxu0 0
    %983 = vmatprep.subr.bf16.mxu0 0
    %984 = vmatpush1.bf16.msra.mxu0 0
    %985 = vmatprep.subr.bf16.mxu0 0
    %986 = vmatpush1.bf16.msra.mxu0 0
    %987 = vmatprep.subr.bf16.mxu0 0
    %988 = vmatpush1.bf16.msra.mxu0 0
    %989 = vmatprep.subr.bf16.mxu0 0
    %990 = vmatpush1.bf16.msra.mxu0 0
    %991 = vmatprep.subr.bf16.mxu0 0
    %992 = vmatpush1.bf16.msra.mxu0 0
    %993 = vmatprep.subr.bf16.mxu0 0
    %994 = vmatpush1.bf16.msra.mxu0 0
    %995 = vmatprep.subr.bf16.mxu0 0
    %996 = vmatpush1.bf16.msra.mxu0 0
    %997 = vmatprep.subr.bf16.mxu0 0
    %998 = vmatpush1.bf16.msra.mxu0 0
    %999 = vmatprep.mubr.bf16.mxu0 0
    %1000 = vmatmul.mubr.bf16.gmra.mrb[0].mxu0 %v956
    %v1001 = vpop.f32.mrb[0].mxu0
    %v1002 = vadd.f32 0.0, %v1001
    %v1003 = vpop.f32.mrb[0].mxu0
    %v1004 = vpop.f32.mrb[0].mxu0
    %v1005 = vadd.f32 0.0, %v1004
    %v1006 = vpop.f32.mrb[0].mxu0
    %1007 = vmatprep.mubr.bf16.mxu0 0
    %1008 = vmatmul.mubr.bf16.gmra.mrb[0].mxu0 %v959
    %v1009 = vpop.f32.mrb[0].mxu0
    %v1010 = vpop.f32.mrb[0].mxu0
    %v1011 = vpop.f32.mrb[0].mxu0
    %v1012 = vpop.f32.mrb[0].mxu0
    %1013 = vmatprep.mubr.bf16.mxu0 0
    %1014 = vmatmul.mubr.bf16.gmra.mrb[0].mxu0 %v962
    %v1015 = vpop.f32.mrb[0].mxu0
    %v1016 = vadd.f32 0.0, %v1015
    %v1017 = vpop.f32.mrb[0].mxu0
    %v1018 = vpop.f32.mrb[0].mxu0
    %v1019 = vadd.f32 0.0, %v1018
    %v1020 = vpop.f32.mrb[0].mxu0
    %1021 = vmatprep.mubr.bf16.mxu0 0
    %1022 = vmatmul.mubr.bf16.gmra.mrb[0].mxu0 %v965
    %v1023 = vpop.f32.mrb[0].mxu0
    %v1024 = vadd.f32 0.0, %v1023
    %v1025 = vpop.f32.mrb[0].mxu0
    %v1026 = vpop.f32.mrb[0].mxu0
    %v1027 = vpop.f32.mrb[0].mxu0
    %1028 = vdwg.mxu0
    %v1029 = vadd.f32 %v887, %v1002
    %v1030 = vadd.f32 %v888, %v1005
    %v1031 = vadd.f32 %v889, %v1016
    %v1032 = vadd.f32 %v890, %v1019
    %v1033 = vadd.f32 %v891, %v1024
    %v1034 = vld [vmem:[#allocation2] sm:$0x8]
    %s1035 = scalar_lea.vmem [#allocation8], 192
    %v1036 = vld [vmem:[%s1035] sm:$0xf]
    %v1037 = vld [vmem:[%s1035 + $0x4] sm:$0xf]
    %v1038 = vld [vmem:[%s1035 + $0x8] sm:$0xf]
    %v1039 = vld [vmem:[%s1035 + $0xc] sm:$0xf]
    %v1040 = vld [vmem:[%s1035 + $0x10] sm:$0xf]
    %v1041 = vld [vmem:[%s1035 + $0x14] sm:$0xf]
    %v1042 = vld [vmem:[%s1035 + $0x18] sm:$0xf]
    %v1043 = vld [vmem:[%s1035 + $0x1c] sm:$0xf]
    %v1045 = vunpack.c.l.b16 %v1034
    %v1046 = vpack.c.b16 %v263, %v1045
    %vm1047 = vcmask 1044480
    %v1048 = vrot.slane %v1046, 3
    %v1049 = vrot.slane %v270, 3
    %v1050 = vsel %vm1047, %v1048, %v1049
    %v1051 = vrot.slane %v271, 3
    %v1052 = vsel %vm1047, %v1049, %v1051
    %v1053 = vrot.slane %v904, 3
    %v1054 = vsel %vm1047, %v1051, %v1053
    %v1063 = vunpack.c.l.b16 %v1036
    %v1064 = vunpack.c.l.b16 %v1037
    %v1065 = vunpack.c.l.b16 %v1038
    %v1066 = vunpack.c.l.b16 %v1039
    %v1067 = vunpack.c.l.b16 %v1040
    %v1068 = vunpack.c.l.b16 %v1041
    %v1069 = vunpack.c.l.b16 %v1042
    %v1070 = vunpack.c.l.b16 %v1043
    %v1071 = vpack.c.b16 %v1064, %v1063
    %v1072 = vpack.c.b16 %v1066, %v1065
    %v1073 = vpack.c.b16 %v1068, %v1067
    %v1074 = vpack.c.b16 %v1070, %v1069
    %v1080 = vsel %vm329, %v1050, 0
    %v1083 = vsel %vm329, %v1052, 0
    %v1086 = vsel %vm329, %v1054, 0
    %v1089 = vsel %vm329, %v1053, 0
    %1091 = vmatprep.subr.bf16.mxu0 0
    %1092 = vmatpush1.bf16.msra.mxu0 %v1071
    %1093 = vmatprep.subr.bf16.mxu0 0
    %1094 = vmatpush1.bf16.msra.mxu0 %v1072
    %1095 = vmatprep.subr.bf16.mxu0 0
    %1096 = vmatpush1.bf16.msra.mxu0 %v1073
    %1097 = vmatprep.subr.bf16.mxu0 0
    %1098 = vmatpush1.bf16.msra.mxu0 %v1074
    %1099 = vmatprep.subr.bf16.mxu0 0
    %1100 = vmatpush1.bf16.msra.mxu0 0
    %1101 = vmatprep.subr.bf16.mxu0 0
    %1102 = vmatpush1.bf16.msra.mxu0 0
    %1103 = vmatprep.subr.bf16.mxu0 0
    %1104 = vmatpush1.bf16.msra.mxu0 0
    %1105 = vmatprep.subr.bf16.mxu0 0
    %1106 = vmatpush1.bf16.msra.mxu0 0
    %1107 = vmatprep.subr.bf16.mxu0 0
    %1108 = vmatpush1.bf16.msra.mxu0 0
    %1109 = vmatprep.subr.bf16.mxu0 0
    %1110 = vmatpush1.bf16.msra.mxu0 0
    %1111 = vmatprep.subr.bf16.mxu0 0
    %1112 = vmatpush1.bf16.msra.mxu0 0
    %1113 = vmatprep.subr.bf16.mxu0 0
    %1114 = vmatpush1.bf16.msra.mxu0 0
    %1115 = vmatprep.subr.bf16.mxu0 0
    %1116 = vmatpush1.bf16.msra.mxu0 0
    %1117 = vmatprep.subr.bf16.mxu0 0
    %1118 = vmatpush1.bf16.msra.mxu0 0
    %1119 = vmatprep.subr.bf16.mxu0 0
    %1120 = vmatpush1.bf16.msra.mxu0 0
    %1121 = vmatprep.subr.bf16.mxu0 0
    %1122 = vmatpush1.bf16.msra.mxu0 0
    %1123 = vmatprep.mubr.bf16.mxu0 0
    %1124 = vmatmul.mubr.bf16.gmra.mrb[0].mxu0 %v1080
    %v1125 = vpop.f32.mrb[0].mxu0
    %v1126 = vadd.f32 0.0, %v1125
    %v1127 = vpop.f32.mrb[0].mxu0
    %v1128 = vpop.f32.mrb[0].mxu0
    %v1129 = vadd.f32 0.0, %v1128
    %v1130 = vpop.f32.mrb[0].mxu0
    %1131 = vmatprep.mubr.bf16.mxu0 0
    %1132 = vmatmul.mubr.bf16.gmra.mrb[0].mxu0 %v1083
    %v1133 = vpop.f32.mrb[0].mxu0
    %v1134 = vpop.f32.mrb[0].mxu0
    %v1135 = vpop.f32.mrb[0].mxu0
    %v1136 = vpop.f32.mrb[0].mxu0
    %1137 = vmatprep.mubr.bf16.mxu0 0
    %1138 = vmatmul.mubr.bf16.gmra.mrb[0].mxu0 %v1086
    %v1139 = vpop.f32.mrb[0].mxu0
    %v1140 = vadd.f32 0.0, %v1139
    %v1141 = vpop.f32.mrb[0].mxu0
    %v1142 = vpop.f32.mrb[0].mxu0
    %v1143 = vadd.f32 0.0, %v1142
    %v1144 = vpop.f32.mrb[0].mxu0
    %1145 = vmatprep.mubr.bf16.mxu0 0
    %1146 = vmatmul.mubr.bf16.gmra.mrb[0].mxu0 %v1089
    %v1147 = vpop.f32.mrb[0].mxu0
    %v1148 = vadd.f32 0.0, %v1147
    %v1149 = vpop.f32.mrb[0].mxu0
    %v1150 = vpop.f32.mrb[0].mxu0
    %v1151 = vpop.f32.mrb[0].mxu0
    %1152 = vdwg.mxu0
    %v1153 = vadd.f32 %v1029, %v1126
    %v1154 = vadd.f32 %v1030, %v1129
    %v1155 = vadd.f32 %v1031, %v1140
    %v1156 = vadd.f32 %v1032, %v1143
    %v1157 = vadd.f32 %v1033, %v1148
    %v1158 = vld [vmem:[#allocation2] sm:$0x8]
    %v1159 = vld [vmem:[#allocation2 + $0x4] sm:$0xf]
    %v1160 = vld [vmem:[#allocation2 + $0x8] sm:$0xf]
    %v1161 = vld [vmem:[#allocation2 + $0xc] sm:$0xf]
    %v1162 = vld [vmem:[#allocation2 + $0x10] sm:$0xf]
    %v1163 = vld [vmem:[#allocation2 + $0x14] sm:$0xf]
    %v1164 = vld [vmem:[#allocation2 + $0x18] sm:$0xf]
    %v1165 = vld [vmem:[#allocation2 + $0x1c] sm:$0x1]
    %s1166 = scalar_lea.vmem [#allocation8], 224
    %v1167 = vld [vmem:[%s1166] sm:$0xf]
    %v1168 = vld [vmem:[%s1166 + $0x4] sm:$0xf]
    %v1169 = vld [vmem:[%s1166 + $0x8] sm:$0xf]
    %v1170 = vld [vmem:[%s1166 + $0xc] sm:$0xf]
    %v1171 = vld [vmem:[%s1166 + $0x10] sm:$0xf]
    %v1172 = vld [vmem:[%s1166 + $0x14] sm:$0xf]
    %v1173 = vld [vmem:[%s1166 + $0x18] sm:$0xf]
    %v1174 = vld [vmem:[%s1166 + $0x1c] sm:$0xf]
    %v1183 = vunpack.c.l.b16 %v1158
    %v1184 = vunpack.c.l.b16 %v1159
    %v1185 = vunpack.c.l.b16 %v1160
    %v1186 = vunpack.c.l.b16 %v1161
    %v1187 = vunpack.c.l.b16 %v1162
    %v1188 = vunpack.c.l.b16 %v1163
    %v1189 = vunpack.c.l.b16 %v1164
    %v1190 = vunpack.c.l.b16 %v1165
    %v1191 = vpack.c.b16 %v1184, %v1183
    %v1192 = vpack.c.b16 %v1186, %v1185
    %v1193 = vpack.c.b16 %v1188, %v1187
    %v1194 = vpack.c.b16 %v1190, %v1189
    %vm1195 = vsmask.f32 4352
    %v1197 = vshrl.u32 %v1191, 16
    %v1199 = vrot.slane %v1197, 3
    %v1200 = vshll.u32 %v1191, 16
    %v1202 = vrot.slane %v1200, 4
    %v1203 = vor.u32 %v1199, %v1202
    %v1205 = vshrl.u32 %v1192, 16
    %v1207 = vrot.slane %v1205, 3
    %v1208 = vshll.u32 %v1192, 16
    %v1210 = vrot.slane %v1208, 4
    %v1211 = vor.u32 %v1207, %v1210
    %v1212 = vsel %vm1195, %v1203, %v1211
    %v1214 = vshrl.u32 %v1193, 16
    %v1216 = vrot.slane %v1214, 3
    %v1217 = vshll.u32 %v1193, 16
    %v1219 = vrot.slane %v1217, 4
    %v1220 = vor.u32 %v1216, %v1219
    %v1221 = vsel %vm1195, %v1211, %v1220
    %v1223 = vshrl.u32 %v1194, 16
    %v1225 = vrot.slane %v1223, 3
    %v1226 = vshll.u32 %v1194, 16
    %v1228 = vrot.slane %v1226, 4
    %v1229 = vor.u32 %v1225, %v1228
    %v1230 = vsel %vm1195, %v1220, %v1229
    %v1239 = vunpack.c.l.b16 %v1167
    %v1240 = vunpack.c.l.b16 %v1168
    %v1241 = vunpack.c.l.b16 %v1169
    %v1242 = vunpack.c.l.b16 %v1170
    %v1243 = vunpack.c.l.b16 %v1171
    %v1244 = vunpack.c.l.b16 %v1172
    %v1245 = vunpack.c.l.b16 %v1173
    %v1246 = vunpack.c.l.b16 %v1174
    %v1247 = vpack.c.b16 %v1240, %v1239
    %v1248 = vpack.c.b16 %v1242, %v1241
    %v1249 = vpack.c.b16 %v1244, %v1243
    %v1250 = vpack.c.b16 %v1246, %v1245
    %v1256 = vsel %vm329, %v1212, 0
    %v1259 = vsel %vm329, %v1221, 0
    %v1262 = vsel %vm329, %v1230, 0
    %v1265 = vsel %vm329, %v1229, 0
    %1267 = vmatprep.subr.bf16.mxu0 0
    %1268 = vmatpush1.bf16.msra.mxu0 %v1247
    %1269 = vmatprep.subr.bf16.mxu0 0
    %1270 = vmatpush1.bf16.msra.mxu0 %v1248
    %1271 = vmatprep.subr.bf16.mxu0 0
    %1272 = vmatpush1.bf16.msra.mxu0 %v1249
    %1273 = vmatprep.subr.bf16.mxu0 0
    %1274 = vmatpush1.bf16.msra.mxu0 %v1250
    %1275 = vmatprep.subr.bf16.mxu0 0
    %1276 = vmatpush1.bf16.msra.mxu0 0
    %1277 = vmatprep.subr.bf16.mxu0 0
    %1278 = vmatpush1.bf16.msra.mxu0 0
    %1279 = vmatprep.subr.bf16.mxu0 0
    %1280 = vmatpush1.bf16.msra.mxu0 0
    %1281 = vmatprep.subr.bf16.mxu0 0
    %1282 = vmatpush1.bf16.msra.mxu0 0
    %1283 = vmatprep.subr.bf16.mxu0 0
    %1284 = vmatpush1.bf16.msra.mxu0 0
    %1285 = vmatprep.subr.bf16.mxu0 0
    %1286 = vmatpush1.bf16.msra.mxu0 0
    %1287 = vmatprep.subr.bf16.mxu0 0
    %1288 = vmatpush1.bf16.msra.mxu0 0
    %1289 = vmatprep.subr.bf16.mxu0 0
    %1290 = vmatpush1.bf16.msra.mxu0 0
    %1291 = vmatprep.subr.bf16.mxu0 0
    %1292 = vmatpush1.bf16.msra.mxu0 0
    %1293 = vmatprep.subr.bf16.mxu0 0
    %1294 = vmatpush1.bf16.msra.mxu0 0
    %1295 = vmatprep.subr.bf16.mxu0 0
    %1296 = vmatpush1.bf16.msra.mxu0 0
    %1297 = vmatprep.subr.bf16.mxu0 0
    %1298 = vmatpush1.bf16.msra.mxu0 0
    %1299 = vmatprep.mubr.bf16.mxu0 0
    %1300 = vmatmul.mubr.bf16.gmra.mrb[0].mxu0 %v1256
    %v1301 = vpop.f32.mrb[0].mxu0
    %v1302 = vadd.f32 0.0, %v1301
    %v1303 = vpop.f32.mrb[0].mxu0
    %v1304 = vpop.f32.mrb[0].mxu0
    %v1305 = vadd.f32 0.0, %v1304
    %v1306 = vpop.f32.mrb[0].mxu0
    %1307 = vmatprep.mubr.bf16.mxu0 0
    %1308 = vmatmul.mubr.bf16.gmra.mrb[0].mxu0 %v1259
    %v1309 = vpop.f32.mrb[0].mxu0
    %v1310 = vpop.f32.mrb[0].mxu0
    %v1311 = vpop.f32.mrb[0].mxu0
    %v1312 = vpop.f32.mrb[0].mxu0
    %1313 = vmatprep.mubr.bf16.mxu0 0
    %1314 = vmatmul.mubr.bf16.gmra.mrb[0].mxu0 %v1262
    %v1315 = vpop.f32.mrb[0].mxu0
    %v1316 = vadd.f32 0.0, %v1315
    %v1317 = vpop.f32.mrb[0].mxu0
    %v1318 = vpop.f32.mrb[0].mxu0
    %v1319 = vadd.f32 0.0, %v1318
    %v1320 = vpop.f32.mrb[0].mxu0
    %1321 = vmatprep.mubr.bf16.mxu0 0
    %1322 = vmatmul.mubr.bf16.gmra.mrb[0].mxu0 %v1265
    %v1323 = vpop.f32.mrb[0].mxu0
    %v1324 = vadd.f32 0.0, %v1323
    %v1325 = vpop.f32.mrb[0].mxu0
    %v1326 = vpop.f32.mrb[0].mxu0
    %v1327 = vpop.f32.mrb[0].mxu0
    %1328 = vdwg.mxu0
    %v1329 = vadd.f32 %v1153, %v1302
    %v1330 = vadd.f32 %v1154, %v1305
    %v1331 = vadd.f32 %v1155, %v1316
    %v1332 = vadd.f32 %v1156, %v1319
    %v1333 = vadd.f32 %v1157, %v1324
    %s1334 = scalar_lea.vmem [#allocation8], 256
    %v1335 = vld [vmem:[%s1334] sm:$0xf]
    %v1336 = vld [vmem:[%s1334 + $0x4] sm:$0xf]
    %v1337 = vld [vmem:[%s1334 + $0x8] sm:$0xf]
    %v1338 = vld [vmem:[%s1334 + $0xc] sm:$0xf]
    %v1339 = vld [vmem:[%s1334 + $0x10] sm:$0xf]
    %v1340 = vld [vmem:[%s1334 + $0x14] sm:$0xf]
    %v1341 = vld [vmem:[%s1334 + $0x18] sm:$0xf]
    %v1342 = vld [vmem:[%s1334 + $0x1c] sm:$0xf]
    %v1343 = vpack.c.b16 %v1185, %v1184
    %v1344 = vpack.c.b16 %v1187, %v1186
    %v1345 = vpack.c.b16 %v1189, %v1188
    %v1346 = vpack.c.b16 %v1190, %v1190
    %v1355 = vunpack.c.l.b16 %v1335
    %v1356 = vunpack.c.l.b16 %v1336
    %v1357 = vunpack.c.l.b16 %v1337
    %v1358 = vunpack.c.l.b16 %v1338
    %v1359 = vunpack.c.l.b16 %v1339
    %v1360 = vunpack.c.l.b16 %v1340
    %v1361 = vunpack.c.l.b16 %v1341
    %v1362 = vunpack.c.l.b16 %v1342
    %v1363 = vpack.c.b16 %v1356, %v1355
    %v1364 = vpack.c.b16 %v1358, %v1357
    %v1365 = vpack.c.b16 %v1360, %v1359
    %v1366 = vpack.c.b16 %v1362, %v1361
    %v1372 = vsel %vm329, %v1343, 0
    %v1375 = vsel %vm329, %v1344, 0
    %v1378 = vsel %vm329, %v1345, 0
    %v1381 = vsel %vm329, %v1346, 0
    %1383 = vmatprep.subr.bf16.mxu0 0
    %1384 = vmatpush1.bf16.msra.mxu0 %v1363
    %1385 = vmatprep.subr.bf16.mxu0 0
    %1386 = vmatpush1.bf16.msra.mxu0 %v1364
    %1387 = vmatprep.subr.bf16.mxu0 0
    %1388 = vmatpush1.bf16.msra.mxu0 %v1365
    %1389 = vmatprep.subr.bf16.mxu0 0
    %1390 = vmatpush1.bf16.msra.mxu0 %v1366
    %1391 = vmatprep.subr.bf16.mxu0 0
    %1392 = vmatpush1.bf16.msra.mxu0 0
    %1393 = vmatprep.subr.bf16.mxu0 0
    %1394 = vmatpush1.bf16.msra.mxu0 0
    %1395 = vmatprep.subr.bf16.mxu0 0
    %1396 = vmatpush1.bf16.msra.mxu0 0
    %1397 = vmatprep.subr.bf16.mxu0 0
    %1398 = vmatpush1.bf16.msra.mxu0 0
    %1399 = vmatprep.subr.bf16.mxu0 0
    %1400 = vmatpush1.bf16.msra.mxu0 0
    %1401 = vmatprep.subr.bf16.mxu0 0
    %1402 = vmatpush1.bf16.msra.mxu0 0
    %1403 = vmatprep.subr.bf16.mxu0 0
    %1404 = vmatpush1.bf16.msra.mxu0 0
    %1405 = vmatprep.subr.bf16.mxu0 0
    %1406 = vmatpush1.bf16.msra.mxu0 0
    %1407 = vmatprep.subr.bf16.mxu0 0
    %1408 = vmatpush1.bf16.msra.mxu0 0
    %1409 = vmatprep.subr.bf16.mxu0 0
    %1410 = vmatpush1.bf16.msra.mxu0 0
    %1411 = vmatprep.subr.bf16.mxu0 0
    %1412 = vmatpush1.bf16.msra.mxu0 0
    %1413 = vmatprep.subr.bf16.mxu0 0
    %1414 = vmatpush1.bf16.msra.mxu0 0
    %1415 = vmatprep.mubr.bf16.mxu0 0
    %1416 = vmatmul.mubr.bf16.gmra.mrb[0].mxu0 %v1372
    %v1417 = vpop.f32.mrb[0].mxu0
    %v1418 = vadd.f32 0.0, %v1417
    %v1419 = vpop.f32.mrb[0].mxu0
    %v1420 = vpop.f32.mrb[0].mxu0
    %v1421 = vadd.f32 0.0, %v1420
    %v1422 = vpop.f32.mrb[0].mxu0
    %1423 = vmatprep.mubr.bf16.mxu0 0
    %1424 = vmatmul.mubr.bf16.gmra.mrb[0].mxu0 %v1375
    %v1425 = vpop.f32.mrb[0].mxu0
    %v1426 = vpop.f32.mrb[0].mxu0
    %v1427 = vpop.f32.mrb[0].mxu0
    %v1428 = vpop.f32.mrb[0].mxu0
    %1429 = vmatprep.mubr.bf16.mxu0 0
    %1430 = vmatmul.mubr.bf16.gmra.mrb[0].mxu0 %v1378
    %v1431 = vpop.f32.mrb[0].mxu0
    %v1432 = vadd.f32 0.0, %v1431
    %v1433 = vpop.f32.mrb[0].mxu0
    %v1434 = vpop.f32.mrb[0].mxu0
    %v1435 = vadd.f32 0.0, %v1434
    %v1436 = vpop.f32.mrb[0].mxu0
    %1437 = vmatprep.mubr.bf16.mxu0 0
    %1438 = vmatmul.mubr.bf16.gmra.mrb[0].mxu0 %v1381
    %v1439 = vpop.f32.mrb[0].mxu0
    %v1440 = vadd.f32 0.0, %v1439
    %v1441 = vpop.f32.mrb[0].mxu0
    %v1442 = vpop.f32.mrb[0].mxu0
    %v1443 = vpop.f32.mrb[0].mxu0
    %1444 = vdwg.mxu0
    %v1445 = vadd.f32 %v1329, %v1418
    %v1446 = vadd.f32 %v1330, %v1421
    %v1447 = vadd.f32 %v1331, %v1432
    %v1448 = vadd.f32 %v1332, %v1435
    %v1449 = vadd.f32 %v1333, %v1440
    %v1450 = vld [vmem:[#allocation2 + $0x1c] sm:$0x3]
    %s1451 = scalar_lea.vmem [#allocation8], 288
    %v1452 = vld [vmem:[%s1451] sm:$0xf]
    %v1453 = vld [vmem:[%s1451 + $0x4] sm:$0xf]
    %v1454 = vld [vmem:[%s1451 + $0x8] sm:$0xf]
    %v1455 = vld [vmem:[%s1451 + $0xc] sm:$0xf]
    %v1456 = vld [vmem:[%s1451 + $0x10] sm:$0xf]
    %v1457 = vld [vmem:[%s1451 + $0x14] sm:$0xf]
    %v1458 = vld [vmem:[%s1451 + $0x18] sm:$0xf]
    %v1459 = vld [vmem:[%s1451 + $0x1c] sm:$0xf]
    %v1461 = vunpack.c.l.b16 %v1450
    %v1462 = vpack.c.b16 %v1461, %v1461
    %v1463 = vshrl.u32 %v1343, 16
    %v1465 = vshll.u32 %v1343, 16
    %v1467 = vrot.slane %v1465, 1
    %v1468 = vor.u32 %v1463, %v1467
    %v1469 = vshll.u32 %v1344, 16
    %v1471 = vrot.slane %v1469, 1
    %v1472 = vsel %vm273, %v1468, %v1471
    %v1473 = vshrl.u32 %v1344, 16
    %v1475 = vor.u32 %v1473, %v1471
    %v1476 = vshll.u32 %v1345, 16
    %v1478 = vrot.slane %v1476, 1
    %v1479 = vsel %vm273, %v1475, %v1478
    %v1480 = vshrl.u32 %v1345, 16
    %v1482 = vor.u32 %v1480, %v1478
    %v1484 = vshll.u32 %v1462, 16
    %v1486 = vrot.slane %v1484, 1
    %v1487 = vsel %vm273, %v1482, %v1486
    %v1488 = vshrl.u32 %v1462, 16
    %v1490 = vor.u32 %v1488, %v1486
    %v1499 = vunpack.c.l.b16 %v1452
    %v1500 = vunpack.c.l.b16 %v1453
    %v1501 = vunpack.c.l.b16 %v1454
    %v1502 = vunpack.c.l.b16 %v1455
    %v1503 = vunpack.c.l.b16 %v1456
    %v1504 = vunpack.c.l.b16 %v1457
    %v1505 = vunpack.c.l.b16 %v1458
    %v1506 = vunpack.c.l.b16 %v1459
    %v1507 = vpack.c.b16 %v1500, %v1499
    %v1508 = vpack.c.b16 %v1502, %v1501
    %v1509 = vpack.c.b16 %v1504, %v1503
    %v1510 = vpack.c.b16 %v1506, %v1505
    %v1516 = vsel %vm329, %v1472, 0
    %v1519 = vsel %vm329, %v1479, 0
    %v1522 = vsel %vm329, %v1487, 0
    %v1525 = vsel %vm329, %v1490, 0
    %1527 = vmatprep.subr.bf16.mxu0 0
    %1528 = vmatpush1.bf16.msra.mxu0 %v1507
    %1529 = vmatprep.subr.bf16.mxu0 0
    %1530 = vmatpush1.bf16.msra.mxu0 %v1508
    %1531 = vmatprep.subr.bf16.mxu0 0
    %1532 = vmatpush1.bf16.msra.mxu0 %v1509
    %1533 = vmatprep.subr.bf16.mxu0 0
    %1534 = vmatpush1.bf16.msra.mxu0 %v1510
    %1535 = vmatprep.subr.bf16.mxu0 0
    %1536 = vmatpush1.bf16.msra.mxu0 0
    %1537 = vmatprep.subr.bf16.mxu0 0
    %1538 = vmatpush1.bf16.msra.mxu0 0
    %1539 = vmatprep.subr.bf16.mxu0 0
    %1540 = vmatpush1.bf16.msra.mxu0 0
    %1541 = vmatprep.subr.bf16.mxu0 0
    %1542 = vmatpush1.bf16.msra.mxu0 0
    %1543 = vmatprep.subr.bf16.mxu0 0
    %1544 = vmatpush1.bf16.msra.mxu0 0
    %1545 = vmatprep.subr.bf16.mxu0 0
    %1546 = vmatpush1.bf16.msra.mxu0 0
    %1547 = vmatprep.subr.bf16.mxu0 0
    %1548 = vmatpush1.bf16.msra.mxu0 0
    %1549 = vmatprep.subr.bf16.mxu0 0
    %1550 = vmatpush1.bf16.msra.mxu0 0
    %1551 = vmatprep.subr.bf16.mxu0 0
    %1552 = vmatpush1.bf16.msra.mxu0 0
    %1553 = vmatprep.subr.bf16.mxu0 0
    %1554 = vmatpush1.bf16.msra.mxu0 0
    %1555 = vmatprep.subr.bf16.mxu0 0
    %1556 = vmatpush1.bf16.msra.mxu0 0
    %1557 = vmatprep.subr.bf16.mxu0 0
    %1558 = vmatpush1.bf16.msra.mxu0 0
    %1559 = vmatprep.mubr.bf16.mxu0 0
    %1560 = vmatmul.mubr.bf16.gmra.mrb[0].mxu0 %v1516
    %v1561 = vpop.f32.mrb[0].mxu0
    %v1562 = vadd.f32 0.0, %v1561
    %v1563 = vpop.f32.mrb[0].mxu0
    %v1564 = vpop.f32.mrb[0].mxu0
    %v1565 = vadd.f32 0.0, %v1564
    %v1566 = vpop.f32.mrb[0].mxu0
    %1567 = vmatprep.mubr.bf16.mxu0 0
    %1568 = vmatmul.mubr.bf16.gmra.mrb[0].mxu0 %v1519
    %v1569 = vpop.f32.mrb[0].mxu0
    %v1570 = vpop.f32.mrb[0].mxu0
    %v1571 = vpop.f32.mrb[0].mxu0
    %v1572 = vpop.f32.mrb[0].mxu0
    %1573 = vmatprep.mubr.bf16.mxu0 0
    %1574 = vmatmul.mubr.bf16.gmra.mrb[0].mxu0 %v1522
    %v1575 = vpop.f32.mrb[0].mxu0
    %v1576 = vadd.f32 0.0, %v1575
    %v1577 = vpop.f32.mrb[0].mxu0
    %v1578 = vpop.f32.mrb[0].mxu0
    %v1579 = vadd.f32 0.0, %v1578
    %v1580 = vpop.f32.mrb[0].mxu0
    %1581 = vmatprep.mubr.bf16.mxu0 0
    %1582 = vmatmul.mubr.bf16.gmra.mrb[0].mxu0 %v1525
    %v1583 = vpop.f32.mrb[0].mxu0
    %v1584 = vadd.f32 0.0, %v1583
    %v1585 = vpop.f32.mrb[0].mxu0
    %v1586 = vpop.f32.mrb[0].mxu0
    %v1587 = vpop.f32.mrb[0].mxu0
    %1588 = vdwg.mxu0
    %v1589 = vadd.f32 %v1445, %v1562
    %v1590 = vadd.f32 %v1446, %v1565
    %v1591 = vadd.f32 %v1447, %v1576
    %v1592 = vadd.f32 %v1448, %v1579
    %v1593 = vadd.f32 %v1449, %v1584
    %v1594 = vld [vmem:[#allocation2 + $0x4] sm:$0xe]
    %s1595 = scalar_lea.vmem [#allocation8], 320
    %v1596 = vld [vmem:[%s1595] sm:$0xf]
    %v1597 = vld [vmem:[%s1595 + $0x4] sm:$0xf]
    %v1598 = vld [vmem:[%s1595 + $0x8] sm:$0xf]
    %v1599 = vld [vmem:[%s1595 + $0xc] sm:$0xf]
    %v1600 = vld [vmem:[%s1595 + $0x10] sm:$0xf]
    %v1601 = vld [vmem:[%s1595 + $0x14] sm:$0xf]
    %v1602 = vld [vmem:[%s1595 + $0x18] sm:$0xf]
    %v1603 = vld [vmem:[%s1595 + $0x1c] sm:$0xf]
    %v1605 = vunpack.c.l.b16 %v1594
    %v1606 = vpack.c.b16 %v1185, %v1605
    %v1607 = vrot.slane %v1606, 1
    %v1608 = vrot.slane %v1344, 1
    %v1609 = vsel %vm515, %v1607, %v1608
    %v1610 = vrot.slane %v1345, 1
    %v1611 = vsel %vm515, %v1608, %v1610
    %v1612 = vrot.slane %v1462, 1
    %v1613 = vsel %vm515, %v1610, %v1612
    %v1622 = vunpack.c.l.b16 %v1596
    %v1623 = vunpack.c.l.b16 %v1597
    %v1624 = vunpack.c.l.b16 %v1598
    %v1625 = vunpack.c.l.b16 %v1599
    %v1626 = vunpack.c.l.b16 %v1600
    %v1627 = vunpack.c.l.b16 %v1601
    %v1628 = vunpack.c.l.b16 %v1602
    %v1629 = vunpack.c.l.b16 %v1603
    %v1630 = vpack.c.b16 %v1623, %v1622
    %v1631 = vpack.c.b16 %v1625, %v1624
    %v1632 = vpack.c.b16 %v1627, %v1626
    %v1633 = vpack.c.b16 %v1629, %v1628
    %v1639 = vsel %vm329, %v1609, 0
    %v1642 = vsel %vm329, %v1611, 0
    %v1645 = vsel %vm329, %v1613, 0
    %v1648 = vsel %vm329, %v1612, 0
    %1650 = vmatprep.subr.bf16.mxu0 0
    %1651 = vmatpush1.bf16.msra.mxu0 %v1630
    %1652 = vmatprep.subr.bf16.mxu0 0
    %1653 = vmatpush1.bf16.msra.mxu0 %v1631
    %1654 = vmatprep.subr.bf16.mxu0 0
    %1655 = vmatpush1.bf16.msra.mxu0 %v1632
    %1656 = vmatprep.subr.bf16.mxu0 0
    %1657 = vmatpush1.bf16.msra.mxu0 %v1633
    %1658 = vmatprep.subr.bf16.mxu0 0
    %1659 = vmatpush1.bf16.msra.mxu0 0
    %1660 = vmatprep.subr.bf16.mxu0 0
    %1661 = vmatpush1.bf16.msra.mxu0 0
    %1662 = vmatprep.subr.bf16.mxu0 0
    %1663 = vmatpush1.bf16.msra.mxu0 0
    %1664 = vmatprep.subr.bf16.mxu0 0
    %1665 = vmatpush1.bf16.msra.mxu0 0
    %1666 = vmatprep.subr.bf16.mxu0 0
    %1667 = vmatpush1.bf16.msra.mxu0 0
    %1668 = vmatprep.subr.bf16.mxu0 0
    %1669 = vmatpush1.bf16.msra.mxu0 0
    %1670 = vmatprep.subr.bf16.mxu0 0
    %1671 = vmatpush1.bf16.msra.mxu0 0
    %1672 = vmatprep.subr.bf16.mxu0 0
    %1673 = vmatpush1.bf16.msra.mxu0 0
    %1674 = vmatprep.subr.bf16.mxu0 0
    %1675 = vmatpush1.bf16.msra.mxu0 0
    %1676 = vmatprep.subr.bf16.mxu0 0
    %1677 = vmatpush1.bf16.msra.mxu0 0
    %1678 = vmatprep.subr.bf16.mxu0 0
    %1679 = vmatpush1.bf16.msra.mxu0 0
    %1680 = vmatprep.subr.bf16.mxu0 0
    %1681 = vmatpush1.bf16.msra.mxu0 0
    %1682 = vmatprep.mubr.bf16.mxu0 0
    %1683 = vmatmul.mubr.bf16.gmra.mrb[0].mxu0 %v1639
    %v1684 = vpop.f32.mrb[0].mxu0
    %v1685 = vadd.f32 0.0, %v1684
    %v1686 = vpop.f32.mrb[0].mxu0
    %v1687 = vpop.f32.mrb[0].mxu0
    %v1688 = vadd.f32 0.0, %v1687
    %v1689 = vpop.f32.mrb[0].mxu0
    %1690 = vmatprep.mubr.bf16.mxu0 0
    %1691 = vmatmul.mubr.bf16.gmra.mrb[0].mxu0 %v1642
    %v1692 = vpop.f32.mrb[0].mxu0
    %v1693 = vpop.f32.mrb[0].mxu0
    %v1694 = vpop.f32.mrb[0].mxu0
    %v1695 = vpop.f32.mrb[0].mxu0
    %1696 = vmatprep.mubr.bf16.mxu0 0
    %1697 = vmatmul.mubr.bf16.gmra.mrb[0].mxu0 %v1645
    %v1698 = vpop.f32.mrb[0].mxu0
    %v1699 = vadd.f32 0.0, %v1698
    %v1700 = vpop.f32.mrb[0].mxu0
    %v1701 = vpop.f32.mrb[0].mxu0
    %v1702 = vadd.f32 0.0, %v1701
    %v1703 = vpop.f32.mrb[0].mxu0
    %1704 = vmatprep.mubr.bf16.mxu0 0
    %1705 = vmatmul.mubr.bf16.gmra.mrb[0].mxu0 %v1648
    %v1706 = vpop.f32.mrb[0].mxu0
    %v1707 = vadd.f32 0.0, %v1706
    %v1708 = vpop.f32.mrb[0].mxu0
    %v1709 = vpop.f32.mrb[0].mxu0
    %v1710 = vpop.f32.mrb[0].mxu0
    %1711 = vdwg.mxu0
    %v1712 = vadd.f32 %v1589, %v1685
    %v1713 = vadd.f32 %v1590, %v1688
    %v1714 = vadd.f32 %v1591, %v1699
    %v1715 = vadd.f32 %v1592, %v1702
    %v1716 = vadd.f32 %v1593, %v1707
    %v1717 = vld [vmem:[#allocation2 + $0x1c] sm:$0x7]
    %s1718 = scalar_lea.vmem [#allocation8], 352
    %v1719 = vld [vmem:[%s1718] sm:$0xf]
    %v1720 = vld [vmem:[%s1718 + $0x4] sm:$0xf]
    %v1721 = vld [vmem:[%s1718 + $0x8] sm:$0xf]
    %v1722 = vld [vmem:[%s1718 + $0xc] sm:$0xf]
    %v1723 = vld [vmem:[%s1718 + $0x10] sm:$0xf]
    %v1724 = vld [vmem:[%s1718 + $0x14] sm:$0xf]
    %v1725 = vld [vmem:[%s1718 + $0x18] sm:$0xf]
    %v1726 = vld [vmem:[%s1718 + $0x1c] sm:$0xf]
    %v1728 = vunpack.c.l.b16 %v1717
    %v1729 = vpack.c.b16 %v1728, %v1728
    %v1731 = vshrl.u32 %v1606, 16
    %v1733 = vrot.slane %v1731, 1
    %v1734 = vshll.u32 %v1606, 16
    %v1736 = vrot.slane %v1734, 2
    %v1737 = vor.u32 %v1733, %v1736
    %v1738 = vrot.slane %v1473, 1
    %v1739 = vrot.slane %v1469, 2
    %v1740 = vor.u32 %v1738, %v1739
    %v1741 = vsel %vm639, %v1737, %v1740
    %v1742 = vrot.slane %v1480, 1
    %v1743 = vrot.slane %v1476, 2
    %v1744 = vor.u32 %v1742, %v1743
    %v1745 = vsel %vm639, %v1740, %v1744
    %v1747 = vshrl.u32 %v1729, 16
    %v1749 = vrot.slane %v1747, 1
    %v1750 = vshll.u32 %v1729, 16
    %v1752 = vrot.slane %v1750, 2
    %v1753 = vor.u32 %v1749, %v1752
    %v1754 = vsel %vm639, %v1744, %v1753
    %v1763 = vunpack.c.l.b16 %v1719
    %v1764 = vunpack.c.l.b16 %v1720
    %v1765 = vunpack.c.l.b16 %v1721
    %v1766 = vunpack.c.l.b16 %v1722
    %v1767 = vunpack.c.l.b16 %v1723
    %v1768 = vunpack.c.l.b16 %v1724
    %v1769 = vunpack.c.l.b16 %v1725
    %v1770 = vunpack.c.l.b16 %v1726
    %v1771 = vpack.c.b16 %v1764, %v1763
    %v1772 = vpack.c.b16 %v1766, %v1765
    %v1773 = vpack.c.b16 %v1768, %v1767
    %v1774 = vpack.c.b16 %v1770, %v1769
    %v1780 = vsel %vm329, %v1741, 0
    %v1783 = vsel %vm329, %v1745, 0
    %v1786 = vsel %vm329, %v1754, 0
    %v1789 = vsel %vm329, %v1753, 0
    %1791 = vmatprep.subr.bf16.mxu0 0
    %1792 = vmatpush1.bf16.msra.mxu0 %v1771
    %1793 = vmatprep.subr.bf16.mxu0 0
    %1794 = vmatpush1.bf16.msra.mxu0 %v1772
    %1795 = vmatprep.subr.bf16.mxu0 0
    %1796 = vmatpush1.bf16.msra.mxu0 %v1773
    %1797 = vmatprep.subr.bf16.mxu0 0
    %1798 = vmatpush1.bf16.msra.mxu0 %v1774
    %1799 = vmatprep.subr.bf16.mxu0 0
    %1800 = vmatpush1.bf16.msra.mxu0 0
    %1801 = vmatprep.subr.bf16.mxu0 0
    %1802 = vmatpush1.bf16.msra.mxu0 0
    %1803 = vmatprep.subr.bf16.mxu0 0
    %1804 = vmatpush1.bf16.msra.mxu0 0
    %1805 = vmatprep.subr.bf16.mxu0 0
    %1806 = vmatpush1.bf16.msra.mxu0 0
    %1807 = vmatprep.subr.bf16.mxu0 0
    %1808 = vmatpush1.bf16.msra.mxu0 0
    %1809 = vmatprep.subr.bf16.mxu0 0
    %1810 = vmatpush1.bf16.msra.mxu0 0
    %1811 = vmatprep.subr.bf16.mxu0 0
    %1812 = vmatpush1.bf16.msra.mxu0 0
    %1813 = vmatprep.subr.bf16.mxu0 0
    %1814 = vmatpush1.bf16.msra.mxu0 0
    %1815 = vmatprep.subr.bf16.mxu0 0
    %1816 = vmatpush1.bf16.msra.mxu0 0
    %1817 = vmatprep.subr.bf16.mxu0 0
    %1818 = vmatpush1.bf16.msra.mxu0 0
    %1819 = vmatprep.subr.bf16.mxu0 0
    %1820 = vmatpush1.bf16.msra.mxu0 0
    %1821 = vmatprep.subr.bf16.mxu0 0
    %1822 = vmatpush1.bf16.msra.mxu0 0
    %1823 = vmatprep.mubr.bf16.mxu0 0
    %1824 = vmatmul.mubr.bf16.gmra.mrb[0].mxu0 %v1780
    %v1825 = vpop.f32.mrb[0].mxu0
    %v1826 = vadd.f32 0.0, %v1825
    %v1827 = vpop.f32.mrb[0].mxu0
    %v1828 = vpop.f32.mrb[0].mxu0
    %v1829 = vadd.f32 0.0, %v1828
    %v1830 = vpop.f32.mrb[0].mxu0
    %1831 = vmatprep.mubr.bf16.mxu0 0
    %1832 = vmatmul.mubr.bf16.gmra.mrb[0].mxu0 %v1783
    %v1833 = vpop.f32.mrb[0].mxu0
    %v1834 = vpop.f32.mrb[0].mxu0
    %v1835 = vpop.f32.mrb[0].mxu0
    %v1836 = vpop.f32.mrb[0].mxu0
    %1837 = vmatprep.mubr.bf16.mxu0 0
    %1838 = vmatmul.mubr.bf16.gmra.mrb[0].mxu0 %v1786
    %v1839 = vpop.f32.mrb[0].mxu0
    %v1840 = vadd.f32 0.0, %v1839
    %v1841 = vpop.f32.mrb[0].mxu0
    %v1842 = vpop.f32.mrb[0].mxu0
    %v1843 = vadd.f32 0.0, %v1842
    %v1844 = vpop.f32.mrb[0].mxu0
    %1845 = vmatprep.mubr.bf16.mxu0 0
    %1846 = vmatmul.mubr.bf16.gmra.mrb[0].mxu0 %v1789
    %v1847 = vpop.f32.mrb[0].mxu0
    %v1848 = vadd.f32 0.0, %v1847
    %v1849 = vpop.f32.mrb[0].mxu0
    %v1850 = vpop.f32.mrb[0].mxu0
    %v1851 = vpop.f32.mrb[0].mxu0
    %1852 = vdwg.mxu0
    %v1853 = vadd.f32 %v1712, %v1826
    %v1854 = vadd.f32 %v1713, %v1829
    %v1855 = vadd.f32 %v1714, %v1840
    %v1856 = vadd.f32 %v1715, %v1843
    %v1857 = vadd.f32 %v1716, %v1848
    %v1858 = vld [vmem:[#allocation2 + $0x4] sm:$0xc]
    %s1859 = scalar_lea.vmem [#allocation8], 384
    %v1860 = vld [vmem:[%s1859] sm:$0xf]
    %v1861 = vld [vmem:[%s1859 + $0x4] sm:$0xf]
    %v1862 = vld [vmem:[%s1859 + $0x8] sm:$0xf]
    %v1863 = vld [vmem:[%s1859 + $0xc] sm:$0xf]
    %v1864 = vld [vmem:[%s1859 + $0x10] sm:$0xf]
    %v1865 = vld [vmem:[%s1859 + $0x14] sm:$0xf]
    %v1866 = vld [vmem:[%s1859 + $0x18] sm:$0xf]
    %v1867 = vld [vmem:[%s1859 + $0x1c] sm:$0xf]
    %v1869 = vunpack.c.l.b16 %v1858
    %v1870 = vpack.c.b16 %v1185, %v1869
    %v1871 = vrot.slane %v1870, 2
    %v1872 = vrot.slane %v1344, 2
    %v1873 = vsel %vm781, %v1871, %v1872
    %v1874 = vrot.slane %v1345, 2
    %v1875 = vsel %vm781, %v1872, %v1874
    %v1876 = vrot.slane %v1729, 2
    %v1877 = vsel %vm781, %v1874, %v1876
    %v1886 = vunpack.c.l.b16 %v1860
    %v1887 = vunpack.c.l.b16 %v1861
    %v1888 = vunpack.c.l.b16 %v1862
    %v1889 = vunpack.c.l.b16 %v1863
    %v1890 = vunpack.c.l.b16 %v1864
    %v1891 = vunpack.c.l.b16 %v1865
    %v1892 = vunpack.c.l.b16 %v1866
    %v1893 = vunpack.c.l.b16 %v1867
    %v1894 = vpack.c.b16 %v1887, %v1886
    %v1895 = vpack.c.b16 %v1889, %v1888
    %v1896 = vpack.c.b16 %v1891, %v1890
    %v1897 = vpack.c.b16 %v1893, %v1892
    %v1903 = vsel %vm329, %v1873, 0
    %v1906 = vsel %vm329, %v1875, 0
    %v1909 = vsel %vm329, %v1877, 0
    %v1912 = vsel %vm329, %v1876, 0
    %1914 = vmatprep.subr.bf16.mxu0 0
    %1915 = vmatpush1.bf16.msra.mxu0 %v1894
    %1916 = vmatprep.subr.bf16.mxu0 0
    %1917 = vmatpush1.bf16.msra.mxu0 %v1895
    %1918 = vmatprep.subr.bf16.mxu0 0
    %1919 = vmatpush1.bf16.msra.mxu0 %v1896
    %1920 = vmatprep.subr.bf16.mxu0 0
    %1921 = vmatpush1.bf16.msra.mxu0 %v1897
    %1922 = vmatprep.subr.bf16.mxu0 0
    %1923 = vmatpush1.bf16.msra.mxu0 0
    %1924 = vmatprep.subr.bf16.mxu0 0
    %1925 = vmatpush1.bf16.msra.mxu0 0
    %1926 = vmatprep.subr.bf16.mxu0 0
    %1927 = vmatpush1.bf16.msra.mxu0 0
    %1928 = vmatprep.subr.bf16.mxu0 0
    %1929 = vmatpush1.bf16.msra.mxu0 0
    %1930 = vmatprep.subr.bf16.mxu0 0
    %1931 = vmatpush1.bf16.msra.mxu0 0
    %1932 = vmatprep.subr.bf16.mxu0 0
    %1933 = vmatpush1.bf16.msra.mxu0 0
    %1934 = vmatprep.subr.bf16.mxu0 0
    %1935 = vmatpush1.bf16.msra.mxu0 0
    %1936 = vmatprep.subr.bf16.mxu0 0
    %1937 = vmatpush1.bf16.msra.mxu0 0
    %1938 = vmatprep.subr.bf16.mxu0 0
    %1939 = vmatpush1.bf16.msra.mxu0 0
    %1940 = vmatprep.subr.bf16.mxu0 0
    %1941 = vmatpush1.bf16.msra.mxu0 0
    %1942 = vmatprep.subr.bf16.mxu0 0
    %1943 = vmatpush1.bf16.msra.mxu0 0
    %1944 = vmatprep.subr.bf16.mxu0 0
    %1945 = vmatpush1.bf16.msra.mxu0 0
    %1946 = vmatprep.mubr.bf16.mxu0 0
    %1947 = vmatmul.mubr.bf16.gmra.mrb[0].mxu0 %v1903
    %v1948 = vpop.f32.mrb[0].mxu0
    %v1949 = vadd.f32 0.0, %v1948
    %v1950 = vpop.f32.mrb[0].mxu0
    %v1951 = vpop.f32.mrb[0].mxu0
    %v1952 = vadd.f32 0.0, %v1951
    %v1953 = vpop.f32.mrb[0].mxu0
    %1954 = vmatprep.mubr.bf16.mxu0 0
    %1955 = vmatmul.mubr.bf16.gmra.mrb[0].mxu0 %v1906
    %v1956 = vpop.f32.mrb[0].mxu0
    %v1957 = vpop.f32.mrb[0].mxu0
    %v1958 = vpop.f32.mrb[0].mxu0
    %v1959 = vpop.f32.mrb[0].mxu0
    %1960 = vmatprep.mubr.bf16.mxu0 0
    %1961 = vmatmul.mubr.bf16.gmra.mrb[0].mxu0 %v1909
    %v1962 = vpop.f32.mrb[0].mxu0
    %v1963 = vadd.f32 0.0, %v1962
    %v1964 = vpop.f32.mrb[0].mxu0
    %v1965 = vpop.f32.mrb[0].mxu0
    %v1966 = vadd.f32 0.0, %v1965
    %v1967 = vpop.f32.mrb[0].mxu0
    %1968 = vmatprep.mubr.bf16.mxu0 0
    %1969 = vmatmul.mubr.bf16.gmra.mrb[0].mxu0 %v1912
    %v1970 = vpop.f32.mrb[0].mxu0
    %v1971 = vadd.f32 0.0, %v1970
    %v1972 = vpop.f32.mrb[0].mxu0
    %v1973 = vpop.f32.mrb[0].mxu0
    %v1974 = vpop.f32.mrb[0].mxu0
    %1975 = vdwg.mxu0
    %v1976 = vadd.f32 %v1853, %v1949
    %v1977 = vadd.f32 %v1854, %v1952
    %v1978 = vadd.f32 %v1855, %v1963
    %v1979 = vadd.f32 %v1856, %v1966
    %v1980 = vadd.f32 %v1857, %v1971
    %v1981 = vld [vmem:[#allocation2 + $0x1c] sm:$0xf]
    %s1982 = scalar_lea.vmem [#allocation8], 416
    %v1983 = vld [vmem:[%s1982] sm:$0xf]
    %v1984 = vld [vmem:[%s1982 + $0x4] sm:$0xf]
    %v1985 = vld [vmem:[%s1982 + $0x8] sm:$0xf]
    %v1986 = vld [vmem:[%s1982 + $0xc] sm:$0xf]
    %v1987 = vld [vmem:[%s1982 + $0x10] sm:$0xf]
    %v1988 = vld [vmem:[%s1982 + $0x14] sm:$0xf]
    %v1989 = vld [vmem:[%s1982 + $0x18] sm:$0xf]
    %v1990 = vld [vmem:[%s1982 + $0x1c] sm:$0xf]
    %v1992 = vunpack.c.l.b16 %v1981
    %v1993 = vpack.c.b16 %v1992, %v1992
    %v1995 = vshrl.u32 %v1870, 16
    %v1997 = vrot.slane %v1995, 2
    %v1998 = vshll.u32 %v1870, 16
    %v2000 = vrot.slane %v1998, 3
    %v2001 = vor.u32 %v1997, %v2000
    %v2002 = vrot.slane %v1473, 2
    %v2003 = vrot.slane %v1469, 3
    %v2004 = vor.u32 %v2002, %v2003
    %v2005 = vsel %vm905, %v2001, %v2004
    %v2006 = vrot.slane %v1480, 2
    %v2007 = vrot.slane %v1476, 3
    %v2008 = vor.u32 %v2006, %v2007
    %v2009 = vsel %vm905, %v2004, %v2008
    %v2011 = vshrl.u32 %v1993, 16
    %v2013 = vrot.slane %v2011, 2
    %v2014 = vshll.u32 %v1993, 16
    %v2016 = vrot.slane %v2014, 3
    %v2017 = vor.u32 %v2013, %v2016
    %v2018 = vsel %vm905, %v2008, %v2017
    %v2027 = vunpack.c.l.b16 %v1983
    %v2028 = vunpack.c.l.b16 %v1984
    %v2029 = vunpack.c.l.b16 %v1985
    %v2030 = vunpack.c.l.b16 %v1986
    %v2031 = vunpack.c.l.b16 %v1987
    %v2032 = vunpack.c.l.b16 %v1988
    %v2033 = vunpack.c.l.b16 %v1989
    %v2034 = vunpack.c.l.b16 %v1990
    %v2035 = vpack.c.b16 %v2028, %v2027
    %v2036 = vpack.c.b16 %v2030, %v2029
    %v2037 = vpack.c.b16 %v2032, %v2031
    %v2038 = vpack.c.b16 %v2034, %v2033
    %v2044 = vsel %vm329, %v2005, 0
    %v2047 = vsel %vm329, %v2009, 0
    %v2050 = vsel %vm329, %v2018, 0
    %v2053 = vsel %vm329, %v2017, 0
    %2055 = vmatprep.subr.bf16.mxu0 0
    %2056 = vmatpush1.bf16.msra.mxu0 %v2035
    %2057 = vmatprep.subr.bf16.mxu0 0
    %2058 = vmatpush1.bf16.msra.mxu0 %v2036
    %2059 = vmatprep.subr.bf16.mxu0 0
    %2060 = vmatpush1.bf16.msra.mxu0 %v2037
    %2061 = vmatprep.subr.bf16.mxu0 0
    %2062 = vmatpush1.bf16.msra.mxu0 %v2038
    %2063 = vmatprep.subr.bf16.mxu0 0
    %2064 = vmatpush1.bf16.msra.mxu0 0
    %2065 = vmatprep.subr.bf16.mxu0 0
    %2066 = vmatpush1.bf16.msra.mxu0 0
    %2067 = vmatprep.subr.bf16.mxu0 0
    %2068 = vmatpush1.bf16.msra.mxu0 0
    %2069 = vmatprep.subr.bf16.mxu0 0
    %2070 = vmatpush1.bf16.msra.mxu0 0
    %2071 = vmatprep.subr.bf16.mxu0 0
    %2072 = vmatpush1.bf16.msra.mxu0 0
    %2073 = vmatprep.subr.bf16.mxu0 0
    %2074 = vmatpush1.bf16.msra.mxu0 0
    %2075 = vmatprep.subr.bf16.mxu0 0
    %2076 = vmatpush1.bf16.msra.mxu0 0
    %2077 = vmatprep.subr.bf16.mxu0 0
    %2078 = vmatpush1.bf16.msra.mxu0 0
    %2079 = vmatprep.subr.bf16.mxu0 0
    %2080 = vmatpush1.bf16.msra.mxu0 0
    %2081 = vmatprep.subr.bf16.mxu0 0
    %2082 = vmatpush1.bf16.msra.mxu0 0
    %2083 = vmatprep.subr.bf16.mxu0 0
    %2084 = vmatpush1.bf16.msra.mxu0 0
    %2085 = vmatprep.subr.bf16.mxu0 0
    %2086 = vmatpush1.bf16.msra.mxu0 0
    %2087 = vmatprep.mubr.bf16.mxu0 0
    %2088 = vmatmul.mubr.bf16.gmra.mrb[0].mxu0 %v2044
    %v2089 = vpop.f32.mrb[0].mxu0
    %v2090 = vadd.f32 0.0, %v2089
    %v2091 = vpop.f32.mrb[0].mxu0
    %v2092 = vpop.f32.mrb[0].mxu0
    %v2093 = vadd.f32 0.0, %v2092
    %v2094 = vpop.f32.mrb[0].mxu0
    %2095 = vmatprep.mubr.bf16.mxu0 0
    %2096 = vmatmul.mubr.bf16.gmra.mrb[0].mxu0 %v2047
    %v2097 = vpop.f32.mrb[0].mxu0
    %v2098 = vpop.f32.mrb[0].mxu0
    %v2099 = vpop.f32.mrb[0].mxu0
    %v2100 = vpop.f32.mrb[0].mxu0
    %2101 = vmatprep.mubr.bf16.mxu0 0
    %2102 = vmatmul.mubr.bf16.gmra.mrb[0].mxu0 %v2050
    %v2103 = vpop.f32.mrb[0].mxu0
    %v2104 = vadd.f32 0.0, %v2103
    %v2105 = vpop.f32.mrb[0].mxu0
    %v2106 = vpop.f32.mrb[0].mxu0
    %v2107 = vadd.f32 0.0, %v2106
    %v2108 = vpop.f32.mrb[0].mxu0
    %2109 = vmatprep.mubr.bf16.mxu0 0
    %2110 = vmatmul.mubr.bf16.gmra.mrb[0].mxu0 %v2053
    %v2111 = vpop.f32.mrb[0].mxu0
    %v2112 = vadd.f32 0.0, %v2111
    %v2113 = vpop.f32.mrb[0].mxu0
    %v2114 = vpop.f32.mrb[0].mxu0
    %v2115 = vpop.f32.mrb[0].mxu0
    %2116 = vdwg.mxu0
    %v2117 = vadd.f32 %v1976, %v2090
    %v2118 = vadd.f32 %v1977, %v2093
    %v2119 = vadd.f32 %v1978, %v2104
    %v2120 = vadd.f32 %v1979, %v2107
    %v2121 = vadd.f32 %v1980, %v2112
    %v2122 = vld [vmem:[#allocation2 + $0x4] sm:$0x8]
    %s2123 = scalar_lea.vmem [#allocation8], 448
    %v2124 = vld [vmem:[%s2123] sm:$0xf]
    %v2125 = vld [vmem:[%s2123 + $0x4] sm:$0xf]
    %v2126 = vld [vmem:[%s2123 + $0x8] sm:$0xf]
    %v2127 = vld [vmem:[%s2123 + $0xc] sm:$0xf]
    %v2128 = vld [vmem:[%s2123 + $0x10] sm:$0xf]
    %v2129 = vld [vmem:[%s2123 + $0x14] sm:$0xf]
    %v2130 = vld [vmem:[%s2123 + $0x18] sm:$0xf]
    %v2131 = vld [vmem:[%s2123 + $0x1c] sm:$0xf]
    %v2133 = vunpack.c.l.b16 %v2122
    %v2134 = vpack.c.b16 %v1185, %v2133
    %v2135 = vrot.slane %v2134, 3
    %v2136 = vrot.slane %v1344, 3
    %v2137 = vsel %vm1047, %v2135, %v2136
    %v2138 = vrot.slane %v1345, 3
    %v2139 = vsel %vm1047, %v2136, %v2138
    %v2140 = vrot.slane %v1993, 3
    %v2141 = vsel %vm1047, %v2138, %v2140
    %v2150 = vunpack.c.l.b16 %v2124
    %v2151 = vunpack.c.l.b16 %v2125
    %v2152 = vunpack.c.l.b16 %v2126
    %v2153 = vunpack.c.l.b16 %v2127
    %v2154 = vunpack.c.l.b16 %v2128
    %v2155 = vunpack.c.l.b16 %v2129
    %v2156 = vunpack.c.l.b16 %v2130
    %v2157 = vunpack.c.l.b16 %v2131
    %v2158 = vpack.c.b16 %v2151, %v2150
    %v2159 = vpack.c.b16 %v2153, %v2152
    %v2160 = vpack.c.b16 %v2155, %v2154
    %v2161 = vpack.c.b16 %v2157, %v2156
    %v2167 = vsel %vm329, %v2137, 0
    %v2170 = vsel %vm329, %v2139, 0
    %v2173 = vsel %vm329, %v2141, 0
    %v2176 = vsel %vm329, %v2140, 0
    %2178 = vmatprep.subr.bf16.mxu0 0
    %2179 = vmatpush1.bf16.msra.mxu0 %v2158
    %2180 = vmatprep.subr.bf16.mxu0 0
    %2181 = vmatpush1.bf16.msra.mxu0 %v2159
    %2182 = vmatprep.subr.bf16.mxu0 0
    %2183 = vmatpush1.bf16.msra.mxu0 %v2160
    %2184 = vmatprep.subr.bf16.mxu0 0
    %2185 = vmatpush1.bf16.msra.mxu0 %v2161
    %2186 = vmatprep.subr.bf16.mxu0 0
    %2187 = vmatpush1.bf16.msra.mxu0 0
    %2188 = vmatprep.subr.bf16.mxu0 0
    %2189 = vmatpush1.bf16.msra.mxu0 0
    %2190 = vmatprep.subr.bf16.mxu0 0
    %2191 = vmatpush1.bf16.msra.mxu0 0
    %2192 = vmatprep.subr.bf16.mxu0 0
    %2193 = vmatpush1.bf16.msra.mxu0 0
    %2194 = vmatprep.subr.bf16.mxu0 0
    %2195 = vmatpush1.bf16.msra.mxu0 0
    %2196 = vmatprep.subr.bf16.mxu0 0
    %2197 = vmatpush1.bf16.msra.mxu0 0
    %2198 = vmatprep.subr.bf16.mxu0 0
    %2199 = vmatpush1.bf16.msra.mxu0 0
    %2200 = vmatprep.subr.bf16.mxu0 0
    %2201 = vmatpush1.bf16.msra.mxu0 0
    %2202 = vmatprep.subr.bf16.mxu0 0
    %2203 = vmatpush1.bf16.msra.mxu0 0
    %2204 = vmatprep.subr.bf16.mxu0 0
    %2205 = vmatpush1.bf16.msra.mxu0 0
    %2206 = vmatprep.subr.bf16.mxu0 0
    %2207 = vmatpush1.bf16.msra.mxu0 0
    %2208 = vmatprep.subr.bf16.mxu0 0
    %2209 = vmatpush1.bf16.msra.mxu0 0
    %2210 = vmatprep.mubr.bf16.mxu0 0
    %2211 = vmatmul.mubr.bf16.gmra.mrb[0].mxu0 %v2167
    %v2212 = vpop.f32.mrb[0].mxu0
    %v2213 = vadd.f32 0.0, %v2212
    %v2214 = vpop.f32.mrb[0].mxu0
    %v2215 = vpop.f32.mrb[0].mxu0
    %v2216 = vadd.f32 0.0, %v2215
    %v2217 = vpop.f32.mrb[0].mxu0
    %2218 = vmatprep.mubr.bf16.mxu0 0
    %2219 = vmatmul.mubr.bf16.gmra.mrb[0].mxu0 %v2170
    %v2220 = vpop.f32.mrb[0].mxu0
    %v2221 = vpop.f32.mrb[0].mxu0
    %v2222 = vpop.f32.mrb[0].mxu0
    %v2223 = vpop.f32.mrb[0].mxu0
    %2224 = vmatprep.mubr.bf16.mxu0 0
    %2225 = vmatmul.mubr.bf16.gmra.mrb[0].mxu0 %v2173
    %v2226 = vpop.f32.mrb[0].mxu0
    %v2227 = vadd.f32 0.0, %v2226
    %v2228 = vpop.f32.mrb[0].mxu0
    %v2229 = vpop.f32.mrb[0].mxu0
    %v2230 = vadd.f32 0.0, %v2229
    %v2231 = vpop.f32.mrb[0].mxu0
    %2232 = vmatprep.mubr.bf16.mxu0 0
    %2233 = vmatmul.mubr.bf16.gmra.mrb[0].mxu0 %v2176
    %v2234 = vpop.f32.mrb[0].mxu0
    %v2235 = vadd.f32 0.0, %v2234
    %v2236 = vpop.f32.mrb[0].mxu0
    %v2237 = vpop.f32.mrb[0].mxu0
    %v2238 = vpop.f32.mrb[0].mxu0
    %2239 = vdwg.mxu0
    %v2240 = vadd.f32 %v2117, %v2213
    %v2241 = vadd.f32 %v2118, %v2216
    %v2242 = vadd.f32 %v2119, %v2227
    %v2243 = vadd.f32 %v2120, %v2230
    %v2244 = vadd.f32 %v2121, %v2235
    %v2245 = vld [vmem:[#allocation2 + $0x4] sm:$0x8]
    %v2246 = vld [vmem:[#allocation2 + $0x8] sm:$0xf]
    %v2247 = vld [vmem:[#allocation2 + $0xc] sm:$0xf]
    %v2248 = vld [vmem:[#allocation2 + $0x10] sm:$0xf]
    %v2249 = vld [vmem:[#allocation2 + $0x14] sm:$0xf]
    %v2250 = vld [vmem:[#allocation2 + $0x18] sm:$0xf]
    %v2251 = vld [vmem:[#allocation2 + $0x1c] sm:$0xf]
    %v2252 = vld [vmem:[#allocation2 + $0x20] sm:$0x1]
    %s2253 = scalar_lea.vmem [#allocation8], 480
    %v2254 = vld [vmem:[%s2253] sm:$0xf]
    %v2255 = vld [vmem:[%s2253 + $0x4] sm:$0xf]
    %v2256 = vld [vmem:[%s2253 + $0x8] sm:$0xf]
    %v2257 = vld [vmem:[%s2253 + $0xc] sm:$0xf]
    %v2258 = vld [vmem:[%s2253 + $0x10] sm:$0xf]
    %v2259 = vld [vmem:[%s2253 + $0x14] sm:$0xf]
    %v2260 = vld [vmem:[%s2253 + $0x18] sm:$0xf]
    %v2261 = vld [vmem:[%s2253 + $0x1c] sm:$0xf]
    %v2270 = vunpack.c.l.b16 %v2245
    %v2271 = vunpack.c.l.b16 %v2246
    %v2272 = vunpack.c.l.b16 %v2247
    %v2273 = vunpack.c.l.b16 %v2248
    %v2274 = vunpack.c.l.b16 %v2249
    %v2275 = vunpack.c.l.b16 %v2250
    %v2276 = vunpack.c.l.b16 %v2251
    %v2277 = vunpack.c.l.b16 %v2252
    %v2278 = vpack.c.b16 %v2271, %v2270
    %v2279 = vpack.c.b16 %v2273, %v2272
    %v2280 = vpack.c.b16 %v2275, %v2274
    %v2281 = vpack.c.b16 %v2277, %v2276
    %v2283 = vshrl.u32 %v2278, 16
    %v2285 = vrot.slane %v2283, 3
    %v2286 = vshll.u32 %v2278, 16
    %v2288 = vrot.slane %v2286, 4
    %v2289 = vor.u32 %v2285, %v2288
    %v2291 = vshrl.u32 %v2279, 16
    %v2293 = vrot.slane %v2291, 3
    %v2294 = vshll.u32 %v2279, 16
    %v2296 = vrot.slane %v2294, 4
    %v2297 = vor.u32 %v2293, %v2296
    %v2298 = vsel %vm1195, %v2289, %v2297
    %v2300 = vshrl.u32 %v2280, 16
    %v2302 = vrot.slane %v2300, 3
    %v2303 = vshll.u32 %v2280, 16
    %v2305 = vrot.slane %v2303, 4
    %v2306 = vor.u32 %v2302, %v2305
    %v2307 = vsel %vm1195, %v2297, %v2306
    %v2309 = vshrl.u32 %v2281, 16
    %v2311 = vrot.slane %v2309, 3
    %v2312 = vshll.u32 %v2281, 16
    %v2314 = vrot.slane %v2312, 4
    %v2315 = vor.u32 %v2311, %v2314
    %v2316 = vsel %vm1195, %v2306, %v2315
    %v2325 = vunpack.c.l.b16 %v2254
    %v2326 = vunpack.c.l.b16 %v2255
    %v2327 = vunpack.c.l.b16 %v2256
    %v2328 = vunpack.c.l.b16 %v2257
    %v2329 = vunpack.c.l.b16 %v2258
    %v2330 = vunpack.c.l.b16 %v2259
    %v2331 = vunpack.c.l.b16 %v2260
    %v2332 = vunpack.c.l.b16 %v2261
    %v2333 = vpack.c.b16 %v2326, %v2325
    %v2334 = vpack.c.b16 %v2328, %v2327
    %v2335 = vpack.c.b16 %v2330, %v2329
    %v2336 = vpack.c.b16 %v2332, %v2331
    %v2342 = vsel %vm329, %v2298, 0
    %v2345 = vsel %vm329, %v2307, 0
    %v2348 = vsel %vm329, %v2316, 0
    %v2351 = vsel %vm329, %v2315, 0
    %2353 = vmatprep.subr.bf16.mxu0 0
    %2354 = vmatpush1.bf16.msra.mxu0 %v2333
    %2355 = vmatprep.subr.bf16.mxu0 0
    %2356 = vmatpush1.bf16.msra.mxu0 %v2334
    %2357 = vmatprep.subr.bf16.mxu0 0
    %2358 = vmatpush1.bf16.msra.mxu0 %v2335
    %2359 = vmatprep.subr.bf16.mxu0 0
    %2360 = vmatpush1.bf16.msra.mxu0 %v2336
    %2361 = vmatprep.subr.bf16.mxu0 0
    %2362 = vmatpush1.bf16.msra.mxu0 0
    %2363 = vmatprep.subr.bf16.mxu0 0
    %2364 = vmatpush1.bf16.msra.mxu0 0
    %2365 = vmatprep.subr.bf16.mxu0 0
    %2366 = vmatpush1.bf16.msra.mxu0 0
    %2367 = vmatprep.subr.bf16.mxu0 0
    %2368 = vmatpush1.bf16.msra.mxu0 0
    %2369 = vmatprep.subr.bf16.mxu0 0
    %2370 = vmatpush1.bf16.msra.mxu0 0
    %2371 = vmatprep.subr.bf16.mxu0 0
    %2372 = vmatpush1.bf16.msra.mxu0 0
    %2373 = vmatprep.subr.bf16.mxu0 0
    %2374 = vmatpush1.bf16.msra.mxu0 0
    %2375 = vmatprep.subr.bf16.mxu0 0
    %2376 = vmatpush1.bf16.msra.mxu0 0
    %2377 = vmatprep.subr.bf16.mxu0 0
    %2378 = vmatpush1.bf16.msra.mxu0 0
    %2379 = vmatprep.subr.bf16.mxu0 0
    %2380 = vmatpush1.bf16.msra.mxu0 0
    %2381 = vmatprep.subr.bf16.mxu0 0
    %2382 = vmatpush1.bf16.msra.mxu0 0
    %2383 = vmatprep.subr.bf16.mxu0 0
    %2384 = vmatpush1.bf16.msra.mxu0 0
    %2385 = vmatprep.mubr.bf16.mxu0 0
    %2386 = vmatmul.mubr.bf16.gmra.mrb[0].mxu0 %v2342
    %v2387 = vpop.f32.mrb[0].mxu0
    %v2388 = vadd.f32 0.0, %v2387
    %v2389 = vpop.f32.mrb[0].mxu0
    %v2390 = vpop.f32.mrb[0].mxu0
    %v2391 = vadd.f32 0.0, %v2390
    %v2392 = vpop.f32.mrb[0].mxu0
    %2393 = vmatprep.mubr.bf16.mxu0 0
    %2394 = vmatmul.mubr.bf16.gmra.mrb[0].mxu0 %v2345
    %v2395 = vpop.f32.mrb[0].mxu0
    %v2396 = vpop.f32.mrb[0].mxu0
    %v2397 = vpop.f32.mrb[0].mxu0
    %v2398 = vpop.f32.mrb[0].mxu0
    %2399 = vmatprep.mubr.bf16.mxu0 0
    %2400 = vmatmul.mubr.bf16.gmra.mrb[0].mxu0 %v2348
    %v2401 = vpop.f32.mrb[0].mxu0
    %v2402 = vadd.f32 0.0, %v2401
    %v2403 = vpop.f32.mrb[0].mxu0
    %v2404 = vpop.f32.mrb[0].mxu0
    %v2405 = vadd.f32 0.0, %v2404
    %v2406 = vpop.f32.mrb[0].mxu0
    %2407 = vmatprep.mubr.bf16.mxu0 0
    %2408 = vmatmul.mubr.bf16.gmra.mrb[0].mxu0 %v2351
    %v2409 = vpop.f32.mrb[0].mxu0
    %v2410 = vadd.f32 0.0, %v2409
    %v2411 = vpop.f32.mrb[0].mxu0
    %v2412 = vpop.f32.mrb[0].mxu0
    %v2413 = vpop.f32.mrb[0].mxu0
    %2414 = vdwg.mxu0
    %v2415 = vadd.f32 %v2240, %v2388
    %v2416 = vadd.f32 %v2241, %v2391
    %v2417 = vadd.f32 %v2242, %v2402
    %v2418 = vadd.f32 %v2243, %v2405
    %v2419 = vadd.f32 %v2244, %v2410
    %s2420 = scalar_lea.vmem [#allocation8], 512
    %v2421 = vld [vmem:[%s2420] sm:$0xf]
    %v2422 = vld [vmem:[%s2420 + $0x4] sm:$0xf]
    %v2423 = vld [vmem:[%s2420 + $0x8] sm:$0xf]
    %v2424 = vld [vmem:[%s2420 + $0xc] sm:$0xf]
    %v2425 = vld [vmem:[%s2420 + $0x10] sm:$0xf]
    %v2426 = vld [vmem:[%s2420 + $0x14] sm:$0xf]
    %v2427 = vld [vmem:[%s2420 + $0x18] sm:$0xf]
    %v2428 = vld [vmem:[%s2420 + $0x1c] sm:$0xf]
    %v2429 = vpack.c.b16 %v2272, %v2271
    %v2430 = vpack.c.b16 %v2274, %v2273
    %v2431 = vpack.c.b16 %v2276, %v2275
    %v2432 = vpack.c.b16 %v2277, %v2277
    %v2441 = vunpack.c.l.b16 %v2421
    %v2442 = vunpack.c.l.b16 %v2422
    %v2443 = vunpack.c.l.b16 %v2423
    %v2444 = vunpack.c.l.b16 %v2424
    %v2445 = vunpack.c.l.b16 %v2425
    %v2446 = vunpack.c.l.b16 %v2426
    %v2447 = vunpack.c.l.b16 %v2427
    %v2448 = vunpack.c.l.b16 %v2428
    %v2449 = vpack.c.b16 %v2442, %v2441
    %v2450 = vpack.c.b16 %v2444, %v2443
    %v2451 = vpack.c.b16 %v2446, %v2445
    %v2452 = vpack.c.b16 %v2448, %v2447
    %v2458 = vsel %vm329, %v2429, 0
    %v2461 = vsel %vm329, %v2430, 0
    %v2464 = vsel %vm329, %v2431, 0
    %v2467 = vsel %vm329, %v2432, 0
    %2469 = vmatprep.subr.bf16.mxu0 0
    %2470 = vmatpush1.bf16.msra.mxu0 %v2449
    %2471 = vmatprep.subr.bf16.mxu0 0
    %2472 = vmatpush1.bf16.msra.mxu0 %v2450
    %2473 = vmatprep.subr.bf16.mxu0 0
    %2474 = vmatpush1.bf16.msra.mxu0 %v2451
    %2475 = vmatprep.subr.bf16.mxu0 0
    %2476 = vmatpush1.bf16.msra.mxu0 %v2452
    %2477 = vmatprep.subr.bf16.mxu0 0
    %2478 = vmatpush1.bf16.msra.mxu0 0
    %2479 = vmatprep.subr.bf16.mxu0 0
    %2480 = vmatpush1.bf16.msra.mxu0 0
    %2481 = vmatprep.subr.bf16.mxu0 0
    %2482 = vmatpush1.bf16.msra.mxu0 0
    %2483 = vmatprep.subr.bf16.mxu0 0
    %2484 = vmatpush1.bf16.msra.mxu0 0
    %2485 = vmatprep.subr.bf16.mxu0 0
    %2486 = vmatpush1.bf16.msra.mxu0 0
    %2487 = vmatprep.subr.bf16.mxu0 0
    %2488 = vmatpush1.bf16.msra.mxu0 0
    %2489 = vmatprep.subr.bf16.mxu0 0
    %2490 = vmatpush1.bf16.msra.mxu0 0
    %2491 = vmatprep.subr.bf16.mxu0 0
    %2492 = vmatpush1.bf16.msra.mxu0 0
    %2493 = vmatprep.subr.bf16.mxu0 0
    %2494 = vmatpush1.bf16.msra.mxu0 0
    %2495 = vmatprep.subr.bf16.mxu0 0
    %2496 = vmatpush1.bf16.msra.mxu0 0
    %2497 = vmatprep.subr.bf16.mxu0 0
    %2498 = vmatpush1.bf16.msra.mxu0 0
    %2499 = vmatprep.subr.bf16.mxu0 0
    %2500 = vmatpush1.bf16.msra.mxu0 0
    %2501 = vmatprep.mubr.bf16.mxu0 0
    %2502 = vmatmul.mubr.bf16.gmra.mrb[0].mxu0 %v2458
    %v2503 = vpop.f32.mrb[0].mxu0
    %v2504 = vadd.f32 0.0, %v2503
    %v2505 = vpop.f32.mrb[0].mxu0
    %v2506 = vpop.f32.mrb[0].mxu0
    %v2507 = vadd.f32 0.0, %v2506
    %v2508 = vpop.f32.mrb[0].mxu0
    %2509 = vmatprep.mubr.bf16.mxu0 0
    %2510 = vmatmul.mubr.bf16.gmra.mrb[0].mxu0 %v2461
    %v2511 = vpop.f32.mrb[0].mxu0
    %v2512 = vpop.f32.mrb[0].mxu0
    %v2513 = vpop.f32.mrb[0].mxu0
    %v2514 = vpop.f32.mrb[0].mxu0
    %2515 = vmatprep.mubr.bf16.mxu0 0
    %2516 = vmatmul.mubr.bf16.gmra.mrb[0].mxu0 %v2464
    %v2517 = vpop.f32.mrb[0].mxu0
    %v2518 = vadd.f32 0.0, %v2517
    %v2519 = vpop.f32.mrb[0].mxu0
    %v2520 = vpop.f32.mrb[0].mxu0
    %v2521 = vadd.f32 0.0, %v2520
    %v2522 = vpop.f32.mrb[0].mxu0
    %2523 = vmatprep.mubr.bf16.mxu0 0
    %2524 = vmatmul.mubr.bf16.gmra.mrb[0].mxu0 %v2467
    %v2525 = vpop.f32.mrb[0].mxu0
    %v2526 = vadd.f32 0.0, %v2525
    %v2527 = vpop.f32.mrb[0].mxu0
    %v2528 = vpop.f32.mrb[0].mxu0
    %v2529 = vpop.f32.mrb[0].mxu0
    %2530 = vdwg.mxu0
    %v2531 = vadd.f32 %v2415, %v2504
    %v2532 = vadd.f32 %v2416, %v2507
    %v2533 = vadd.f32 %v2417, %v2518
    %v2534 = vadd.f32 %v2418, %v2521
    %v2535 = vadd.f32 %v2419, %v2526
    %v2536 = vld [vmem:[#allocation2 + $0x20] sm:$0x3]
    %s2537 = scalar_lea.vmem [#allocation8], 544
    %v2538 = vld [vmem:[%s2537] sm:$0xf]
    %v2539 = vld [vmem:[%s2537 + $0x4] sm:$0xf]
    %v2540 = vld [vmem:[%s2537 + $0x8] sm:$0xf]
    %v2541 = vld [vmem:[%s2537 + $0xc] sm:$0xf]
    %v2542 = vld [vmem:[%s2537 + $0x10] sm:$0xf]
    %v2543 = vld [vmem:[%s2537 + $0x14] sm:$0xf]
    %v2544 = vld [vmem:[%s2537 + $0x18] sm:$0xf]
    %v2545 = vld [vmem:[%s2537 + $0x1c] sm:$0xf]
    %v2547 = vunpack.c.l.b16 %v2536
    %v2548 = vpack.c.b16 %v2547, %v2547
    %v2549 = vshrl.u32 %v2429, 16
    %v2551 = vshll.u32 %v2429, 16
    %v2553 = vrot.slane %v2551, 1
    %v2554 = vor.u32 %v2549, %v2553
    %v2555 = vshll.u32 %v2430, 16
    %v2557 = vrot.slane %v2555, 1
    %v2558 = vsel %vm273, %v2554, %v2557
    %v2559 = vshrl.u32 %v2430, 16
    %v2561 = vor.u32 %v2559, %v2557
    %v2562 = vshll.u32 %v2431, 16
    %v2564 = vrot.slane %v2562, 1
    %v2565 = vsel %vm273, %v2561, %v2564
    %v2566 = vshrl.u32 %v2431, 16
    %v2568 = vor.u32 %v2566, %v2564
    %v2570 = vshll.u32 %v2548, 16
    %v2572 = vrot.slane %v2570, 1
    %v2573 = vsel %vm273, %v2568, %v2572
    %v2574 = vshrl.u32 %v2548, 16
    %v2576 = vor.u32 %v2574, %v2572
    %v2585 = vunpack.c.l.b16 %v2538
    %v2586 = vunpack.c.l.b16 %v2539
    %v2587 = vunpack.c.l.b16 %v2540
    %v2588 = vunpack.c.l.b16 %v2541
    %v2589 = vunpack.c.l.b16 %v2542
    %v2590 = vunpack.c.l.b16 %v2543
    %v2591 = vunpack.c.l.b16 %v2544
    %v2592 = vunpack.c.l.b16 %v2545
    %v2593 = vpack.c.b16 %v2586, %v2585
    %v2594 = vpack.c.b16 %v2588, %v2587
    %v2595 = vpack.c.b16 %v2590, %v2589
    %v2596 = vpack.c.b16 %v2592, %v2591
    %v2602 = vsel %vm329, %v2558, 0
    %v2605 = vsel %vm329, %v2565, 0
    %v2608 = vsel %vm329, %v2573, 0
    %v2611 = vsel %vm329, %v2576, 0
    %2613 = vmatprep.subr.bf16.mxu0 0
    %2614 = vmatpush1.bf16.msra.mxu0 %v2593
    %2615 = vmatprep.subr.bf16.mxu0 0
    %2616 = vmatpush1.bf16.msra.mxu0 %v2594
    %2617 = vmatprep.subr.bf16.mxu0 0
    %2618 = vmatpush1.bf16.msra.mxu0 %v2595
    %2619 = vmatprep.subr.bf16.mxu0 0
    %2620 = vmatpush1.bf16.msra.mxu0 %v2596
    %2621 = vmatprep.subr.bf16.mxu0 0
    %2622 = vmatpush1.bf16.msra.mxu0 0
    %2623 = vmatprep.subr.bf16.mxu0 0
    %2624 = vmatpush1.bf16.msra.mxu0 0
    %2625 = vmatprep.subr.bf16.mxu0 0
    %2626 = vmatpush1.bf16.msra.mxu0 0
    %2627 = vmatprep.subr.bf16.mxu0 0
    %2628 = vmatpush1.bf16.msra.mxu0 0
    %2629 = vmatprep.subr.bf16.mxu0 0
    %2630 = vmatpush1.bf16.msra.mxu0 0
    %2631 = vmatprep.subr.bf16.mxu0 0
    %2632 = vmatpush1.bf16.msra.mxu0 0
    %2633 = vmatprep.subr.bf16.mxu0 0
    %2634 = vmatpush1.bf16.msra.mxu0 0
    %2635 = vmatprep.subr.bf16.mxu0 0
    %2636 = vmatpush1.bf16.msra.mxu0 0
    %2637 = vmatprep.subr.bf16.mxu0 0
    %2638 = vmatpush1.bf16.msra.mxu0 0
    %2639 = vmatprep.subr.bf16.mxu0 0
    %2640 = vmatpush1.bf16.msra.mxu0 0
    %2641 = vmatprep.subr.bf16.mxu0 0
    %2642 = vmatpush1.bf16.msra.mxu0 0
    %2643 = vmatprep.subr.bf16.mxu0 0
    %2644 = vmatpush1.bf16.msra.mxu0 0
    %2645 = vmatprep.mubr.bf16.mxu0 0
    %2646 = vmatmul.mubr.bf16.gmra.mrb[0].mxu0 %v2602
    %v2647 = vpop.f32.mrb[0].mxu0
    %v2648 = vadd.f32 0.0, %v2647
    %v2649 = vpop.f32.mrb[0].mxu0
    %v2650 = vpop.f32.mrb[0].mxu0
    %v2651 = vadd.f32 0.0, %v2650
    %v2652 = vpop.f32.mrb[0].mxu0
    %2653 = vmatprep.mubr.bf16.mxu0 0
    %2654 = vmatmul.mubr.bf16.gmra.mrb[0].mxu0 %v2605
    %v2655 = vpop.f32.mrb[0].mxu0
    %v2656 = vpop.f32.mrb[0].mxu0
    %v2657 = vpop.f32.mrb[0].mxu0
    %v2658 = vpop.f32.mrb[0].mxu0
    %2659 = vmatprep.mubr.bf16.mxu0 0
    %2660 = vmatmul.mubr.bf16.gmra.mrb[0].mxu0 %v2608
    %v2661 = vpop.f32.mrb[0].mxu0
    %v2662 = vadd.f32 0.0, %v2661
    %v2663 = vpop.f32.mrb[0].mxu0
    %v2664 = vpop.f32.mrb[0].mxu0
    %v2665 = vadd.f32 0.0, %v2664
    %v2666 = vpop.f32.mrb[0].mxu0
    %2667 = vmatprep.mubr.bf16.mxu0 0
    %2668 = vmatmul.mubr.bf16.gmra.mrb[0].mxu0 %v2611
    %v2669 = vpop.f32.mrb[0].mxu0
    %v2670 = vadd.f32 0.0, %v2669
    %v2671 = vpop.f32.mrb[0].mxu0
    %v2672 = vpop.f32.mrb[0].mxu0
    %v2673 = vpop.f32.mrb[0].mxu0
    %2674 = vdwg.mxu0
    %v2675 = vadd.f32 %v2531, %v2648
    %v2676 = vadd.f32 %v2532, %v2651
    %v2677 = vadd.f32 %v2533, %v2662
    %v2678 = vadd.f32 %v2534, %v2665
    %v2679 = vadd.f32 %v2535, %v2670
    %v2680 = vld [vmem:[#allocation2 + $0x8] sm:$0xe]
    %s2681 = scalar_lea.vmem [#allocation8], 576
    %v2682 = vld [vmem:[%s2681] sm:$0xf]
    %v2683 = vld [vmem:[%s2681 + $0x4] sm:$0xf]
    %v2684 = vld [vmem:[%s2681 + $0x8] sm:$0xf]
    %v2685 = vld [vmem:[%s2681 + $0xc] sm:$0xf]
    %v2686 = vld [vmem:[%s2681 + $0x10] sm:$0xf]
    %v2687 = vld [vmem:[%s2681 + $0x14] sm:$0xf]
    %v2688 = vld [vmem:[%s2681 + $0x18] sm:$0xf]
    %v2689 = vld [vmem:[%s2681 + $0x1c] sm:$0xf]
    %v2691 = vunpack.c.l.b16 %v2680
    %v2692 = vpack.c.b16 %v2272, %v2691
    %v2693 = vrot.slane %v2692, 1
    %v2694 = vrot.slane %v2430, 1
    %v2695 = vsel %vm515, %v2693, %v2694
    %v2696 = vrot.slane %v2431, 1
    %v2697 = vsel %vm515, %v2694, %v2696
    %v2698 = vrot.slane %v2548, 1
    %v2699 = vsel %vm515, %v2696, %v2698
    %v2708 = vunpack.c.l.b16 %v2682
    %v2709 = vunpack.c.l.b16 %v2683
    %v2710 = vunpack.c.l.b16 %v2684
    %v2711 = vunpack.c.l.b16 %v2685
    %v2712 = vunpack.c.l.b16 %v2686
    %v2713 = vunpack.c.l.b16 %v2687
    %v2714 = vunpack.c.l.b16 %v2688
    %v2715 = vunpack.c.l.b16 %v2689
    %v2716 = vpack.c.b16 %v2709, %v2708
    %v2717 = vpack.c.b16 %v2711, %v2710
    %v2718 = vpack.c.b16 %v2713, %v2712
    %v2719 = vpack.c.b16 %v2715, %v2714
    %v2725 = vsel %vm329, %v2695, 0
    %v2728 = vsel %vm329, %v2697, 0
    %v2731 = vsel %vm329, %v2699, 0
    %v2734 = vsel %vm329, %v2698, 0
    %2736 = vmatprep.subr.bf16.mxu0 0
    %2737 = vmatpush1.bf16.msra.mxu0 %v2716
    %2738 = vmatprep.subr.bf16.mxu0 0
    %2739 = vmatpush1.bf16.msra.mxu0 %v2717
    %2740 = vmatprep.subr.bf16.mxu0 0
    %2741 = vmatpush1.bf16.msra.mxu0 %v2718
    %2742 = vmatprep.subr.bf16.mxu0 0
    %2743 = vmatpush1.bf16.msra.mxu0 %v2719
    %2744 = vmatprep.subr.bf16.mxu0 0
    %2745 = vmatpush1.bf16.msra.mxu0 0
    %2746 = vmatprep.subr.bf16.mxu0 0
    %2747 = vmatpush1.bf16.msra.mxu0 0
    %2748 = vmatprep.subr.bf16.mxu0 0
    %2749 = vmatpush1.bf16.msra.mxu0 0
    %2750 = vmatprep.subr.bf16.mxu0 0
    %2751 = vmatpush1.bf16.msra.mxu0 0
    %2752 = vmatprep.subr.bf16.mxu0 0
    %2753 = vmatpush1.bf16.msra.mxu0 0
    %2754 = vmatprep.subr.bf16.mxu0 0
    %2755 = vmatpush1.bf16.msra.mxu0 0
    %2756 = vmatprep.subr.bf16.mxu0 0
    %2757 = vmatpush1.bf16.msra.mxu0 0
    %2758 = vmatprep.subr.bf16.mxu0 0
    %2759 = vmatpush1.bf16.msra.mxu0 0
    %2760 = vmatprep.subr.bf16.mxu0 0
    %2761 = vmatpush1.bf16.msra.mxu0 0
    %2762 = vmatprep.subr.bf16.mxu0 0
    %2763 = vmatpush1.bf16.msra.mxu0 0
    %2764 = vmatprep.subr.bf16.mxu0 0
    %2765 = vmatpush1.bf16.msra.mxu0 0
    %2766 = vmatprep.subr.bf16.mxu0 0
    %2767 = vmatpush1.bf16.msra.mxu0 0
    %2768 = vmatprep.mubr.bf16.mxu0 0
    %2769 = vmatmul.mubr.bf16.gmra.mrb[0].mxu0 %v2725
    %v2770 = vpop.f32.mrb[0].mxu0
    %v2771 = vadd.f32 0.0, %v2770
    %v2772 = vpop.f32.mrb[0].mxu0
    %v2773 = vpop.f32.mrb[0].mxu0
    %v2774 = vadd.f32 0.0, %v2773
    %v2775 = vpop.f32.mrb[0].mxu0
    %2776 = vmatprep.mubr.bf16.mxu0 0
    %2777 = vmatmul.mubr.bf16.gmra.mrb[0].mxu0 %v2728
    %v2778 = vpop.f32.mrb[0].mxu0
    %v2779 = vpop.f32.mrb[0].mxu0
    %v2780 = vpop.f32.mrb[0].mxu0
    %v2781 = vpop.f32.mrb[0].mxu0
    %2782 = vmatprep.mubr.bf16.mxu0 0
    %2783 = vmatmul.mubr.bf16.gmra.mrb[0].mxu0 %v2731
    %v2784 = vpop.f32.mrb[0].mxu0
    %v2785 = vadd.f32 0.0, %v2784
    %v2786 = vpop.f32.mrb[0].mxu0
    %v2787 = vpop.f32.mrb[0].mxu0
    %v2788 = vadd.f32 0.0, %v2787
    %v2789 = vpop.f32.mrb[0].mxu0
    %2790 = vmatprep.mubr.bf16.mxu0 0
    %2791 = vmatmul.mubr.bf16.gmra.mrb[0].mxu0 %v2734
    %v2792 = vpop.f32.mrb[0].mxu0
    %v2793 = vadd.f32 0.0, %v2792
    %v2794 = vpop.f32.mrb[0].mxu0
    %v2795 = vpop.f32.mrb[0].mxu0
    %v2796 = vpop.f32.mrb[0].mxu0
    %2797 = vdwg.mxu0
    %v2798 = vadd.f32 %v2675, %v2771
    %v2799 = vadd.f32 %v2676, %v2774
    %v2800 = vadd.f32 %v2677, %v2785
    %v2801 = vadd.f32 %v2678, %v2788
    %v2802 = vadd.f32 %v2679, %v2793
    %v2803 = vld [vmem:[#allocation10] sm:$0x1]
    %v2805 = vlaneseq
    %v2806 = vshrl.u32 %v2805, 7
    %v2807 = vsub.s32 0, %v2806
    %v2808 = vrot.slane %v2803, %v2807
    %v2810 = vadd.f32 %v2798, %v2808
    %v2811 = vadd.f32 %v2799, %v2808
    %v2812 = vadd.f32 %v2800, %v2808
    %v2813 = vadd.f32 %v2801, %v2808
    %v2814 = vadd.f32 %v2802, %v2808
    %v2815 = vxor.u32 %v2810, 2147483648
    %v2816 = vxor.u32 %v2811, 2147483648
    %v2817 = vxor.u32 %v2812, 2147483648
    %v2818 = vxor.u32 %v2813, 2147483648
    %v2819 = vxor.u32 %v2814, 2147483648
    %v2820 = vmul.f32 %v2815, 1.442695
    %v2821 = vpow.pop %v2820
    %v2822 = vmul.f32 %v2816, 1.442695
    %v2823 = vpow.pop %v2822
    %v2824 = vmul.f32 %v2817, 1.442695
    %v2825 = vpow.pop %v2824
    %v2826 = vmul.f32 %v2818, 1.442695
    %v2827 = vpow.pop %v2826
    %v2828 = vmul.f32 %v2819, 1.442695
    %v2829 = vpow.pop %v2828
    %v2830 = vadd.f32 %v2821, 1.0
    %v2831 = vadd.f32 %v2823, 1.0
    %v2832 = vadd.f32 %v2825, 1.0
    %v2833 = vadd.f32 %v2827, 1.0
    %v2834 = vadd.f32 %v2829, 1.0
    %v2835 = vrcp.pop %v2830
    %v2836 = vmul.f32 1.0, %v2835
    %v2837 = vrcp.pop %v2831
    %v2838 = vmul.f32 1.0, %v2837
    %v2839 = vrcp.pop %v2832
    %v2840 = vmul.f32 1.0, %v2839
    %v2841 = vrcp.pop %v2833
    %v2842 = vmul.f32 1.0, %v2841
    %v2843 = vrcp.pop %v2834
    %v2844 = vmul.f32 1.0, %v2843
    %v2845 = vmul.f32 %v2810, %v2836
    %v2846 = vmul.f32 %v2811, %v2838
    %v2847 = vmul.f32 %v2812, %v2840
    %v2848 = vmul.f32 %v2813, %v2842
    %v2849 = vmul.f32 %v2814, %v2844
    %v2850 = vpack.c.bf16 %v2846, %v2845
    %v2852 = vrot.slane %v2850, 6
    %2854 = vst [vmem:[#allocation3] sm:$0xfc] %v2852
    %2855 = vst [vmem:[#allocation3 + $0x8] sm:$0x3] %v2852
    %v2856 = vpack.c.bf16 %v2848, %v2847
    %v2857 = vpack.c.bf16 %v2849, %v2849
    %v2860 = vrot.slane %v2856, 3
    %v2861 = vrot.slane %v2857, 3
    %v2862 = vsel %vm1047, %v2860, %v2861
    %2865 = vst [vmem:[#allocation3 + $0x8] sm:$0xc0] %v2860
    %2866 = vst [vmem:[#allocation3 + $0x10] sm:$0x3f] %v2862
    %v2867 = vld [vmem:[#allocation3] sm:$0xff]
    %v2868 = vld [vmem:[#allocation3 + $0x8] sm:$0xff]
    %v2869 = vld [vmem:[#allocation3 + $0x10] sm:$0xf]
    %v2870 = vld [vmem:[#allocation11] sm:$0xf]
    %v2871 = vld [vmem:[#allocation11 + $0x4] sm:$0xf]
    %v2872 = vld [vmem:[#allocation11 + $0x8] sm:$0xf]
    %v2873 = vld [vmem:[#allocation11 + $0xc] sm:$0xf]
    %v2874 = vld [vmem:[#allocation11 + $0x10] sm:$0xf]
    %v2875 = vld [vmem:[#allocation11 + $0x14] sm:$0xf]
    %v2876 = vld [vmem:[#allocation11 + $0x18] sm:$0xf]
    %v2877 = vld [vmem:[#allocation11 + $0x1c] sm:$0xf]
    %v2878 = vld [vmem:[#allocation11 + $0x20] sm:$0xf]
    %v2879 = vld [vmem:[#allocation11 + $0x24] sm:$0xf]
    %v2880 = vld [vmem:[#allocation11 + $0x28] sm:$0xf]
    %v2881 = vld [vmem:[#allocation11 + $0x2c] sm:$0xf]
    %v2882 = vld [vmem:[#allocation11 + $0x30] sm:$0xf]
    %v2883 = vld [vmem:[#allocation11 + $0x34] sm:$0xf]
    %v2884 = vld [vmem:[#allocation11 + $0x38] sm:$0xf]
    %v2885 = vld [vmem:[#allocation11 + $0x3c] sm:$0xf]
    %v2886 = vld [vmem:[#allocation3 + $0x10] sm:$0x1f]
    %s2887 = scalar_lea.vmem [#allocation11], 64
    %v2888 = vld [vmem:[%s2887] sm:$0xf]
    %v2889 = vld [vmem:[%s2887 + $0x4] sm:$0xf]
    %v2890 = vld [vmem:[%s2887 + $0x8] sm:$0xf]
    %v2891 = vld [vmem:[%s2887 + $0xc] sm:$0xf]
    %v2892 = vld [vmem:[%s2887 + $0x10] sm:$0xf]
    %v2893 = vld [vmem:[%s2887 + $0x14] sm:$0xf]
    %v2894 = vld [vmem:[%s2887 + $0x18] sm:$0xf]
    %v2895 = vld [vmem:[%s2887 + $0x1c] sm:$0xf]
    %v2896 = vld [vmem:[%s2887 + $0x20] sm:$0xf]
    %v2897 = vld [vmem:[%s2887 + $0x24] sm:$0xf]
    %v2898 = vld [vmem:[%s2887 + $0x28] sm:$0xf]
    %v2899 = vld [vmem:[%s2887 + $0x2c] sm:$0xf]
    %v2900 = vld [vmem:[%s2887 + $0x30] sm:$0xf]
    %v2901 = vld [vmem:[%s2887 + $0x34] sm:$0xf]
    %v2902 = vld [vmem:[%s2887 + $0x38] sm:$0xf]
    %v2903 = vld [vmem:[%s2887 + $0x3c] sm:$0xf]
    %v2905 = vshrl.u32 %v2867, 16
    %v2907 = vshll.u32 %v2867, 16
    %v2909 = vrot.slane %v2907, 1
    %v2910 = vor.u32 %v2905, %v2909
    %v2912 = vshll.u32 %v2868, 16
    %v2914 = vrot.slane %v2912, 1
    %v2915 = vsel %vm273, %v2910, %v2914
    %v2916 = vshrl.u32 %v2868, 16
    %v2918 = vor.u32 %v2916, %v2914
    %v2920 = vshll.u32 %v2886, 16
    %v2922 = vrot.slane %v2920, 1
    %v2923 = vsel %vm273, %v2918, %v2922
    %v2924 = vshrl.u32 %v2886, 16
    %v2926 = vor.u32 %v2924, %v2922
    %v2946 = vunpack.c.l.b16 %v2888
    %v2947 = vunpack.c.l.b16 %v2889
    %v2948 = vunpack.c.l.b16 %v2890
    %v2949 = vunpack.c.l.b16 %v2891
    %v2950 = vunpack.c.l.b16 %v2892
    %v2951 = vunpack.c.l.b16 %v2893
    %v2952 = vunpack.c.l.b16 %v2894
    %v2953 = vunpack.c.l.b16 %v2895
    %v2954 = vunpack.c.l.b16 %v2896
    %v2955 = vunpack.c.l.b16 %v2897
    %v2956 = vunpack.c.l.b16 %v2898
    %v2957 = vunpack.c.l.b16 %v2899
    %v2958 = vunpack.c.l.b16 %v2900
    %v2959 = vunpack.c.l.b16 %v2901
    %v2960 = vunpack.c.l.b16 %v2902
    %v2961 = vunpack.c.l.b16 %v2903
    %v2962 = vpack.c.b16 %v2947, %v2946
    %v2963 = vpack.c.b16 %v2949, %v2948
    %v2964 = vpack.c.b16 %v2951, %v2950
    %v2965 = vpack.c.b16 %v2953, %v2952
    %v2966 = vpack.c.b16 %v2955, %v2954
    %v2967 = vpack.c.b16 %v2957, %v2956
    %v2968 = vpack.c.b16 %v2959, %v2958
    %v2969 = vpack.c.b16 %v2961, %v2960
    %2978 = vmatprep.subr.bf16.mxu0 0
    %2979 = vmatpush1.bf16.msra.mxu0 %v2962
    %2980 = vmatprep.subr.bf16.mxu0 0
    %2981 = vmatpush1.bf16.msra.mxu0 %v2963
    %2982 = vmatprep.subr.bf16.mxu0 0
    %2983 = vmatpush1.bf16.msra.mxu0 %v2964
    %2984 = vmatprep.subr.bf16.mxu0 0
    %2985 = vmatpush1.bf16.msra.mxu0 %v2965
    %2986 = vmatprep.subr.bf16.mxu0 0
    %2987 = vmatpush1.bf16.msra.mxu0 %v2966
    %2988 = vmatprep.subr.bf16.mxu0 0
    %2989 = vmatpush1.bf16.msra.mxu0 %v2967
    %2990 = vmatprep.subr.bf16.mxu0 0
    %2991 = vmatpush1.bf16.msra.mxu0 %v2968
    %2992 = vmatprep.subr.bf16.mxu0 0
    %2993 = vmatpush1.bf16.msra.mxu0 %v2969
    %2994 = vmatprep.subr.bf16.mxu0 0
    %2995 = vmatpush1.bf16.msra.mxu0 0
    %2996 = vmatprep.subr.bf16.mxu0 0
    %2997 = vmatpush1.bf16.msra.mxu0 0
    %2998 = vmatprep.subr.bf16.mxu0 0
    %2999 = vmatpush1.bf16.msra.mxu0 0
    %3000 = vmatprep.subr.bf16.mxu0 0
    %3001 = vmatpush1.bf16.msra.mxu0 0
    %3002 = vmatprep.subr.bf16.mxu0 0
    %3003 = vmatpush1.bf16.msra.mxu0 0
    %3004 = vmatprep.subr.bf16.mxu0 0
    %3005 = vmatpush1.bf16.msra.mxu0 0
    %3006 = vmatprep.subr.bf16.mxu0 0
    %3007 = vmatpush1.bf16.msra.mxu0 0
    %3008 = vmatprep.subr.bf16.mxu0 0
    %3009 = vmatpush1.bf16.msra.mxu0 0
    %3010 = vmatprep.mubr.bf16.mxu0 0
    %3011 = vmatmul.mubr.bf16.gmra.mrb[0].mxu0 %v2915
    %v3012 = vpop.f32.mrb[0].mxu0
    %v3013 = vadd.f32 0.0, %v3012
    %v3014 = vpop.f32.mrb[0].mxu0
    %v3015 = vpop.f32.mrb[0].mxu0
    %v3016 = vadd.f32 0.0, %v3015
    %v3017 = vpop.f32.mrb[0].mxu0
    %3018 = vmatprep.mubr.bf16.mxu0 0
    %3019 = vmatmul.mubr.bf16.gmra.mrb[0].mxu0 %v2923
    %v3020 = vpop.f32.mrb[0].mxu0
    %v3021 = vpop.f32.mrb[0].mxu0
    %v3022 = vpop.f32.mrb[0].mxu0
    %v3023 = vadd.f32 0.0, %v3022
    %v3024 = vpop.f32.mrb[0].mxu0
    %3025 = vmatprep.mubr.bf16.mxu0 0
    %3026 = vmatmul.mubr.bf16.gmra.mrb[0].mxu0 %v2926
    %v3027 = vpop.f32.mrb[0].mxu0
    %v3028 = vadd.f32 0.0, %v3027
    %v3029 = vpop.f32.mrb[0].mxu0
    %v3030 = vpop.f32.mrb[0].mxu0
    %v3031 = vpop.f32.mrb[0].mxu0
    %3032 = vdwg.mxu0
    %v3049 = vunpack.c.l.b16 %v2870
    %v3050 = vunpack.c.l.b16 %v2871
    %v3051 = vunpack.c.l.b16 %v2872
    %v3052 = vunpack.c.l.b16 %v2873
    %v3053 = vunpack.c.l.b16 %v2874
    %v3054 = vunpack.c.l.b16 %v2875
    %v3055 = vunpack.c.l.b16 %v2876
    %v3056 = vunpack.c.l.b16 %v2877
    %v3057 = vunpack.c.l.b16 %v2878
    %v3058 = vunpack.c.l.b16 %v2879
    %v3059 = vunpack.c.l.b16 %v2880
    %v3060 = vunpack.c.l.b16 %v2881
    %v3061 = vunpack.c.l.b16 %v2882
    %v3062 = vunpack.c.l.b16 %v2883
    %v3063 = vunpack.c.l.b16 %v2884
    %v3064 = vunpack.c.l.b16 %v2885
    %v3065 = vpack.c.b16 %v3050, %v3049
    %v3066 = vpack.c.b16 %v3052, %v3051
    %v3067 = vpack.c.b16 %v3054, %v3053
    %v3068 = vpack.c.b16 %v3056, %v3055
    %v3069 = vpack.c.b16 %v3058, %v3057
    %v3070 = vpack.c.b16 %v3060, %v3059
    %v3071 = vpack.c.b16 %v3062, %v3061
    %v3072 = vpack.c.b16 %v3064, %v3063
    %3081 = vmatprep.subr.bf16.mxu0 0
    %3082 = vmatpush1.bf16.msra.mxu0 %v3065
    %3083 = vmatprep.subr.bf16.mxu0 0
    %3084 = vmatpush1.bf16.msra.mxu0 %v3066
    %3085 = vmatprep.subr.bf16.mxu0 0
    %3086 = vmatpush1.bf16.msra.mxu0 %v3067
    %3087 = vmatprep.subr.bf16.mxu0 0
    %3088 = vmatpush1.bf16.msra.mxu0 %v3068
    %3089 = vmatprep.subr.bf16.mxu0 0
    %3090 = vmatpush1.bf16.msra.mxu0 %v3069
    %3091 = vmatprep.subr.bf16.mxu0 0
    %3092 = vmatpush1.bf16.msra.mxu0 %v3070
    %3093 = vmatprep.subr.bf16.mxu0 0
    %3094 = vmatpush1.bf16.msra.mxu0 %v3071
    %3095 = vmatprep.subr.bf16.mxu0 0
    %3096 = vmatpush1.bf16.msra.mxu0 %v3072
    %3097 = vmatprep.subr.bf16.mxu0 0
    %3098 = vmatpush1.bf16.msra.mxu0 0
    %3099 = vmatprep.subr.bf16.mxu0 0
    %3100 = vmatpush1.bf16.msra.mxu0 0
    %3101 = vmatprep.subr.bf16.mxu0 0
    %3102 = vmatpush1.bf16.msra.mxu0 0
    %3103 = vmatprep.subr.bf16.mxu0 0
    %3104 = vmatpush1.bf16.msra.mxu0 0
    %3105 = vmatprep.subr.bf16.mxu0 0
    %3106 = vmatpush1.bf16.msra.mxu0 0
    %3107 = vmatprep.subr.bf16.mxu0 0
    %3108 = vmatpush1.bf16.msra.mxu0 0
    %3109 = vmatprep.subr.bf16.mxu0 0
    %3110 = vmatpush1.bf16.msra.mxu0 0
    %3111 = vmatprep.subr.bf16.mxu0 0
    %3112 = vmatpush1.bf16.msra.mxu0 0
    %3113 = vmatprep.mubr.bf16.mxu0 0
    %3114 = vmatmul.mubr.bf16.gmra.mrb[0].mxu0 %v2867
    %v3115 = vpop.f32.mrb[0].mxu0
    %v3116 = vadd.f32 %v3013, %v3115
    %v3117 = vpop.f32.mrb[0].mxu0
    %v3118 = vpop.f32.mrb[0].mxu0
    %v3119 = vadd.f32 %v3016, %v3118
    %v3120 = vpop.f32.mrb[0].mxu0
    %3121 = vmatprep.mubr.bf16.mxu0 0
    %3122 = vmatmul.mubr.bf16.gmra.mrb[0].mxu0 %v2868
    %v3123 = vpop.f32.mrb[0].mxu0
    %v3124 = vpop.f32.mrb[0].mxu0
    %v3125 = vpop.f32.mrb[0].mxu0
    %v3126 = vadd.f32 %v3023, %v3125
    %v3127 = vpop.f32.mrb[0].mxu0
    %3128 = vmatprep.mubr.bf16.mxu0 0
    %3129 = vmatmul.mubr.bf16.gmra.mrb[0].mxu0 %v2869
    %v3130 = vpop.f32.mrb[0].mxu0
    %v3131 = vadd.f32 %v3028, %v3130
    %v3132 = vpop.f32.mrb[0].mxu0
    %v3133 = vpop.f32.mrb[0].mxu0
    %v3134 = vpop.f32.mrb[0].mxu0
    %3135 = vdwg.mxu0
    %v3136 = vld [vmem:[#allocation3] sm:$0xfe]
    %s3137 = scalar_lea.vmem [#allocation11], 128
    %v3138 = vld [vmem:[%s3137] sm:$0xf]
    %v3139 = vld [vmem:[%s3137 + $0x4] sm:$0xf]
    %v3140 = vld [vmem:[%s3137 + $0x8] sm:$0xf]
    %v3141 = vld [vmem:[%s3137 + $0xc] sm:$0xf]
    %v3142 = vld [vmem:[%s3137 + $0x10] sm:$0xf]
    %v3143 = vld [vmem:[%s3137 + $0x14] sm:$0xf]
    %v3144 = vld [vmem:[%s3137 + $0x18] sm:$0xf]
    %v3145 = vld [vmem:[%s3137 + $0x1c] sm:$0xf]
    %v3146 = vld [vmem:[%s3137 + $0x20] sm:$0xf]
    %v3147 = vld [vmem:[%s3137 + $0x24] sm:$0xf]
    %v3148 = vld [vmem:[%s3137 + $0x28] sm:$0xf]
    %v3149 = vld [vmem:[%s3137 + $0x2c] sm:$0xf]
    %v3150 = vld [vmem:[%s3137 + $0x30] sm:$0xf]
    %v3151 = vld [vmem:[%s3137 + $0x34] sm:$0xf]
    %v3152 = vld [vmem:[%s3137 + $0x38] sm:$0xf]
    %v3153 = vld [vmem:[%s3137 + $0x3c] sm:$0xf]
    %v3157 = vrot.slane %v3136, 1
    %v3158 = vrot.slane %v2868, 1
    %v3159 = vsel %vm515, %v3157, %v3158
    %v3160 = vrot.slane %v2886, 1
    %v3161 = vsel %vm515, %v3158, %v3160
    %v3181 = vunpack.c.l.b16 %v3138
    %v3182 = vunpack.c.l.b16 %v3139
    %v3183 = vunpack.c.l.b16 %v3140
    %v3184 = vunpack.c.l.b16 %v3141
    %v3185 = vunpack.c.l.b16 %v3142
    %v3186 = vunpack.c.l.b16 %v3143
    %v3187 = vunpack.c.l.b16 %v3144
    %v3188 = vunpack.c.l.b16 %v3145
    %v3189 = vunpack.c.l.b16 %v3146
    %v3190 = vunpack.c.l.b16 %v3147
    %v3191 = vunpack.c.l.b16 %v3148
    %v3192 = vunpack.c.l.b16 %v3149
    %v3193 = vunpack.c.l.b16 %v3150
    %v3194 = vunpack.c.l.b16 %v3151
    %v3195 = vunpack.c.l.b16 %v3152
    %v3196 = vunpack.c.l.b16 %v3153
    %v3197 = vpack.c.b16 %v3182, %v3181
    %v3198 = vpack.c.b16 %v3184, %v3183
    %v3199 = vpack.c.b16 %v3186, %v3185
    %v3200 = vpack.c.b16 %v3188, %v3187
    %v3201 = vpack.c.b16 %v3190, %v3189
    %v3202 = vpack.c.b16 %v3192, %v3191
    %v3203 = vpack.c.b16 %v3194, %v3193
    %v3204 = vpack.c.b16 %v3196, %v3195
    %3213 = vmatprep.subr.bf16.mxu0 0
    %3214 = vmatpush1.bf16.msra.mxu0 %v3197
    %3215 = vmatprep.subr.bf16.mxu0 0
    %3216 = vmatpush1.bf16.msra.mxu0 %v3198
    %3217 = vmatprep.subr.bf16.mxu0 0
    %3218 = vmatpush1.bf16.msra.mxu0 %v3199
    %3219 = vmatprep.subr.bf16.mxu0 0
    %3220 = vmatpush1.bf16.msra.mxu0 %v3200
    %3221 = vmatprep.subr.bf16.mxu0 0
    %3222 = vmatpush1.bf16.msra.mxu0 %v3201
    %3223 = vmatprep.subr.bf16.mxu0 0
    %3224 = vmatpush1.bf16.msra.mxu0 %v3202
    %3225 = vmatprep.subr.bf16.mxu0 0
    %3226 = vmatpush1.bf16.msra.mxu0 %v3203
    %3227 = vmatprep.subr.bf16.mxu0 0
    %3228 = vmatpush1.bf16.msra.mxu0 %v3204
    %3229 = vmatprep.subr.bf16.mxu0 0
    %3230 = vmatpush1.bf16.msra.mxu0 0
    %3231 = vmatprep.subr.bf16.mxu0 0
    %3232 = vmatpush1.bf16.msra.mxu0 0
    %3233 = vmatprep.subr.bf16.mxu0 0
    %3234 = vmatpush1.bf16.msra.mxu0 0
    %3235 = vmatprep.subr.bf16.mxu0 0
    %3236 = vmatpush1.bf16.msra.mxu0 0
    %3237 = vmatprep.subr.bf16.mxu0 0
    %3238 = vmatpush1.bf16.msra.mxu0 0
    %3239 = vmatprep.subr.bf16.mxu0 0
    %3240 = vmatpush1.bf16.msra.mxu0 0
    %3241 = vmatprep.subr.bf16.mxu0 0
    %3242 = vmatpush1.bf16.msra.mxu0 0
    %3243 = vmatprep.subr.bf16.mxu0 0
    %3244 = vmatpush1.bf16.msra.mxu0 0
    %3245 = vmatprep.mubr.bf16.mxu0 0
    %3246 = vmatmul.mubr.bf16.gmra.mrb[0].mxu0 %v3159
    %v3247 = vpop.f32.mrb[0].mxu0
    %v3248 = vadd.f32 0.0, %v3247
    %v3249 = vpop.f32.mrb[0].mxu0
    %v3250 = vpop.f32.mrb[0].mxu0
    %v3251 = vadd.f32 0.0, %v3250
    %v3252 = vpop.f32.mrb[0].mxu0
    %3253 = vmatprep.mubr.bf16.mxu0 0
    %3254 = vmatmul.mubr.bf16.gmra.mrb[0].mxu0 %v3161
    %v3255 = vpop.f32.mrb[0].mxu0
    %v3256 = vpop.f32.mrb[0].mxu0
    %v3257 = vpop.f32.mrb[0].mxu0
    %v3258 = vadd.f32 0.0, %v3257
    %v3259 = vpop.f32.mrb[0].mxu0
    %3260 = vmatprep.mubr.bf16.mxu0 0
    %3261 = vmatmul.mubr.bf16.gmra.mrb[0].mxu0 %v3160
    %v3262 = vpop.f32.mrb[0].mxu0
    %v3263 = vadd.f32 0.0, %v3262
    %v3264 = vpop.f32.mrb[0].mxu0
    %v3265 = vpop.f32.mrb[0].mxu0
    %v3266 = vpop.f32.mrb[0].mxu0
    %3267 = vdwg.mxu0
    %v3268 = vadd.f32 %v3116, %v3248
    %v3269 = vadd.f32 %v3119, %v3251
    %v3270 = vadd.f32 %v3126, %v3258
    %v3271 = vadd.f32 %v3131, %v3263
    %v3272 = vld [vmem:[#allocation3 + $0x10] sm:$0x3f]
    %s3273 = scalar_lea.vmem [#allocation11], 192
    %v3274 = vld [vmem:[%s3273] sm:$0xf]
    %v3275 = vld [vmem:[%s3273 + $0x4] sm:$0xf]
    %v3276 = vld [vmem:[%s3273 + $0x8] sm:$0xf]
    %v3277 = vld [vmem:[%s3273 + $0xc] sm:$0xf]
    %v3278 = vld [vmem:[%s3273 + $0x10] sm:$0xf]
    %v3279 = vld [vmem:[%s3273 + $0x14] sm:$0xf]
    %v3280 = vld [vmem:[%s3273 + $0x18] sm:$0xf]
    %v3281 = vld [vmem:[%s3273 + $0x1c] sm:$0xf]
    %v3282 = vld [vmem:[%s3273 + $0x20] sm:$0xf]
    %v3283 = vld [vmem:[%s3273 + $0x24] sm:$0xf]
    %v3284 = vld [vmem:[%s3273 + $0x28] sm:$0xf]
    %v3285 = vld [vmem:[%s3273 + $0x2c] sm:$0xf]
    %v3286 = vld [vmem:[%s3273 + $0x30] sm:$0xf]
    %v3287 = vld [vmem:[%s3273 + $0x34] sm:$0xf]
    %v3288 = vld [vmem:[%s3273 + $0x38] sm:$0xf]
    %v3289 = vld [vmem:[%s3273 + $0x3c] sm:$0xf]
    %v3291 = vshrl.u32 %v3136, 16
    %v3293 = vrot.slane %v3291, 1
    %v3294 = vshll.u32 %v3136, 16
    %v3296 = vrot.slane %v3294, 2
    %v3297 = vor.u32 %v3293, %v3296
    %v3298 = vrot.slane %v2916, 1
    %v3299 = vrot.slane %v2912, 2
    %v3300 = vor.u32 %v3298, %v3299
    %v3301 = vsel %vm639, %v3297, %v3300
    %v3303 = vshrl.u32 %v3272, 16
    %v3305 = vrot.slane %v3303, 1
    %v3306 = vshll.u32 %v3272, 16
    %v3308 = vrot.slane %v3306, 2
    %v3309 = vor.u32 %v3305, %v3308
    %v3310 = vsel %vm639, %v3300, %v3309
    %v3330 = vunpack.c.l.b16 %v3274
    %v3331 = vunpack.c.l.b16 %v3275
    %v3332 = vunpack.c.l.b16 %v3276
    %v3333 = vunpack.c.l.b16 %v3277
    %v3334 = vunpack.c.l.b16 %v3278
    %v3335 = vunpack.c.l.b16 %v3279
    %v3336 = vunpack.c.l.b16 %v3280
    %v3337 = vunpack.c.l.b16 %v3281
    %v3338 = vunpack.c.l.b16 %v3282
    %v3339 = vunpack.c.l.b16 %v3283
    %v3340 = vunpack.c.l.b16 %v3284
    %v3341 = vunpack.c.l.b16 %v3285
    %v3342 = vunpack.c.l.b16 %v3286
    %v3343 = vunpack.c.l.b16 %v3287
    %v3344 = vunpack.c.l.b16 %v3288
    %v3345 = vunpack.c.l.b16 %v3289
    %v3346 = vpack.c.b16 %v3331, %v3330
    %v3347 = vpack.c.b16 %v3333, %v3332
    %v3348 = vpack.c.b16 %v3335, %v3334
    %v3349 = vpack.c.b16 %v3337, %v3336
    %v3350 = vpack.c.b16 %v3339, %v3338
    %v3351 = vpack.c.b16 %v3341, %v3340
    %v3352 = vpack.c.b16 %v3343, %v3342
    %v3353 = vpack.c.b16 %v3345, %v3344
    %3362 = vmatprep.subr.bf16.mxu0 0
    %3363 = vmatpush1.bf16.msra.mxu0 %v3346
    %3364 = vmatprep.subr.bf16.mxu0 0
    %3365 = vmatpush1.bf16.msra.mxu0 %v3347
    %3366 = vmatprep.subr.bf16.mxu0 0
    %3367 = vmatpush1.bf16.msra.mxu0 %v3348
    %3368 = vmatprep.subr.bf16.mxu0 0
    %3369 = vmatpush1.bf16.msra.mxu0 %v3349
    %3370 = vmatprep.subr.bf16.mxu0 0
    %3371 = vmatpush1.bf16.msra.mxu0 %v3350
    %3372 = vmatprep.subr.bf16.mxu0 0
    %3373 = vmatpush1.bf16.msra.mxu0 %v3351
    %3374 = vmatprep.subr.bf16.mxu0 0
    %3375 = vmatpush1.bf16.msra.mxu0 %v3352
    %3376 = vmatprep.subr.bf16.mxu0 0
    %3377 = vmatpush1.bf16.msra.mxu0 %v3353
    %3378 = vmatprep.subr.bf16.mxu0 0
    %3379 = vmatpush1.bf16.msra.mxu0 0
    %3380 = vmatprep.subr.bf16.mxu0 0
    %3381 = vmatpush1.bf16.msra.mxu0 0
    %3382 = vmatprep.subr.bf16.mxu0 0
    %3383 = vmatpush1.bf16.msra.mxu0 0
    %3384 = vmatprep.subr.bf16.mxu0 0
    %3385 = vmatpush1.bf16.msra.mxu0 0
    %3386 = vmatprep.subr.bf16.mxu0 0
    %3387 = vmatpush1.bf16.msra.mxu0 0
    %3388 = vmatprep.subr.bf16.mxu0 0
    %3389 = vmatpush1.bf16.msra.mxu0 0
    %3390 = vmatprep.subr.bf16.mxu0 0
    %3391 = vmatpush1.bf16.msra.mxu0 0
    %3392 = vmatprep.subr.bf16.mxu0 0
    %3393 = vmatpush1.bf16.msra.mxu0 0
    %3394 = vmatprep.mubr.bf16.mxu0 0
    %3395 = vmatmul.mubr.bf16.gmra.mrb[0].mxu0 %v3301
    %v3396 = vpop.f32.mrb[0].mxu0
    %v3397 = vadd.f32 0.0, %v3396
    %v3398 = vpop.f32.mrb[0].mxu0
    %v3399 = vpop.f32.mrb[0].mxu0
    %v3400 = vadd.f32 0.0, %v3399
    %v3401 = vpop.f32.mrb[0].mxu0
    %3402 = vmatprep.mubr.bf16.mxu0 0
    %3403 = vmatmul.mubr.bf16.gmra.mrb[0].mxu0 %v3310
    %v3404 = vpop.f32.mrb[0].mxu0
    %v3405 = vpop.f32.mrb[0].mxu0
    %v3406 = vpop.f32.mrb[0].mxu0
    %v3407 = vadd.f32 0.0, %v3406
    %v3408 = vpop.f32.mrb[0].mxu0
    %3409 = vmatprep.mubr.bf16.mxu0 0
    %3410 = vmatmul.mubr.bf16.gmra.mrb[0].mxu0 %v3309
    %v3411 = vpop.f32.mrb[0].mxu0
    %v3412 = vadd.f32 0.0, %v3411
    %v3413 = vpop.f32.mrb[0].mxu0
    %v3414 = vpop.f32.mrb[0].mxu0
    %v3415 = vpop.f32.mrb[0].mxu0
    %3416 = vdwg.mxu0
    %v3417 = vadd.f32 %v3268, %v3397
    %v3418 = vadd.f32 %v3269, %v3400
    %v3419 = vadd.f32 %v3270, %v3407
    %v3420 = vadd.f32 %v3271, %v3412
    %v3421 = vld [vmem:[#allocation3] sm:$0xfc]
    %s3422 = scalar_lea.vmem [#allocation11], 256
    %v3423 = vld [vmem:[%s3422] sm:$0xf]
    %v3424 = vld [vmem:[%s3422 + $0x4] sm:$0xf]
    %v3425 = vld [vmem:[%s3422 + $0x8] sm:$0xf]
    %v3426 = vld [vmem:[%s3422 + $0xc] sm:$0xf]
    %v3427 = vld [vmem:[%s3422 + $0x10] sm:$0xf]
    %v3428 = vld [vmem:[%s3422 + $0x14] sm:$0xf]
    %v3429 = vld [vmem:[%s3422 + $0x18] sm:$0xf]
    %v3430 = vld [vmem:[%s3422 + $0x1c] sm:$0xf]
    %v3431 = vld [vmem:[%s3422 + $0x20] sm:$0xf]
    %v3432 = vld [vmem:[%s3422 + $0x24] sm:$0xf]
    %v3433 = vld [vmem:[%s3422 + $0x28] sm:$0xf]
    %v3434 = vld [vmem:[%s3422 + $0x2c] sm:$0xf]
    %v3435 = vld [vmem:[%s3422 + $0x30] sm:$0xf]
    %v3436 = vld [vmem:[%s3422 + $0x34] sm:$0xf]
    %v3437 = vld [vmem:[%s3422 + $0x38] sm:$0xf]
    %v3438 = vld [vmem:[%s3422 + $0x3c] sm:$0xf]
    %v3441 = vrot.slane %v3421, 2
    %v3442 = vrot.slane %v2868, 2
    %v3443 = vsel %vm781, %v3441, %v3442
    %v3444 = vrot.slane %v3272, 2
    %v3445 = vsel %vm781, %v3442, %v3444
    %v3465 = vunpack.c.l.b16 %v3423
    %v3466 = vunpack.c.l.b16 %v3424
    %v3467 = vunpack.c.l.b16 %v3425
    %v3468 = vunpack.c.l.b16 %v3426
    %v3469 = vunpack.c.l.b16 %v3427
    %v3470 = vunpack.c.l.b16 %v3428
    %v3471 = vunpack.c.l.b16 %v3429
    %v3472 = vunpack.c.l.b16 %v3430
    %v3473 = vunpack.c.l.b16 %v3431
    %v3474 = vunpack.c.l.b16 %v3432
    %v3475 = vunpack.c.l.b16 %v3433
    %v3476 = vunpack.c.l.b16 %v3434
    %v3477 = vunpack.c.l.b16 %v3435
    %v3478 = vunpack.c.l.b16 %v3436
    %v3479 = vunpack.c.l.b16 %v3437
    %v3480 = vunpack.c.l.b16 %v3438
    %v3481 = vpack.c.b16 %v3466, %v3465
    %v3482 = vpack.c.b16 %v3468, %v3467
    %v3483 = vpack.c.b16 %v3470, %v3469
    %v3484 = vpack.c.b16 %v3472, %v3471
    %v3485 = vpack.c.b16 %v3474, %v3473
    %v3486 = vpack.c.b16 %v3476, %v3475
    %v3487 = vpack.c.b16 %v3478, %v3477
    %v3488 = vpack.c.b16 %v3480, %v3479
    %3497 = vmatprep.subr.bf16.mxu0 0
    %3498 = vmatpush1.bf16.msra.mxu0 %v3481
    %3499 = vmatprep.subr.bf16.mxu0 0
    %3500 = vmatpush1.bf16.msra.mxu0 %v3482
    %3501 = vmatprep.subr.bf16.mxu0 0
    %3502 = vmatpush1.bf16.msra.mxu0 %v3483
    %3503 = vmatprep.subr.bf16.mxu0 0
    %3504 = vmatpush1.bf16.msra.mxu0 %v3484
    %3505 = vmatprep.subr.bf16.mxu0 0
    %3506 = vmatpush1.bf16.msra.mxu0 %v3485
    %3507 = vmatprep.subr.bf16.mxu0 0
    %3508 = vmatpush1.bf16.msra.mxu0 %v3486
    %3509 = vmatprep.subr.bf16.mxu0 0
    %3510 = vmatpush1.bf16.msra.mxu0 %v3487
    %3511 = vmatprep.subr.bf16.mxu0 0
    %3512 = vmatpush1.bf16.msra.mxu0 %v3488
    %3513 = vmatprep.subr.bf16.mxu0 0
    %3514 = vmatpush1.bf16.msra.mxu0 0
    %3515 = vmatprep.subr.bf16.mxu0 0
    %3516 = vmatpush1.bf16.msra.mxu0 0
    %3517 = vmatprep.subr.bf16.mxu0 0
    %3518 = vmatpush1.bf16.msra.mxu0 0
    %3519 = vmatprep.subr.bf16.mxu0 0
    %3520 = vmatpush1.bf16.msra.mxu0 0
    %3521 = vmatprep.subr.bf16.mxu0 0
    %3522 = vmatpush1.bf16.msra.mxu0 0
    %3523 = vmatprep.subr.bf16.mxu0 0
    %3524 = vmatpush1.bf16.msra.mxu0 0
    %3525 = vmatprep.subr.bf16.mxu0 0
    %3526 = vmatpush1.bf16.msra.mxu0 0
    %3527 = vmatprep.subr.bf16.mxu0 0
    %3528 = vmatpush1.bf16.msra.mxu0 0
    %3529 = vmatprep.mubr.bf16.mxu0 0
    %3530 = vmatmul.mubr.bf16.gmra.mrb[0].mxu0 %v3443
    %v3531 = vpop.f32.mrb[0].mxu0
    %v3532 = vadd.f32 0.0, %v3531
    %v3533 = vpop.f32.mrb[0].mxu0
    %v3534 = vpop.f32.mrb[0].mxu0
    %v3535 = vadd.f32 0.0, %v3534
    %v3536 = vpop.f32.mrb[0].mxu0
    %3537 = vmatprep.mubr.bf16.mxu0 0
    %3538 = vmatmul.mubr.bf16.gmra.mrb[0].mxu0 %v3445
    %v3539 = vpop.f32.mrb[0].mxu0
    %v3540 = vpop.f32.mrb[0].mxu0
    %v3541 = vpop.f32.mrb[0].mxu0
    %v3542 = vadd.f32 0.0, %v3541
    %v3543 = vpop.f32.mrb[0].mxu0
    %3544 = vmatprep.mubr.bf16.mxu0 0
    %3545 = vmatmul.mubr.bf16.gmra.mrb[0].mxu0 %v3444
    %v3546 = vpop.f32.mrb[0].mxu0
    %v3547 = vadd.f32 0.0, %v3546
    %v3548 = vpop.f32.mrb[0].mxu0
    %v3549 = vpop.f32.mrb[0].mxu0
    %v3550 = vpop.f32.mrb[0].mxu0
    %3551 = vdwg.mxu0
    %v3552 = vadd.f32 %v3417, %v3532
    %v3553 = vadd.f32 %v3418, %v3535
    %v3554 = vadd.f32 %v3419, %v3542
    %v3555 = vadd.f32 %v3420, %v3547
    %v3556 = vld [vmem:[#allocation3 + $0x10] sm:$0x7f]
    %s3557 = scalar_lea.vmem [#allocation11], 320
    %v3558 = vld [vmem:[%s3557] sm:$0xf]
    %v3559 = vld [vmem:[%s3557 + $0x4] sm:$0xf]
    %v3560 = vld [vmem:[%s3557 + $0x8] sm:$0xf]
    %v3561 = vld [vmem:[%s3557 + $0xc] sm:$0xf]
    %v3562 = vld [vmem:[%s3557 + $0x10] sm:$0xf]
    %v3563 = vld [vmem:[%s3557 + $0x14] sm:$0xf]
    %v3564 = vld [vmem:[%s3557 + $0x18] sm:$0xf]
    %v3565 = vld [vmem:[%s3557 + $0x1c] sm:$0xf]
    %v3566 = vld [vmem:[%s3557 + $0x20] sm:$0xf]
    %v3567 = vld [vmem:[%s3557 + $0x24] sm:$0xf]
    %v3568 = vld [vmem:[%s3557 + $0x28] sm:$0xf]
    %v3569 = vld [vmem:[%s3557 + $0x2c] sm:$0xf]
    %v3570 = vld [vmem:[%s3557 + $0x30] sm:$0xf]
    %v3571 = vld [vmem:[%s3557 + $0x34] sm:$0xf]
    %v3572 = vld [vmem:[%s3557 + $0x38] sm:$0xf]
    %v3573 = vld [vmem:[%s3557 + $0x3c] sm:$0xf]
    %v3575 = vshrl.u32 %v3421, 16
    %v3577 = vrot.slane %v3575, 2
    %v3578 = vshll.u32 %v3421, 16
    %v3580 = vrot.slane %v3578, 3
    %v3581 = vor.u32 %v3577, %v3580
    %v3582 = vrot.slane %v2916, 2
    %v3583 = vrot.slane %v2912, 3
    %v3584 = vor.u32 %v3582, %v3583
    %v3585 = vsel %vm905, %v3581, %v3584
    %v3587 = vshrl.u32 %v3556, 16
    %v3589 = vrot.slane %v3587, 2
    %v3590 = vshll.u32 %v3556, 16
    %v3592 = vrot.slane %v3590, 3
    %v3593 = vor.u32 %v3589, %v3592
    %v3594 = vsel %vm905, %v3584, %v3593
    %v3614 = vunpack.c.l.b16 %v3558
    %v3615 = vunpack.c.l.b16 %v3559
    %v3616 = vunpack.c.l.b16 %v3560
    %v3617 = vunpack.c.l.b16 %v3561
    %v3618 = vunpack.c.l.b16 %v3562
    %v3619 = vunpack.c.l.b16 %v3563
    %v3620 = vunpack.c.l.b16 %v3564
    %v3621 = vunpack.c.l.b16 %v3565
    %v3622 = vunpack.c.l.b16 %v3566
    %v3623 = vunpack.c.l.b16 %v3567
    %v3624 = vunpack.c.l.b16 %v3568
    %v3625 = vunpack.c.l.b16 %v3569
    %v3626 = vunpack.c.l.b16 %v3570
    %v3627 = vunpack.c.l.b16 %v3571
    %v3628 = vunpack.c.l.b16 %v3572
    %v3629 = vunpack.c.l.b16 %v3573
    %v3630 = vpack.c.b16 %v3615, %v3614
    %v3631 = vpack.c.b16 %v3617, %v3616
    %v3632 = vpack.c.b16 %v3619, %v3618
    %v3633 = vpack.c.b16 %v3621, %v3620
    %v3634 = vpack.c.b16 %v3623, %v3622
    %v3635 = vpack.c.b16 %v3625, %v3624
    %v3636 = vpack.c.b16 %v3627, %v3626
    %v3637 = vpack.c.b16 %v3629, %v3628
    %3646 = vmatprep.subr.bf16.mxu0 0
    %3647 = vmatpush1.bf16.msra.mxu0 %v3630
    %3648 = vmatprep.subr.bf16.mxu0 0
    %3649 = vmatpush1.bf16.msra.mxu0 %v3631
    %3650 = vmatprep.subr.bf16.mxu0 0
    %3651 = vmatpush1.bf16.msra.mxu0 %v3632
    %3652 = vmatprep.subr.bf16.mxu0 0
    %3653 = vmatpush1.bf16.msra.mxu0 %v3633
    %3654 = vmatprep.subr.bf16.mxu0 0
    %3655 = vmatpush1.bf16.msra.mxu0 %v3634
    %3656 = vmatprep.subr.bf16.mxu0 0
    %3657 = vmatpush1.bf16.msra.mxu0 %v3635
    %3658 = vmatprep.subr.bf16.mxu0 0
    %3659 = vmatpush1.bf16.msra.mxu0 %v3636
    %3660 = vmatprep.subr.bf16.mxu0 0
    %3661 = vmatpush1.bf16.msra.mxu0 %v3637
    %3662 = vmatprep.subr.bf16.mxu0 0
    %3663 = vmatpush1.bf16.msra.mxu0 0
    %3664 = vmatprep.subr.bf16.mxu0 0
    %3665 = vmatpush1.bf16.msra.mxu0 0
    %3666 = vmatprep.subr.bf16.mxu0 0
    %3667 = vmatpush1.bf16.msra.mxu0 0
    %3668 = vmatprep.subr.bf16.mxu0 0
    %3669 = vmatpush1.bf16.msra.mxu0 0
    %3670 = vmatprep.subr.bf16.mxu0 0
    %3671 = vmatpush1.bf16.msra.mxu0 0
    %3672 = vmatprep.subr.bf16.mxu0 0
    %3673 = vmatpush1.bf16.msra.mxu0 0
    %3674 = vmatprep.subr.bf16.mxu0 0
    %3675 = vmatpush1.bf16.msra.mxu0 0
    %3676 = vmatprep.subr.bf16.mxu0 0
    %3677 = vmatpush1.bf16.msra.mxu0 0
    %3678 = vmatprep.mubr.bf16.mxu0 0
    %3679 = vmatmul.mubr.bf16.gmra.mrb[0].mxu0 %v3585
    %v3680 = vpop.f32.mrb[0].mxu0
    %v3681 = vadd.f32 0.0, %v3680
    %v3682 = vpop.f32.mrb[0].mxu0
    %v3683 = vpop.f32.mrb[0].mxu0
    %v3684 = vadd.f32 0.0, %v3683
    %v3685 = vpop.f32.mrb[0].mxu0
    %3686 = vmatprep.mubr.bf16.mxu0 0
    %3687 = vmatmul.mubr.bf16.gmra.mrb[0].mxu0 %v3594
    %v3688 = vpop.f32.mrb[0].mxu0
    %v3689 = vpop.f32.mrb[0].mxu0
    %v3690 = vpop.f32.mrb[0].mxu0
    %v3691 = vadd.f32 0.0, %v3690
    %v3692 = vpop.f32.mrb[0].mxu0
    %3693 = vmatprep.mubr.bf16.mxu0 0
    %3694 = vmatmul.mubr.bf16.gmra.mrb[0].mxu0 %v3593
    %v3695 = vpop.f32.mrb[0].mxu0
    %v3696 = vadd.f32 0.0, %v3695
    %v3697 = vpop.f32.mrb[0].mxu0
    %v3698 = vpop.f32.mrb[0].mxu0
    %v3699 = vpop.f32.mrb[0].mxu0
    %3700 = vdwg.mxu0
    %v3701 = vadd.f32 %v3552, %v3681
    %v3702 = vadd.f32 %v3553, %v3684
    %v3703 = vadd.f32 %v3554, %v3691
    %v3704 = vadd.f32 %v3555, %v3696
    %v3705 = vld [vmem:[#allocation3] sm:$0xf8]
    %s3706 = scalar_lea.vmem [#allocation11], 384
    %v3707 = vld [vmem:[%s3706] sm:$0xf]
    %v3708 = vld [vmem:[%s3706 + $0x4] sm:$0xf]
    %v3709 = vld [vmem:[%s3706 + $0x8] sm:$0xf]
    %v3710 = vld [vmem:[%s3706 + $0xc] sm:$0xf]
    %v3711 = vld [vmem:[%s3706 + $0x10] sm:$0xf]
    %v3712 = vld [vmem:[%s3706 + $0x14] sm:$0xf]
    %v3713 = vld [vmem:[%s3706 + $0x18] sm:$0xf]
    %v3714 = vld [vmem:[%s3706 + $0x1c] sm:$0xf]
    %v3715 = vld [vmem:[%s3706 + $0x20] sm:$0xf]
    %v3716 = vld [vmem:[%s3706 + $0x24] sm:$0xf]
    %v3717 = vld [vmem:[%s3706 + $0x28] sm:$0xf]
    %v3718 = vld [vmem:[%s3706 + $0x2c] sm:$0xf]
    %v3719 = vld [vmem:[%s3706 + $0x30] sm:$0xf]
    %v3720 = vld [vmem:[%s3706 + $0x34] sm:$0xf]
    %v3721 = vld [vmem:[%s3706 + $0x38] sm:$0xf]
    %v3722 = vld [vmem:[%s3706 + $0x3c] sm:$0xf]
    %v3725 = vrot.slane %v3705, 3
    %v3726 = vrot.slane %v2868, 3
    %v3727 = vsel %vm1047, %v3725, %v3726
    %v3728 = vrot.slane %v3556, 3
    %v3729 = vsel %vm1047, %v3726, %v3728
    %v3749 = vunpack.c.l.b16 %v3707
    %v3750 = vunpack.c.l.b16 %v3708
    %v3751 = vunpack.c.l.b16 %v3709
    %v3752 = vunpack.c.l.b16 %v3710
    %v3753 = vunpack.c.l.b16 %v3711
    %v3754 = vunpack.c.l.b16 %v3712
    %v3755 = vunpack.c.l.b16 %v3713
    %v3756 = vunpack.c.l.b16 %v3714
    %v3757 = vunpack.c.l.b16 %v3715
    %v3758 = vunpack.c.l.b16 %v3716
    %v3759 = vunpack.c.l.b16 %v3717
    %v3760 = vunpack.c.l.b16 %v3718
    %v3761 = vunpack.c.l.b16 %v3719
    %v3762 = vunpack.c.l.b16 %v3720
    %v3763 = vunpack.c.l.b16 %v3721
    %v3764 = vunpack.c.l.b16 %v3722
    %v3765 = vpack.c.b16 %v3750, %v3749
    %v3766 = vpack.c.b16 %v3752, %v3751
    %v3767 = vpack.c.b16 %v3754, %v3753
    %v3768 = vpack.c.b16 %v3756, %v3755
    %v3769 = vpack.c.b16 %v3758, %v3757
    %v3770 = vpack.c.b16 %v3760, %v3759
    %v3771 = vpack.c.b16 %v3762, %v3761
    %v3772 = vpack.c.b16 %v3764, %v3763
    %3781 = vmatprep.subr.bf16.mxu0 0
    %3782 = vmatpush1.bf16.msra.mxu0 %v3765
    %3783 = vmatprep.subr.bf16.mxu0 0
    %3784 = vmatpush1.bf16.msra.mxu0 %v3766
    %3785 = vmatprep.subr.bf16.mxu0 0
    %3786 = vmatpush1.bf16.msra.mxu0 %v3767
    %3787 = vmatprep.subr.bf16.mxu0 0
    %3788 = vmatpush1.bf16.msra.mxu0 %v3768
    %3789 = vmatprep.subr.bf16.mxu0 0
    %3790 = vmatpush1.bf16.msra.mxu0 %v3769
    %3791 = vmatprep.subr.bf16.mxu0 0
    %3792 = vmatpush1.bf16.msra.mxu0 %v3770
    %3793 = vmatprep.subr.bf16.mxu0 0
    %3794 = vmatpush1.bf16.msra.mxu0 %v3771
    %3795 = vmatprep.subr.bf16.mxu0 0
    %3796 = vmatpush1.bf16.msra.mxu0 %v3772
    %3797 = vmatprep.subr.bf16.mxu0 0
    %3798 = vmatpush1.bf16.msra.mxu0 0
    %3799 = vmatprep.subr.bf16.mxu0 0
    %3800 = vmatpush1.bf16.msra.mxu0 0
    %3801 = vmatprep.subr.bf16.mxu0 0
    %3802 = vmatpush1.bf16.msra.mxu0 0
    %3803 = vmatprep.subr.bf16.mxu0 0
    %3804 = vmatpush1.bf16.msra.mxu0 0
    %3805 = vmatprep.subr.bf16.mxu0 0
    %3806 = vmatpush1.bf16.msra.mxu0 0
    %3807 = vmatprep.subr.bf16.mxu0 0
    %3808 = vmatpush1.bf16.msra.mxu0 0
    %3809 = vmatprep.subr.bf16.mxu0 0
    %3810 = vmatpush1.bf16.msra.mxu0 0
    %3811 = vmatprep.subr.bf16.mxu0 0
    %3812 = vmatpush1.bf16.msra.mxu0 0
    %3813 = vmatprep.mubr.bf16.mxu0 0
    %3814 = vmatmul.mubr.bf16.gmra.mrb[0].mxu0 %v3727
    %v3815 = vpop.f32.mrb[0].mxu0
    %v3816 = vadd.f32 0.0, %v3815
    %v3817 = vpop.f32.mrb[0].mxu0
    %v3818 = vpop.f32.mrb[0].mxu0
    %v3819 = vadd.f32 0.0, %v3818
    %v3820 = vpop.f32.mrb[0].mxu0
    %3821 = vmatprep.mubr.bf16.mxu0 0
    %3822 = vmatmul.mubr.bf16.gmra.mrb[0].mxu0 %v3729
    %v3823 = vpop.f32.mrb[0].mxu0
    %v3824 = vpop.f32.mrb[0].mxu0
    %v3825 = vpop.f32.mrb[0].mxu0
    %v3826 = vadd.f32 0.0, %v3825
    %v3827 = vpop.f32.mrb[0].mxu0
    %3828 = vmatprep.mubr.bf16.mxu0 0
    %3829 = vmatmul.mubr.bf16.gmra.mrb[0].mxu0 %v3728
    %v3830 = vpop.f32.mrb[0].mxu0
    %v3831 = vadd.f32 0.0, %v3830
    %v3832 = vpop.f32.mrb[0].mxu0
    %v3833 = vpop.f32.mrb[0].mxu0
    %v3834 = vpop.f32.mrb[0].mxu0
    %3835 = vdwg.mxu0
    %v3836 = vadd.f32 %v3701, %v3816
    %v3837 = vadd.f32 %v3702, %v3819
    %v3838 = vadd.f32 %v3703, %v3826
    %v3839 = vadd.f32 %v3704, %v3831
    %v3840 = vld [vmem:[#allocation3 + $0x10] sm:$0xff]
    %s3841 = scalar_lea.vmem [#allocation11], 448
    %v3842 = vld [vmem:[%s3841] sm:$0xf]
    %v3843 = vld [vmem:[%s3841 + $0x4] sm:$0xf]
    %v3844 = vld [vmem:[%s3841 + $0x8] sm:$0xf]
    %v3845 = vld [vmem:[%s3841 + $0xc] sm:$0xf]
    %v3846 = vld [vmem:[%s3841 + $0x10] sm:$0xf]
    %v3847 = vld [vmem:[%s3841 + $0x14] sm:$0xf]
    %v3848 = vld [vmem:[%s3841 + $0x18] sm:$0xf]
    %v3849 = vld [vmem:[%s3841 + $0x1c] sm:$0xf]
    %v3850 = vld [vmem:[%s3841 + $0x20] sm:$0xf]
    %v3851 = vld [vmem:[%s3841 + $0x24] sm:$0xf]
    %v3852 = vld [vmem:[%s3841 + $0x28] sm:$0xf]
    %v3853 = vld [vmem:[%s3841 + $0x2c] sm:$0xf]
    %v3854 = vld [vmem:[%s3841 + $0x30] sm:$0xf]
    %v3855 = vld [vmem:[%s3841 + $0x34] sm:$0xf]
    %v3856 = vld [vmem:[%s3841 + $0x38] sm:$0xf]
    %v3857 = vld [vmem:[%s3841 + $0x3c] sm:$0xf]
    %v3859 = vshrl.u32 %v3705, 16
    %v3861 = vrot.slane %v3859, 3
    %v3862 = vshll.u32 %v3705, 16
    %v3864 = vrot.slane %v3862, 4
    %v3865 = vor.u32 %v3861, %v3864
    %v3866 = vrot.slane %v2916, 3
    %v3867 = vrot.slane %v2912, 4
    %v3868 = vor.u32 %v3866, %v3867
    %v3869 = vsel %vm1195, %v3865, %v3868
    %v3871 = vshrl.u32 %v3840, 16
    %v3873 = vrot.slane %v3871, 3
    %v3874 = vshll.u32 %v3840, 16
    %v3876 = vrot.slane %v3874, 4
    %v3877 = vor.u32 %v3873, %v3876
    %v3878 = vsel %vm1195, %v3868, %v3877
    %v3898 = vunpack.c.l.b16 %v3842
    %v3899 = vunpack.c.l.b16 %v3843
    %v3900 = vunpack.c.l.b16 %v3844
    %v3901 = vunpack.c.l.b16 %v3845
    %v3902 = vunpack.c.l.b16 %v3846
    %v3903 = vunpack.c.l.b16 %v3847
    %v3904 = vunpack.c.l.b16 %v3848
    %v3905 = vunpack.c.l.b16 %v3849
    %v3906 = vunpack.c.l.b16 %v3850
    %v3907 = vunpack.c.l.b16 %v3851
    %v3908 = vunpack.c.l.b16 %v3852
    %v3909 = vunpack.c.l.b16 %v3853
    %v3910 = vunpack.c.l.b16 %v3854
    %v3911 = vunpack.c.l.b16 %v3855
    %v3912 = vunpack.c.l.b16 %v3856
    %v3913 = vunpack.c.l.b16 %v3857
    %v3914 = vpack.c.b16 %v3899, %v3898
    %v3915 = vpack.c.b16 %v3901, %v3900
    %v3916 = vpack.c.b16 %v3903, %v3902
    %v3917 = vpack.c.b16 %v3905, %v3904
    %v3918 = vpack.c.b16 %v3907, %v3906
    %v3919 = vpack.c.b16 %v3909, %v3908
    %v3920 = vpack.c.b16 %v3911, %v3910
    %v3921 = vpack.c.b16 %v3913, %v3912
    %3930 = vmatprep.subr.bf16.mxu0 0
    %3931 = vmatpush1.bf16.msra.mxu0 %v3914
    %3932 = vmatprep.subr.bf16.mxu0 0
    %3933 = vmatpush1.bf16.msra.mxu0 %v3915
    %3934 = vmatprep.subr.bf16.mxu0 0
    %3935 = vmatpush1.bf16.msra.mxu0 %v3916
    %3936 = vmatprep.subr.bf16.mxu0 0
    %3937 = vmatpush1.bf16.msra.mxu0 %v3917
    %3938 = vmatprep.subr.bf16.mxu0 0
    %3939 = vmatpush1.bf16.msra.mxu0 %v3918
    %3940 = vmatprep.subr.bf16.mxu0 0
    %3941 = vmatpush1.bf16.msra.mxu0 %v3919
    %3942 = vmatprep.subr.bf16.mxu0 0
    %3943 = vmatpush1.bf16.msra.mxu0 %v3920
    %3944 = vmatprep.subr.bf16.mxu0 0
    %3945 = vmatpush1.bf16.msra.mxu0 %v3921
    %3946 = vmatprep.subr.bf16.mxu0 0
    %3947 = vmatpush1.bf16.msra.mxu0 0
    %3948 = vmatprep.subr.bf16.mxu0 0
    %3949 = vmatpush1.bf16.msra.mxu0 0
    %3950 = vmatprep.subr.bf16.mxu0 0
    %3951 = vmatpush1.bf16.msra.mxu0 0
    %3952 = vmatprep.subr.bf16.mxu0 0
    %3953 = vmatpush1.bf16.msra.mxu0 0
    %3954 = vmatprep.subr.bf16.mxu0 0
    %3955 = vmatpush1.bf16.msra.mxu0 0
    %3956 = vmatprep.subr.bf16.mxu0 0
    %3957 = vmatpush1.bf16.msra.mxu0 0
    %3958 = vmatprep.subr.bf16.mxu0 0
    %3959 = vmatpush1.bf16.msra.mxu0 0
    %3960 = vmatprep.subr.bf16.mxu0 0
    %3961 = vmatpush1.bf16.msra.mxu0 0
    %3962 = vmatprep.mubr.bf16.mxu0 0
    %3963 = vmatmul.mubr.bf16.gmra.mrb[0].mxu0 %v3869
    %v3964 = vpop.f32.mrb[0].mxu0
    %v3965 = vadd.f32 0.0, %v3964
    %v3966 = vpop.f32.mrb[0].mxu0
    %v3967 = vpop.f32.mrb[0].mxu0
    %v3968 = vadd.f32 0.0, %v3967
    %v3969 = vpop.f32.mrb[0].mxu0
    %3970 = vmatprep.mubr.bf16.mxu0 0
    %3971 = vmatmul.mubr.bf16.gmra.mrb[0].mxu0 %v3878
    %v3972 = vpop.f32.mrb[0].mxu0
    %v3973 = vpop.f32.mrb[0].mxu0
    %v3974 = vpop.f32.mrb[0].mxu0
    %v3975 = vadd.f32 0.0, %v3974
    %v3976 = vpop.f32.mrb[0].mxu0
    %3977 = vmatprep.mubr.bf16.mxu0 0
    %3978 = vmatmul.mubr.bf16.gmra.mrb[0].mxu0 %v3877
    %v3979 = vpop.f32.mrb[0].mxu0
    %v3980 = vadd.f32 0.0, %v3979
    %v3981 = vpop.f32.mrb[0].mxu0
    %v3982 = vpop.f32.mrb[0].mxu0
    %v3983 = vpop.f32.mrb[0].mxu0
    %3984 = vdwg.mxu0
    %v3985 = vadd.f32 %v3836, %v3965
    %v3986 = vadd.f32 %v3837, %v3968
    %v3987 = vadd.f32 %v3838, %v3975
    %v3988 = vadd.f32 %v3839, %v3980
    %v3989 = vld [vmem:[#allocation3] sm:$0xf0]
    %s3990 = scalar_lea.vmem [#allocation11], 512
    %v3991 = vld [vmem:[%s3990] sm:$0xf]
    %v3992 = vld [vmem:[%s3990 + $0x4] sm:$0xf]
    %v3993 = vld [vmem:[%s3990 + $0x8] sm:$0xf]
    %v3994 = vld [vmem:[%s3990 + $0xc] sm:$0xf]
    %v3995 = vld [vmem:[%s3990 + $0x10] sm:$0xf]
    %v3996 = vld [vmem:[%s3990 + $0x14] sm:$0xf]
    %v3997 = vld [vmem:[%s3990 + $0x18] sm:$0xf]
    %v3998 = vld [vmem:[%s3990 + $0x1c] sm:$0xf]
    %v3999 = vld [vmem:[%s3990 + $0x20] sm:$0xf]
    %v4000 = vld [vmem:[%s3990 + $0x24] sm:$0xf]
    %v4001 = vld [vmem:[%s3990 + $0x28] sm:$0xf]
    %v4002 = vld [vmem:[%s3990 + $0x2c] sm:$0xf]
    %v4003 = vld [vmem:[%s3990 + $0x30] sm:$0xf]
    %v4004 = vld [vmem:[%s3990 + $0x34] sm:$0xf]
    %v4005 = vld [vmem:[%s3990 + $0x38] sm:$0xf]
    %v4006 = vld [vmem:[%s3990 + $0x3c] sm:$0xf]
    %vm4009 = vcmask 1043456
    %v4010 = vrot.slane %v3989, 4
    %v4011 = vrot.slane %v2868, 4
    %v4012 = vsel %vm4009, %v4010, %v4011
    %v4013 = vrot.slane %v3840, 4
    %v4014 = vsel %vm4009, %v4011, %v4013
    %v4034 = vunpack.c.l.b16 %v3991
    %v4035 = vunpack.c.l.b16 %v3992
    %v4036 = vunpack.c.l.b16 %v3993
    %v4037 = vunpack.c.l.b16 %v3994
    %v4038 = vunpack.c.l.b16 %v3995
    %v4039 = vunpack.c.l.b16 %v3996
    %v4040 = vunpack.c.l.b16 %v3997
    %v4041 = vunpack.c.l.b16 %v3998
    %v4042 = vunpack.c.l.b16 %v3999
    %v4043 = vunpack.c.l.b16 %v4000
    %v4044 = vunpack.c.l.b16 %v4001
    %v4045 = vunpack.c.l.b16 %v4002
    %v4046 = vunpack.c.l.b16 %v4003
    %v4047 = vunpack.c.l.b16 %v4004
    %v4048 = vunpack.c.l.b16 %v4005
    %v4049 = vunpack.c.l.b16 %v4006
    %v4050 = vpack.c.b16 %v4035, %v4034
    %v4051 = vpack.c.b16 %v4037, %v4036
    %v4052 = vpack.c.b16 %v4039, %v4038
    %v4053 = vpack.c.b16 %v4041, %v4040
    %v4054 = vpack.c.b16 %v4043, %v4042
    %v4055 = vpack.c.b16 %v4045, %v4044
    %v4056 = vpack.c.b16 %v4047, %v4046
    %v4057 = vpack.c.b16 %v4049, %v4048
    %4066 = vmatprep.subr.bf16.mxu0 0
    %4067 = vmatpush1.bf16.msra.mxu0 %v4050
    %4068 = vmatprep.subr.bf16.mxu0 0
    %4069 = vmatpush1.bf16.msra.mxu0 %v4051
    %4070 = vmatprep.subr.bf16.mxu0 0
    %4071 = vmatpush1.bf16.msra.mxu0 %v4052
    %4072 = vmatprep.subr.bf16.mxu0 0
    %4073 = vmatpush1.bf16.msra.mxu0 %v4053
    %4074 = vmatprep.subr.bf16.mxu0 0
    %4075 = vmatpush1.bf16.msra.mxu0 %v4054
    %4076 = vmatprep.subr.bf16.mxu0 0
    %4077 = vmatpush1.bf16.msra.mxu0 %v4055
    %4078 = vmatprep.subr.bf16.mxu0 0
    %4079 = vmatpush1.bf16.msra.mxu0 %v4056
    %4080 = vmatprep.subr.bf16.mxu0 0
    %4081 = vmatpush1.bf16.msra.mxu0 %v4057
    %4082 = vmatprep.subr.bf16.mxu0 0
    %4083 = vmatpush1.bf16.msra.mxu0 0
    %4084 = vmatprep.subr.bf16.mxu0 0
    %4085 = vmatpush1.bf16.msra.mxu0 0
    %4086 = vmatprep.subr.bf16.mxu0 0
    %4087 = vmatpush1.bf16.msra.mxu0 0
    %4088 = vmatprep.subr.bf16.mxu0 0
    %4089 = vmatpush1.bf16.msra.mxu0 0
    %4090 = vmatprep.subr.bf16.mxu0 0
    %4091 = vmatpush1.bf16.msra.mxu0 0
    %4092 = vmatprep.subr.bf16.mxu0 0
    %4093 = vmatpush1.bf16.msra.mxu0 0
    %4094 = vmatprep.subr.bf16.mxu0 0
    %4095 = vmatpush1.bf16.msra.mxu0 0
    %4096 = vmatprep.subr.bf16.mxu0 0
    %4097 = vmatpush1.bf16.msra.mxu0 0
    %4098 = vmatprep.mubr.bf16.mxu0 0
    %4099 = vmatmul.mubr.bf16.gmra.mrb[0].mxu0 %v4012
    %v4100 = vpop.f32.mrb[0].mxu0
    %v4101 = vadd.f32 0.0, %v4100
    %v4102 = vpop.f32.mrb[0].mxu0
    %v4103 = vpop.f32.mrb[0].mxu0
    %v4104 = vadd.f32 0.0, %v4103
    %v4105 = vpop.f32.mrb[0].mxu0
    %4106 = vmatprep.mubr.bf16.mxu0 0
    %4107 = vmatmul.mubr.bf16.gmra.mrb[0].mxu0 %v4014
    %v4108 = vpop.f32.mrb[0].mxu0
    %v4109 = vpop.f32.mrb[0].mxu0
    %v4110 = vpop.f32.mrb[0].mxu0
    %v4111 = vadd.f32 0.0, %v4110
    %v4112 = vpop.f32.mrb[0].mxu0
    %4113 = vmatprep.mubr.bf16.mxu0 0
    %4114 = vmatmul.mubr.bf16.gmra.mrb[0].mxu0 %v4013
    %v4115 = vpop.f32.mrb[0].mxu0
    %v4116 = vadd.f32 0.0, %v4115
    %v4117 = vpop.f32.mrb[0].mxu0
    %v4118 = vpop.f32.mrb[0].mxu0
    %v4119 = vpop.f32.mrb[0].mxu0
    %4120 = vdwg.mxu0
    %v4121 = vadd.f32 %v3985, %v4101
    %v4122 = vadd.f32 %v3986, %v4104
    %v4123 = vadd.f32 %v3987, %v4111
    %v4124 = vadd.f32 %v3988, %v4116
    %v4125 = vld [vmem:[#allocation13] sm:$0x1]
    %v4127 = vlaneseq
    %v4128 = vshrl.u32 %v4127, 7
    %v4129 = vsub.s32 0, %v4128
    %v4130 = vrot.slane %v4125, %v4129
    %v4132 = vadd.f32 %v4121, %v4130
    %v4133 = vadd.f32 %v4122, %v4130
    %v4134 = vadd.f32 %v4123, %v4130
    %v4135 = vadd.f32 %v4124, %v4130
    %v4136 = vxor.u32 %v4132, 2147483648
    %v4137 = vxor.u32 %v4133, 2147483648
    %v4138 = vxor.u32 %v4134, 2147483648
    %v4139 = vxor.u32 %v4135, 2147483648
    %v4140 = vmul.f32 %v4136, 1.442695
    %v4141 = vpow.pop %v4140
    %v4142 = vmul.f32 %v4137, 1.442695
    %v4143 = vpow.pop %v4142
    %v4144 = vmul.f32 %v4138, 1.442695
    %v4145 = vpow.pop %v4144
    %v4146 = vmul.f32 %v4139, 1.442695
    %v4147 = vpow.pop %v4146
    %v4148 = vadd.f32 %v4141, 1.0
    %v4149 = vadd.f32 %v4143, 1.0
    %v4150 = vadd.f32 %v4145, 1.0
    %v4151 = vadd.f32 %v4147, 1.0
    %v4152 = vrcp.pop %v4148
    %v4153 = vmul.f32 1.0, %v4152
    %v4154 = vrcp.pop %v4149
    %v4155 = vmul.f32 1.0, %v4154
    %v4156 = vrcp.pop %v4150
    %v4157 = vmul.f32 1.0, %v4156
    %v4158 = vrcp.pop %v4151
    %v4159 = vmul.f32 1.0, %v4158
    %v4160 = vmul.f32 %v4132, %v4153
    %v4161 = vmul.f32 %v4133, %v4155
    %v4162 = vmul.f32 %v4134, %v4157
    %v4163 = vmul.f32 %v4135, %v4159
    %v4164 = vpack.c.bf16 %v4161, %v4160
    %v4166 = vunpack.c.l.b16 %v4164
    %v4167 = vunpack.c.h.b16 %v4164
    %v4168 = vpack.c.b16 %v4166, %v4166
    %v4169 = vpack.c.b16 %v4167, %v4167
    %v4171 = vshrl.u32 %v4168, 16
    %v4173 = vrot.slane %v4171, 7
    %v4174 = vshll.u32 %v4168, 16
    %v4176 = vor.u32 %v4173, %v4174
    %v4177 = vrot.slane %v4173, 4
    %v4179 = vshrl.u32 %v4169, 16
    %v4181 = vrot.slane %v4179, 7
    %v4182 = vshll.u32 %v4169, 16
    %v4184 = vor.u32 %v4181, %v4182
    %v4185 = vsel %vm168, %v4177, %v4184
    %v4186 = vrot.slane %v4181, 4
    %vm4190 = vmand %vm4009, %vm134
    %v4191 = vld [vmem:[#allocation4] sm:$0xf]
    %v4192 = vsel %vm4190, %v4176, %v4191
    %4193 = vst [vmem:[#allocation4] sm:$0xf] %v4192
    %4194 = vst [vmem:[#allocation4 + $0x4] sm:$0xf] %v4185
    %v4195 = vld [vmem:[#allocation4 + $0x8] sm:$0x1]
    %v4196 = vsel %vm150, %v4186, %v4195
    %4197 = vst [vmem:[#allocation4 + $0x8] sm:$0x1] %v4196
    %v4198 = vpack.c.bf16 %v4163, %v4162
    %v4200 = vunpack.c.l.b16 %v4198
    %v4201 = vunpack.c.h.b16 %v4198
    %v4202 = vpack.c.b16 %v4200, %v4200
    %v4203 = vpack.c.b16 %v4201, %v4201
    %v4205 = vshrl.u32 %v4202, 16
    %v4207 = vrot.slane %v4205, 6
    %v4208 = vshll.u32 %v4202, 16
    %v4210 = vrot.slane %v4208, 7
    %v4211 = vor.u32 %v4207, %v4210
    %v4212 = vrot.slane %v4211, 4
    %v4214 = vshrl.u32 %v4203, 16
    %v4216 = vrot.slane %v4214, 6
    %v4217 = vshll.u32 %v4203, 16
    %v4219 = vrot.slane %v4217, 7
    %v4220 = vor.u32 %v4216, %v4219
    %v4221 = vsel %vm200, %v4212, %v4220
    %v4222 = vrot.slane %v4220, 4
    %vm4226 = vcmask 1043457
    %vm4227 = vmand %vm4226, %vm126
    %v4228 = vld [vmem:[#allocation4 + $0x8] sm:$0xe]
    %v4229 = vsel %vm4227, %v4211, %v4228
    %4230 = vst [vmem:[#allocation4 + $0x8] sm:$0xe] %v4229
    %4231 = vst [vmem:[#allocation4 + $0xc] sm:$0xf] %v4221
    %vm4232 = vmand %vm159, %vm141
    %v4233 = vld [vmem:[#allocation4 + $0x10] sm:$0x3]
    %v4234 = vsel %vm4232, %v4222, %v4233
    %4235 = vst [vmem:[#allocation4 + $0x10] sm:$0x3] %v4234
    %v4236 = vld [vmem:[#allocation4] sm:$0xf]
    %v4237 = vld [vmem:[#allocation4 + $0x4] sm:$0xf]
    %v4238 = vld [vmem:[#allocation4 + $0x8] sm:$0xf]
    %v4239 = vld [vmem:[#allocation4 + $0xc] sm:$0xf]
    %v4240 = vld [vmem:[#allocation4 + $0x10] sm:$0x1]
    %v4241 = vld [vmem:[#allocation14] sm:$0xff]
    %v4242 = vld [vmem:[#allocation14 + $0x8] sm:$0xff]
    %v4243 = vld [vmem:[#allocation14 + $0x10] sm:$0xff]
    %v4244 = vld [vmem:[#allocation14 + $0x18] sm:$0xff]
    %v4245 = vld [vmem:[#allocation14 + $0x20] sm:$0xff]
    %v4246 = vld [vmem:[#allocation14 + $0x28] sm:$0xff]
    %v4247 = vld [vmem:[#allocation14 + $0x30] sm:$0xff]
    %v4248 = vld [vmem:[#allocation14 + $0x38] sm:$0xff]
    %v4249 = vld [vmem:[#allocation14 + $0x40] sm:$0xff]
    %v4250 = vld [vmem:[#allocation14 + $0x48] sm:$0xff]
    %v4251 = vld [vmem:[#allocation14 + $0x50] sm:$0xff]
    %v4252 = vld [vmem:[#allocation14 + $0x58] sm:$0xff]
    %v4253 = vld [vmem:[#allocation14 + $0x60] sm:$0xff]
    %v4254 = vld [vmem:[#allocation14 + $0x68] sm:$0xff]
    %v4255 = vld [vmem:[#allocation14 + $0x70] sm:$0xff]
    %v4256 = vld [vmem:[#allocation14 + $0x78] sm:$0xff]
    %v4257 = vld [vmem:[#allocation4 + $0x10] sm:$0x3]
    %s4258 = scalar_lea.vmem [#allocation14], 128
    %v4259 = vld [vmem:[%s4258] sm:$0xff]
    %v4260 = vld [vmem:[%s4258 + $0x8] sm:$0xff]
    %v4261 = vld [vmem:[%s4258 + $0x10] sm:$0xff]
    %v4262 = vld [vmem:[%s4258 + $0x18] sm:$0xff]
    %v4263 = vld [vmem:[%s4258 + $0x20] sm:$0xff]
    %v4264 = vld [vmem:[%s4258 + $0x28] sm:$0xff]
    %v4265 = vld [vmem:[%s4258 + $0x30] sm:$0xff]
    %v4266 = vld [vmem:[%s4258 + $0x38] sm:$0xff]
    %v4267 = vld [vmem:[%s4258 + $0x40] sm:$0xff]
    %v4268 = vld [vmem:[%s4258 + $0x48] sm:$0xff]
    %v4269 = vld [vmem:[%s4258 + $0x50] sm:$0xff]
    %v4270 = vld [vmem:[%s4258 + $0x58] sm:$0xff]
    %v4271 = vld [vmem:[%s4258 + $0x60] sm:$0xff]
    %v4272 = vld [vmem:[%s4258 + $0x68] sm:$0xff]
    %v4273 = vld [vmem:[%s4258 + $0x70] sm:$0xff]
    %v4274 = vld [vmem:[%s4258 + $0x78] sm:$0xff]
    %v4280 = vunpack.c.l.b16 %v4236
    %v4281 = vunpack.c.l.b16 %v4237
    %v4282 = vunpack.c.l.b16 %v4238
    %v4283 = vunpack.c.l.b16 %v4239
    %v4284 = vunpack.c.l.b16 %v4257
    %v4285 = vpack.c.b16 %v4281, %v4280
    %v4286 = vpack.c.b16 %v4283, %v4282
    %v4287 = vpack.c.b16 %v4284, %v4284
    %v4289 = vshrl.u32 %v4285, 16
    %v4291 = vshll.u32 %v4285, 16
    %v4293 = vrot.slane %v4291, 1
    %v4294 = vor.u32 %v4289, %v4293
    %v4296 = vshll.u32 %v4286, 16
    %v4298 = vrot.slane %v4296, 1
    %v4299 = vsel %vm273, %v4294, %v4298
    %v4300 = vshrl.u32 %v4286, 16
    %v4302 = vor.u32 %v4300, %v4298
    %v4304 = vshll.u32 %v4287, 16
    %v4306 = vrot.slane %v4304, 1
    %v4307 = vsel %vm273, %v4302, %v4306
    %v4308 = vshrl.u32 %v4287, 16
    %v4310 = vor.u32 %v4308, %v4306
    %v4330 = vunpack.c.l.b16 %v4259
    %v4331 = vunpack.c.h.b16 %v4259
    %v4332 = vunpack.c.l.b16 %v4260
    %v4333 = vunpack.c.h.b16 %v4260
    %v4334 = vunpack.c.l.b16 %v4261
    %v4335 = vunpack.c.h.b16 %v4261
    %v4336 = vunpack.c.l.b16 %v4262
    %v4337 = vunpack.c.h.b16 %v4262
    %v4338 = vunpack.c.l.b16 %v4263
    %v4339 = vunpack.c.h.b16 %v4263
    %v4340 = vunpack.c.l.b16 %v4264
    %v4341 = vunpack.c.h.b16 %v4264
    %v4342 = vunpack.c.l.b16 %v4265
    %v4343 = vunpack.c.h.b16 %v4265
    %v4344 = vunpack.c.l.b16 %v4266
    %v4345 = vunpack.c.h.b16 %v4266
    %v4346 = vunpack.c.l.b16 %v4267
    %v4347 = vunpack.c.h.b16 %v4267
    %v4348 = vunpack.c.l.b16 %v4268
    %v4349 = vunpack.c.h.b16 %v4268
    %v4350 = vunpack.c.l.b16 %v4269
    %v4351 = vunpack.c.h.b16 %v4269
    %v4352 = vunpack.c.l.b16 %v4270
    %v4353 = vunpack.c.h.b16 %v4270
    %v4354 = vunpack.c.l.b16 %v4271
    %v4355 = vunpack.c.h.b16 %v4271
    %v4356 = vunpack.c.l.b16 %v4272
    %v4357 = vunpack.c.h.b16 %v4272
    %v4358 = vunpack.c.l.b16 %v4273
    %v4359 = vunpack.c.h.b16 %v4273
    %v4360 = vunpack.c.l.b16 %v4274
    %v4361 = vunpack.c.h.b16 %v4274
    %v4362 = vpack.c.b16 %v4332, %v4330
    %v4363 = vpack.c.b16 %v4333, %v4331
    %v4364 = vpack.c.b16 %v4336, %v4334
    %v4365 = vpack.c.b16 %v4337, %v4335
    %v4366 = vpack.c.b16 %v4340, %v4338
    %v4367 = vpack.c.b16 %v4341, %v4339
    %v4368 = vpack.c.b16 %v4344, %v4342
    %v4369 = vpack.c.b16 %v4345, %v4343
    %v4370 = vpack.c.b16 %v4348, %v4346
    %v4371 = vpack.c.b16 %v4349, %v4347
    %v4372 = vpack.c.b16 %v4352, %v4350
    %v4373 = vpack.c.b16 %v4353, %v4351
    %v4374 = vpack.c.b16 %v4356, %v4354
    %v4375 = vpack.c.b16 %v4357, %v4355
    %v4376 = vpack.c.b16 %v4360, %v4358
    %v4377 = vpack.c.b16 %v4361, %v4359
    %4394 = vmatprep.subr.bf16.mxu0 %v4363
    %4395 = vmatpush1.bf16.msra.mxu0 %v4362
    %4396 = vmatprep.subr.bf16.mxu0 %v4365
    %4397 = vmatpush1.bf16.msra.mxu0 %v4364
    %4398 = vmatprep.subr.bf16.mxu0 %v4367
    %4399 = vmatpush1.bf16.msra.mxu0 %v4366
    %4400 = vmatprep.subr.bf16.mxu0 %v4369
    %4401 = vmatpush1.bf16.msra.mxu0 %v4368
    %4402 = vmatprep.subr.bf16.mxu0 %v4371
    %4403 = vmatpush1.bf16.msra.mxu0 %v4370
    %4404 = vmatprep.subr.bf16.mxu0 %v4373
    %4405 = vmatpush1.bf16.msra.mxu0 %v4372
    %4406 = vmatprep.subr.bf16.mxu0 %v4375
    %4407 = vmatpush1.bf16.msra.mxu0 %v4374
    %4408 = vmatprep.subr.bf16.mxu0 %v4377
    %4409 = vmatpush1.bf16.msra.mxu0 %v4376
    %4410 = vmatprep.subr.bf16.mxu0 0
    %4411 = vmatpush1.bf16.msra.mxu0 0
    %4412 = vmatprep.subr.bf16.mxu0 0
    %4413 = vmatpush1.bf16.msra.mxu0 0
    %4414 = vmatprep.subr.bf16.mxu0 0
    %4415 = vmatpush1.bf16.msra.mxu0 0
    %4416 = vmatprep.subr.bf16.mxu0 0
    %4417 = vmatpush1.bf16.msra.mxu0 0
    %4418 = vmatprep.subr.bf16.mxu0 0
    %4419 = vmatpush1.bf16.msra.mxu0 0
    %4420 = vmatprep.subr.bf16.mxu0 0
    %4421 = vmatpush1.bf16.msra.mxu0 0
    %4422 = vmatprep.subr.bf16.mxu0 0
    %4423 = vmatpush1.bf16.msra.mxu0 0
    %4424 = vmatprep.subr.bf16.mxu0 0
    %4425 = vmatpush1.bf16.msra.mxu0 0
    %4426 = vmatprep.mubr.bf16.mxu0 0
    %4427 = vmatmul.mubr.bf16.gmra.mrb[0].mxu0 %v4299
    %v4428 = vpop.f32.mrb[0].mxu0
    %v4429 = vadd.f32 0.0, %v4428
    %v4430 = vpop.f32.mrb[0].mxu0
    %v4431 = vadd.f32 0.0, %v4430
    %v4432 = vpop.f32.mrb[0].mxu0
    %v4433 = vadd.f32 0.0, %v4432
    %v4434 = vpop.f32.mrb[0].mxu0
    %v4435 = vadd.f32 0.0, %v4434
    %4436 = vmatprep.mubr.bf16.mxu0 0
    %4437 = vmatmul.mubr.bf16.gmra.mrb[0].mxu0 %v4307
    %v4438 = vpop.f32.mrb[0].mxu0
    %v4439 = vadd.f32 0.0, %v4438
    %v4440 = vpop.f32.mrb[0].mxu0
    %v4441 = vadd.f32 0.0, %v4440
    %v4442 = vpop.f32.mrb[0].mxu0
    %v4443 = vadd.f32 0.0, %v4442
    %v4444 = vpop.f32.mrb[0].mxu0
    %v4445 = vadd.f32 0.0, %v4444
    %4446 = vmatprep.mubr.bf16.mxu0 0
    %4447 = vmatmul.mubr.bf16.gmra.mrb[0].mxu0 %v4310
    %v4448 = vpop.f32.mrb[0].mxu0
    %v4449 = vadd.f32 0.0, %v4448
    %v4450 = vpop.f32.mrb[0].mxu0
    %v4451 = vadd.f32 0.0, %v4450
    %v4452 = vpop.f32.mrb[0].mxu0
    %v4453 = vpop.f32.mrb[0].mxu0
    %4454 = vdwg.mxu0
    %v4456 = vunpack.c.l.b16 %v4240
    %v4457 = vpack.c.b16 %v4456, %v4456
    %v4477 = vunpack.c.l.b16 %v4241
    %v4478 = vunpack.c.h.b16 %v4241
    %v4479 = vunpack.c.l.b16 %v4242
    %v4480 = vunpack.c.h.b16 %v4242
    %v4481 = vunpack.c.l.b16 %v4243
    %v4482 = vunpack.c.h.b16 %v4243
    %v4483 = vunpack.c.l.b16 %v4244
    %v4484 = vunpack.c.h.b16 %v4244
    %v4485 = vunpack.c.l.b16 %v4245
    %v4486 = vunpack.c.h.b16 %v4245
    %v4487 = vunpack.c.l.b16 %v4246
    %v4488 = vunpack.c.h.b16 %v4246
    %v4489 = vunpack.c.l.b16 %v4247
    %v4490 = vunpack.c.h.b16 %v4247
    %v4491 = vunpack.c.l.b16 %v4248
    %v4492 = vunpack.c.h.b16 %v4248
    %v4493 = vunpack.c.l.b16 %v4249
    %v4494 = vunpack.c.h.b16 %v4249
    %v4495 = vunpack.c.l.b16 %v4250
    %v4496 = vunpack.c.h.b16 %v4250
    %v4497 = vunpack.c.l.b16 %v4251
    %v4498 = vunpack.c.h.b16 %v4251
    %v4499 = vunpack.c.l.b16 %v4252
    %v4500 = vunpack.c.h.b16 %v4252
    %v4501 = vunpack.c.l.b16 %v4253
    %v4502 = vunpack.c.h.b16 %v4253
    %v4503 = vunpack.c.l.b16 %v4254
    %v4504 = vunpack.c.h.b16 %v4254
    %v4505 = vunpack.c.l.b16 %v4255
    %v4506 = vunpack.c.h.b16 %v4255
    %v4507 = vunpack.c.l.b16 %v4256
    %v4508 = vunpack.c.h.b16 %v4256
    %v4509 = vpack.c.b16 %v4479, %v4477
    %v4510 = vpack.c.b16 %v4480, %v4478
    %v4511 = vpack.c.b16 %v4483, %v4481
    %v4512 = vpack.c.b16 %v4484, %v4482
    %v4513 = vpack.c.b16 %v4487, %v4485
    %v4514 = vpack.c.b16 %v4488, %v4486
    %v4515 = vpack.c.b16 %v4491, %v4489
    %v4516 = vpack.c.b16 %v4492, %v4490
    %v4517 = vpack.c.b16 %v4495, %v4493
    %v4518 = vpack.c.b16 %v4496, %v4494
    %v4519 = vpack.c.b16 %v4499, %v4497
    %v4520 = vpack.c.b16 %v4500, %v4498
    %v4521 = vpack.c.b16 %v4503, %v4501
    %v4522 = vpack.c.b16 %v4504, %v4502
    %v4523 = vpack.c.b16 %v4507, %v4505
    %v4524 = vpack.c.b16 %v4508, %v4506
    %4541 = vmatprep.subr.bf16.mxu0 %v4510
    %4542 = vmatpush1.bf16.msra.mxu0 %v4509
    %4543 = vmatprep.subr.bf16.mxu0 %v4512
    %4544 = vmatpush1.bf16.msra.mxu0 %v4511
    %4545 = vmatprep.subr.bf16.mxu0 %v4514
    %4546 = vmatpush1.bf16.msra.mxu0 %v4513
    %4547 = vmatprep.subr.bf16.mxu0 %v4516
    %4548 = vmatpush1.bf16.msra.mxu0 %v4515
    %4549 = vmatprep.subr.bf16.mxu0 %v4518
    %4550 = vmatpush1.bf16.msra.mxu0 %v4517
    %4551 = vmatprep.subr.bf16.mxu0 %v4520
    %4552 = vmatpush1.bf16.msra.mxu0 %v4519
    %4553 = vmatprep.subr.bf16.mxu0 %v4522
    %4554 = vmatpush1.bf16.msra.mxu0 %v4521
    %4555 = vmatprep.subr.bf16.mxu0 %v4524
    %4556 = vmatpush1.bf16.msra.mxu0 %v4523
    %4557 = vmatprep.subr.bf16.mxu0 0
    %4558 = vmatpush1.bf16.msra.mxu0 0
    %4559 = vmatprep.subr.bf16.mxu0 0
    %4560 = vmatpush1.bf16.msra.mxu0 0
    %4561 = vmatprep.subr.bf16.mxu0 0
    %4562 = vmatpush1.bf16.msra.mxu0 0
    %4563 = vmatprep.subr.bf16.mxu0 0
    %4564 = vmatpush1.bf16.msra.mxu0 0
    %4565 = vmatprep.subr.bf16.mxu0 0
    %4566 = vmatpush1.bf16.msra.mxu0 0
    %4567 = vmatprep.subr.bf16.mxu0 0
    %4568 = vmatpush1.bf16.msra.mxu0 0
    %4569 = vmatprep.subr.bf16.mxu0 0
    %4570 = vmatpush1.bf16.msra.mxu0 0
    %4571 = vmatprep.subr.bf16.mxu0 0
    %4572 = vmatpush1.bf16.msra.mxu0 0
    %4573 = vmatprep.mubr.bf16.mxu0 0
    %4574 = vmatmul.mubr.bf16.gmra.mrb[0].mxu0 %v4285
    %v4575 = vpop.f32.mrb[0].mxu0
    %v4576 = vadd.f32 %v4429, %v4575
    %v4577 = vpop.f32.mrb[0].mxu0
    %v4578 = vadd.f32 %v4431, %v4577
    %v4579 = vpop.f32.mrb[0].mxu0
    %v4580 = vadd.f32 %v4433, %v4579
    %v4581 = vpop.f32.mrb[0].mxu0
    %v4582 = vadd.f32 %v4435, %v4581
    %4583 = vmatprep.mubr.bf16.mxu0 0
    %4584 = vmatmul.mubr.bf16.gmra.mrb[0].mxu0 %v4286
    %v4585 = vpop.f32.mrb[0].mxu0
    %v4586 = vadd.f32 %v4439, %v4585
    %v4587 = vpop.f32.mrb[0].mxu0
    %v4588 = vadd.f32 %v4441, %v4587
    %v4589 = vpop.f32.mrb[0].mxu0
    %v4590 = vadd.f32 %v4443, %v4589
    %v4591 = vpop.f32.mrb[0].mxu0
    %v4592 = vadd.f32 %v4445, %v4591
    %4593 = vmatprep.mubr.bf16.mxu0 0
    %4594 = vmatmul.mubr.bf16.gmra.mrb[0].mxu0 %v4457
    %v4595 = vpop.f32.mrb[0].mxu0
    %v4596 = vadd.f32 %v4449, %v4595
    %v4597 = vpop.f32.mrb[0].mxu0
    %v4598 = vadd.f32 %v4451, %v4597
    %v4599 = vpop.f32.mrb[0].mxu0
    %v4600 = vpop.f32.mrb[0].mxu0
    %4601 = vdwg.mxu0
    %v4602 = vld [vmem:[#allocation4] sm:$0xe]
    %s4603 = scalar_lea.vmem [#allocation14], 256
    %v4604 = vld [vmem:[%s4603] sm:$0xff]
    %v4605 = vld [vmem:[%s4603 + $0x8] sm:$0xff]
    %v4606 = vld [vmem:[%s4603 + $0x10] sm:$0xff]
    %v4607 = vld [vmem:[%s4603 + $0x18] sm:$0xff]
    %v4608 = vld [vmem:[%s4603 + $0x20] sm:$0xff]
    %v4609 = vld [vmem:[%s4603 + $0x28] sm:$0xff]
    %v4610 = vld [vmem:[%s4603 + $0x30] sm:$0xff]
    %v4611 = vld [vmem:[%s4603 + $0x38] sm:$0xff]
    %v4612 = vld [vmem:[%s4603 + $0x40] sm:$0xff]
    %v4613 = vld [vmem:[%s4603 + $0x48] sm:$0xff]
    %v4614 = vld [vmem:[%s4603 + $0x50] sm:$0xff]
    %v4615 = vld [vmem:[%s4603 + $0x58] sm:$0xff]
    %v4616 = vld [vmem:[%s4603 + $0x60] sm:$0xff]
    %v4617 = vld [vmem:[%s4603 + $0x68] sm:$0xff]
    %v4618 = vld [vmem:[%s4603 + $0x70] sm:$0xff]
    %v4619 = vld [vmem:[%s4603 + $0x78] sm:$0xff]
    %v4621 = vunpack.c.l.b16 %v4602
    %v4622 = vpack.c.b16 %v4281, %v4621
    %v4623 = vrot.slane %v4622, 1
    %v4624 = vrot.slane %v4286, 1
    %v4625 = vsel %vm515, %v4623, %v4624
    %v4626 = vrot.slane %v4287, 1
    %v4627 = vsel %vm515, %v4624, %v4626
    %v4647 = vunpack.c.l.b16 %v4604
    %v4648 = vunpack.c.h.b16 %v4604
    %v4649 = vunpack.c.l.b16 %v4605
    %v4650 = vunpack.c.h.b16 %v4605
    %v4651 = vunpack.c.l.b16 %v4606
    %v4652 = vunpack.c.h.b16 %v4606
    %v4653 = vunpack.c.l.b16 %v4607
    %v4654 = vunpack.c.h.b16 %v4607
    %v4655 = vunpack.c.l.b16 %v4608
    %v4656 = vunpack.c.h.b16 %v4608
    %v4657 = vunpack.c.l.b16 %v4609
    %v4658 = vunpack.c.h.b16 %v4609
    %v4659 = vunpack.c.l.b16 %v4610
    %v4660 = vunpack.c.h.b16 %v4610
    %v4661 = vunpack.c.l.b16 %v4611
    %v4662 = vunpack.c.h.b16 %v4611
    %v4663 = vunpack.c.l.b16 %v4612
    %v4664 = vunpack.c.h.b16 %v4612
    %v4665 = vunpack.c.l.b16 %v4613
    %v4666 = vunpack.c.h.b16 %v4613
    %v4667 = vunpack.c.l.b16 %v4614
    %v4668 = vunpack.c.h.b16 %v4614
    %v4669 = vunpack.c.l.b16 %v4615
    %v4670 = vunpack.c.h.b16 %v4615
    %v4671 = vunpack.c.l.b16 %v4616
    %v4672 = vunpack.c.h.b16 %v4616
    %v4673 = vunpack.c.l.b16 %v4617
    %v4674 = vunpack.c.h.b16 %v4617
    %v4675 = vunpack.c.l.b16 %v4618
    %v4676 = vunpack.c.h.b16 %v4618
    %v4677 = vunpack.c.l.b16 %v4619
    %v4678 = vunpack.c.h.b16 %v4619
    %v4679 = vpack.c.b16 %v4649, %v4647
    %v4680 = vpack.c.b16 %v4650, %v4648
    %v4681 = vpack.c.b16 %v4653, %v4651
    %v4682 = vpack.c.b16 %v4654, %v4652
    %v4683 = vpack.c.b16 %v4657, %v4655
    %v4684 = vpack.c.b16 %v4658, %v4656
    %v4685 = vpack.c.b16 %v4661, %v4659
    %v4686 = vpack.c.b16 %v4662, %v4660
    %v4687 = vpack.c.b16 %v4665, %v4663
    %v4688 = vpack.c.b16 %v4666, %v4664
    %v4689 = vpack.c.b16 %v4669, %v4667
    %v4690 = vpack.c.b16 %v4670, %v4668
    %v4691 = vpack.c.b16 %v4673, %v4671
    %v4692 = vpack.c.b16 %v4674, %v4672
    %v4693 = vpack.c.b16 %v4677, %v4675
    %v4694 = vpack.c.b16 %v4678, %v4676
    %4711 = vmatprep.subr.bf16.mxu0 %v4680
    %4712 = vmatpush1.bf16.msra.mxu0 %v4679
    %4713 = vmatprep.subr.bf16.mxu0 %v4682
    %4714 = vmatpush1.bf16.msra.mxu0 %v4681
    %4715 = vmatprep.subr.bf16.mxu0 %v4684
    %4716 = vmatpush1.bf16.msra.mxu0 %v4683
    %4717 = vmatprep.subr.bf16.mxu0 %v4686
    %4718 = vmatpush1.bf16.msra.mxu0 %v4685
    %4719 = vmatprep.subr.bf16.mxu0 %v4688
    %4720 = vmatpush1.bf16.msra.mxu0 %v4687
    %4721 = vmatprep.subr.bf16.mxu0 %v4690
    %4722 = vmatpush1.bf16.msra.mxu0 %v4689
    %4723 = vmatprep.subr.bf16.mxu0 %v4692
    %4724 = vmatpush1.bf16.msra.mxu0 %v4691
    %4725 = vmatprep.subr.bf16.mxu0 %v4694
    %4726 = vmatpush1.bf16.msra.mxu0 %v4693
    %4727 = vmatprep.subr.bf16.mxu0 0
    %4728 = vmatpush1.bf16.msra.mxu0 0
    %4729 = vmatprep.subr.bf16.mxu0 0
    %4730 = vmatpush1.bf16.msra.mxu0 0
    %4731 = vmatprep.subr.bf16.mxu0 0
    %4732 = vmatpush1.bf16.msra.mxu0 0
    %4733 = vmatprep.subr.bf16.mxu0 0
    %4734 = vmatpush1.bf16.msra.mxu0 0
    %4735 = vmatprep.subr.bf16.mxu0 0
    %4736 = vmatpush1.bf16.msra.mxu0 0
    %4737 = vmatprep.subr.bf16.mxu0 0
    %4738 = vmatpush1.bf16.msra.mxu0 0
    %4739 = vmatprep.subr.bf16.mxu0 0
    %4740 = vmatpush1.bf16.msra.mxu0 0
    %4741 = vmatprep.subr.bf16.mxu0 0
    %4742 = vmatpush1.bf16.msra.mxu0 0
    %4743 = vmatprep.mubr.bf16.mxu0 0
    %4744 = vmatmul.mubr.bf16.gmra.mrb[0].mxu0 %v4625
    %v4745 = vpop.f32.mrb[0].mxu0
    %v4746 = vadd.f32 0.0, %v4745
    %v4747 = vpop.f32.mrb[0].mxu0
    %v4748 = vadd.f32 0.0, %v4747
    %v4749 = vpop.f32.mrb[0].mxu0
    %v4750 = vadd.f32 0.0, %v4749
    %v4751 = vpop.f32.mrb[0].mxu0
    %v4752 = vadd.f32 0.0, %v4751
    %4753 = vmatprep.mubr.bf16.mxu0 0
    %4754 = vmatmul.mubr.bf16.gmra.mrb[0].mxu0 %v4627
    %v4755 = vpop.f32.mrb[0].mxu0
    %v4756 = vadd.f32 0.0, %v4755
    %v4757 = vpop.f32.mrb[0].mxu0
    %v4758 = vadd.f32 0.0, %v4757
    %v4759 = vpop.f32.mrb[0].mxu0
    %v4760 = vadd.f32 0.0, %v4759
    %v4761 = vpop.f32.mrb[0].mxu0
    %v4762 = vadd.f32 0.0, %v4761
    %4763 = vmatprep.mubr.bf16.mxu0 0
    %4764 = vmatmul.mubr.bf16.gmra.mrb[0].mxu0 %v4626
    %v4765 = vpop.f32.mrb[0].mxu0
    %v4766 = vadd.f32 0.0, %v4765
    %v4767 = vpop.f32.mrb[0].mxu0
    %v4768 = vadd.f32 0.0, %v4767
    %v4769 = vpop.f32.mrb[0].mxu0
    %v4770 = vpop.f32.mrb[0].mxu0
    %4771 = vdwg.mxu0
    %v4772 = vadd.f32 %v4576, %v4746
    %v4773 = vadd.f32 %v4578, %v4748
    %v4774 = vadd.f32 %v4580, %v4750
    %v4775 = vadd.f32 %v4582, %v4752
    %v4776 = vadd.f32 %v4586, %v4756
    %v4777 = vadd.f32 %v4588, %v4758
    %v4778 = vadd.f32 %v4590, %v4760
    %v4779 = vadd.f32 %v4592, %v4762
    %v4780 = vadd.f32 %v4596, %v4766
    %v4781 = vadd.f32 %v4598, %v4768
    %v4782 = vld [vmem:[#allocation16] sm:$0x3]
    %v4784 = vlaneseq
    %v4785 = vshrl.u32 %v4784, 7
    %v4786 = vsub.s32 0, %v4785
    %v4787 = vrot.slane %v4782, %v4786
    %v4788 = vlaneseq
    %v4789 = vshrl.u32 %v4788, 7
    %v4790 = vsub.s32 1, %v4789
    %v4791 = vrot.slane %v4782, %v4790
    %v4794 = vadd.f32 %v4772, %v4787
    %v4795 = vadd.f32 %v4773, %v4791
    %v4796 = vadd.f32 %v4774, %v4787
    %v4797 = vadd.f32 %v4775, %v4791
    %v4798 = vadd.f32 %v4776, %v4787
    %v4799 = vadd.f32 %v4777, %v4791
    %v4800 = vadd.f32 %v4778, %v4787
    %v4801 = vadd.f32 %v4779, %v4791
    %v4802 = vadd.f32 %v4780, %v4787
    %v4803 = vadd.f32 %v4781, %v4791
    %v4804 = vxor.u32 %v4794, 2147483648
    %v4805 = vxor.u32 %v4795, 2147483648
    %v4806 = vxor.u32 %v4796, 2147483648
    %v4807 = vxor.u32 %v4797, 2147483648
    %v4808 = vxor.u32 %v4798, 2147483648
    %v4809 = vxor.u32 %v4799, 2147483648
    %v4810 = vxor.u32 %v4800, 2147483648
    %v4811 = vxor.u32 %v4801, 2147483648
    %v4812 = vxor.u32 %v4802, 2147483648
    %v4813 = vxor.u32 %v4803, 2147483648
    %v4814 = vmul.f32 %v4804, 1.442695
    %v4815 = vpow.pop %v4814
    %v4816 = vmul.f32 %v4805, 1.442695
    %v4817 = vpow.pop %v4816
    %v4818 = vmul.f32 %v4806, 1.442695
    %v4819 = vpow.pop %v4818
    %v4820 = vmul.f32 %v4807, 1.442695
    %v4821 = vpow.pop %v4820
    %v4822 = vmul.f32 %v4808, 1.442695
    %v4823 = vpow.pop %v4822
    %v4824 = vmul.f32 %v4809, 1.442695
    %v4825 = vpow.pop %v4824
    %v4826 = vmul.f32 %v4810, 1.442695
    %v4827 = vpow.pop %v4826
    %v4828 = vmul.f32 %v4811, 1.442695
    %v4829 = vpow.pop %v4828
    %v4830 = vmul.f32 %v4812, 1.442695
    %v4831 = vpow.pop %v4830
    %v4832 = vmul.f32 %v4813, 1.442695
    %v4833 = vpow.pop %v4832
    %v4834 = vadd.f32 %v4815, 1.0
    %v4835 = vadd.f32 %v4817, 1.0
    %v4836 = vadd.f32 %v4819, 1.0
    %v4837 = vadd.f32 %v4821, 1.0
    %v4838 = vadd.f32 %v4823, 1.0
    %v4839 = vadd.f32 %v4825, 1.0
    %v4840 = vadd.f32 %v4827, 1.0
    %v4841 = vadd.f32 %v4829, 1.0
    %v4842 = vadd.f32 %v4831, 1.0
    %v4843 = vadd.f32 %v4833, 1.0
    %v4844 = vrcp.pop %v4834
    %v4845 = vmul.f32 1.0, %v4844
    %v4846 = vrcp.pop %v4835
    %v4847 = vmul.f32 1.0, %v4846
    %v4848 = vrcp.pop %v4836
    %v4849 = vmul.f32 1.0, %v4848
    %v4850 = vrcp.pop %v4837
    %v4851 = vmul.f32 1.0, %v4850
    %v4852 = vrcp.pop %v4838
    %v4853 = vmul.f32 1.0, %v4852
    %v4854 = vrcp.pop %v4839
    %v4855 = vmul.f32 1.0, %v4854
    %v4856 = vrcp.pop %v4840
    %v4857 = vmul.f32 1.0, %v4856
    %v4858 = vrcp.pop %v4841
    %v4859 = vmul.f32 1.0, %v4858
    %v4860 = vrcp.pop %v4842
    %v4861 = vmul.f32 1.0, %v4860
    %v4862 = vrcp.pop %v4843
    %v4863 = vmul.f32 1.0, %v4862
    %v4864 = vmul.f32 %v4794, %v4845
    %v4865 = vmul.f32 %v4795, %v4847
    %v4866 = vmul.f32 %v4796, %v4849
    %v4867 = vmul.f32 %v4797, %v4851
    %v4868 = vmul.f32 %v4798, %v4853
    %v4869 = vmul.f32 %v4799, %v4855
    %v4870 = vmul.f32 %v4800, %v4857
    %v4871 = vmul.f32 %v4801, %v4859
    %v4872 = vmul.f32 %v4802, %v4861
    %v4873 = vmul.f32 %v4803, %v4863
    %v4874 = vmax.f32 %v4864, %v4866
    %v4875 = vrot.slane %v4874, 4
    %v4876 = vmax.f32 %v4874, %v4875
    %v4877 = vrot.slane %v4876, 2
    %v4878 = vmax.f32 %v4876, %v4877
    %v4879 = vrot.slane %v4878, 1
    %v4880 = vmax.f32 %v4878, %v4879
    %v4881 = vmax.f32 %v4865, %v4867
    %v4882 = vrot.slane %v4881, 4
    %v4883 = vmax.f32 %v4881, %v4882
    %v4884 = vrot.slane %v4883, 2
    %v4885 = vmax.f32 %v4883, %v4884
    %v4886 = vrot.slane %v4885, 1
    %v4887 = vmax.f32 %v4885, %v4886
    %vm4888 = vcmask 1047554
    %v4889 = vsel %vm4888, %v4868, -inf
    %vm4890 = vcmask 1041408
    %v4891 = vsel %vm4890, %v4872, -inf
    %v4892 = vmax.f32 %v4889, %v4891
    %v4893 = vmax.f32 %v4892, %v4870
    %v4894 = vrot.slane %v4893, 4
    %v4895 = vmax.f32 %v4893, %v4894
    %v4896 = vrot.slane %v4895, 2
    %v4897 = vmax.f32 %v4895, %v4896
    %v4898 = vrot.slane %v4897, 1
    %v4899 = vmax.f32 %v4897, %v4898
    %v4900 = vsel %vm4888, %v4869, -inf
    %v4901 = vsel %vm4890, %v4873, -inf
    %v4902 = vmax.f32 %v4900, %v4901
    %v4903 = vmax.f32 %v4902, %v4871
    %v4904 = vrot.slane %v4903, 4
    %v4905 = vmax.f32 %v4903, %v4904
    %v4906 = vrot.slane %v4905, 2
    %v4907 = vmax.f32 %v4905, %v4906
    %v4908 = vrot.slane %v4907, 1
    %v4909 = vmax.f32 %v4907, %v4908
    %vm4910 = vcmask 1040384
    %v4911 = vsel %vm4910, %v4880, %v4899
    %v4912 = vsel %vm4910, %v4887, %v4909
    %v4915 = vcombine.low %v4911, %v4912
    %v4917 = vunpack.c.l.s4 1983009808
    %v4918 = vunpack.c.0.s8 %v4917
    %v4919 = vlaneseq
    %v4920 = vshrl.u32 %v4919, 7
    %v4921 = vsub.s32 %v4918, %v4920
    %v4922 = vrot.slane %v4915, %v4921
    %4924 = vst [vmem:[#allocation17] sm:$0xf] %v4922
    // Predicated region
    $region58: #{cnn1d_without_gru_forward.2} parent=1 // pred_check
      _
    $region59: #{cnn1d_without_gru_forward.2} parent=1 // pred_check_branch
      %4926 = sbr.rel (0) target = $region61
    $region60: #{cnn1d_without_gru_forward.2} parent=1 // pred_region
      %s4928 = ssub.s32 64, 64
      %4929 = vsyncadd [#allocation7], %s4928
      %s4931 = sshll.u32 [#allocation17], 4
      %s4932 = int_to_ptr.vmem [resolvable:$true] %s4931
      %4934 = dma.vmem_to_hbm [thread:$0]  %s4932, 64, %s7, [#allocation7]
    $region61: #{cnn1d_without_gru_forward.2} parent=1 // pred_fallthru
      _
    // Predicated region
    $region62: #{cnn1d_without_gru_forward.2} parent=1 // pred_check
      _
    $region63: #{cnn1d_without_gru_forward.2} parent=1 // pred_check_branch
      %4936 = sbr.rel (0) target = $region65
    $region64: #{cnn1d_without_gru_forward.2} parent=1 // pred_region
      %4937 = dma.done [#allocation7], 64
    $region65: #{cnn1d_without_gru_forward.2} parent=1 // pred_fallthru
      _
    %4938 = vsyncpa [#allocation6], 1
    %4939 = vsyncpa [#allocation9], 1
    %4940 = vsyncpa [#allocation12], 1
    %4941 = vsyncpa [#allocation15], 1
    %4942 = vsyncpa [#allocation7], 1

// kernel: cnn1d_without_gru_forward.3
$region0: #{cnn1d_without_gru_forward.3}
  #allocation0 [shape = 'u32[]', space=smem, size = 0x4, offset = 0x4, fixed_abs, tag = 'smem constant byte address 0x4 - core index']
  #allocation1 [shape = 'u32[144,128]{1,0:T(1,128)}', space=vmem, size = 0x12000, scoped, tag = 'internal scratch']
  %s0 = inlined_call_operand.hbm [shape: f32[2,256], index: 0, kind: input, shape index: {}]
  %s1 = inlined_call_operand.hbm [shape: bf16[256,1024], index: 1, kind: input, shape index: {}]
  %s2 = inlined_call_operand.hbm [shape: f32[1,1024], index: 2, kind: input, shape index: {}]
  %s3 = inlined_call_operand.hbm [shape: bf16[1024,1024], index: 3, kind: input, shape index: {}]
  %s4 = inlined_call_operand.hbm [shape: f32[1,1024], index: 4, kind: input, shape index: {}]
  %s5 = inlined_call_operand.hbm [shape: bf16[1024,512], index: 5, kind: input, shape index: {}]
  %s6 = inlined_call_operand.hbm [shape: f32[1,512], index: 6, kind: input, shape index: {}]
  %s7 = inlined_call_operand.hbm [shape: bf16[512,128], index: 7, kind: input, shape index: {}]
  %s8 = inlined_call_operand.hbm [shape: f32[1,128], index: 8, kind: input, shape index: {}]
  %s9 = inlined_call_operand.hbm [shape: f32[2,128], index: 9, kind: output, shape index: {}]
  %s10 = sld [smem:[#allocation0]]
  $region82: #{cnn1d_without_gru_forward.3} parent=0
    _
  %s12 = ssub.s32 1, %s10
  %s13 = scalar_select 0, %s12, %s10
  $region1: #{cnn1d_without_gru_forward.3} parent=0
    #allocation2 [shape = 'u8[2048]{0}', space=vmem, size = 0x800, scoped, tag = 'input window, operand 0, single buffered']
    #allocation3 [shape = 's32[1]{0}', space=sflag, size = 0x4, scoped, tag = 'scoped memory for cnn1d_without_gru_forward.3']
    #allocation4 [shape = 's32[1]{0}', space=sflag, size = 0x4, scoped, tag = 'scoped memory for cnn1d_without_gru_forward.3']
    #allocation5 [shape = 'u8[524288]{0}', space=vmem, size = 0x80000, scoped, tag = 'input window, operand 1, single buffered']
    #allocation6 [shape = 's32[1]{0}', space=sflag, size = 0x4, scoped, tag = 'scoped memory for cnn1d_without_gru_forward.3']
    #allocation7 [shape = 'u8[4096]{0}', space=vmem, size = 0x1000, scoped, tag = 'input window, operand 2, single buffered']
    #allocation8 [shape = 'u8[2097152]{0}', space=vmem, size = 0x200000, scoped, tag = 'input window, operand 3, single buffered']
    #allocation9 [shape = 's32[1]{0}', space=sflag, size = 0x4, scoped, tag = 'scoped memory for cnn1d_without_gru_forward.3']
    #allocation10 [shape = 'u8[4096]{0}', space=vmem, size = 0x1000, scoped, tag = 'input window, operand 4, single buffered']
    #allocation11 [shape = 'u8[1048576]{0}', space=vmem, size = 0x100000, scoped, tag = 'input window, operand 5, single buffered']
    #allocation12 [shape = 's32[1]{0}', space=sflag, size = 0x4, scoped, tag = 'scoped memory for cnn1d_without_gru_forward.3']
    #allocation13 [shape = 'u8[2048]{0}', space=vmem, size = 0x800, scoped, tag = 'input window, operand 6, single buffered']
    #allocation14 [shape = 'u8[131072]{0}', space=vmem, size = 0x20000, scoped, tag = 'input window, operand 7, single buffered']
    #allocation15 [shape = 's32[1]{0}', space=sflag, size = 0x4, scoped, tag = 'scoped memory for cnn1d_without_gru_forward.3']
    #allocation16 [shape = 'u8[512]{0}', space=vmem, size = 0x400, scoped, tag = 'input window, operand 8, single buffered']
    #allocation17 [shape = 'u8[1024]{0}', space=vmem, size = 0x400, scoped, tag = 'output window, operand 0, single buffered']
    %14 = vsyncpa [#allocation3], 0
    %15 = vsyncpa [#allocation6], 0
    %16 = vsyncpa [#allocation9], 0
    %17 = vsyncpa [#allocation12], 0
    %18 = vsyncpa [#allocation15], 0
    %19 = vsyncpa [#allocation4], 0
    // Predicated region
    $region2: #{cnn1d_without_gru_forward.3} parent=1 // pred_check
      _
    $region3: #{cnn1d_without_gru_forward.3} parent=1 // pred_check_branch
      %21 = sbr.rel (0) target = $region5
    $region4: #{cnn1d_without_gru_forward.3} parent=1 // pred_region
      %s23 = ssub.s32 64, 64
      %24 = vsyncadd [#allocation3], %s23
      %s26 = sshll.u32 [#allocation2], 4
      %s27 = int_to_ptr.vmem [resolvable:$true] %s26
      %29 = dma.hbm_to_vmem [thread:$0]  %s0, 64, %s27, [#allocation3]
    $region5: #{cnn1d_without_gru_forward.3} parent=1 // pred_fallthru
      _
    // Predicated region
    $region6: #{cnn1d_without_gru_forward.3} parent=1 // pred_check
      _
    $region7: #{cnn1d_without_gru_forward.3} parent=1 // pred_check_branch
      %31 = sbr.rel (0) target = $region9
    $region8: #{cnn1d_without_gru_forward.3} parent=1 // pred_region
      %s33 = ssub.s32 16384, 16384
      %34 = vsyncadd [#allocation6], %s33
      %s35 = sshll.u32 [#allocation5], 4
      %s36 = int_to_ptr.vmem [resolvable:$true] %s35
      %41 = dma.hbm_to_vmem [thread:$0]  %s1, 16384, %s36, [#allocation6], 512, 512, 32
    $region9: #{cnn1d_without_gru_forward.3} parent=1 // pred_fallthru
      _
    // Predicated region
    $region10: #{cnn1d_without_gru_forward.3} parent=1 // pred_check
      _
    $region11: #{cnn1d_without_gru_forward.3} parent=1 // pred_check_branch
      %43 = sbr.rel (0) target = $region13
    $region12: #{cnn1d_without_gru_forward.3} parent=1 // pred_region
      %s45 = ssub.s32 128, 128
      %46 = vsyncadd [#allocation6], %s45
      %s48 = sshll.u32 [#allocation7], 4
      %s49 = int_to_ptr.vmem [resolvable:$true] %s48
      %51 = dma.hbm_to_vmem [thread:$0]  %s2, 128, %s49, [#allocation6]
    $region13: #{cnn1d_without_gru_forward.3} parent=1 // pred_fallthru
      _
    // Predicated region
    $region14: #{cnn1d_without_gru_forward.3} parent=1 // pred_check
      _
    $region15: #{cnn1d_without_gru_forward.3} parent=1 // pred_check_branch
      %53 = sbr.rel (0) target = $region17
    $region16: #{cnn1d_without_gru_forward.3} parent=1 // pred_region
      %s55 = ssub.s32 65536, 65536
      %56 = vsyncadd [#allocation9], %s55
      %s57 = sshll.u32 [#allocation8], 4
      %s58 = int_to_ptr.vmem [resolvable:$true] %s57
      %63 = dma.hbm_to_vmem [thread:$0]  %s3, 65536, %s58, [#allocation9], 512, 512, 32
    $region17: #{cnn1d_without_gru_forward.3} parent=1 // pred_fallthru
      _
    // Predicated region
    $region18: #{cnn1d_without_gru_forward.3} parent=1 // pred_check
      _
    $region19: #{cnn1d_without_gru_forward.3} parent=1 // pred_check_branch
      %65 = sbr.rel (0) target = $region21
    $region20: #{cnn1d_without_gru_forward.3} parent=1 // pred_region
      %s67 = ssub.s32 128, 128
      %68 = vsyncadd [#allocation9], %s67
      %s70 = sshll.u32 [#allocation10], 4
      %s71 = int_to_ptr.vmem [resolvable:$true] %s70
      %73 = dma.hbm_to_vmem [thread:$0]  %s4, 128, %s71, [#allocation9]
    $region21: #{cnn1d_without_gru_forward.3} parent=1 // pred_fallthru
      _
    // Predicated region
    $region22: #{cnn1d_without_gru_forward.3} parent=1 // pred_check
      _
    $region23: #{cnn1d_without_gru_forward.3} parent=1 // pred_check_branch
      %75 = sbr.rel (0) target = $region25
    $region24: #{cnn1d_without_gru_forward.3} parent=1 // pred_region
      %s77 = ssub.s32 32768, 32768
      %78 = vsyncadd [#allocation12], %s77
      %s79 = sshll.u32 [#allocation11], 4
      %s80 = int_to_ptr.vmem [resolvable:$true] %s79
      %85 = dma.hbm_to_vmem [thread:$0]  %s5, 32768, %s80, [#allocation12], 256, 256, 16
    $region25: #{cnn1d_without_gru_forward.3} parent=1 // pred_fallthru
      _
    // Predicated region
    $region26: #{cnn1d_without_gru_forward.3} parent=1 // pred_check
      _
    $region27: #{cnn1d_without_gru_forward.3} parent=1 // pred_check_branch
      %87 = sbr.rel (0) target = $region29
    $region28: #{cnn1d_without_gru_forward.3} parent=1 // pred_region
      %s89 = ssub.s32 64, 64
      %90 = vsyncadd [#allocation12], %s89
      %s92 = sshll.u32 [#allocation13], 4
      %s93 = int_to_ptr.vmem [resolvable:$true] %s92
      %95 = dma.hbm_to_vmem [thread:$0]  %s6, 64, %s93, [#allocation12]
    $region29: #{cnn1d_without_gru_forward.3} parent=1 // pred_fallthru
      _
    // Predicated region
    $region30: #{cnn1d_without_gru_forward.3} parent=1 // pred_check
      _
    $region31: #{cnn1d_without_gru_forward.3} parent=1 // pred_check_branch
      %97 = sbr.rel (0) target = $region33
    $region32: #{cnn1d_without_gru_forward.3} parent=1 // pred_region
      %s99 = ssub.s32 4096, 4096
      %100 = vsyncadd [#allocation15], %s99
      %s101 = sshll.u32 [#allocation14], 4
      %s102 = int_to_ptr.vmem [resolvable:$true] %s101
      %107 = dma.hbm_to_vmem [thread:$0]  %s7, 4096, %s102, [#allocation15], 64, 64, 4
    $region33: #{cnn1d_without_gru_forward.3} parent=1 // pred_fallthru
      _
    // Predicated region
    $region34: #{cnn1d_without_gru_forward.3} parent=1 // pred_check
      _
    $region35: #{cnn1d_without_gru_forward.3} parent=1 // pred_check_branch
      %109 = sbr.rel (0) target = $region37
    $region36: #{cnn1d_without_gru_forward.3} parent=1 // pred_region
      %s111 = ssub.s32 16, 16
      %112 = vsyncadd [#allocation15], %s111
      %s114 = sshll.u32 [#allocation16], 4
      %s115 = int_to_ptr.vmem [resolvable:$true] %s114
      %117 = dma.hbm_to_vmem [thread:$0]  %s8, 16, %s115, [#allocation15]
    $region37: #{cnn1d_without_gru_forward.3} parent=1 // pred_fallthru
      _
    // Predicated region
    $region38: #{cnn1d_without_gru_forward.3} parent=1 // pred_check
      _
    $region39: #{cnn1d_without_gru_forward.3} parent=1 // pred_check_branch
      %119 = sbr.rel (0) target = $region41
    $region40: #{cnn1d_without_gru_forward.3} parent=1 // pred_region
      %120 = dma.done [#allocation3], 64
    $region41: #{cnn1d_without_gru_forward.3} parent=1 // pred_fallthru
      _
    // Predicated region
    $region42: #{cnn1d_without_gru_forward.3} parent=1 // pred_check
      _
    $region43: #{cnn1d_without_gru_forward.3} parent=1 // pred_check_branch
      %122 = sbr.rel (0) target = $region45
    $region44: #{cnn1d_without_gru_forward.3} parent=1 // pred_region
      %123 = dma.done [#allocation6], 16384
    $region45: #{cnn1d_without_gru_forward.3} parent=1 // pred_fallthru
      _
    // Predicated region
    $region46: #{cnn1d_without_gru_forward.3} parent=1 // pred_check
      _
    $region47: #{cnn1d_without_gru_forward.3} parent=1 // pred_check_branch
      %125 = sbr.rel (0) target = $region49
    $region48: #{cnn1d_without_gru_forward.3} parent=1 // pred_region
      %126 = dma.done [#allocation6], 128
    $region49: #{cnn1d_without_gru_forward.3} parent=1 // pred_fallthru
      _
    // Predicated region
    $region50: #{cnn1d_without_gru_forward.3} parent=1 // pred_check
      _
    $region51: #{cnn1d_without_gru_forward.3} parent=1 // pred_check_branch
      %128 = sbr.rel (0) target = $region53
    $region52: #{cnn1d_without_gru_forward.3} parent=1 // pred_region
      %129 = dma.done [#allocation9], 65536
    $region53: #{cnn1d_without_gru_forward.3} parent=1 // pred_fallthru
      _
    // Predicated region
    $region54: #{cnn1d_without_gru_forward.3} parent=1 // pred_check
      _
    $region55: #{cnn1d_without_gru_forward.3} parent=1 // pred_check_branch
      %131 = sbr.rel (0) target = $region57
    $region56: #{cnn1d_without_gru_forward.3} parent=1 // pred_region
      %132 = dma.done [#allocation9], 128
    $region57: #{cnn1d_without_gru_forward.3} parent=1 // pred_fallthru
      _
    // Predicated region
    $region58: #{cnn1d_without_gru_forward.3} parent=1 // pred_check
      _
    $region59: #{cnn1d_without_gru_forward.3} parent=1 // pred_check_branch
      %134 = sbr.rel (0) target = $region61
    $region60: #{cnn1d_without_gru_forward.3} parent=1 // pred_region
      %135 = dma.done [#allocation12], 32768
    $region61: #{cnn1d_without_gru_forward.3} parent=1 // pred_fallthru
      _
    // Predicated region
    $region62: #{cnn1d_without_gru_forward.3} parent=1 // pred_check
      _
    $region63: #{cnn1d_without_gru_forward.3} parent=1 // pred_check_branch
      %137 = sbr.rel (0) target = $region65
    $region64: #{cnn1d_without_gru_forward.3} parent=1 // pred_region
      %138 = dma.done [#allocation12], 64
    $region65: #{cnn1d_without_gru_forward.3} parent=1 // pred_fallthru
      _
    // Predicated region
    $region66: #{cnn1d_without_gru_forward.3} parent=1 // pred_check
      _
    $region67: #{cnn1d_without_gru_forward.3} parent=1 // pred_check_branch
      %140 = sbr.rel (0) target = $region69
    $region68: #{cnn1d_without_gru_forward.3} parent=1 // pred_region
      %141 = dma.done [#allocation15], 4096
    $region69: #{cnn1d_without_gru_forward.3} parent=1 // pred_fallthru
      _
    // Predicated region
    $region70: #{cnn1d_without_gru_forward.3} parent=1 // pred_check
      _
    $region71: #{cnn1d_without_gru_forward.3} parent=1 // pred_check_branch
      %143 = sbr.rel (0) target = $region73
    $region72: #{cnn1d_without_gru_forward.3} parent=1 // pred_region
      %144 = dma.done [#allocation15], 16
    $region73: #{cnn1d_without_gru_forward.3} parent=1 // pred_fallthru
      _
    %v146 = vld [vmem:[#allocation2] sm:$0xf]
    %v149 = vunpack.c.l.s4 1983009808
    %v150 = vunpack.c.0.s8 %v149
    %v151 = vlaneseq
    %v152 = vshrl.u32 %v151, 7
    %v153 = vsub.s32 %v150, %v152
    %v154 = vrot.slane %v146, %v153
    %v155 = vcombine.high %v154, %v154
    %v158 = vpack.c.bf16 %v154, %v154
    %v159 = vpack.c.bf16 %v155, %v155
    %v160 = vld [vmem:[#allocation5] sm:$0xff]
    %v161 = vld [vmem:[#allocation5 + $0x8] sm:$0xff]
    %v162 = vld [vmem:[#allocation5 + $0x10] sm:$0xff]
    %v163 = vld [vmem:[#allocation5 + $0x18] sm:$0xff]
    %v164 = vld [vmem:[#allocation5 + $0x20] sm:$0xff]
    %v165 = vld [vmem:[#allocation5 + $0x28] sm:$0xff]
    %v166 = vld [vmem:[#allocation5 + $0x30] sm:$0xff]
    %v167 = vld [vmem:[#allocation5 + $0x38] sm:$0xff]
    %v168 = vld [vmem:[#allocation5 + $0x40] sm:$0xff]
    %v169 = vld [vmem:[#allocation5 + $0x48] sm:$0xff]
    %v170 = vld [vmem:[#allocation5 + $0x50] sm:$0xff]
    %v171 = vld [vmem:[#allocation5 + $0x58] sm:$0xff]
    %v172 = vld [vmem:[#allocation5 + $0x60] sm:$0xff]
    %v173 = vld [vmem:[#allocation5 + $0x68] sm:$0xff]
    %v174 = vld [vmem:[#allocation5 + $0x70] sm:$0xff]
    %v175 = vld [vmem:[#allocation5 + $0x78] sm:$0xff]
    %v176 = vld [vmem:[#allocation5 + $0x80] sm:$0xff]
    %v177 = vld [vmem:[#allocation5 + $0x88] sm:$0xff]
    %v178 = vld [vmem:[#allocation5 + $0x90] sm:$0xff]
    %v179 = vld [vmem:[#allocation5 + $0x98] sm:$0xff]
    %v180 = vld [vmem:[#allocation5 + $0xa0] sm:$0xff]
    %v181 = vld [vmem:[#allocation5 + $0xa8] sm:$0xff]
    %v182 = vld [vmem:[#allocation5 + $0xb0] sm:$0xff]
    %v183 = vld [vmem:[#allocation5 + $0xb8] sm:$0xff]
    %v184 = vld [vmem:[#allocation5 + $0xc0] sm:$0xff]
    %v185 = vld [vmem:[#allocation5 + $0xc8] sm:$0xff]
    %v186 = vld [vmem:[#allocation5 + $0xd0] sm:$0xff]
    %v187 = vld [vmem:[#allocation5 + $0xd8] sm:$0xff]
    %v188 = vld [vmem:[#allocation5 + $0xe0] sm:$0xff]
    %v189 = vld [vmem:[#allocation5 + $0xe8] sm:$0xff]
    %v190 = vld [vmem:[#allocation5 + $0xf0] sm:$0xff]
    %v191 = vld [vmem:[#allocation5 + $0xf8] sm:$0xff]
    %v192 = vld [vmem:[#allocation5 + $0x100] sm:$0xff]
    %v193 = vld [vmem:[#allocation5 + $0x108] sm:$0xff]
    %v194 = vld [vmem:[#allocation5 + $0x110] sm:$0xff]
    %v195 = vld [vmem:[#allocation5 + $0x118] sm:$0xff]
    %v196 = vld [vmem:[#allocation5 + $0x120] sm:$0xff]
    %v197 = vld [vmem:[#allocation5 + $0x128] sm:$0xff]
    %v198 = vld [vmem:[#allocation5 + $0x130] sm:$0xff]
    %v199 = vld [vmem:[#allocation5 + $0x138] sm:$0xff]
    %v200 = vld [vmem:[#allocation5 + $0x140] sm:$0xff]
    %v201 = vld [vmem:[#allocation5 + $0x148] sm:$0xff]
    %v202 = vld [vmem:[#allocation5 + $0x150] sm:$0xff]
    %v203 = vld [vmem:[#allocation5 + $0x158] sm:$0xff]
    %v204 = vld [vmem:[#allocation5 + $0x160] sm:$0xff]
    %v205 = vld [vmem:[#allocation5 + $0x168] sm:$0xff]
    %v206 = vld [vmem:[#allocation5 + $0x170] sm:$0xff]
    %v207 = vld [vmem:[#allocation5 + $0x178] sm:$0xff]
    %v208 = vld [vmem:[#allocation5 + $0x180] sm:$0xff]
    %v209 = vld [vmem:[#allocation5 + $0x188] sm:$0xff]
    %v210 = vld [vmem:[#allocation5 + $0x190] sm:$0xff]
    %v211 = vld [vmem:[#allocation5 + $0x198] sm:$0xff]
    %v212 = vld [vmem:[#allocation5 + $0x1a0] sm:$0xff]
    %v213 = vld [vmem:[#allocation5 + $0x1a8] sm:$0xff]
    %v214 = vld [vmem:[#allocation5 + $0x1b0] sm:$0xff]
    %v215 = vld [vmem:[#allocation5 + $0x1b8] sm:$0xff]
    %v216 = vld [vmem:[#allocation5 + $0x1c0] sm:$0xff]
    %v217 = vld [vmem:[#allocation5 + $0x1c8] sm:$0xff]
    %v218 = vld [vmem:[#allocation5 + $0x1d0] sm:$0xff]
    %v219 = vld [vmem:[#allocation5 + $0x1d8] sm:$0xff]
    %v220 = vld [vmem:[#allocation5 + $0x1e0] sm:$0xff]
    %v221 = vld [vmem:[#allocation5 + $0x1e8] sm:$0xff]
    %v222 = vld [vmem:[#allocation5 + $0x1f0] sm:$0xff]
    %v223 = vld [vmem:[#allocation5 + $0x1f8] sm:$0xff]
    %v224 = vld [vmem:[#allocation5 + $0x200] sm:$0xff]
    %v225 = vld [vmem:[#allocation5 + $0x208] sm:$0xff]
    %v226 = vld [vmem:[#allocation5 + $0x210] sm:$0xff]
    %v227 = vld [vmem:[#allocation5 + $0x218] sm:$0xff]
    %v228 = vld [vmem:[#allocation5 + $0x220] sm:$0xff]
    %v229 = vld [vmem:[#allocation5 + $0x228] sm:$0xff]
    %v230 = vld [vmem:[#allocation5 + $0x230] sm:$0xff]
    %v231 = vld [vmem:[#allocation5 + $0x238] sm:$0xff]
    %v232 = vld [vmem:[#allocation5 + $0x240] sm:$0xff]
    %v233 = vld [vmem:[#allocation5 + $0x248] sm:$0xff]
    %v234 = vld [vmem:[#allocation5 + $0x250] sm:$0xff]
    %v235 = vld [vmem:[#allocation5 + $0x258] sm:$0xff]
    %v236 = vld [vmem:[#allocation5 + $0x260] sm:$0xff]
    %v237 = vld [vmem:[#allocation5 + $0x268] sm:$0xff]
    %v238 = vld [vmem:[#allocation5 + $0x270] sm:$0xff]
    %v239 = vld [vmem:[#allocation5 + $0x278] sm:$0xff]
    %v240 = vld [vmem:[#allocation5 + $0x280] sm:$0xff]
    %v241 = vld [vmem:[#allocation5 + $0x288] sm:$0xff]
    %v242 = vld [vmem:[#allocation5 + $0x290] sm:$0xff]
    %v243 = vld [vmem:[#allocation5 + $0x298] sm:$0xff]
    %v244 = vld [vmem:[#allocation5 + $0x2a0] sm:$0xff]
    %v245 = vld [vmem:[#allocation5 + $0x2a8] sm:$0xff]
    %v246 = vld [vmem:[#allocation5 + $0x2b0] sm:$0xff]
    %v247 = vld [vmem:[#allocation5 + $0x2b8] sm:$0xff]
    %v248 = vld [vmem:[#allocation5 + $0x2c0] sm:$0xff]
    %v249 = vld [vmem:[#allocation5 + $0x2c8] sm:$0xff]
    %v250 = vld [vmem:[#allocation5 + $0x2d0] sm:$0xff]
    %v251 = vld [vmem:[#allocation5 + $0x2d8] sm:$0xff]
    %v252 = vld [vmem:[#allocation5 + $0x2e0] sm:$0xff]
    %v253 = vld [vmem:[#allocation5 + $0x2e8] sm:$0xff]
    %v254 = vld [vmem:[#allocation5 + $0x2f0] sm:$0xff]
    %v255 = vld [vmem:[#allocation5 + $0x2f8] sm:$0xff]
    %v256 = vld [vmem:[#allocation5 + $0x300] sm:$0xff]
    %v257 = vld [vmem:[#allocation5 + $0x308] sm:$0xff]
    %v258 = vld [vmem:[#allocation5 + $0x310] sm:$0xff]
    %v259 = vld [vmem:[#allocation5 + $0x318] sm:$0xff]
    %v260 = vld [vmem:[#allocation5 + $0x320] sm:$0xff]
    %v261 = vld [vmem:[#allocation5 + $0x328] sm:$0xff]
    %v262 = vld [vmem:[#allocation5 + $0x330] sm:$0xff]
    %v263 = vld [vmem:[#allocation5 + $0x338] sm:$0xff]
    %v264 = vld [vmem:[#allocation5 + $0x340] sm:$0xff]
    %v265 = vld [vmem:[#allocation5 + $0x348] sm:$0xff]
    %v266 = vld [vmem:[#allocation5 + $0x350] sm:$0xff]
    %v267 = vld [vmem:[#allocation5 + $0x358] sm:$0xff]
    %v268 = vld [vmem:[#allocation5 + $0x360] sm:$0xff]
    %v269 = vld [vmem:[#allocation5 + $0x368] sm:$0xff]
    %v270 = vld [vmem:[#allocation5 + $0x370] sm:$0xff]
    %v271 = vld [vmem:[#allocation5 + $0x378] sm:$0xff]
    %v272 = vld [vmem:[#allocation5 + $0x380] sm:$0xff]
    %v273 = vld [vmem:[#allocation5 + $0x388] sm:$0xff]
    %v274 = vld [vmem:[#allocation5 + $0x390] sm:$0xff]
    %v275 = vld [vmem:[#allocation5 + $0x398] sm:$0xff]
    %v276 = vld [vmem:[#allocation5 + $0x3a0] sm:$0xff]
    %v277 = vld [vmem:[#allocation5 + $0x3a8] sm:$0xff]
    %v278 = vld [vmem:[#allocation5 + $0x3b0] sm:$0xff]
    %v279 = vld [vmem:[#allocation5 + $0x3b8] sm:$0xff]
    %v280 = vld [vmem:[#allocation5 + $0x3c0] sm:$0xff]
    %v281 = vld [vmem:[#allocation5 + $0x3c8] sm:$0xff]
    %v282 = vld [vmem:[#allocation5 + $0x3d0] sm:$0xff]
    %v283 = vld [vmem:[#allocation5 + $0x3d8] sm:$0xff]
    %v284 = vld [vmem:[#allocation5 + $0x3e0] sm:$0xff]
    %v285 = vld [vmem:[#allocation5 + $0x3e8] sm:$0xff]
    %v286 = vld [vmem:[#allocation5 + $0x3f0] sm:$0xff]
    %v287 = vld [vmem:[#allocation5 + $0x3f8] sm:$0xff]
    %v288 = vld [vmem:[#allocation7] sm:$0xff]
    %v290 = vlaneseq
    %v291 = vshrl.u32 %v290, 7
    %v292 = vsub.s32 0, %v291
    %v293 = vrot.slane %v288, %v292
    %v294 = vlaneseq
    %v295 = vshrl.u32 %v294, 7
    %v296 = vsub.s32 1, %v295
    %v297 = vrot.slane %v288, %v296
    %v298 = vlaneseq
    %v299 = vshrl.u32 %v298, 7
    %v300 = vsub.s32 2, %v299
    %v301 = vrot.slane %v288, %v300
    %v302 = vlaneseq
    %v303 = vshrl.u32 %v302, 7
    %v304 = vsub.s32 3, %v303
    %v305 = vrot.slane %v288, %v304
    %v306 = vlaneseq
    %v307 = vshrl.u32 %v306, 7
    %v308 = vsub.s32 4, %v307
    %v309 = vrot.slane %v288, %v308
    %v310 = vlaneseq
    %v311 = vshrl.u32 %v310, 7
    %v312 = vsub.s32 5, %v311
    %v313 = vrot.slane %v288, %v312
    %v314 = vlaneseq
    %v315 = vshrl.u32 %v314, 7
    %v316 = vsub.s32 6, %v315
    %v317 = vrot.slane %v288, %v316
    %v318 = vlaneseq
    %v319 = vshrl.u32 %v318, 7
    %v320 = vsub.s32 7, %v319
    %v321 = vrot.slane %v288, %v320
    %v458 = vunpack.c.l.b16 %v160
    %v459 = vunpack.c.h.b16 %v160
    %v460 = vunpack.c.l.b16 %v161
    %v461 = vunpack.c.h.b16 %v161
    %v462 = vunpack.c.l.b16 %v162
    %v463 = vunpack.c.h.b16 %v162
    %v464 = vunpack.c.l.b16 %v163
    %v465 = vunpack.c.h.b16 %v163
    %v466 = vunpack.c.l.b16 %v164
    %v467 = vunpack.c.h.b16 %v164
    %v468 = vunpack.c.l.b16 %v165
    %v469 = vunpack.c.h.b16 %v165
    %v470 = vunpack.c.l.b16 %v166
    %v471 = vunpack.c.h.b16 %v166
    %v472 = vunpack.c.l.b16 %v167
    %v473 = vunpack.c.h.b16 %v167
    %v474 = vunpack.c.l.b16 %v168
    %v475 = vunpack.c.h.b16 %v168
    %v476 = vunpack.c.l.b16 %v169
    %v477 = vunpack.c.h.b16 %v169
    %v478 = vunpack.c.l.b16 %v170
    %v479 = vunpack.c.h.b16 %v170
    %v480 = vunpack.c.l.b16 %v171
    %v481 = vunpack.c.h.b16 %v171
    %v482 = vunpack.c.l.b16 %v172
    %v483 = vunpack.c.h.b16 %v172
    %v484 = vunpack.c.l.b16 %v173
    %v485 = vunpack.c.h.b16 %v173
    %v486 = vunpack.c.l.b16 %v174
    %v487 = vunpack.c.h.b16 %v174
    %v488 = vunpack.c.l.b16 %v175
    %v489 = vunpack.c.h.b16 %v175
    %v490 = vunpack.c.l.b16 %v176
    %v491 = vunpack.c.h.b16 %v176
    %v492 = vunpack.c.l.b16 %v177
    %v493 = vunpack.c.h.b16 %v177
    %v494 = vunpack.c.l.b16 %v178
    %v495 = vunpack.c.h.b16 %v178
    %v496 = vunpack.c.l.b16 %v179
    %v497 = vunpack.c.h.b16 %v179
    %v498 = vunpack.c.l.b16 %v180
    %v499 = vunpack.c.h.b16 %v180
    %v500 = vunpack.c.l.b16 %v181
    %v501 = vunpack.c.h.b16 %v181
    %v502 = vunpack.c.l.b16 %v182
    %v503 = vunpack.c.h.b16 %v182
    %v504 = vunpack.c.l.b16 %v183
    %v505 = vunpack.c.h.b16 %v183
    %v506 = vunpack.c.l.b16 %v184
    %v507 = vunpack.c.h.b16 %v184
    %v508 = vunpack.c.l.b16 %v185
    %v509 = vunpack.c.h.b16 %v185
    %v510 = vunpack.c.l.b16 %v186
    %v511 = vunpack.c.h.b16 %v186
    %v512 = vunpack.c.l.b16 %v187
    %v513 = vunpack.c.h.b16 %v187
    %v514 = vunpack.c.l.b16 %v188
    %v515 = vunpack.c.h.b16 %v188
    %v516 = vunpack.c.l.b16 %v189
    %v517 = vunpack.c.h.b16 %v189
    %v518 = vunpack.c.l.b16 %v190
    %v519 = vunpack.c.h.b16 %v190
    %v520 = vunpack.c.l.b16 %v191
    %v521 = vunpack.c.h.b16 %v191
    %v522 = vunpack.c.l.b16 %v192
    %v523 = vunpack.c.h.b16 %v192
    %v524 = vunpack.c.l.b16 %v193
    %v525 = vunpack.c.h.b16 %v193
    %v526 = vunpack.c.l.b16 %v194
    %v527 = vunpack.c.h.b16 %v194
    %v528 = vunpack.c.l.b16 %v195
    %v529 = vunpack.c.h.b16 %v195
    %v530 = vunpack.c.l.b16 %v196
    %v531 = vunpack.c.h.b16 %v196
    %v532 = vunpack.c.l.b16 %v197
    %v533 = vunpack.c.h.b16 %v197
    %v534 = vunpack.c.l.b16 %v198
    %v535 = vunpack.c.h.b16 %v198
    %v536 = vunpack.c.l.b16 %v199
    %v537 = vunpack.c.h.b16 %v199
    %v538 = vunpack.c.l.b16 %v200
    %v539 = vunpack.c.h.b16 %v200
    %v540 = vunpack.c.l.b16 %v201
    %v541 = vunpack.c.h.b16 %v201
    %v542 = vunpack.c.l.b16 %v202
    %v543 = vunpack.c.h.b16 %v202
    %v544 = vunpack.c.l.b16 %v203
    %v545 = vunpack.c.h.b16 %v203
    %v546 = vunpack.c.l.b16 %v204
    %v547 = vunpack.c.h.b16 %v204
    %v548 = vunpack.c.l.b16 %v205
    %v549 = vunpack.c.h.b16 %v205
    %v550 = vunpack.c.l.b16 %v206
    %v551 = vunpack.c.h.b16 %v206
    %v552 = vunpack.c.l.b16 %v207
    %v553 = vunpack.c.h.b16 %v207
    %v554 = vunpack.c.l.b16 %v208
    %v555 = vunpack.c.h.b16 %v208
    %v556 = vunpack.c.l.b16 %v209
    %v557 = vunpack.c.h.b16 %v209
    %v558 = vunpack.c.l.b16 %v210
    %v559 = vunpack.c.h.b16 %v210
    %v560 = vunpack.c.l.b16 %v211
    %v561 = vunpack.c.h.b16 %v211
    %v562 = vunpack.c.l.b16 %v212
    %v563 = vunpack.c.h.b16 %v212
    %v564 = vunpack.c.l.b16 %v213
    %v565 = vunpack.c.h.b16 %v213
    %v566 = vunpack.c.l.b16 %v214
    %v567 = vunpack.c.h.b16 %v214
    %v568 = vunpack.c.l.b16 %v215
    %v569 = vunpack.c.h.b16 %v215
    %v570 = vunpack.c.l.b16 %v216
    %v571 = vunpack.c.h.b16 %v216
    %v572 = vunpack.c.l.b16 %v217
    %v573 = vunpack.c.h.b16 %v217
    %v574 = vunpack.c.l.b16 %v218
    %v575 = vunpack.c.h.b16 %v218
    %v576 = vunpack.c.l.b16 %v219
    %v577 = vunpack.c.h.b16 %v219
    %v578 = vunpack.c.l.b16 %v220
    %v579 = vunpack.c.h.b16 %v220
    %v580 = vunpack.c.l.b16 %v221
    %v581 = vunpack.c.h.b16 %v221
    %v582 = vunpack.c.l.b16 %v222
    %v583 = vunpack.c.h.b16 %v222
    %v584 = vunpack.c.l.b16 %v223
    %v585 = vunpack.c.h.b16 %v223
    %v586 = vunpack.c.l.b16 %v224
    %v587 = vunpack.c.h.b16 %v224
    %v588 = vunpack.c.l.b16 %v225
    %v589 = vunpack.c.h.b16 %v225
    %v590 = vunpack.c.l.b16 %v226
    %v591 = vunpack.c.h.b16 %v226
    %v592 = vunpack.c.l.b16 %v227
    %v593 = vunpack.c.h.b16 %v227
    %v594 = vunpack.c.l.b16 %v228
    %v595 = vunpack.c.h.b16 %v228
    %v596 = vunpack.c.l.b16 %v229
    %v597 = vunpack.c.h.b16 %v229
    %v598 = vunpack.c.l.b16 %v230
    %v599 = vunpack.c.h.b16 %v230
    %v600 = vunpack.c.l.b16 %v231
    %v601 = vunpack.c.h.b16 %v231
    %v602 = vunpack.c.l.b16 %v232
    %v603 = vunpack.c.h.b16 %v232
    %v604 = vunpack.c.l.b16 %v233
    %v605 = vunpack.c.h.b16 %v233
    %v606 = vunpack.c.l.b16 %v234
    %v607 = vunpack.c.h.b16 %v234
    %v608 = vunpack.c.l.b16 %v235
    %v609 = vunpack.c.h.b16 %v235
    %v610 = vunpack.c.l.b16 %v236
    %v611 = vunpack.c.h.b16 %v236
    %v612 = vunpack.c.l.b16 %v237
    %v613 = vunpack.c.h.b16 %v237
    %v614 = vunpack.c.l.b16 %v238
    %v615 = vunpack.c.h.b16 %v238
    %v616 = vunpack.c.l.b16 %v239
    %v617 = vunpack.c.h.b16 %v239
    %v618 = vunpack.c.l.b16 %v240
    %v619 = vunpack.c.h.b16 %v240
    %v620 = vunpack.c.l.b16 %v241
    %v621 = vunpack.c.h.b16 %v241
    %v622 = vunpack.c.l.b16 %v242
    %v623 = vunpack.c.h.b16 %v242
    %v624 = vunpack.c.l.b16 %v243
    %v625 = vunpack.c.h.b16 %v243
    %v626 = vunpack.c.l.b16 %v244
    %v627 = vunpack.c.h.b16 %v244
    %v628 = vunpack.c.l.b16 %v245
    %v629 = vunpack.c.h.b16 %v245
    %v630 = vunpack.c.l.b16 %v246
    %v631 = vunpack.c.h.b16 %v246
    %v632 = vunpack.c.l.b16 %v247
    %v633 = vunpack.c.h.b16 %v247
    %v634 = vunpack.c.l.b16 %v248
    %v635 = vunpack.c.h.b16 %v248
    %v636 = vunpack.c.l.b16 %v249
    %v637 = vunpack.c.h.b16 %v249
    %v638 = vunpack.c.l.b16 %v250
    %v639 = vunpack.c.h.b16 %v250
    %v640 = vunpack.c.l.b16 %v251
    %v641 = vunpack.c.h.b16 %v251
    %v642 = vunpack.c.l.b16 %v252
    %v643 = vunpack.c.h.b16 %v252
    %v644 = vunpack.c.l.b16 %v253
    %v645 = vunpack.c.h.b16 %v253
    %v646 = vunpack.c.l.b16 %v254
    %v647 = vunpack.c.h.b16 %v254
    %v648 = vunpack.c.l.b16 %v255
    %v649 = vunpack.c.h.b16 %v255
    %v650 = vunpack.c.l.b16 %v256
    %v651 = vunpack.c.h.b16 %v256
    %v652 = vunpack.c.l.b16 %v257
    %v653 = vunpack.c.h.b16 %v257
    %v654 = vunpack.c.l.b16 %v258
    %v655 = vunpack.c.h.b16 %v258
    %v656 = vunpack.c.l.b16 %v259
    %v657 = vunpack.c.h.b16 %v259
    %v658 = vunpack.c.l.b16 %v260
    %v659 = vunpack.c.h.b16 %v260
    %v660 = vunpack.c.l.b16 %v261
    %v661 = vunpack.c.h.b16 %v261
    %v662 = vunpack.c.l.b16 %v262
    %v663 = vunpack.c.h.b16 %v262
    %v664 = vunpack.c.l.b16 %v263
    %v665 = vunpack.c.h.b16 %v263
    %v666 = vunpack.c.l.b16 %v264
    %v667 = vunpack.c.h.b16 %v264
    %v668 = vunpack.c.l.b16 %v265
    %v669 = vunpack.c.h.b16 %v265
    %v670 = vunpack.c.l.b16 %v266
    %v671 = vunpack.c.h.b16 %v266
    %v672 = vunpack.c.l.b16 %v267
    %v673 = vunpack.c.h.b16 %v267
    %v674 = vunpack.c.l.b16 %v268
    %v675 = vunpack.c.h.b16 %v268
    %v676 = vunpack.c.l.b16 %v269
    %v677 = vunpack.c.h.b16 %v269
    %v678 = vunpack.c.l.b16 %v270
    %v679 = vunpack.c.h.b16 %v270
    %v680 = vunpack.c.l.b16 %v271
    %v681 = vunpack.c.h.b16 %v271
    %v682 = vunpack.c.l.b16 %v272
    %v683 = vunpack.c.h.b16 %v272
    %v684 = vunpack.c.l.b16 %v273
    %v685 = vunpack.c.h.b16 %v273
    %v686 = vunpack.c.l.b16 %v274
    %v687 = vunpack.c.h.b16 %v274
    %v688 = vunpack.c.l.b16 %v275
    %v689 = vunpack.c.h.b16 %v275
    %v690 = vunpack.c.l.b16 %v276
    %v691 = vunpack.c.h.b16 %v276
    %v692 = vunpack.c.l.b16 %v277
    %v693 = vunpack.c.h.b16 %v277
    %v694 = vunpack.c.l.b16 %v278
    %v695 = vunpack.c.h.b16 %v278
    %v696 = vunpack.c.l.b16 %v279
    %v697 = vunpack.c.h.b16 %v279
    %v698 = vunpack.c.l.b16 %v280
    %v699 = vunpack.c.h.b16 %v280
    %v700 = vunpack.c.l.b16 %v281
    %v701 = vunpack.c.h.b16 %v281
    %v702 = vunpack.c.l.b16 %v282
    %v703 = vunpack.c.h.b16 %v282
    %v704 = vunpack.c.l.b16 %v283
    %v705 = vunpack.c.h.b16 %v283
    %v706 = vunpack.c.l.b16 %v284
    %v707 = vunpack.c.h.b16 %v284
    %v708 = vunpack.c.l.b16 %v285
    %v709 = vunpack.c.h.b16 %v285
    %v710 = vunpack.c.l.b16 %v286
    %v711 = vunpack.c.h.b16 %v286
    %v712 = vunpack.c.l.b16 %v287
    %v713 = vunpack.c.h.b16 %v287
    %v714 = vpack.c.b16 %v466, %v458
    %v715 = vpack.c.b16 %v467, %v459
    %v716 = vpack.c.b16 %v468, %v460
    %v717 = vpack.c.b16 %v469, %v461
    %v718 = vpack.c.b16 %v470, %v462
    %v719 = vpack.c.b16 %v471, %v463
    %v720 = vpack.c.b16 %v472, %v464
    %v721 = vpack.c.b16 %v473, %v465
    %v722 = vpack.c.b16 %v482, %v474
    %v723 = vpack.c.b16 %v483, %v475
    %v724 = vpack.c.b16 %v484, %v476
    %v725 = vpack.c.b16 %v485, %v477
    %v726 = vpack.c.b16 %v486, %v478
    %v727 = vpack.c.b16 %v487, %v479
    %v728 = vpack.c.b16 %v488, %v480
    %v729 = vpack.c.b16 %v489, %v481
    %v730 = vpack.c.b16 %v498, %v490
    %v731 = vpack.c.b16 %v499, %v491
    %v732 = vpack.c.b16 %v500, %v492
    %v733 = vpack.c.b16 %v501, %v493
    %v734 = vpack.c.b16 %v502, %v494
    %v735 = vpack.c.b16 %v503, %v495
    %v736 = vpack.c.b16 %v504, %v496
    %v737 = vpack.c.b16 %v505, %v497
    %v738 = vpack.c.b16 %v514, %v506
    %v739 = vpack.c.b16 %v515, %v507
    %v740 = vpack.c.b16 %v516, %v508
    %v741 = vpack.c.b16 %v517, %v509
    %v742 = vpack.c.b16 %v518, %v510
    %v743 = vpack.c.b16 %v519, %v511
    %v744 = vpack.c.b16 %v520, %v512
    %v745 = vpack.c.b16 %v521, %v513
    %v746 = vpack.c.b16 %v530, %v522
    %v747 = vpack.c.b16 %v531, %v523
    %v748 = vpack.c.b16 %v532, %v524
    %v749 = vpack.c.b16 %v533, %v525
    %v750 = vpack.c.b16 %v534, %v526
    %v751 = vpack.c.b16 %v535, %v527
    %v752 = vpack.c.b16 %v536, %v528
    %v753 = vpack.c.b16 %v537, %v529
    %v754 = vpack.c.b16 %v546, %v538
    %v755 = vpack.c.b16 %v547, %v539
    %v756 = vpack.c.b16 %v548, %v540
    %v757 = vpack.c.b16 %v549, %v541
    %v758 = vpack.c.b16 %v550, %v542
    %v759 = vpack.c.b16 %v551, %v543
    %v760 = vpack.c.b16 %v552, %v544
    %v761 = vpack.c.b16 %v553, %v545
    %v762 = vpack.c.b16 %v562, %v554
    %v763 = vpack.c.b16 %v563, %v555
    %v764 = vpack.c.b16 %v564, %v556
    %v765 = vpack.c.b16 %v565, %v557
    %v766 = vpack.c.b16 %v566, %v558
    %v767 = vpack.c.b16 %v567, %v559
    %v768 = vpack.c.b16 %v568, %v560
    %v769 = vpack.c.b16 %v569, %v561
    %v770 = vpack.c.b16 %v578, %v570
    %v771 = vpack.c.b16 %v579, %v571
    %v772 = vpack.c.b16 %v580, %v572
    %v773 = vpack.c.b16 %v581, %v573
    %v774 = vpack.c.b16 %v582, %v574
    %v775 = vpack.c.b16 %v583, %v575
    %v776 = vpack.c.b16 %v584, %v576
    %v777 = vpack.c.b16 %v585, %v577
    %v778 = vpack.c.b16 %v594, %v586
    %v779 = vpack.c.b16 %v595, %v587
    %v780 = vpack.c.b16 %v596, %v588
    %v781 = vpack.c.b16 %v597, %v589
    %v782 = vpack.c.b16 %v598, %v590
    %v783 = vpack.c.b16 %v599, %v591
    %v784 = vpack.c.b16 %v600, %v592
    %v785 = vpack.c.b16 %v601, %v593
    %v786 = vpack.c.b16 %v610, %v602
    %v787 = vpack.c.b16 %v611, %v603
    %v788 = vpack.c.b16 %v612, %v604
    %v789 = vpack.c.b16 %v613, %v605
    %v790 = vpack.c.b16 %v614, %v606
    %v791 = vpack.c.b16 %v615, %v607
    %v792 = vpack.c.b16 %v616, %v608
    %v793 = vpack.c.b16 %v617, %v609
    %v794 = vpack.c.b16 %v626, %v618
    %v795 = vpack.c.b16 %v627, %v619
    %v796 = vpack.c.b16 %v628, %v620
    %v797 = vpack.c.b16 %v629, %v621
    %v798 = vpack.c.b16 %v630, %v622
    %v799 = vpack.c.b16 %v631, %v623
    %v800 = vpack.c.b16 %v632, %v624
    %v801 = vpack.c.b16 %v633, %v625
    %v802 = vpack.c.b16 %v642, %v634
    %v803 = vpack.c.b16 %v643, %v635
    %v804 = vpack.c.b16 %v644, %v636
    %v805 = vpack.c.b16 %v645, %v637
    %v806 = vpack.c.b16 %v646, %v638
    %v807 = vpack.c.b16 %v647, %v639
    %v808 = vpack.c.b16 %v648, %v640
    %v809 = vpack.c.b16 %v649, %v641
    %v810 = vpack.c.b16 %v658, %v650
    %v811 = vpack.c.b16 %v659, %v651
    %v812 = vpack.c.b16 %v660, %v652
    %v813 = vpack.c.b16 %v661, %v653
    %v814 = vpack.c.b16 %v662, %v654
    %v815 = vpack.c.b16 %v663, %v655
    %v816 = vpack.c.b16 %v664, %v656
    %v817 = vpack.c.b16 %v665, %v657
    %v818 = vpack.c.b16 %v674, %v666
    %v819 = vpack.c.b16 %v675, %v667
    %v820 = vpack.c.b16 %v676, %v668
    %v821 = vpack.c.b16 %v677, %v669
    %v822 = vpack.c.b16 %v678, %v670
    %v823 = vpack.c.b16 %v679, %v671
    %v824 = vpack.c.b16 %v680, %v672
    %v825 = vpack.c.b16 %v681, %v673
    %v826 = vpack.c.b16 %v690, %v682
    %v827 = vpack.c.b16 %v691, %v683
    %v828 = vpack.c.b16 %v692, %v684
    %v829 = vpack.c.b16 %v693, %v685
    %v830 = vpack.c.b16 %v694, %v686
    %v831 = vpack.c.b16 %v695, %v687
    %v832 = vpack.c.b16 %v696, %v688
    %v833 = vpack.c.b16 %v697, %v689
    %v834 = vpack.c.b16 %v706, %v698
    %v835 = vpack.c.b16 %v707, %v699
    %v836 = vpack.c.b16 %v708, %v700
    %v837 = vpack.c.b16 %v709, %v701
    %v838 = vpack.c.b16 %v710, %v702
    %v839 = vpack.c.b16 %v711, %v703
    %v840 = vpack.c.b16 %v712, %v704
    %v841 = vpack.c.b16 %v713, %v705
    %970 = vmatprep.subr.bf16.mxu0 %v715
    %971 = vmatpush1.bf16.msra.mxu0 %v714
    %972 = vmatprep.subr.bf16.mxu0 %v723
    %973 = vmatpush1.bf16.msra.mxu0 %v722
    %974 = vmatprep.subr.bf16.mxu0 %v731
    %975 = vmatpush1.bf16.msra.mxu0 %v730
    %976 = vmatprep.subr.bf16.mxu0 %v739
    %977 = vmatpush1.bf16.msra.mxu0 %v738
    %978 = vmatprep.subr.bf16.mxu0 %v747
    %979 = vmatpush1.bf16.msra.mxu0 %v746
    %980 = vmatprep.subr.bf16.mxu0 %v755
    %981 = vmatpush1.bf16.msra.mxu0 %v754
    %982 = vmatprep.subr.bf16.mxu0 %v763
    %983 = vmatpush1.bf16.msra.mxu0 %v762
    %984 = vmatprep.subr.bf16.mxu0 %v771
    %985 = vmatpush1.bf16.msra.mxu0 %v770
    %986 = vmatprep.subr.bf16.mxu0 %v779
    %987 = vmatpush1.bf16.msra.mxu0 %v778
    %988 = vmatprep.subr.bf16.mxu0 %v787
    %989 = vmatpush1.bf16.msra.mxu0 %v786
    %990 = vmatprep.subr.bf16.mxu0 %v795
    %991 = vmatpush1.bf16.msra.mxu0 %v794
    %992 = vmatprep.subr.bf16.mxu0 %v803
    %993 = vmatpush1.bf16.msra.mxu0 %v802
    %994 = vmatprep.subr.bf16.mxu0 %v811
    %995 = vmatpush1.bf16.msra.mxu0 %v810
    %996 = vmatprep.subr.bf16.mxu0 %v819
    %997 = vmatpush1.bf16.msra.mxu0 %v818
    %998 = vmatprep.subr.bf16.mxu0 %v827
    %999 = vmatpush1.bf16.msra.mxu0 %v826
    %1000 = vmatprep.subr.bf16.mxu0 %v835
    %1001 = vmatpush1.bf16.msra.mxu0 %v834
    %1002 = vmatprep.mubr.bf16.mxu0 %v159
    %1003 = vmatmul.mubr.bf16.gmra.mrb[0].mxu0 %v158
    %v1004 = vpop.f32.mrb[0].mxu0
    %v1005 = vadd.f32 %v293, %v1004
    %v1006 = vpop.f32.mrb[0].mxu0
    %v1007 = vadd.f32 %v297, %v1006
    %v1008 = vpop.f32.mrb[0].mxu0
    %v1009 = vpop.f32.mrb[0].mxu0
    %1010 = vdwg.mxu0
    %1011 = vmatprep.subr.bf16.mxu0 %v717
    %1012 = vmatpush1.bf16.msra.mxu0 %v716
    %1013 = vmatprep.subr.bf16.mxu0 %v725
    %1014 = vmatpush1.bf16.msra.mxu0 %v724
    %1015 = vmatprep.subr.bf16.mxu0 %v733
    %1016 = vmatpush1.bf16.msra.mxu0 %v732
    %1017 = vmatprep.subr.bf16.mxu0 %v741
    %1018 = vmatpush1.bf16.msra.mxu0 %v740
    %1019 = vmatprep.subr.bf16.mxu0 %v749
    %1020 = vmatpush1.bf16.msra.mxu0 %v748
    %1021 = vmatprep.subr.bf16.mxu0 %v757
    %1022 = vmatpush1.bf16.msra.mxu0 %v756
    %1023 = vmatprep.subr.bf16.mxu0 %v765
    %1024 = vmatpush1.bf16.msra.mxu0 %v764
    %1025 = vmatprep.subr.bf16.mxu0 %v773
    %1026 = vmatpush1.bf16.msra.mxu0 %v772
    %1027 = vmatprep.subr.bf16.mxu0 %v781
    %1028 = vmatpush1.bf16.msra.mxu0 %v780
    %1029 = vmatprep.subr.bf16.mxu0 %v789
    %1030 = vmatpush1.bf16.msra.mxu0 %v788
    %1031 = vmatprep.subr.bf16.mxu0 %v797
    %1032 = vmatpush1.bf16.msra.mxu0 %v796
    %1033 = vmatprep.subr.bf16.mxu0 %v805
    %1034 = vmatpush1.bf16.msra.mxu0 %v804
    %1035 = vmatprep.subr.bf16.mxu0 %v813
    %1036 = vmatpush1.bf16.msra.mxu0 %v812
    %1037 = vmatprep.subr.bf16.mxu0 %v821
    %1038 = vmatpush1.bf16.msra.mxu0 %v820
    %1039 = vmatprep.subr.bf16.mxu0 %v829
    %1040 = vmatpush1.bf16.msra.mxu0 %v828
    %1041 = vmatprep.subr.bf16.mxu0 %v837
    %1042 = vmatpush1.bf16.msra.mxu0 %v836
    %1043 = vmatprep.mubr.bf16.mxu0 %v159
    %1044 = vmatmul.mubr.bf16.gmra.mrb[0].mxu0 %v158
    %v1045 = vpop.f32.mrb[0].mxu0
    %v1046 = vadd.f32 %v301, %v1045
    %v1047 = vpop.f32.mrb[0].mxu0
    %v1048 = vadd.f32 %v305, %v1047
    %v1049 = vpop.f32.mrb[0].mxu0
    %v1050 = vpop.f32.mrb[0].mxu0
    %1051 = vdwg.mxu0
    %1052 = vmatprep.subr.bf16.mxu0 %v719
    %1053 = vmatpush1.bf16.msra.mxu0 %v718
    %1054 = vmatprep.subr.bf16.mxu0 %v727
    %1055 = vmatpush1.bf16.msra.mxu0 %v726
    %1056 = vmatprep.subr.bf16.mxu0 %v735
    %1057 = vmatpush1.bf16.msra.mxu0 %v734
    %1058 = vmatprep.subr.bf16.mxu0 %v743
    %1059 = vmatpush1.bf16.msra.mxu0 %v742
    %1060 = vmatprep.subr.bf16.mxu0 %v751
    %1061 = vmatpush1.bf16.msra.mxu0 %v750
    %1062 = vmatprep.subr.bf16.mxu0 %v759
    %1063 = vmatpush1.bf16.msra.mxu0 %v758
    %1064 = vmatprep.subr.bf16.mxu0 %v767
    %1065 = vmatpush1.bf16.msra.mxu0 %v766
    %1066 = vmatprep.subr.bf16.mxu0 %v775
    %1067 = vmatpush1.bf16.msra.mxu0 %v774
    %1068 = vmatprep.subr.bf16.mxu0 %v783
    %1069 = vmatpush1.bf16.msra.mxu0 %v782
    %1070 = vmatprep.subr.bf16.mxu0 %v791
    %1071 = vmatpush1.bf16.msra.mxu0 %v790
    %1072 = vmatprep.subr.bf16.mxu0 %v799
    %1073 = vmatpush1.bf16.msra.mxu0 %v798
    %1074 = vmatprep.subr.bf16.mxu0 %v807
    %1075 = vmatpush1.bf16.msra.mxu0 %v806
    %1076 = vmatprep.subr.bf16.mxu0 %v815
    %1077 = vmatpush1.bf16.msra.mxu0 %v814
    %1078 = vmatprep.subr.bf16.mxu0 %v823
    %1079 = vmatpush1.bf16.msra.mxu0 %v822
    %1080 = vmatprep.subr.bf16.mxu0 %v831
    %1081 = vmatpush1.bf16.msra.mxu0 %v830
    %1082 = vmatprep.subr.bf16.mxu0 %v839
    %1083 = vmatpush1.bf16.msra.mxu0 %v838
    %1084 = vmatprep.mubr.bf16.mxu0 %v159
    %1085 = vmatmul.mubr.bf16.gmra.mrb[0].mxu0 %v158
    %v1086 = vpop.f32.mrb[0].mxu0
    %v1087 = vadd.f32 %v309, %v1086
    %v1088 = vpop.f32.mrb[0].mxu0
    %v1089 = vadd.f32 %v313, %v1088
    %v1090 = vpop.f32.mrb[0].mxu0
    %v1091 = vpop.f32.mrb[0].mxu0
    %1092 = vdwg.mxu0
    %1093 = vmatprep.subr.bf16.mxu0 %v721
    %1094 = vmatpush1.bf16.msra.mxu0 %v720
    %1095 = vmatprep.subr.bf16.mxu0 %v729
    %1096 = vmatpush1.bf16.msra.mxu0 %v728
    %1097 = vmatprep.subr.bf16.mxu0 %v737
    %1098 = vmatpush1.bf16.msra.mxu0 %v736
    %1099 = vmatprep.subr.bf16.mxu0 %v745
    %1100 = vmatpush1.bf16.msra.mxu0 %v744
    %1101 = vmatprep.subr.bf16.mxu0 %v753
    %1102 = vmatpush1.bf16.msra.mxu0 %v752
    %1103 = vmatprep.subr.bf16.mxu0 %v761
    %1104 = vmatpush1.bf16.msra.mxu0 %v760
    %1105 = vmatprep.subr.bf16.mxu0 %v769
    %1106 = vmatpush1.bf16.msra.mxu0 %v768
    %1107 = vmatprep.subr.bf16.mxu0 %v777
    %1108 = vmatpush1.bf16.msra.mxu0 %v776
    %1109 = vmatprep.subr.bf16.mxu0 %v785
    %1110 = vmatpush1.bf16.msra.mxu0 %v784
    %1111 = vmatprep.subr.bf16.mxu0 %v793
    %1112 = vmatpush1.bf16.msra.mxu0 %v792
    %1113 = vmatprep.subr.bf16.mxu0 %v801
    %1114 = vmatpush1.bf16.msra.mxu0 %v800
    %1115 = vmatprep.subr.bf16.mxu0 %v809
    %1116 = vmatpush1.bf16.msra.mxu0 %v808
    %1117 = vmatprep.subr.bf16.mxu0 %v817
    %1118 = vmatpush1.bf16.msra.mxu0 %v816
    %1119 = vmatprep.subr.bf16.mxu0 %v825
    %1120 = vmatpush1.bf16.msra.mxu0 %v824
    %1121 = vmatprep.subr.bf16.mxu0 %v833
    %1122 = vmatpush1.bf16.msra.mxu0 %v832
    %1123 = vmatprep.subr.bf16.mxu0 %v841
    %1124 = vmatpush1.bf16.msra.mxu0 %v840
    %1125 = vmatprep.mubr.bf16.mxu0 %v159
    %1126 = vmatmul.mubr.bf16.gmra.mrb[0].mxu0 %v158
    %v1127 = vpop.f32.mrb[0].mxu0
    %v1128 = vadd.f32 %v317, %v1127
    %v1129 = vpop.f32.mrb[0].mxu0
    %v1130 = vadd.f32 %v321, %v1129
    %v1131 = vpop.f32.mrb[0].mxu0
    %v1132 = vpop.f32.mrb[0].mxu0
    %1133 = vdwg.mxu0
    %v1134 = vxor.u32 %v1005, 2147483648
    %v1135 = vxor.u32 %v1007, 2147483648
    %v1136 = vxor.u32 %v1046, 2147483648
    %v1137 = vxor.u32 %v1048, 2147483648
    %v1138 = vxor.u32 %v1087, 2147483648
    %v1139 = vxor.u32 %v1089, 2147483648
    %v1140 = vxor.u32 %v1128, 2147483648
    %v1141 = vxor.u32 %v1130, 2147483648
    %v1142 = vmul.f32 %v1134, 1.442695
    %v1143 = vpow.pop %v1142
    %v1144 = vmul.f32 %v1135, 1.442695
    %v1145 = vpow.pop %v1144
    %v1146 = vmul.f32 %v1136, 1.442695
    %v1147 = vpow.pop %v1146
    %v1148 = vmul.f32 %v1137, 1.442695
    %v1149 = vpow.pop %v1148
    %v1150 = vmul.f32 %v1138, 1.442695
    %v1151 = vpow.pop %v1150
    %v1152 = vmul.f32 %v1139, 1.442695
    %v1153 = vpow.pop %v1152
    %v1154 = vmul.f32 %v1140, 1.442695
    %v1155 = vpow.pop %v1154
    %v1156 = vmul.f32 %v1141, 1.442695
    %v1157 = vpow.pop %v1156
    %v1158 = vadd.f32 %v1143, 1.0
    %v1159 = vadd.f32 %v1145, 1.0
    %v1160 = vadd.f32 %v1147, 1.0
    %v1161 = vadd.f32 %v1149, 1.0
    %v1162 = vadd.f32 %v1151, 1.0
    %v1163 = vadd.f32 %v1153, 1.0
    %v1164 = vadd.f32 %v1155, 1.0
    %v1165 = vadd.f32 %v1157, 1.0
    %v1166 = vrcp.pop %v1158
    %v1167 = vmul.f32 1.0, %v1166
    %v1168 = vrcp.pop %v1159
    %v1169 = vmul.f32 1.0, %v1168
    %v1170 = vrcp.pop %v1160
    %v1171 = vmul.f32 1.0, %v1170
    %v1172 = vrcp.pop %v1161
    %v1173 = vmul.f32 1.0, %v1172
    %v1174 = vrcp.pop %v1162
    %v1175 = vmul.f32 1.0, %v1174
    %v1176 = vrcp.pop %v1163
    %v1177 = vmul.f32 1.0, %v1176
    %v1178 = vrcp.pop %v1164
    %v1179 = vmul.f32 1.0, %v1178
    %v1180 = vrcp.pop %v1165
    %v1181 = vmul.f32 1.0, %v1180
    %v1182 = vmul.f32 %v1005, %v1167
    %v1183 = vmul.f32 %v1007, %v1169
    %v1184 = vmul.f32 %v1046, %v1171
    %v1185 = vmul.f32 %v1048, %v1173
    %v1186 = vmul.f32 %v1087, %v1175
    %v1187 = vmul.f32 %v1089, %v1177
    %v1188 = vmul.f32 %v1128, %v1179
    %v1189 = vmul.f32 %v1130, %v1181
    %v1190 = vpack.c.bf16 %v1182, %v1182
    %v1191 = vpack.c.bf16 %v1183, %v1183
    %v1192 = vpack.c.bf16 %v1184, %v1184
    %v1193 = vpack.c.bf16 %v1185, %v1185
    %v1194 = vpack.c.bf16 %v1186, %v1186
    %v1195 = vpack.c.bf16 %v1187, %v1187
    %v1196 = vpack.c.bf16 %v1188, %v1188
    %v1197 = vpack.c.bf16 %v1189, %v1189
    %v1198 = vld [vmem:[#allocation8] sm:$0xff]
    %v1199 = vld [vmem:[#allocation8 + $0x8] sm:$0xff]
    %v1200 = vld [vmem:[#allocation8 + $0x10] sm:$0xff]
    %v1201 = vld [vmem:[#allocation8 + $0x18] sm:$0xff]
    %v1202 = vld [vmem:[#allocation8 + $0x20] sm:$0xff]
    %v1203 = vld [vmem:[#allocation8 + $0x28] sm:$0xff]
    %v1204 = vld [vmem:[#allocation8 + $0x30] sm:$0xff]
    %v1205 = vld [vmem:[#allocation8 + $0x38] sm:$0xff]
    %v1206 = vld [vmem:[#allocation8 + $0x40] sm:$0xff]
    %v1207 = vld [vmem:[#allocation8 + $0x48] sm:$0xff]
    %v1208 = vld [vmem:[#allocation8 + $0x50] sm:$0xff]
    %v1209 = vld [vmem:[#allocation8 + $0x58] sm:$0xff]
    %v1210 = vld [vmem:[#allocation8 + $0x60] sm:$0xff]
    %v1211 = vld [vmem:[#allocation8 + $0x68] sm:$0xff]
    %v1212 = vld [vmem:[#allocation8 + $0x70] sm:$0xff]
    %v1213 = vld [vmem:[#allocation8 + $0x78] sm:$0xff]
    %v1214 = vld [vmem:[#allocation8 + $0x80] sm:$0xff]
    %v1215 = vld [vmem:[#allocation8 + $0x88] sm:$0xff]
    %v1216 = vld [vmem:[#allocation8 + $0x90] sm:$0xff]
    %v1217 = vld [vmem:[#allocation8 + $0x98] sm:$0xff]
    %v1218 = vld [vmem:[#allocation8 + $0xa0] sm:$0xff]
    %v1219 = vld [vmem:[#allocation8 + $0xa8] sm:$0xff]
    %v1220 = vld [vmem:[#allocation8 + $0xb0] sm:$0xff]
    %v1221 = vld [vmem:[#allocation8 + $0xb8] sm:$0xff]
    %v1222 = vld [vmem:[#allocation8 + $0xc0] sm:$0xff]
    %v1223 = vld [vmem:[#allocation8 + $0xc8] sm:$0xff]
    %v1224 = vld [vmem:[#allocation8 + $0xd0] sm:$0xff]
    %v1225 = vld [vmem:[#allocation8 + $0xd8] sm:$0xff]
    %v1226 = vld [vmem:[#allocation8 + $0xe0] sm:$0xff]
    %v1227 = vld [vmem:[#allocation8 + $0xe8] sm:$0xff]
    %v1228 = vld [vmem:[#allocation8 + $0xf0] sm:$0xff]
    %v1229 = vld [vmem:[#allocation8 + $0xf8] sm:$0xff]
    %v1230 = vld [vmem:[#allocation8 + $0x100] sm:$0xff]
    %v1231 = vld [vmem:[#allocation8 + $0x108] sm:$0xff]
    %v1232 = vld [vmem:[#allocation8 + $0x110] sm:$0xff]
    %v1233 = vld [vmem:[#allocation8 + $0x118] sm:$0xff]
    %v1234 = vld [vmem:[#allocation8 + $0x120] sm:$0xff]
    %v1235 = vld [vmem:[#allocation8 + $0x128] sm:$0xff]
    %v1236 = vld [vmem:[#allocation8 + $0x130] sm:$0xff]
    %v1237 = vld [vmem:[#allocation8 + $0x138] sm:$0xff]
    %v1238 = vld [vmem:[#allocation8 + $0x140] sm:$0xff]
    %v1239 = vld [vmem:[#allocation8 + $0x148] sm:$0xff]
    %v1240 = vld [vmem:[#allocation8 + $0x150] sm:$0xff]
    %v1241 = vld [vmem:[#allocation8 + $0x158] sm:$0xff]
    %v1242 = vld [vmem:[#allocation8 + $0x160] sm:$0xff]
    %v1243 = vld [vmem:[#allocation8 + $0x168] sm:$0xff]
    %v1244 = vld [vmem:[#allocation8 + $0x170] sm:$0xff]
    %v1245 = vld [vmem:[#allocation8 + $0x178] sm:$0xff]
    %v1246 = vld [vmem:[#allocation8 + $0x180] sm:$0xff]
    %v1247 = vld [vmem:[#allocation8 + $0x188] sm:$0xff]
    %v1248 = vld [vmem:[#allocation8 + $0x190] sm:$0xff]
    %v1249 = vld [vmem:[#allocation8 + $0x198] sm:$0xff]
    %v1250 = vld [vmem:[#allocation8 + $0x1a0] sm:$0xff]
    %v1251 = vld [vmem:[#allocation8 + $0x1a8] sm:$0xff]
    %v1252 = vld [vmem:[#allocation8 + $0x1b0] sm:$0xff]
    %v1253 = vld [vmem:[#allocation8 + $0x1b8] sm:$0xff]
    %v1254 = vld [vmem:[#allocation8 + $0x1c0] sm:$0xff]
    %v1255 = vld [vmem:[#allocation8 + $0x1c8] sm:$0xff]
    %v1256 = vld [vmem:[#allocation8 + $0x1d0] sm:$0xff]
    %v1257 = vld [vmem:[#allocation8 + $0x1d8] sm:$0xff]
    %v1258 = vld [vmem:[#allocation8 + $0x1e0] sm:$0xff]
    %v1259 = vld [vmem:[#allocation8 + $0x1e8] sm:$0xff]
    %v1260 = vld [vmem:[#allocation8 + $0x1f0] sm:$0xff]
    %v1261 = vld [vmem:[#allocation8 + $0x1f8] sm:$0xff]
    %v1262 = vld [vmem:[#allocation8 + $0x200] sm:$0xff]
    %v1263 = vld [vmem:[#allocation8 + $0x208] sm:$0xff]
    %v1264 = vld [vmem:[#allocation8 + $0x210] sm:$0xff]
    %v1265 = vld [vmem:[#allocation8 + $0x218] sm:$0xff]
    %v1266 = vld [vmem:[#allocation8 + $0x220] sm:$0xff]
    %v1267 = vld [vmem:[#allocation8 + $0x228] sm:$0xff]
    %v1268 = vld [vmem:[#allocation8 + $0x230] sm:$0xff]
    %v1269 = vld [vmem:[#allocation8 + $0x238] sm:$0xff]
    %v1270 = vld [vmem:[#allocation8 + $0x240] sm:$0xff]
    %v1271 = vld [vmem:[#allocation8 + $0x248] sm:$0xff]
    %v1272 = vld [vmem:[#allocation8 + $0x250] sm:$0xff]
    %v1273 = vld [vmem:[#allocation8 + $0x258] sm:$0xff]
    %v1274 = vld [vmem:[#allocation8 + $0x260] sm:$0xff]
    %v1275 = vld [vmem:[#allocation8 + $0x268] sm:$0xff]
    %v1276 = vld [vmem:[#allocation8 + $0x270] sm:$0xff]
    %v1277 = vld [vmem:[#allocation8 + $0x278] sm:$0xff]
    %v1278 = vld [vmem:[#allocation8 + $0x280] sm:$0xff]
    %v1279 = vld [vmem:[#allocation8 + $0x288] sm:$0xff]
    %v1280 = vld [vmem:[#allocation8 + $0x290] sm:$0xff]
    %v1281 = vld [vmem:[#allocation8 + $0x298] sm:$0xff]
    %v1282 = vld [vmem:[#allocation8 + $0x2a0] sm:$0xff]
    %v1283 = vld [vmem:[#allocation8 + $0x2a8] sm:$0xff]
    %v1284 = vld [vmem:[#allocation8 + $0x2b0] sm:$0xff]
    %v1285 = vld [vmem:[#allocation8 + $0x2b8] sm:$0xff]
    %v1286 = vld [vmem:[#allocation8 + $0x2c0] sm:$0xff]
    %v1287 = vld [vmem:[#allocation8 + $0x2c8] sm:$0xff]
    %v1288 = vld [vmem:[#allocation8 + $0x2d0] sm:$0xff]
    %v1289 = vld [vmem:[#allocation8 + $0x2d8] sm:$0xff]
    %v1290 = vld [vmem:[#allocation8 + $0x2e0] sm:$0xff]
    %v1291 = vld [vmem:[#allocation8 + $0x2e8] sm:$0xff]
    %v1292 = vld [vmem:[#allocation8 + $0x2f0] sm:$0xff]
    %v1293 = vld [vmem:[#allocation8 + $0x2f8] sm:$0xff]
    %v1294 = vld [vmem:[#allocation8 + $0x300] sm:$0xff]
    %v1295 = vld [vmem:[#allocation8 + $0x308] sm:$0xff]
    %v1296 = vld [vmem:[#allocation8 + $0x310] sm:$0xff]
    %v1297 = vld [vmem:[#allocation8 + $0x318] sm:$0xff]
    %v1298 = vld [vmem:[#allocation8 + $0x320] sm:$0xff]
    %v1299 = vld [vmem:[#allocation8 + $0x328] sm:$0xff]
    %v1300 = vld [vmem:[#allocation8 + $0x330] sm:$0xff]
    %v1301 = vld [vmem:[#allocation8 + $0x338] sm:$0xff]
    %v1302 = vld [vmem:[#allocation8 + $0x340] sm:$0xff]
    %v1303 = vld [vmem:[#allocation8 + $0x348] sm:$0xff]
    %v1304 = vld [vmem:[#allocation8 + $0x350] sm:$0xff]
    %v1305 = vld [vmem:[#allocation8 + $0x358] sm:$0xff]
    %v1306 = vld [vmem:[#allocation8 + $0x360] sm:$0xff]
    %v1307 = vld [vmem:[#allocation8 + $0x368] sm:$0xff]
    %v1308 = vld [vmem:[#allocation8 + $0x370] sm:$0xff]
    %v1309 = vld [vmem:[#allocation8 + $0x378] sm:$0xff]
    %v1310 = vld [vmem:[#allocation8 + $0x380] sm:$0xff]
    %v1311 = vld [vmem:[#allocation8 + $0x388] sm:$0xff]
    %v1312 = vld [vmem:[#allocation8 + $0x390] sm:$0xff]
    %v1313 = vld [vmem:[#allocation8 + $0x398] sm:$0xff]
    %v1314 = vld [vmem:[#allocation8 + $0x3a0] sm:$0xff]
    %v1315 = vld [vmem:[#allocation8 + $0x3a8] sm:$0xff]
    %v1316 = vld [vmem:[#allocation8 + $0x3b0] sm:$0xff]
    %v1317 = vld [vmem:[#allocation8 + $0x3b8] sm:$0xff]
    %v1318 = vld [vmem:[#allocation8 + $0x3c0] sm:$0xff]
    %v1319 = vld [vmem:[#allocation8 + $0x3c8] sm:$0xff]
    %v1320 = vld [vmem:[#allocation8 + $0x3d0] sm:$0xff]
    %v1321 = vld [vmem:[#allocation8 + $0x3d8] sm:$0xff]
    %v1322 = vld [vmem:[#allocation8 + $0x3e0] sm:$0xff]
    %v1323 = vld [vmem:[#allocation8 + $0x3e8] sm:$0xff]
    %v1324 = vld [vmem:[#allocation8 + $0x3f0] sm:$0xff]
    %v1325 = vld [vmem:[#allocation8 + $0x3f8] sm:$0xff]
    %v1326 = vld [vmem:[#allocation8 + $0x400] sm:$0xff]
    %v1327 = vld [vmem:[#allocation8 + $0x408] sm:$0xff]
    %v1328 = vld [vmem:[#allocation8 + $0x410] sm:$0xff]
    %v1329 = vld [vmem:[#allocation8 + $0x418] sm:$0xff]
    %v1330 = vld [vmem:[#allocation8 + $0x420] sm:$0xff]
    %v1331 = vld [vmem:[#allocation8 + $0x428] sm:$0xff]
    %v1332 = vld [vmem:[#allocation8 + $0x430] sm:$0xff]
    %v1333 = vld [vmem:[#allocation8 + $0x438] sm:$0xff]
    %v1334 = vld [vmem:[#allocation8 + $0x440] sm:$0xff]
    %v1335 = vld [vmem:[#allocation8 + $0x448] sm:$0xff]
    %v1336 = vld [vmem:[#allocation8 + $0x450] sm:$0xff]
    %v1337 = vld [vmem:[#allocation8 + $0x458] sm:$0xff]
    %v1338 = vld [vmem:[#allocation8 + $0x460] sm:$0xff]
    %v1339 = vld [vmem:[#allocation8 + $0x468] sm:$0xff]
    %v1340 = vld [vmem:[#allocation8 + $0x470] sm:$0xff]
    %v1341 = vld [vmem:[#allocation8 + $0x478] sm:$0xff]
    %v1342 = vld [vmem:[#allocation8 + $0x480] sm:$0xff]
    %v1343 = vld [vmem:[#allocation8 + $0x488] sm:$0xff]
    %v1344 = vld [vmem:[#allocation8 + $0x490] sm:$0xff]
    %v1345 = vld [vmem:[#allocation8 + $0x498] sm:$0xff]
    %v1346 = vld [vmem:[#allocation8 + $0x4a0] sm:$0xff]
    %v1347 = vld [vmem:[#allocation8 + $0x4a8] sm:$0xff]
    %v1348 = vld [vmem:[#allocation8 + $0x4b0] sm:$0xff]
    %v1349 = vld [vmem:[#allocation8 + $0x4b8] sm:$0xff]
    %v1350 = vld [vmem:[#allocation8 + $0x4c0] sm:$0xff]
    %v1351 = vld [vmem:[#allocation8 + $0x4c8] sm:$0xff]
    %v1352 = vld [vmem:[#allocation8 + $0x4d0] sm:$0xff]
    %v1353 = vld [vmem:[#allocation8 + $0x4d8] sm:$0xff]
    %v1354 = vld [vmem:[#allocation8 + $0x4e0] sm:$0xff]
    %v1355 = vld [vmem:[#allocation8 + $0x4e8] sm:$0xff]
    %v1356 = vld [vmem:[#allocation8 + $0x4f0] sm:$0xff]
    %v1357 = vld [vmem:[#allocation8 + $0x4f8] sm:$0xff]
    %v1358 = vld [vmem:[#allocation8 + $0x500] sm:$0xff]
    %v1359 = vld [vmem:[#allocation8 + $0x508] sm:$0xff]
    %v1360 = vld [vmem:[#allocation8 + $0x510] sm:$0xff]
    %v1361 = vld [vmem:[#allocation8 + $0x518] sm:$0xff]
    %v1362 = vld [vmem:[#allocation8 + $0x520] sm:$0xff]
    %v1363 = vld [vmem:[#allocation8 + $0x528] sm:$0xff]
    %v1364 = vld [vmem:[#allocation8 + $0x530] sm:$0xff]
    %v1365 = vld [vmem:[#allocation8 + $0x538] sm:$0xff]
    %v1366 = vld [vmem:[#allocation8 + $0x540] sm:$0xff]
    %v1367 = vld [vmem:[#allocation8 + $0x548] sm:$0xff]
    %v1368 = vld [vmem:[#allocation8 + $0x550] sm:$0xff]
    %v1369 = vld [vmem:[#allocation8 + $0x558] sm:$0xff]
    %v1370 = vld [vmem:[#allocation8 + $0x560] sm:$0xff]
    %v1371 = vld [vmem:[#allocation8 + $0x568] sm:$0xff]
    %v1372 = vld [vmem:[#allocation8 + $0x570] sm:$0xff]
    %v1373 = vld [vmem:[#allocation8 + $0x578] sm:$0xff]
    %v1374 = vld [vmem:[#allocation8 + $0x580] sm:$0xff]
    %v1375 = vld [vmem:[#allocation8 + $0x588] sm:$0xff]
    %v1376 = vld [vmem:[#allocation8 + $0x590] sm:$0xff]
    %v1377 = vld [vmem:[#allocation8 + $0x598] sm:$0xff]
    %v1378 = vld [vmem:[#allocation8 + $0x5a0] sm:$0xff]
    %v1379 = vld [vmem:[#allocation8 + $0x5a8] sm:$0xff]
    %v1380 = vld [vmem:[#allocation8 + $0x5b0] sm:$0xff]
    %v1381 = vld [vmem:[#allocation8 + $0x5b8] sm:$0xff]
    %v1382 = vld [vmem:[#allocation8 + $0x5c0] sm:$0xff]
    %v1383 = vld [vmem:[#allocation8 + $0x5c8] sm:$0xff]
    %v1384 = vld [vmem:[#allocation8 + $0x5d0] sm:$0xff]
    %v1385 = vld [vmem:[#allocation8 + $0x5d8] sm:$0xff]
    %v1386 = vld [vmem:[#allocation8 + $0x5e0] sm:$0xff]
    %v1387 = vld [vmem:[#allocation8 + $0x5e8] sm:$0xff]
    %v1388 = vld [vmem:[#allocation8 + $0x5f0] sm:$0xff]
    %v1389 = vld [vmem:[#allocation8 + $0x5f8] sm:$0xff]
    %v1390 = vld [vmem:[#allocation8 + $0x600] sm:$0xff]
    %v1391 = vld [vmem:[#allocation8 + $0x608] sm:$0xff]
    %v1392 = vld [vmem:[#allocation8 + $0x610] sm:$0xff]
    %v1393 = vld [vmem:[#allocation8 + $0x618] sm:$0xff]
    %v1394 = vld [vmem:[#allocation8 + $0x620] sm:$0xff]
    %v1395 = vld [vmem:[#allocation8 + $0x628] sm:$0xff]
    %v1396 = vld [vmem:[#allocation8 + $0x630] sm:$0xff]
    %v1397 = vld [vmem:[#allocation8 + $0x638] sm:$0xff]
    %v1398 = vld [vmem:[#allocation8 + $0x640] sm:$0xff]
    %v1399 = vld [vmem:[#allocation8 + $0x648] sm:$0xff]
    %v1400 = vld [vmem:[#allocation8 + $0x650] sm:$0xff]
    %v1401 = vld [vmem:[#allocation8 + $0x658] sm:$0xff]
    %v1402 = vld [vmem:[#allocation8 + $0x660] sm:$0xff]
    %v1403 = vld [vmem:[#allocation8 + $0x668] sm:$0xff]
    %v1404 = vld [vmem:[#allocation8 + $0x670] sm:$0xff]
    %v1405 = vld [vmem:[#allocation8 + $0x678] sm:$0xff]
    %v1406 = vld [vmem:[#allocation8 + $0x680] sm:$0xff]
    %v1407 = vld [vmem:[#allocation8 + $0x688] sm:$0xff]
    %v1408 = vld [vmem:[#allocation8 + $0x690] sm:$0xff]
    %v1409 = vld [vmem:[#allocation8 + $0x698] sm:$0xff]
    %v1410 = vld [vmem:[#allocation8 + $0x6a0] sm:$0xff]
    %v1411 = vld [vmem:[#allocation8 + $0x6a8] sm:$0xff]
    %v1412 = vld [vmem:[#allocation8 + $0x6b0] sm:$0xff]
    %v1413 = vld [vmem:[#allocation8 + $0x6b8] sm:$0xff]
    %v1414 = vld [vmem:[#allocation8 + $0x6c0] sm:$0xff]
    %v1415 = vld [vmem:[#allocation8 + $0x6c8] sm:$0xff]
    %v1416 = vld [vmem:[#allocation8 + $0x6d0] sm:$0xff]
    %v1417 = vld [vmem:[#allocation8 + $0x6d8] sm:$0xff]
    %v1418 = vld [vmem:[#allocation8 + $0x6e0] sm:$0xff]
    %v1419 = vld [vmem:[#allocation8 + $0x6e8] sm:$0xff]
    %v1420 = vld [vmem:[#allocation8 + $0x6f0] sm:$0xff]
    %v1421 = vld [vmem:[#allocation8 + $0x6f8] sm:$0xff]
    %v1422 = vld [vmem:[#allocation8 + $0x700] sm:$0xff]
    %v1423 = vld [vmem:[#allocation8 + $0x708] sm:$0xff]
    %v1424 = vld [vmem:[#allocation8 + $0x710] sm:$0xff]
    %v1425 = vld [vmem:[#allocation8 + $0x718] sm:$0xff]
    %v1426 = vld [vmem:[#allocation8 + $0x720] sm:$0xff]
    %v1427 = vld [vmem:[#allocation8 + $0x728] sm:$0xff]
    %v1428 = vld [vmem:[#allocation8 + $0x730] sm:$0xff]
    %v1429 = vld [vmem:[#allocation8 + $0x738] sm:$0xff]
    %v1430 = vld [vmem:[#allocation8 + $0x740] sm:$0xff]
    %v1431 = vld [vmem:[#allocation8 + $0x748] sm:$0xff]
    %v1432 = vld [vmem:[#allocation8 + $0x750] sm:$0xff]
    %v1433 = vld [vmem:[#allocation8 + $0x758] sm:$0xff]
    %v1434 = vld [vmem:[#allocation8 + $0x760] sm:$0xff]
    %v1435 = vld [vmem:[#allocation8 + $0x768] sm:$0xff]
    %v1436 = vld [vmem:[#allocation8 + $0x770] sm:$0xff]
    %v1437 = vld [vmem:[#allocation8 + $0x778] sm:$0xff]
    %v1438 = vld [vmem:[#allocation8 + $0x780] sm:$0xff]
    %v1439 = vld [vmem:[#allocation8 + $0x788] sm:$0xff]
    %v1440 = vld [vmem:[#allocation8 + $0x790] sm:$0xff]
    %v1441 = vld [vmem:[#allocation8 + $0x798] sm:$0xff]
    %v1442 = vld [vmem:[#allocation8 + $0x7a0] sm:$0xff]
    %v1443 = vld [vmem:[#allocation8 + $0x7a8] sm:$0xff]
    %v1444 = vld [vmem:[#allocation8 + $0x7b0] sm:$0xff]
    %v1445 = vld [vmem:[#allocation8 + $0x7b8] sm:$0xff]
    %v1446 = vld [vmem:[#allocation8 + $0x7c0] sm:$0xff]
    %v1447 = vld [vmem:[#allocation8 + $0x7c8] sm:$0xff]
    %v1448 = vld [vmem:[#allocation8 + $0x7d0] sm:$0xff]
    %v1449 = vld [vmem:[#allocation8 + $0x7d8] sm:$0xff]
    %v1450 = vld [vmem:[#allocation8 + $0x7e0] sm:$0xff]
    %v1451 = vld [vmem:[#allocation8 + $0x7e8] sm:$0xff]
    %v1452 = vld [vmem:[#allocation8 + $0x7f0] sm:$0xff]
    %v1453 = vld [vmem:[#allocation8 + $0x7f8] sm:$0xff]
    %v1454 = vld [vmem:[#allocation8 + $0x800] sm:$0xff]
    %v1455 = vld [vmem:[#allocation8 + $0x808] sm:$0xff]
    %v1456 = vld [vmem:[#allocation8 + $0x810] sm:$0xff]
    %v1457 = vld [vmem:[#allocation8 + $0x818] sm:$0xff]
    %v1458 = vld [vmem:[#allocation8 + $0x820] sm:$0xff]
    %v1459 = vld [vmem:[#allocation8 + $0x828] sm:$0xff]
    %v1460 = vld [vmem:[#allocation8 + $0x830] sm:$0xff]
    %v1461 = vld [vmem:[#allocation8 + $0x838] sm:$0xff]
    %v1462 = vld [vmem:[#allocation8 + $0x840] sm:$0xff]
    %v1463 = vld [vmem:[#allocation8 + $0x848] sm:$0xff]
    %v1464 = vld [vmem:[#allocation8 + $0x850] sm:$0xff]
    %v1465 = vld [vmem:[#allocation8 + $0x858] sm:$0xff]
    %v1466 = vld [vmem:[#allocation8 + $0x860] sm:$0xff]
    %v1467 = vld [vmem:[#allocation8 + $0x868] sm:$0xff]
    %v1468 = vld [vmem:[#allocation8 + $0x870] sm:$0xff]
    %v1469 = vld [vmem:[#allocation8 + $0x878] sm:$0xff]
    %v1470 = vld [vmem:[#allocation8 + $0x880] sm:$0xff]
    %v1471 = vld [vmem:[#allocation8 + $0x888] sm:$0xff]
    %v1472 = vld [vmem:[#allocation8 + $0x890] sm:$0xff]
    %v1473 = vld [vmem:[#allocation8 + $0x898] sm:$0xff]
    %v1474 = vld [vmem:[#allocation8 + $0x8a0] sm:$0xff]
    %v1475 = vld [vmem:[#allocation8 + $0x8a8] sm:$0xff]
    %v1476 = vld [vmem:[#allocation8 + $0x8b0] sm:$0xff]
    %v1477 = vld [vmem:[#allocation8 + $0x8b8] sm:$0xff]
    %v1478 = vld [vmem:[#allocation8 + $0x8c0] sm:$0xff]
    %v1479 = vld [vmem:[#allocation8 + $0x8c8] sm:$0xff]
    %v1480 = vld [vmem:[#allocation8 + $0x8d0] sm:$0xff]
    %v1481 = vld [vmem:[#allocation8 + $0x8d8] sm:$0xff]
    %v1482 = vld [vmem:[#allocation8 + $0x8e0] sm:$0xff]
    %v1483 = vld [vmem:[#allocation8 + $0x8e8] sm:$0xff]
    %v1484 = vld [vmem:[#allocation8 + $0x8f0] sm:$0xff]
    %v1485 = vld [vmem:[#allocation8 + $0x8f8] sm:$0xff]
    %v1486 = vld [vmem:[#allocation8 + $0x900] sm:$0xff]
    %v1487 = vld [vmem:[#allocation8 + $0x908] sm:$0xff]
    %v1488 = vld [vmem:[#allocation8 + $0x910] sm:$0xff]
    %v1489 = vld [vmem:[#allocation8 + $0x918] sm:$0xff]
    %v1490 = vld [vmem:[#allocation8 + $0x920] sm:$0xff]
    %v1491 = vld [vmem:[#allocation8 + $0x928] sm:$0xff]
    %v1492 = vld [vmem:[#allocation8 + $0x930] sm:$0xff]
    %v1493 = vld [vmem:[#allocation8 + $0x938] sm:$0xff]
    %v1494 = vld [vmem:[#allocation8 + $0x940] sm:$0xff]
    %v1495 = vld [vmem:[#allocation8 + $0x948] sm:$0xff]
    %v1496 = vld [vmem:[#allocation8 + $0x950] sm:$0xff]
    %v1497 = vld [vmem:[#allocation8 + $0x958] sm:$0xff]
    %v1498 = vld [vmem:[#allocation8 + $0x960] sm:$0xff]
    %v1499 = vld [vmem:[#allocation8 + $0x968] sm:$0xff]
    %v1500 = vld [vmem:[#allocation8 + $0x970] sm:$0xff]
    %v1501 = vld [vmem:[#allocation8 + $0x978] sm:$0xff]
    %v1502 = vld [vmem:[#allocation8 + $0x980] sm:$0xff]
    %v1503 = vld [vmem:[#allocation8 + $0x988] sm:$0xff]
    %v1504 = vld [vmem:[#allocation8 + $0x990] sm:$0xff]
    %v1505 = vld [vmem:[#allocation8 + $0x998] sm:$0xff]
    %v1506 = vld [vmem:[#allocation8 + $0x9a0] sm:$0xff]
    %v1507 = vld [vmem:[#allocation8 + $0x9a8] sm:$0xff]
    %v1508 = vld [vmem:[#allocation8 + $0x9b0] sm:$0xff]
    %v1509 = vld [vmem:[#allocation8 + $0x9b8] sm:$0xff]
    %v1510 = vld [vmem:[#allocation8 + $0x9c0] sm:$0xff]
    %v1511 = vld [vmem:[#allocation8 + $0x9c8] sm:$0xff]
    %v1512 = vld [vmem:[#allocation8 + $0x9d0] sm:$0xff]
    %v1513 = vld [vmem:[#allocation8 + $0x9d8] sm:$0xff]
    %v1514 = vld [vmem:[#allocation8 + $0x9e0] sm:$0xff]
    %v1515 = vld [vmem:[#allocation8 + $0x9e8] sm:$0xff]
    %v1516 = vld [vmem:[#allocation8 + $0x9f0] sm:$0xff]
    %v1517 = vld [vmem:[#allocation8 + $0x9f8] sm:$0xff]
    %v1518 = vld [vmem:[#allocation8 + $0xa00] sm:$0xff]
    %v1519 = vld [vmem:[#allocation8 + $0xa08] sm:$0xff]
    %v1520 = vld [vmem:[#allocation8 + $0xa10] sm:$0xff]
    %v1521 = vld [vmem:[#allocation8 + $0xa18] sm:$0xff]
    %v1522 = vld [vmem:[#allocation8 + $0xa20] sm:$0xff]
    %v1523 = vld [vmem:[#allocation8 + $0xa28] sm:$0xff]
    %v1524 = vld [vmem:[#allocation8 + $0xa30] sm:$0xff]
    %v1525 = vld [vmem:[#allocation8 + $0xa38] sm:$0xff]
    %v1526 = vld [vmem:[#allocation8 + $0xa40] sm:$0xff]
    %v1527 = vld [vmem:[#allocation8 + $0xa48] sm:$0xff]
    %v1528 = vld [vmem:[#allocation8 + $0xa50] sm:$0xff]
    %v1529 = vld [vmem:[#allocation8 + $0xa58] sm:$0xff]
    %v1530 = vld [vmem:[#allocation8 + $0xa60] sm:$0xff]
    %v1531 = vld [vmem:[#allocation8 + $0xa68] sm:$0xff]
    %v1532 = vld [vmem:[#allocation8 + $0xa70] sm:$0xff]
    %v1533 = vld [vmem:[#allocation8 + $0xa78] sm:$0xff]
    %v1534 = vld [vmem:[#allocation8 + $0xa80] sm:$0xff]
    %v1535 = vld [vmem:[#allocation8 + $0xa88] sm:$0xff]
    %v1536 = vld [vmem:[#allocation8 + $0xa90] sm:$0xff]
    %v1537 = vld [vmem:[#allocation8 + $0xa98] sm:$0xff]
    %v1538 = vld [vmem:[#allocation8 + $0xaa0] sm:$0xff]
    %v1539 = vld [vmem:[#allocation8 + $0xaa8] sm:$0xff]
    %v1540 = vld [vmem:[#allocation8 + $0xab0] sm:$0xff]
    %v1541 = vld [vmem:[#allocation8 + $0xab8] sm:$0xff]
    %v1542 = vld [vmem:[#allocation8 + $0xac0] sm:$0xff]
    %v1543 = vld [vmem:[#allocation8 + $0xac8] sm:$0xff]
    %v1544 = vld [vmem:[#allocation8 + $0xad0] sm:$0xff]
    %v1545 = vld [vmem:[#allocation8 + $0xad8] sm:$0xff]
    %v1546 = vld [vmem:[#allocation8 + $0xae0] sm:$0xff]
    %v1547 = vld [vmem:[#allocation8 + $0xae8] sm:$0xff]
    %v1548 = vld [vmem:[#allocation8 + $0xaf0] sm:$0xff]
    %v1549 = vld [vmem:[#allocation8 + $0xaf8] sm:$0xff]
    %v1550 = vld [vmem:[#allocation8 + $0xb00] sm:$0xff]
    %v1551 = vld [vmem:[#allocation8 + $0xb08] sm:$0xff]
    %v1552 = vld [vmem:[#allocation8 + $0xb10] sm:$0xff]
    %v1553 = vld [vmem:[#allocation8 + $0xb18] sm:$0xff]
    %v1554 = vld [vmem:[#allocation8 + $0xb20] sm:$0xff]
    %v1555 = vld [vmem:[#allocation8 + $0xb28] sm:$0xff]
    %v1556 = vld [vmem:[#allocation8 + $0xb30] sm:$0xff]
    %v1557 = vld [vmem:[#allocation8 + $0xb38] sm:$0xff]
    %v1558 = vld [vmem:[#allocation8 + $0xb40] sm:$0xff]
    %v1559 = vld [vmem:[#allocation8 + $0xb48] sm:$0xff]
    %v1560 = vld [vmem:[#allocation8 + $0xb50] sm:$0xff]
    %v1561 = vld [vmem:[#allocation8 + $0xb58] sm:$0xff]
    %v1562 = vld [vmem:[#allocation8 + $0xb60] sm:$0xff]
    %v1563 = vld [vmem:[#allocation8 + $0xb68] sm:$0xff]
    %v1564 = vld [vmem:[#allocation8 + $0xb70] sm:$0xff]
    %v1565 = vld [vmem:[#allocation8 + $0xb78] sm:$0xff]
    %v1566 = vld [vmem:[#allocation8 + $0xb80] sm:$0xff]
    %v1567 = vld [vmem:[#allocation8 + $0xb88] sm:$0xff]
    %v1568 = vld [vmem:[#allocation8 + $0xb90] sm:$0xff]
    %v1569 = vld [vmem:[#allocation8 + $0xb98] sm:$0xff]
    %v1570 = vld [vmem:[#allocation8 + $0xba0] sm:$0xff]
    %v1571 = vld [vmem:[#allocation8 + $0xba8] sm:$0xff]
    %v1572 = vld [vmem:[#allocation8 + $0xbb0] sm:$0xff]
    %v1573 = vld [vmem:[#allocation8 + $0xbb8] sm:$0xff]
    %v1574 = vld [vmem:[#allocation8 + $0xbc0] sm:$0xff]
    %v1575 = vld [vmem:[#allocation8 + $0xbc8] sm:$0xff]
    %v1576 = vld [vmem:[#allocation8 + $0xbd0] sm:$0xff]
    %v1577 = vld [vmem:[#allocation8 + $0xbd8] sm:$0xff]
    %v1578 = vld [vmem:[#allocation8 + $0xbe0] sm:$0xff]
    %v1579 = vld [vmem:[#allocation8 + $0xbe8] sm:$0xff]
    %v1580 = vld [vmem:[#allocation8 + $0xbf0] sm:$0xff]
    %v1581 = vld [vmem:[#allocation8 + $0xbf8] sm:$0xff]
    %v1582 = vld [vmem:[#allocation8 + $0xc00] sm:$0xff]
    %v1583 = vld [vmem:[#allocation8 + $0xc08] sm:$0xff]
    %v1584 = vld [vmem:[#allocation8 + $0xc10] sm:$0xff]
    %v1585 = vld [vmem:[#allocation8 + $0xc18] sm:$0xff]
    %v1586 = vld [vmem:[#allocation8 + $0xc20] sm:$0xff]
    %v1587 = vld [vmem:[#allocation8 + $0xc28] sm:$0xff]
    %v1588 = vld [vmem:[#allocation8 + $0xc30] sm:$0xff]
    %v1589 = vld [vmem:[#allocation8 + $0xc38] sm:$0xff]
    %v1590 = vld [vmem:[#allocation8 + $0xc40] sm:$0xff]
    %v1591 = vld [vmem:[#allocation8 + $0xc48] sm:$0xff]
    %v1592 = vld [vmem:[#allocation8 + $0xc50] sm:$0xff]
    %v1593 = vld [vmem:[#allocation8 + $0xc58] sm:$0xff]
    %v1594 = vld [vmem:[#allocation8 + $0xc60] sm:$0xff]
    %v1595 = vld [vmem:[#allocation8 + $0xc68] sm:$0xff]
    %v1596 = vld [vmem:[#allocation8 + $0xc70] sm:$0xff]
    %v1597 = vld [vmem:[#allocation8 + $0xc78] sm:$0xff]
    %v1598 = vld [vmem:[#allocation8 + $0xc80] sm:$0xff]
    %v1599 = vld [vmem:[#allocation8 + $0xc88] sm:$0xff]
    %v1600 = vld [vmem:[#allocation8 + $0xc90] sm:$0xff]
    %v1601 = vld [vmem:[#allocation8 + $0xc98] sm:$0xff]
    %v1602 = vld [vmem:[#allocation8 + $0xca0] sm:$0xff]
    %v1603 = vld [vmem:[#allocation8 + $0xca8] sm:$0xff]
    %v1604 = vld [vmem:[#allocation8 + $0xcb0] sm:$0xff]
    %v1605 = vld [vmem:[#allocation8 + $0xcb8] sm:$0xff]
    %v1606 = vld [vmem:[#allocation8 + $0xcc0] sm:$0xff]
    %v1607 = vld [vmem:[#allocation8 + $0xcc8] sm:$0xff]
    %v1608 = vld [vmem:[#allocation8 + $0xcd0] sm:$0xff]
    %v1609 = vld [vmem:[#allocation8 + $0xcd8] sm:$0xff]
    %v1610 = vld [vmem:[#allocation8 + $0xce0] sm:$0xff]
    %v1611 = vld [vmem:[#allocation8 + $0xce8] sm:$0xff]
    %v1612 = vld [vmem:[#allocation8 + $0xcf0] sm:$0xff]
    %v1613 = vld [vmem:[#allocation8 + $0xcf8] sm:$0xff]
    %v1614 = vld [vmem:[#allocation8 + $0xd00] sm:$0xff]
    %v1615 = vld [vmem:[#allocation8 + $0xd08] sm:$0xff]
    %v1616 = vld [vmem:[#allocation8 + $0xd10] sm:$0xff]
    %v1617 = vld [vmem:[#allocation8 + $0xd18] sm:$0xff]
    %v1618 = vld [vmem:[#allocation8 + $0xd20] sm:$0xff]
    %v1619 = vld [vmem:[#allocation8 + $0xd28] sm:$0xff]
    %v1620 = vld [vmem:[#allocation8 + $0xd30] sm:$0xff]
    %v1621 = vld [vmem:[#allocation8 + $0xd38] sm:$0xff]
    %v1622 = vld [vmem:[#allocation8 + $0xd40] sm:$0xff]
    %v1623 = vld [vmem:[#allocation8 + $0xd48] sm:$0xff]
    %v1624 = vld [vmem:[#allocation8 + $0xd50] sm:$0xff]
    %v1625 = vld [vmem:[#allocation8 + $0xd58] sm:$0xff]
    %v1626 = vld [vmem:[#allocation8 + $0xd60] sm:$0xff]
    %v1627 = vld [vmem:[#allocation8 + $0xd68] sm:$0xff]
    %v1628 = vld [vmem:[#allocation8 + $0xd70] sm:$0xff]
    %v1629 = vld [vmem:[#allocation8 + $0xd78] sm:$0xff]
    %v1630 = vld [vmem:[#allocation8 + $0xd80] sm:$0xff]
    %v1631 = vld [vmem:[#allocation8 + $0xd88] sm:$0xff]
    %v1632 = vld [vmem:[#allocation8 + $0xd90] sm:$0xff]
    %v1633 = vld [vmem:[#allocation8 + $0xd98] sm:$0xff]
    %v1634 = vld [vmem:[#allocation8 + $0xda0] sm:$0xff]
    %v1635 = vld [vmem:[#allocation8 + $0xda8] sm:$0xff]
    %v1636 = vld [vmem:[#allocation8 + $0xdb0] sm:$0xff]
    %v1637 = vld [vmem:[#allocation8 + $0xdb8] sm:$0xff]
    %v1638 = vld [vmem:[#allocation8 + $0xdc0] sm:$0xff]
    %v1639 = vld [vmem:[#allocation8 + $0xdc8] sm:$0xff]
    %v1640 = vld [vmem:[#allocation8 + $0xdd0] sm:$0xff]
    %v1641 = vld [vmem:[#allocation8 + $0xdd8] sm:$0xff]
    %v1642 = vld [vmem:[#allocation8 + $0xde0] sm:$0xff]
    %v1643 = vld [vmem:[#allocation8 + $0xde8] sm:$0xff]
    %v1644 = vld [vmem:[#allocation8 + $0xdf0] sm:$0xff]
    %v1645 = vld [vmem:[#allocation8 + $0xdf8] sm:$0xff]
    %v1646 = vld [vmem:[#allocation8 + $0xe00] sm:$0xff]
    %v1647 = vld [vmem:[#allocation8 + $0xe08] sm:$0xff]
    %v1648 = vld [vmem:[#allocation8 + $0xe10] sm:$0xff]
    %v1649 = vld [vmem:[#allocation8 + $0xe18] sm:$0xff]
    %v1650 = vld [vmem:[#allocation8 + $0xe20] sm:$0xff]
    %v1651 = vld [vmem:[#allocation8 + $0xe28] sm:$0xff]
    %v1652 = vld [vmem:[#allocation8 + $0xe30] sm:$0xff]
    %v1653 = vld [vmem:[#allocation8 + $0xe38] sm:$0xff]
    %v1654 = vld [vmem:[#allocation8 + $0xe40] sm:$0xff]
    %v1655 = vld [vmem:[#allocation8 + $0xe48] sm:$0xff]
    %v1656 = vld [vmem:[#allocation8 + $0xe50] sm:$0xff]
    %v1657 = vld [vmem:[#allocation8 + $0xe58] sm:$0xff]
    %v1658 = vld [vmem:[#allocation8 + $0xe60] sm:$0xff]
    %v1659 = vld [vmem:[#allocation8 + $0xe68] sm:$0xff]
    %v1660 = vld [vmem:[#allocation8 + $0xe70] sm:$0xff]
    %v1661 = vld [vmem:[#allocation8 + $0xe78] sm:$0xff]
    %v1662 = vld [vmem:[#allocation8 + $0xe80] sm:$0xff]
    %v1663 = vld [vmem:[#allocation8 + $0xe88] sm:$0xff]
    %v1664 = vld [vmem:[#allocation8 + $0xe90] sm:$0xff]
    %v1665 = vld [vmem:[#allocation8 + $0xe98] sm:$0xff]
    %v1666 = vld [vmem:[#allocation8 + $0xea0] sm:$0xff]
    %v1667 = vld [vmem:[#allocation8 + $0xea8] sm:$0xff]
    %v1668 = vld [vmem:[#allocation8 + $0xeb0] sm:$0xff]
    %v1669 = vld [vmem:[#allocation8 + $0xeb8] sm:$0xff]
    %v1670 = vld [vmem:[#allocation8 + $0xec0] sm:$0xff]
    %v1671 = vld [vmem:[#allocation8 + $0xec8] sm:$0xff]
    %v1672 = vld [vmem:[#allocation8 + $0xed0] sm:$0xff]
    %v1673 = vld [vmem:[#allocation8 + $0xed8] sm:$0xff]
    %v1674 = vld [vmem:[#allocation8 + $0xee0] sm:$0xff]
    %v1675 = vld [vmem:[#allocation8 + $0xee8] sm:$0xff]
    %v1676 = vld [vmem:[#allocation8 + $0xef0] sm:$0xff]
    %v1677 = vld [vmem:[#allocation8 + $0xef8] sm:$0xff]
    %v1678 = vld [vmem:[#allocation8 + $0xf00] sm:$0xff]
    %v1679 = vld [vmem:[#allocation8 + $0xf08] sm:$0xff]
    %v1680 = vld [vmem:[#allocation8 + $0xf10] sm:$0xff]
    %v1681 = vld [vmem:[#allocation8 + $0xf18] sm:$0xff]
    %v1682 = vld [vmem:[#allocation8 + $0xf20] sm:$0xff]
    %v1683 = vld [vmem:[#allocation8 + $0xf28] sm:$0xff]
    %v1684 = vld [vmem:[#allocation8 + $0xf30] sm:$0xff]
    %v1685 = vld [vmem:[#allocation8 + $0xf38] sm:$0xff]
    %v1686 = vld [vmem:[#allocation8 + $0xf40] sm:$0xff]
    %v1687 = vld [vmem:[#allocation8 + $0xf48] sm:$0xff]
    %v1688 = vld [vmem:[#allocation8 + $0xf50] sm:$0xff]
    %v1689 = vld [vmem:[#allocation8 + $0xf58] sm:$0xff]
    %v1690 = vld [vmem:[#allocation8 + $0xf60] sm:$0xff]
    %v1691 = vld [vmem:[#allocation8 + $0xf68] sm:$0xff]
    %v1692 = vld [vmem:[#allocation8 + $0xf70] sm:$0xff]
    %v1693 = vld [vmem:[#allocation8 + $0xf78] sm:$0xff]
    %v1694 = vld [vmem:[#allocation8 + $0xf80] sm:$0xff]
    %v1695 = vld [vmem:[#allocation8 + $0xf88] sm:$0xff]
    %v1696 = vld [vmem:[#allocation8 + $0xf90] sm:$0xff]
    %v1697 = vld [vmem:[#allocation8 + $0xf98] sm:$0xff]
    %v1698 = vld [vmem:[#allocation8 + $0xfa0] sm:$0xff]
    %v1699 = vld [vmem:[#allocation8 + $0xfa8] sm:$0xff]
    %v1700 = vld [vmem:[#allocation8 + $0xfb0] sm:$0xff]
    %v1701 = vld [vmem:[#allocation8 + $0xfb8] sm:$0xff]
    %v1702 = vld [vmem:[#allocation8 + $0xfc0] sm:$0xff]
    %v1703 = vld [vmem:[#allocation8 + $0xfc8] sm:$0xff]
    %v1704 = vld [vmem:[#allocation8 + $0xfd0] sm:$0xff]
    %v1705 = vld [vmem:[#allocation8 + $0xfd8] sm:$0xff]
    %v1706 = vld [vmem:[#allocation8 + $0xfe0] sm:$0xff]
    %v1707 = vld [vmem:[#allocation8 + $0xfe8] sm:$0xff]
    %v1708 = vld [vmem:[#allocation8 + $0xff0] sm:$0xff]
    %v1709 = vld [vmem:[#allocation8 + $0xff8] sm:$0xff]
    %v1710 = vld [vmem:[#allocation10] sm:$0xff]
    %v1712 = vlaneseq
    %v1713 = vshrl.u32 %v1712, 7
    %v1714 = vsub.s32 0, %v1713
    %v1715 = vrot.slane %v1710, %v1714
    %v1716 = vlaneseq
    %v1717 = vshrl.u32 %v1716, 7
    %v1718 = vsub.s32 1, %v1717
    %v1719 = vrot.slane %v1710, %v1718
    %v1720 = vlaneseq
    %v1721 = vshrl.u32 %v1720, 7
    %v1722 = vsub.s32 2, %v1721
    %v1723 = vrot.slane %v1710, %v1722
    %v1724 = vlaneseq
    %v1725 = vshrl.u32 %v1724, 7
    %v1726 = vsub.s32 3, %v1725
    %v1727 = vrot.slane %v1710, %v1726
    %v1728 = vlaneseq
    %v1729 = vshrl.u32 %v1728, 7
    %v1730 = vsub.s32 4, %v1729
    %v1731 = vrot.slane %v1710, %v1730
    %v1732 = vlaneseq
    %v1733 = vshrl.u32 %v1732, 7
    %v1734 = vsub.s32 5, %v1733
    %v1735 = vrot.slane %v1710, %v1734
    %v1736 = vlaneseq
    %v1737 = vshrl.u32 %v1736, 7
    %v1738 = vsub.s32 6, %v1737
    %v1739 = vrot.slane %v1710, %v1738
    %v1740 = vlaneseq
    %v1741 = vshrl.u32 %v1740, 7
    %v1742 = vsub.s32 7, %v1741
    %v1743 = vrot.slane %v1710, %v1742
    %v2264 = vunpack.c.l.b16 %v1198
    %v2265 = vunpack.c.h.b16 %v1198
    %v2266 = vunpack.c.l.b16 %v1199
    %v2267 = vunpack.c.h.b16 %v1199
    %v2268 = vunpack.c.l.b16 %v1200
    %v2269 = vunpack.c.h.b16 %v1200
    %v2270 = vunpack.c.l.b16 %v1201
    %v2271 = vunpack.c.h.b16 %v1201
    %v2272 = vunpack.c.l.b16 %v1202
    %v2273 = vunpack.c.h.b16 %v1202
    %v2274 = vunpack.c.l.b16 %v1203
    %v2275 = vunpack.c.h.b16 %v1203
    %v2276 = vunpack.c.l.b16 %v1204
    %v2277 = vunpack.c.h.b16 %v1204
    %v2278 = vunpack.c.l.b16 %v1205
    %v2279 = vunpack.c.h.b16 %v1205
    %v2280 = vunpack.c.l.b16 %v1206
    %v2281 = vunpack.c.h.b16 %v1206
    %v2282 = vunpack.c.l.b16 %v1207
    %v2283 = vunpack.c.h.b16 %v1207
    %v2284 = vunpack.c.l.b16 %v1208
    %v2285 = vunpack.c.h.b16 %v1208
    %v2286 = vunpack.c.l.b16 %v1209
    %v2287 = vunpack.c.h.b16 %v1209
    %v2288 = vunpack.c.l.b16 %v1210
    %v2289 = vunpack.c.h.b16 %v1210
    %v2290 = vunpack.c.l.b16 %v1211
    %v2291 = vunpack.c.h.b16 %v1211
    %v2292 = vunpack.c.l.b16 %v1212
    %v2293 = vunpack.c.h.b16 %v1212
    %v2294 = vunpack.c.l.b16 %v1213
    %v2295 = vunpack.c.h.b16 %v1213
    %v2296 = vunpack.c.l.b16 %v1214
    %v2297 = vunpack.c.h.b16 %v1214
    %v2298 = vunpack.c.l.b16 %v1215
    %v2299 = vunpack.c.h.b16 %v1215
    %v2300 = vunpack.c.l.b16 %v1216
    %v2301 = vunpack.c.h.b16 %v1216
    %v2302 = vunpack.c.l.b16 %v1217
    %v2303 = vunpack.c.h.b16 %v1217
    %v2304 = vunpack.c.l.b16 %v1218
    %v2305 = vunpack.c.h.b16 %v1218
    %v2306 = vunpack.c.l.b16 %v1219
    %v2307 = vunpack.c.h.b16 %v1219
    %v2308 = vunpack.c.l.b16 %v1220
    %v2309 = vunpack.c.h.b16 %v1220
    %v2310 = vunpack.c.l.b16 %v1221
    %v2311 = vunpack.c.h.b16 %v1221
    %v2312 = vunpack.c.l.b16 %v1222
    %v2313 = vunpack.c.h.b16 %v1222
    %v2314 = vunpack.c.l.b16 %v1223
    %v2315 = vunpack.c.h.b16 %v1223
    %v2316 = vunpack.c.l.b16 %v1224
    %v2317 = vunpack.c.h.b16 %v1224
    %v2318 = vunpack.c.l.b16 %v1225
    %v2319 = vunpack.c.h.b16 %v1225
    %v2320 = vunpack.c.l.b16 %v1226
    %v2321 = vunpack.c.h.b16 %v1226
    %v2322 = vunpack.c.l.b16 %v1227
    %v2323 = vunpack.c.h.b16 %v1227
    %v2324 = vunpack.c.l.b16 %v1228
    %v2325 = vunpack.c.h.b16 %v1228
    %v2326 = vunpack.c.l.b16 %v1229
    %v2327 = vunpack.c.h.b16 %v1229
    %v2328 = vunpack.c.l.b16 %v1230
    %v2329 = vunpack.c.h.b16 %v1230
    %v2330 = vunpack.c.l.b16 %v1231
    %v2331 = vunpack.c.h.b16 %v1231
    %v2332 = vunpack.c.l.b16 %v1232
    %v2333 = vunpack.c.h.b16 %v1232
    %v2334 = vunpack.c.l.b16 %v1233
    %v2335 = vunpack.c.h.b16 %v1233
    %v2336 = vunpack.c.l.b16 %v1234
    %v2337 = vunpack.c.h.b16 %v1234
    %v2338 = vunpack.c.l.b16 %v1235
    %v2339 = vunpack.c.h.b16 %v1235
    %v2340 = vunpack.c.l.b16 %v1236
    %v2341 = vunpack.c.h.b16 %v1236
    %v2342 = vunpack.c.l.b16 %v1237
    %v2343 = vunpack.c.h.b16 %v1237
    %v2344 = vunpack.c.l.b16 %v1238
    %v2345 = vunpack.c.h.b16 %v1238
    %v2346 = vunpack.c.l.b16 %v1239
    %v2347 = vunpack.c.h.b16 %v1239
    %v2348 = vunpack.c.l.b16 %v1240
    %v2349 = vunpack.c.h.b16 %v1240
    %v2350 = vunpack.c.l.b16 %v1241
    %v2351 = vunpack.c.h.b16 %v1241
    %v2352 = vunpack.c.l.b16 %v1242
    %v2353 = vunpack.c.h.b16 %v1242
    %v2354 = vunpack.c.l.b16 %v1243
    %v2355 = vunpack.c.h.b16 %v1243
    %v2356 = vunpack.c.l.b16 %v1244
    %v2357 = vunpack.c.h.b16 %v1244
    %v2358 = vunpack.c.l.b16 %v1245
    %v2359 = vunpack.c.h.b16 %v1245
    %v2360 = vunpack.c.l.b16 %v1246
    %v2361 = vunpack.c.h.b16 %v1246
    %v2362 = vunpack.c.l.b16 %v1247
    %v2363 = vunpack.c.h.b16 %v1247
    %v2364 = vunpack.c.l.b16 %v1248
    %v2365 = vunpack.c.h.b16 %v1248
    %v2366 = vunpack.c.l.b16 %v1249
    %v2367 = vunpack.c.h.b16 %v1249
    %v2368 = vunpack.c.l.b16 %v1250
    %v2369 = vunpack.c.h.b16 %v1250
    %v2370 = vunpack.c.l.b16 %v1251
    %v2371 = vunpack.c.h.b16 %v1251
    %v2372 = vunpack.c.l.b16 %v1252
    %v2373 = vunpack.c.h.b16 %v1252
    %v2374 = vunpack.c.l.b16 %v1253
    %v2375 = vunpack.c.h.b16 %v1253
    %v2376 = vunpack.c.l.b16 %v1254
    %v2377 = vunpack.c.h.b16 %v1254
    %v2378 = vunpack.c.l.b16 %v1255
    %v2379 = vunpack.c.h.b16 %v1255
    %v2380 = vunpack.c.l.b16 %v1256
    %v2381 = vunpack.c.h.b16 %v1256
    %v2382 = vunpack.c.l.b16 %v1257
    %v2383 = vunpack.c.h.b16 %v1257
    %v2384 = vunpack.c.l.b16 %v1258
    %v2385 = vunpack.c.h.b16 %v1258
    %v2386 = vunpack.c.l.b16 %v1259
    %v2387 = vunpack.c.h.b16 %v1259
    %v2388 = vunpack.c.l.b16 %v1260
    %v2389 = vunpack.c.h.b16 %v1260
    %v2390 = vunpack.c.l.b16 %v1261
    %v2391 = vunpack.c.h.b16 %v1261
    %v2392 = vunpack.c.l.b16 %v1262
    %v2393 = vunpack.c.h.b16 %v1262
    %v2394 = vunpack.c.l.b16 %v1263
    %v2395 = vunpack.c.h.b16 %v1263
    %v2396 = vunpack.c.l.b16 %v1264
    %v2397 = vunpack.c.h.b16 %v1264
    %v2398 = vunpack.c.l.b16 %v1265
    %v2399 = vunpack.c.h.b16 %v1265
    %v2400 = vunpack.c.l.b16 %v1266
    %v2401 = vunpack.c.h.b16 %v1266
    %v2402 = vunpack.c.l.b16 %v1267
    %v2403 = vunpack.c.h.b16 %v1267
    %v2404 = vunpack.c.l.b16 %v1268
    %v2405 = vunpack.c.h.b16 %v1268
    %v2406 = vunpack.c.l.b16 %v1269
    %v2407 = vunpack.c.h.b16 %v1269
    %v2408 = vunpack.c.l.b16 %v1270
    %v2409 = vunpack.c.h.b16 %v1270
    %v2410 = vunpack.c.l.b16 %v1271
    %v2411 = vunpack.c.h.b16 %v1271
    %v2412 = vunpack.c.l.b16 %v1272
    %v2413 = vunpack.c.h.b16 %v1272
    %v2414 = vunpack.c.l.b16 %v1273
    %v2415 = vunpack.c.h.b16 %v1273
    %v2416 = vunpack.c.l.b16 %v1274
    %v2417 = vunpack.c.h.b16 %v1274
    %v2418 = vunpack.c.l.b16 %v1275
    %v2419 = vunpack.c.h.b16 %v1275
    %v2420 = vunpack.c.l.b16 %v1276
    %v2421 = vunpack.c.h.b16 %v1276
    %v2422 = vunpack.c.l.b16 %v1277
    %v2423 = vunpack.c.h.b16 %v1277
    %v2424 = vunpack.c.l.b16 %v1278
    %v2425 = vunpack.c.h.b16 %v1278
    %v2426 = vunpack.c.l.b16 %v1279
    %v2427 = vunpack.c.h.b16 %v1279
    %v2428 = vunpack.c.l.b16 %v1280
    %v2429 = vunpack.c.h.b16 %v1280
    %v2430 = vunpack.c.l.b16 %v1281
    %v2431 = vunpack.c.h.b16 %v1281
    %v2432 = vunpack.c.l.b16 %v1282
    %v2433 = vunpack.c.h.b16 %v1282
    %v2434 = vunpack.c.l.b16 %v1283
    %v2435 = vunpack.c.h.b16 %v1283
    %v2436 = vunpack.c.l.b16 %v1284
    %v2437 = vunpack.c.h.b16 %v1284
    %v2438 = vunpack.c.l.b16 %v1285
    %v2439 = vunpack.c.h.b16 %v1285
    %v2440 = vunpack.c.l.b16 %v1286
    %v2441 = vunpack.c.h.b16 %v1286
    %v2442 = vunpack.c.l.b16 %v1287
    %v2443 = vunpack.c.h.b16 %v1287
    %v2444 = vunpack.c.l.b16 %v1288
    %v2445 = vunpack.c.h.b16 %v1288
    %v2446 = vunpack.c.l.b16 %v1289
    %v2447 = vunpack.c.h.b16 %v1289
    %v2448 = vunpack.c.l.b16 %v1290
    %v2449 = vunpack.c.h.b16 %v1290
    %v2450 = vunpack.c.l.b16 %v1291
    %v2451 = vunpack.c.h.b16 %v1291
    %v2452 = vunpack.c.l.b16 %v1292
    %v2453 = vunpack.c.h.b16 %v1292
    %v2454 = vunpack.c.l.b16 %v1293
    %v2455 = vunpack.c.h.b16 %v1293
    %v2456 = vunpack.c.l.b16 %v1294
    %v2457 = vunpack.c.h.b16 %v1294
    %v2458 = vunpack.c.l.b16 %v1295
    %v2459 = vunpack.c.h.b16 %v1295
    %v2460 = vunpack.c.l.b16 %v1296
    %v2461 = vunpack.c.h.b16 %v1296
    %v2462 = vunpack.c.l.b16 %v1297
    %v2463 = vunpack.c.h.b16 %v1297
    %v2464 = vunpack.c.l.b16 %v1298
    %v2465 = vunpack.c.h.b16 %v1298
    %v2466 = vunpack.c.l.b16 %v1299
    %v2467 = vunpack.c.h.b16 %v1299
    %v2468 = vunpack.c.l.b16 %v1300
    %v2469 = vunpack.c.h.b16 %v1300
    %v2470 = vunpack.c.l.b16 %v1301
    %v2471 = vunpack.c.h.b16 %v1301
    %v2472 = vunpack.c.l.b16 %v1302
    %v2473 = vunpack.c.h.b16 %v1302
    %v2474 = vunpack.c.l.b16 %v1303
    %v2475 = vunpack.c.h.b16 %v1303
    %v2476 = vunpack.c.l.b16 %v1304
    %v2477 = vunpack.c.h.b16 %v1304
    %v2478 = vunpack.c.l.b16 %v1305
    %v2479 = vunpack.c.h.b16 %v1305
    %v2480 = vunpack.c.l.b16 %v1306
    %v2481 = vunpack.c.h.b16 %v1306
    %v2482 = vunpack.c.l.b16 %v1307
    %v2483 = vunpack.c.h.b16 %v1307
    %v2484 = vunpack.c.l.b16 %v1308
    %v2485 = vunpack.c.h.b16 %v1308
    %v2486 = vunpack.c.l.b16 %v1309
    %v2487 = vunpack.c.h.b16 %v1309
    %v2488 = vunpack.c.l.b16 %v1310
    %v2489 = vunpack.c.h.b16 %v1310
    %v2490 = vunpack.c.l.b16 %v1311
    %v2491 = vunpack.c.h.b16 %v1311
    %v2492 = vunpack.c.l.b16 %v1312
    %v2493 = vunpack.c.h.b16 %v1312
    %v2494 = vunpack.c.l.b16 %v1313
    %v2495 = vunpack.c.h.b16 %v1313
    %v2496 = vunpack.c.l.b16 %v1314
    %v2497 = vunpack.c.h.b16 %v1314
    %v2498 = vunpack.c.l.b16 %v1315
    %v2499 = vunpack.c.h.b16 %v1315
    %v2500 = vunpack.c.l.b16 %v1316
    %v2501 = vunpack.c.h.b16 %v1316
    %v2502 = vunpack.c.l.b16 %v1317
    %v2503 = vunpack.c.h.b16 %v1317
    %v2504 = vunpack.c.l.b16 %v1318
    %v2505 = vunpack.c.h.b16 %v1318
    %v2506 = vunpack.c.l.b16 %v1319
    %v2507 = vunpack.c.h.b16 %v1319
    %v2508 = vunpack.c.l.b16 %v1320
    %v2509 = vunpack.c.h.b16 %v1320
    %v2510 = vunpack.c.l.b16 %v1321
    %v2511 = vunpack.c.h.b16 %v1321
    %v2512 = vunpack.c.l.b16 %v1322
    %v2513 = vunpack.c.h.b16 %v1322
    %v2514 = vunpack.c.l.b16 %v1323
    %v2515 = vunpack.c.h.b16 %v1323
    %v2516 = vunpack.c.l.b16 %v1324
    %v2517 = vunpack.c.h.b16 %v1324
    %v2518 = vunpack.c.l.b16 %v1325
    %v2519 = vunpack.c.h.b16 %v1325
    %v2520 = vunpack.c.l.b16 %v1326
    %v2521 = vunpack.c.h.b16 %v1326
    %v2522 = vunpack.c.l.b16 %v1327
    %v2523 = vunpack.c.h.b16 %v1327
    %v2524 = vunpack.c.l.b16 %v1328
    %v2525 = vunpack.c.h.b16 %v1328
    %v2526 = vunpack.c.l.b16 %v1329
    %v2527 = vunpack.c.h.b16 %v1329
    %v2528 = vunpack.c.l.b16 %v1330
    %v2529 = vunpack.c.h.b16 %v1330
    %v2530 = vunpack.c.l.b16 %v1331
    %v2531 = vunpack.c.h.b16 %v1331
    %v2532 = vunpack.c.l.b16 %v1332
    %v2533 = vunpack.c.h.b16 %v1332
    %v2534 = vunpack.c.l.b16 %v1333
    %v2535 = vunpack.c.h.b16 %v1333
    %v2536 = vunpack.c.l.b16 %v1334
    %v2537 = vunpack.c.h.b16 %v1334
    %v2538 = vunpack.c.l.b16 %v1335
    %v2539 = vunpack.c.h.b16 %v1335
    %v2540 = vunpack.c.l.b16 %v1336
    %v2541 = vunpack.c.h.b16 %v1336
    %v2542 = vunpack.c.l.b16 %v1337
    %v2543 = vunpack.c.h.b16 %v1337
    %v2544 = vunpack.c.l.b16 %v1338
    %v2545 = vunpack.c.h.b16 %v1338
    %v2546 = vunpack.c.l.b16 %v1339
    %v2547 = vunpack.c.h.b16 %v1339
    %v2548 = vunpack.c.l.b16 %v1340
    %v2549 = vunpack.c.h.b16 %v1340
    %v2550 = vunpack.c.l.b16 %v1341
    %v2551 = vunpack.c.h.b16 %v1341
    %v2552 = vunpack.c.l.b16 %v1342
    %v2553 = vunpack.c.h.b16 %v1342
    %v2554 = vunpack.c.l.b16 %v1343
    %v2555 = vunpack.c.h.b16 %v1343
    %v2556 = vunpack.c.l.b16 %v1344
    %v2557 = vunpack.c.h.b16 %v1344
    %v2558 = vunpack.c.l.b16 %v1345
    %v2559 = vunpack.c.h.b16 %v1345
    %v2560 = vunpack.c.l.b16 %v1346
    %v2561 = vunpack.c.h.b16 %v1346
    %v2562 = vunpack.c.l.b16 %v1347
    %v2563 = vunpack.c.h.b16 %v1347
    %v2564 = vunpack.c.l.b16 %v1348
    %v2565 = vunpack.c.h.b16 %v1348
    %v2566 = vunpack.c.l.b16 %v1349
    %v2567 = vunpack.c.h.b16 %v1349
    %v2568 = vunpack.c.l.b16 %v1350
    %v2569 = vunpack.c.h.b16 %v1350
    %v2570 = vunpack.c.l.b16 %v1351
    %v2571 = vunpack.c.h.b16 %v1351
    %v2572 = vunpack.c.l.b16 %v1352
    %v2573 = vunpack.c.h.b16 %v1352
    %v2574 = vunpack.c.l.b16 %v1353
    %v2575 = vunpack.c.h.b16 %v1353
    %v2576 = vunpack.c.l.b16 %v1354
    %v2577 = vunpack.c.h.b16 %v1354
    %v2578 = vunpack.c.l.b16 %v1355
    %v2579 = vunpack.c.h.b16 %v1355
    %v2580 = vunpack.c.l.b16 %v1356
    %v2581 = vunpack.c.h.b16 %v1356
    %v2582 = vunpack.c.l.b16 %v1357
    %v2583 = vunpack.c.h.b16 %v1357
    %v2584 = vunpack.c.l.b16 %v1358
    %v2585 = vunpack.c.h.b16 %v1358
    %v2586 = vunpack.c.l.b16 %v1359
    %v2587 = vunpack.c.h.b16 %v1359
    %v2588 = vunpack.c.l.b16 %v1360
    %v2589 = vunpack.c.h.b16 %v1360
    %v2590 = vunpack.c.l.b16 %v1361
    %v2591 = vunpack.c.h.b16 %v1361
    %v2592 = vunpack.c.l.b16 %v1362
    %v2593 = vunpack.c.h.b16 %v1362
    %v2594 = vunpack.c.l.b16 %v1363
    %v2595 = vunpack.c.h.b16 %v1363
    %v2596 = vunpack.c.l.b16 %v1364
    %v2597 = vunpack.c.h.b16 %v1364
    %v2598 = vunpack.c.l.b16 %v1365
    %v2599 = vunpack.c.h.b16 %v1365
    %v2600 = vunpack.c.l.b16 %v1366
    %v2601 = vunpack.c.h.b16 %v1366
    %v2602 = vunpack.c.l.b16 %v1367
    %v2603 = vunpack.c.h.b16 %v1367
    %v2604 = vunpack.c.l.b16 %v1368
    %v2605 = vunpack.c.h.b16 %v1368
    %v2606 = vunpack.c.l.b16 %v1369
    %v2607 = vunpack.c.h.b16 %v1369
    %v2608 = vunpack.c.l.b16 %v1370
    %v2609 = vunpack.c.h.b16 %v1370
    %v2610 = vunpack.c.l.b16 %v1371
    %v2611 = vunpack.c.h.b16 %v1371
    %v2612 = vunpack.c.l.b16 %v1372
    %v2613 = vunpack.c.h.b16 %v1372
    %v2614 = vunpack.c.l.b16 %v1373
    %v2615 = vunpack.c.h.b16 %v1373
    %v2616 = vunpack.c.l.b16 %v1374
    %v2617 = vunpack.c.h.b16 %v1374
    %v2618 = vunpack.c.l.b16 %v1375
    %v2619 = vunpack.c.h.b16 %v1375
    %v2620 = vunpack.c.l.b16 %v1376
    %v2621 = vunpack.c.h.b16 %v1376
    %v2622 = vunpack.c.l.b16 %v1377
    %v2623 = vunpack.c.h.b16 %v1377
    %v2624 = vunpack.c.l.b16 %v1378
    %v2625 = vunpack.c.h.b16 %v1378
    %v2626 = vunpack.c.l.b16 %v1379
    %v2627 = vunpack.c.h.b16 %v1379
    %v2628 = vunpack.c.l.b16 %v1380
    %v2629 = vunpack.c.h.b16 %v1380
    %v2630 = vunpack.c.l.b16 %v1381
    %v2631 = vunpack.c.h.b16 %v1381
    %v2632 = vunpack.c.l.b16 %v1382
    %v2633 = vunpack.c.h.b16 %v1382
    %v2634 = vunpack.c.l.b16 %v1383
    %v2635 = vunpack.c.h.b16 %v1383
    %v2636 = vunpack.c.l.b16 %v1384
    %v2637 = vunpack.c.h.b16 %v1384
    %v2638 = vunpack.c.l.b16 %v1385
    %v2639 = vunpack.c.h.b16 %v1385
    %v2640 = vunpack.c.l.b16 %v1386
    %v2641 = vunpack.c.h.b16 %v1386
    %v2642 = vunpack.c.l.b16 %v1387
    %v2643 = vunpack.c.h.b16 %v1387
    %v2644 = vunpack.c.l.b16 %v1388
    %v2645 = vunpack.c.h.b16 %v1388
    %v2646 = vunpack.c.l.b16 %v1389
    %v2647 = vunpack.c.h.b16 %v1389
    %v2648 = vunpack.c.l.b16 %v1390
    %v2649 = vunpack.c.h.b16 %v1390
    %v2650 = vunpack.c.l.b16 %v1391
    %v2651 = vunpack.c.h.b16 %v1391
    %v2652 = vunpack.c.l.b16 %v1392
    %v2653 = vunpack.c.h.b16 %v1392
    %v2654 = vunpack.c.l.b16 %v1393
    %v2655 = vunpack.c.h.b16 %v1393
    %v2656 = vunpack.c.l.b16 %v1394
    %v2657 = vunpack.c.h.b16 %v1394
    %v2658 = vunpack.c.l.b16 %v1395
    %v2659 = vunpack.c.h.b16 %v1395
    %v2660 = vunpack.c.l.b16 %v1396
    %v2661 = vunpack.c.h.b16 %v1396
    %v2662 = vunpack.c.l.b16 %v1397
    %v2663 = vunpack.c.h.b16 %v1397
    %v2664 = vunpack.c.l.b16 %v1398
    %v2665 = vunpack.c.h.b16 %v1398
    %v2666 = vunpack.c.l.b16 %v1399
    %v2667 = vunpack.c.h.b16 %v1399
    %v2668 = vunpack.c.l.b16 %v1400
    %v2669 = vunpack.c.h.b16 %v1400
    %v2670 = vunpack.c.l.b16 %v1401
    %v2671 = vunpack.c.h.b16 %v1401
    %v2672 = vunpack.c.l.b16 %v1402
    %v2673 = vunpack.c.h.b16 %v1402
    %v2674 = vunpack.c.l.b16 %v1403
    %v2675 = vunpack.c.h.b16 %v1403
    %v2676 = vunpack.c.l.b16 %v1404
    %v2677 = vunpack.c.h.b16 %v1404
    %v2678 = vunpack.c.l.b16 %v1405
    %v2679 = vunpack.c.h.b16 %v1405
    %v2680 = vunpack.c.l.b16 %v1406
    %v2681 = vunpack.c.h.b16 %v1406
    %v2682 = vunpack.c.l.b16 %v1407
    %v2683 = vunpack.c.h.b16 %v1407
    %v2684 = vunpack.c.l.b16 %v1408
    %v2685 = vunpack.c.h.b16 %v1408
    %v2686 = vunpack.c.l.b16 %v1409
    %v2687 = vunpack.c.h.b16 %v1409
    %v2688 = vunpack.c.l.b16 %v1410
    %v2689 = vunpack.c.h.b16 %v1410
    %v2690 = vunpack.c.l.b16 %v1411
    %v2691 = vunpack.c.h.b16 %v1411
    %v2692 = vunpack.c.l.b16 %v1412
    %v2693 = vunpack.c.h.b16 %v1412
    %v2694 = vunpack.c.l.b16 %v1413
    %v2695 = vunpack.c.h.b16 %v1413
    %v2696 = vunpack.c.l.b16 %v1414
    %v2697 = vunpack.c.h.b16 %v1414
    %v2698 = vunpack.c.l.b16 %v1415
    %v2699 = vunpack.c.h.b16 %v1415
    %v2700 = vunpack.c.l.b16 %v1416
    %v2701 = vunpack.c.h.b16 %v1416
    %v2702 = vunpack.c.l.b16 %v1417
    %v2703 = vunpack.c.h.b16 %v1417
    %v2704 = vunpack.c.l.b16 %v1418
    %v2705 = vunpack.c.h.b16 %v1418
    %v2706 = vunpack.c.l.b16 %v1419
    %v2707 = vunpack.c.h.b16 %v1419
    %v2708 = vunpack.c.l.b16 %v1420
    %v2709 = vunpack.c.h.b16 %v1420
    %v2710 = vunpack.c.l.b16 %v1421
    %v2711 = vunpack.c.h.b16 %v1421
    %v2712 = vunpack.c.l.b16 %v1422
    %v2713 = vunpack.c.h.b16 %v1422
    %v2714 = vunpack.c.l.b16 %v1423
    %v2715 = vunpack.c.h.b16 %v1423
    %v2716 = vunpack.c.l.b16 %v1424
    %v2717 = vunpack.c.h.b16 %v1424
    %v2718 = vunpack.c.l.b16 %v1425
    %v2719 = vunpack.c.h.b16 %v1425
    %v2720 = vunpack.c.l.b16 %v1426
    %v2721 = vunpack.c.h.b16 %v1426
    %v2722 = vunpack.c.l.b16 %v1427
    %v2723 = vunpack.c.h.b16 %v1427
    %v2724 = vunpack.c.l.b16 %v1428
    %v2725 = vunpack.c.h.b16 %v1428
    %v2726 = vunpack.c.l.b16 %v1429
    %v2727 = vunpack.c.h.b16 %v1429
    %v2728 = vunpack.c.l.b16 %v1430
    %v2729 = vunpack.c.h.b16 %v1430
    %v2730 = vunpack.c.l.b16 %v1431
    %v2731 = vunpack.c.h.b16 %v1431
    %v2732 = vunpack.c.l.b16 %v1432
    %v2733 = vunpack.c.h.b16 %v1432
    %v2734 = vunpack.c.l.b16 %v1433
    %v2735 = vunpack.c.h.b16 %v1433
    %v2736 = vunpack.c.l.b16 %v1434
    %v2737 = vunpack.c.h.b16 %v1434
    %v2738 = vunpack.c.l.b16 %v1435
    %v2739 = vunpack.c.h.b16 %v1435
    %v2740 = vunpack.c.l.b16 %v1436
    %v2741 = vunpack.c.h.b16 %v1436
    %v2742 = vunpack.c.l.b16 %v1437
    %v2743 = vunpack.c.h.b16 %v1437
    %v2744 = vunpack.c.l.b16 %v1438
    %v2745 = vunpack.c.h.b16 %v1438
    %v2746 = vunpack.c.l.b16 %v1439
    %v2747 = vunpack.c.h.b16 %v1439
    %v2748 = vunpack.c.l.b16 %v1440
    %v2749 = vunpack.c.h.b16 %v1440
    %v2750 = vunpack.c.l.b16 %v1441
    %v2751 = vunpack.c.h.b16 %v1441
    %v2752 = vunpack.c.l.b16 %v1442
    %v2753 = vunpack.c.h.b16 %v1442
    %v2754 = vunpack.c.l.b16 %v1443
    %v2755 = vunpack.c.h.b16 %v1443
    %v2756 = vunpack.c.l.b16 %v1444
    %v2757 = vunpack.c.h.b16 %v1444
    %v2758 = vunpack.c.l.b16 %v1445
    %v2759 = vunpack.c.h.b16 %v1445
    %v2760 = vunpack.c.l.b16 %v1446
    %v2761 = vunpack.c.h.b16 %v1446
    %v2762 = vunpack.c.l.b16 %v1447
    %v2763 = vunpack.c.h.b16 %v1447
    %v2764 = vunpack.c.l.b16 %v1448
    %v2765 = vunpack.c.h.b16 %v1448
    %v2766 = vunpack.c.l.b16 %v1449
    %v2767 = vunpack.c.h.b16 %v1449
    %v2768 = vunpack.c.l.b16 %v1450
    %v2769 = vunpack.c.h.b16 %v1450
    %v2770 = vunpack.c.l.b16 %v1451
    %v2771 = vunpack.c.h.b16 %v1451
    %v2772 = vunpack.c.l.b16 %v1452
    %v2773 = vunpack.c.h.b16 %v1452
    %v2774 = vunpack.c.l.b16 %v1453
    %v2775 = vunpack.c.h.b16 %v1453
    %v2776 = vunpack.c.l.b16 %v1454
    %v2777 = vunpack.c.h.b16 %v1454
    %v2778 = vunpack.c.l.b16 %v1455
    %v2779 = vunpack.c.h.b16 %v1455
    %v2780 = vunpack.c.l.b16 %v1456
    %v2781 = vunpack.c.h.b16 %v1456
    %v2782 = vunpack.c.l.b16 %v1457
    %v2783 = vunpack.c.h.b16 %v1457
    %v2784 = vunpack.c.l.b16 %v1458
    %v2785 = vunpack.c.h.b16 %v1458
    %v2786 = vunpack.c.l.b16 %v1459
    %v2787 = vunpack.c.h.b16 %v1459
    %v2788 = vunpack.c.l.b16 %v1460
    %v2789 = vunpack.c.h.b16 %v1460
    %v2790 = vunpack.c.l.b16 %v1461
    %v2791 = vunpack.c.h.b16 %v1461
    %v2792 = vunpack.c.l.b16 %v1462
    %v2793 = vunpack.c.h.b16 %v1462
    %v2794 = vunpack.c.l.b16 %v1463
    %v2795 = vunpack.c.h.b16 %v1463
    %v2796 = vunpack.c.l.b16 %v1464
    %v2797 = vunpack.c.h.b16 %v1464
    %v2798 = vunpack.c.l.b16 %v1465
    %v2799 = vunpack.c.h.b16 %v1465
    %v2800 = vunpack.c.l.b16 %v1466
    %v2801 = vunpack.c.h.b16 %v1466
    %v2802 = vunpack.c.l.b16 %v1467
    %v2803 = vunpack.c.h.b16 %v1467
    %v2804 = vunpack.c.l.b16 %v1468
    %v2805 = vunpack.c.h.b16 %v1468
    %v2806 = vunpack.c.l.b16 %v1469
    %v2807 = vunpack.c.h.b16 %v1469
    %v2808 = vunpack.c.l.b16 %v1470
    %v2809 = vunpack.c.h.b16 %v1470
    %v2810 = vunpack.c.l.b16 %v1471
    %v2811 = vunpack.c.h.b16 %v1471
    %v2812 = vunpack.c.l.b16 %v1472
    %v2813 = vunpack.c.h.b16 %v1472
    %v2814 = vunpack.c.l.b16 %v1473
    %v2815 = vunpack.c.h.b16 %v1473
    %v2816 = vunpack.c.l.b16 %v1474
    %v2817 = vunpack.c.h.b16 %v1474
    %v2818 = vunpack.c.l.b16 %v1475
    %v2819 = vunpack.c.h.b16 %v1475
    %v2820 = vunpack.c.l.b16 %v1476
    %v2821 = vunpack.c.h.b16 %v1476
    %v2822 = vunpack.c.l.b16 %v1477
    %v2823 = vunpack.c.h.b16 %v1477
    %v2824 = vunpack.c.l.b16 %v1478
    %v2825 = vunpack.c.h.b16 %v1478
    %v2826 = vunpack.c.l.b16 %v1479
    %v2827 = vunpack.c.h.b16 %v1479
    %v2828 = vunpack.c.l.b16 %v1480
    %v2829 = vunpack.c.h.b16 %v1480
    %v2830 = vunpack.c.l.b16 %v1481
    %v2831 = vunpack.c.h.b16 %v1481
    %v2832 = vunpack.c.l.b16 %v1482
    %v2833 = vunpack.c.h.b16 %v1482
    %v2834 = vunpack.c.l.b16 %v1483
    %v2835 = vunpack.c.h.b16 %v1483
    %v2836 = vunpack.c.l.b16 %v1484
    %v2837 = vunpack.c.h.b16 %v1484
    %v2838 = vunpack.c.l.b16 %v1485
    %v2839 = vunpack.c.h.b16 %v1485
    %v2840 = vunpack.c.l.b16 %v1486
    %v2841 = vunpack.c.h.b16 %v1486
    %v2842 = vunpack.c.l.b16 %v1487
    %v2843 = vunpack.c.h.b16 %v1487
    %v2844 = vunpack.c.l.b16 %v1488
    %v2845 = vunpack.c.h.b16 %v1488
    %v2846 = vunpack.c.l.b16 %v1489
    %v2847 = vunpack.c.h.b16 %v1489
    %v2848 = vunpack.c.l.b16 %v1490
    %v2849 = vunpack.c.h.b16 %v1490
    %v2850 = vunpack.c.l.b16 %v1491
    %v2851 = vunpack.c.h.b16 %v1491
    %v2852 = vunpack.c.l.b16 %v1492
    %v2853 = vunpack.c.h.b16 %v1492
    %v2854 = vunpack.c.l.b16 %v1493
    %v2855 = vunpack.c.h.b16 %v1493
    %v2856 = vunpack.c.l.b16 %v1494
    %v2857 = vunpack.c.h.b16 %v1494
    %v2858 = vunpack.c.l.b16 %v1495
    %v2859 = vunpack.c.h.b16 %v1495
    %v2860 = vunpack.c.l.b16 %v1496
    %v2861 = vunpack.c.h.b16 %v1496
    %v2862 = vunpack.c.l.b16 %v1497
    %v2863 = vunpack.c.h.b16 %v1497
    %v2864 = vunpack.c.l.b16 %v1498
    %v2865 = vunpack.c.h.b16 %v1498
    %v2866 = vunpack.c.l.b16 %v1499
    %v2867 = vunpack.c.h.b16 %v1499
    %v2868 = vunpack.c.l.b16 %v1500
    %v2869 = vunpack.c.h.b16 %v1500
    %v2870 = vunpack.c.l.b16 %v1501
    %v2871 = vunpack.c.h.b16 %v1501
    %v2872 = vunpack.c.l.b16 %v1502
    %v2873 = vunpack.c.h.b16 %v1502
    %v2874 = vunpack.c.l.b16 %v1503
    %v2875 = vunpack.c.h.b16 %v1503
    %v2876 = vunpack.c.l.b16 %v1504
    %v2877 = vunpack.c.h.b16 %v1504
    %v2878 = vunpack.c.l.b16 %v1505
    %v2879 = vunpack.c.h.b16 %v1505
    %v2880 = vunpack.c.l.b16 %v1506
    %v2881 = vunpack.c.h.b16 %v1506
    %v2882 = vunpack.c.l.b16 %v1507
    %v2883 = vunpack.c.h.b16 %v1507
    %v2884 = vunpack.c.l.b16 %v1508
    %v2885 = vunpack.c.h.b16 %v1508
    %v2886 = vunpack.c.l.b16 %v1509
    %v2887 = vunpack.c.h.b16 %v1509
    %v2888 = vunpack.c.l.b16 %v1510
    %v2889 = vunpack.c.h.b16 %v1510
    %v2890 = vunpack.c.l.b16 %v1511
    %v2891 = vunpack.c.h.b16 %v1511
    %v2892 = vunpack.c.l.b16 %v1512
    %v2893 = vunpack.c.h.b16 %v1512
    %v2894 = vunpack.c.l.b16 %v1513
    %v2895 = vunpack.c.h.b16 %v1513
    %v2896 = vunpack.c.l.b16 %v1514
    %v2897 = vunpack.c.h.b16 %v1514
    %v2898 = vunpack.c.l.b16 %v1515
    %v2899 = vunpack.c.h.b16 %v1515
    %v2900 = vunpack.c.l.b16 %v1516
    %v2901 = vunpack.c.h.b16 %v1516
    %v2902 = vunpack.c.l.b16 %v1517
    %v2903 = vunpack.c.h.b16 %v1517
    %v2904 = vunpack.c.l.b16 %v1518
    %v2905 = vunpack.c.h.b16 %v1518
    %v2906 = vunpack.c.l.b16 %v1519
    %v2907 = vunpack.c.h.b16 %v1519
    %v2908 = vunpack.c.l.b16 %v1520
    %v2909 = vunpack.c.h.b16 %v1520
    %v2910 = vunpack.c.l.b16 %v1521
    %v2911 = vunpack.c.h.b16 %v1521
    %v2912 = vunpack.c.l.b16 %v1522
    %v2913 = vunpack.c.h.b16 %v1522
    %v2914 = vunpack.c.l.b16 %v1523
    %v2915 = vunpack.c.h.b16 %v1523
    %v2916 = vunpack.c.l.b16 %v1524
    %v2917 = vunpack.c.h.b16 %v1524
    %v2918 = vunpack.c.l.b16 %v1525
    %v2919 = vunpack.c.h.b16 %v1525
    %v2920 = vunpack.c.l.b16 %v1526
    %v2921 = vunpack.c.h.b16 %v1526
    %v2922 = vunpack.c.l.b16 %v1527
    %v2923 = vunpack.c.h.b16 %v1527
    %v2924 = vunpack.c.l.b16 %v1528
    %v2925 = vunpack.c.h.b16 %v1528
    %v2926 = vunpack.c.l.b16 %v1529
    %v2927 = vunpack.c.h.b16 %v1529
    %v2928 = vunpack.c.l.b16 %v1530
    %v2929 = vunpack.c.h.b16 %v1530
    %v2930 = vunpack.c.l.b16 %v1531
    %v2931 = vunpack.c.h.b16 %v1531
    %v2932 = vunpack.c.l.b16 %v1532
    %v2933 = vunpack.c.h.b16 %v1532
    %v2934 = vunpack.c.l.b16 %v1533
    %v2935 = vunpack.c.h.b16 %v1533
    %v2936 = vunpack.c.l.b16 %v1534
    %v2937 = vunpack.c.h.b16 %v1534
    %v2938 = vunpack.c.l.b16 %v1535
    %v2939 = vunpack.c.h.b16 %v1535
    %v2940 = vunpack.c.l.b16 %v1536
    %v2941 = vunpack.c.h.b16 %v1536
    %v2942 = vunpack.c.l.b16 %v1537
    %v2943 = vunpack.c.h.b16 %v1537
    %v2944 = vunpack.c.l.b16 %v1538
    %v2945 = vunpack.c.h.b16 %v1538
    %v2946 = vunpack.c.l.b16 %v1539
    %v2947 = vunpack.c.h.b16 %v1539
    %v2948 = vunpack.c.l.b16 %v1540
    %v2949 = vunpack.c.h.b16 %v1540
    %v2950 = vunpack.c.l.b16 %v1541
    %v2951 = vunpack.c.h.b16 %v1541
    %v2952 = vunpack.c.l.b16 %v1542
    %v2953 = vunpack.c.h.b16 %v1542
    %v2954 = vunpack.c.l.b16 %v1543
    %v2955 = vunpack.c.h.b16 %v1543
    %v2956 = vunpack.c.l.b16 %v1544
    %v2957 = vunpack.c.h.b16 %v1544
    %v2958 = vunpack.c.l.b16 %v1545
    %v2959 = vunpack.c.h.b16 %v1545
    %v2960 = vunpack.c.l.b16 %v1546
    %v2961 = vunpack.c.h.b16 %v1546
    %v2962 = vunpack.c.l.b16 %v1547
    %v2963 = vunpack.c.h.b16 %v1547
    %v2964 = vunpack.c.l.b16 %v1548
    %v2965 = vunpack.c.h.b16 %v1548
    %v2966 = vunpack.c.l.b16 %v1549
    %v2967 = vunpack.c.h.b16 %v1549
    %v2968 = vunpack.c.l.b16 %v1550
    %v2969 = vunpack.c.h.b16 %v1550
    %v2970 = vunpack.c.l.b16 %v1551
    %v2971 = vunpack.c.h.b16 %v1551
    %v2972 = vunpack.c.l.b16 %v1552
    %v2973 = vunpack.c.h.b16 %v1552
    %v2974 = vunpack.c.l.b16 %v1553
    %v2975 = vunpack.c.h.b16 %v1553
    %v2976 = vunpack.c.l.b16 %v1554
    %v2977 = vunpack.c.h.b16 %v1554
    %v2978 = vunpack.c.l.b16 %v1555
    %v2979 = vunpack.c.h.b16 %v1555
    %v2980 = vunpack.c.l.b16 %v1556
    %v2981 = vunpack.c.h.b16 %v1556
    %v2982 = vunpack.c.l.b16 %v1557
    %v2983 = vunpack.c.h.b16 %v1557
    %v2984 = vunpack.c.l.b16 %v1558
    %v2985 = vunpack.c.h.b16 %v1558
    %v2986 = vunpack.c.l.b16 %v1559
    %v2987 = vunpack.c.h.b16 %v1559
    %v2988 = vunpack.c.l.b16 %v1560
    %v2989 = vunpack.c.h.b16 %v1560
    %v2990 = vunpack.c.l.b16 %v1561
    %v2991 = vunpack.c.h.b16 %v1561
    %v2992 = vunpack.c.l.b16 %v1562
    %v2993 = vunpack.c.h.b16 %v1562
    %v2994 = vunpack.c.l.b16 %v1563
    %v2995 = vunpack.c.h.b16 %v1563
    %v2996 = vunpack.c.l.b16 %v1564
    %v2997 = vunpack.c.h.b16 %v1564
    %v2998 = vunpack.c.l.b16 %v1565
    %v2999 = vunpack.c.h.b16 %v1565
    %v3000 = vunpack.c.l.b16 %v1566
    %v3001 = vunpack.c.h.b16 %v1566
    %v3002 = vunpack.c.l.b16 %v1567
    %v3003 = vunpack.c.h.b16 %v1567
    %v3004 = vunpack.c.l.b16 %v1568
    %v3005 = vunpack.c.h.b16 %v1568
    %v3006 = vunpack.c.l.b16 %v1569
    %v3007 = vunpack.c.h.b16 %v1569
    %v3008 = vunpack.c.l.b16 %v1570
    %v3009 = vunpack.c.h.b16 %v1570
    %v3010 = vunpack.c.l.b16 %v1571
    %v3011 = vunpack.c.h.b16 %v1571
    %v3012 = vunpack.c.l.b16 %v1572
    %v3013 = vunpack.c.h.b16 %v1572
    %v3014 = vunpack.c.l.b16 %v1573
    %v3015 = vunpack.c.h.b16 %v1573
    %v3016 = vunpack.c.l.b16 %v1574
    %v3017 = vunpack.c.h.b16 %v1574
    %v3018 = vunpack.c.l.b16 %v1575
    %v3019 = vunpack.c.h.b16 %v1575
    %v3020 = vunpack.c.l.b16 %v1576
    %v3021 = vunpack.c.h.b16 %v1576
    %v3022 = vunpack.c.l.b16 %v1577
    %v3023 = vunpack.c.h.b16 %v1577
    %v3024 = vunpack.c.l.b16 %v1578
    %v3025 = vunpack.c.h.b16 %v1578
    %v3026 = vunpack.c.l.b16 %v1579
    %v3027 = vunpack.c.h.b16 %v1579
    %v3028 = vunpack.c.l.b16 %v1580
    %v3029 = vunpack.c.h.b16 %v1580
    %v3030 = vunpack.c.l.b16 %v1581
    %v3031 = vunpack.c.h.b16 %v1581
    %v3032 = vunpack.c.l.b16 %v1582
    %v3033 = vunpack.c.h.b16 %v1582
    %v3034 = vunpack.c.l.b16 %v1583
    %v3035 = vunpack.c.h.b16 %v1583
    %v3036 = vunpack.c.l.b16 %v1584
    %v3037 = vunpack.c.h.b16 %v1584
    %v3038 = vunpack.c.l.b16 %v1585
    %v3039 = vunpack.c.h.b16 %v1585
    %v3040 = vunpack.c.l.b16 %v1586
    %v3041 = vunpack.c.h.b16 %v1586
    %v3042 = vunpack.c.l.b16 %v1587
    %v3043 = vunpack.c.h.b16 %v1587
    %v3044 = vunpack.c.l.b16 %v1588
    %v3045 = vunpack.c.h.b16 %v1588
    %v3046 = vunpack.c.l.b16 %v1589
    %v3047 = vunpack.c.h.b16 %v1589
    %v3048 = vunpack.c.l.b16 %v1590
    %v3049 = vunpack.c.h.b16 %v1590
    %v3050 = vunpack.c.l.b16 %v1591
    %v3051 = vunpack.c.h.b16 %v1591
    %v3052 = vunpack.c.l.b16 %v1592
    %v3053 = vunpack.c.h.b16 %v1592
    %v3054 = vunpack.c.l.b16 %v1593
    %v3055 = vunpack.c.h.b16 %v1593
    %v3056 = vunpack.c.l.b16 %v1594
    %v3057 = vunpack.c.h.b16 %v1594
    %v3058 = vunpack.c.l.b16 %v1595
    %v3059 = vunpack.c.h.b16 %v1595
    %v3060 = vunpack.c.l.b16 %v1596
    %v3061 = vunpack.c.h.b16 %v1596
    %v3062 = vunpack.c.l.b16 %v1597
    %v3063 = vunpack.c.h.b16 %v1597
    %v3064 = vunpack.c.l.b16 %v1598
    %v3065 = vunpack.c.h.b16 %v1598
    %v3066 = vunpack.c.l.b16 %v1599
    %v3067 = vunpack.c.h.b16 %v1599
    %v3068 = vunpack.c.l.b16 %v1600
    %v3069 = vunpack.c.h.b16 %v1600
    %v3070 = vunpack.c.l.b16 %v1601
    %v3071 = vunpack.c.h.b16 %v1601
    %v3072 = vunpack.c.l.b16 %v1602
    %v3073 = vunpack.c.h.b16 %v1602
    %v3074 = vunpack.c.l.b16 %v1603
    %v3075 = vunpack.c.h.b16 %v1603
    %v3076 = vunpack.c.l.b16 %v1604
    %v3077 = vunpack.c.h.b16 %v1604
    %v3078 = vunpack.c.l.b16 %v1605
    %v3079 = vunpack.c.h.b16 %v1605
    %v3080 = vunpack.c.l.b16 %v1606
    %v3081 = vunpack.c.h.b16 %v1606
    %v3082 = vunpack.c.l.b16 %v1607
    %v3083 = vunpack.c.h.b16 %v1607
    %v3084 = vunpack.c.l.b16 %v1608
    %v3085 = vunpack.c.h.b16 %v1608
    %v3086 = vunpack.c.l.b16 %v1609
    %v3087 = vunpack.c.h.b16 %v1609
    %v3088 = vunpack.c.l.b16 %v1610
    %v3089 = vunpack.c.h.b16 %v1610
    %v3090 = vunpack.c.l.b16 %v1611
    %v3091 = vunpack.c.h.b16 %v1611
    %v3092 = vunpack.c.l.b16 %v1612
    %v3093 = vunpack.c.h.b16 %v1612
    %v3094 = vunpack.c.l.b16 %v1613
    %v3095 = vunpack.c.h.b16 %v1613
    %v3096 = vunpack.c.l.b16 %v1614
    %v3097 = vunpack.c.h.b16 %v1614
    %v3098 = vunpack.c.l.b16 %v1615
    %v3099 = vunpack.c.h.b16 %v1615
    %v3100 = vunpack.c.l.b16 %v1616
    %v3101 = vunpack.c.h.b16 %v1616
    %v3102 = vunpack.c.l.b16 %v1617
    %v3103 = vunpack.c.h.b16 %v1617
    %v3104 = vunpack.c.l.b16 %v1618
    %v3105 = vunpack.c.h.b16 %v1618
    %v3106 = vunpack.c.l.b16 %v1619
    %v3107 = vunpack.c.h.b16 %v1619
    %v3108 = vunpack.c.l.b16 %v1620
    %v3109 = vunpack.c.h.b16 %v1620
    %v3110 = vunpack.c.l.b16 %v1621
    %v3111 = vunpack.c.h.b16 %v1621
    %v3112 = vunpack.c.l.b16 %v1622
    %v3113 = vunpack.c.h.b16 %v1622
    %v3114 = vunpack.c.l.b16 %v1623
    %v3115 = vunpack.c.h.b16 %v1623
    %v3116 = vunpack.c.l.b16 %v1624
    %v3117 = vunpack.c.h.b16 %v1624
    %v3118 = vunpack.c.l.b16 %v1625
    %v3119 = vunpack.c.h.b16 %v1625
    %v3120 = vunpack.c.l.b16 %v1626
    %v3121 = vunpack.c.h.b16 %v1626
    %v3122 = vunpack.c.l.b16 %v1627
    %v3123 = vunpack.c.h.b16 %v1627
    %v3124 = vunpack.c.l.b16 %v1628
    %v3125 = vunpack.c.h.b16 %v1628
    %v3126 = vunpack.c.l.b16 %v1629
    %v3127 = vunpack.c.h.b16 %v1629
    %v3128 = vunpack.c.l.b16 %v1630
    %v3129 = vunpack.c.h.b16 %v1630
    %v3130 = vunpack.c.l.b16 %v1631
    %v3131 = vunpack.c.h.b16 %v1631
    %v3132 = vunpack.c.l.b16 %v1632
    %v3133 = vunpack.c.h.b16 %v1632
    %v3134 = vunpack.c.l.b16 %v1633
    %v3135 = vunpack.c.h.b16 %v1633
    %v3136 = vunpack.c.l.b16 %v1634
    %v3137 = vunpack.c.h.b16 %v1634
    %v3138 = vunpack.c.l.b16 %v1635
    %v3139 = vunpack.c.h.b16 %v1635
    %v3140 = vunpack.c.l.b16 %v1636
    %v3141 = vunpack.c.h.b16 %v1636
    %v3142 = vunpack.c.l.b16 %v1637
    %v3143 = vunpack.c.h.b16 %v1637
    %v3144 = vunpack.c.l.b16 %v1638
    %v3145 = vunpack.c.h.b16 %v1638
    %v3146 = vunpack.c.l.b16 %v1639
    %v3147 = vunpack.c.h.b16 %v1639
    %v3148 = vunpack.c.l.b16 %v1640
    %v3149 = vunpack.c.h.b16 %v1640
    %v3150 = vunpack.c.l.b16 %v1641
    %v3151 = vunpack.c.h.b16 %v1641
    %v3152 = vunpack.c.l.b16 %v1642
    %v3153 = vunpack.c.h.b16 %v1642
    %v3154 = vunpack.c.l.b16 %v1643
    %v3155 = vunpack.c.h.b16 %v1643
    %v3156 = vunpack.c.l.b16 %v1644
    %v3157 = vunpack.c.h.b16 %v1644
    %v3158 = vunpack.c.l.b16 %v1645
    %v3159 = vunpack.c.h.b16 %v1645
    %v3160 = vunpack.c.l.b16 %v1646
    %v3161 = vunpack.c.h.b16 %v1646
    %v3162 = vunpack.c.l.b16 %v1647
    %v3163 = vunpack.c.h.b16 %v1647
    %v3164 = vunpack.c.l.b16 %v1648
    %v3165 = vunpack.c.h.b16 %v1648
    %v3166 = vunpack.c.l.b16 %v1649
    %v3167 = vunpack.c.h.b16 %v1649
    %v3168 = vunpack.c.l.b16 %v1650
    %v3169 = vunpack.c.h.b16 %v1650
    %v3170 = vunpack.c.l.b16 %v1651
    %v3171 = vunpack.c.h.b16 %v1651
    %v3172 = vunpack.c.l.b16 %v1652
    %v3173 = vunpack.c.h.b16 %v1652
    %v3174 = vunpack.c.l.b16 %v1653
    %v3175 = vunpack.c.h.b16 %v1653
    %v3176 = vunpack.c.l.b16 %v1654
    %v3177 = vunpack.c.h.b16 %v1654
    %v3178 = vunpack.c.l.b16 %v1655
    %v3179 = vunpack.c.h.b16 %v1655
    %v3180 = vunpack.c.l.b16 %v1656
    %v3181 = vunpack.c.h.b16 %v1656
    %v3182 = vunpack.c.l.b16 %v1657
    %v3183 = vunpack.c.h.b16 %v1657
    %v3184 = vunpack.c.l.b16 %v1658
    %v3185 = vunpack.c.h.b16 %v1658
    %v3186 = vunpack.c.l.b16 %v1659
    %v3187 = vunpack.c.h.b16 %v1659
    %v3188 = vunpack.c.l.b16 %v1660
    %v3189 = vunpack.c.h.b16 %v1660
    %v3190 = vunpack.c.l.b16 %v1661
    %v3191 = vunpack.c.h.b16 %v1661
    %v3192 = vunpack.c.l.b16 %v1662
    %v3193 = vunpack.c.h.b16 %v1662
    %v3194 = vunpack.c.l.b16 %v1663
    %v3195 = vunpack.c.h.b16 %v1663
    %v3196 = vunpack.c.l.b16 %v1664
    %v3197 = vunpack.c.h.b16 %v1664
    %v3198 = vunpack.c.l.b16 %v1665
    %v3199 = vunpack.c.h.b16 %v1665
    %v3200 = vunpack.c.l.b16 %v1666
    %v3201 = vunpack.c.h.b16 %v1666
    %v3202 = vunpack.c.l.b16 %v1667
    %v3203 = vunpack.c.h.b16 %v1667
    %v3204 = vunpack.c.l.b16 %v1668
    %v3205 = vunpack.c.h.b16 %v1668
    %v3206 = vunpack.c.l.b16 %v1669
    %v3207 = vunpack.c.h.b16 %v1669
    %v3208 = vunpack.c.l.b16 %v1670
    %v3209 = vunpack.c.h.b16 %v1670
    %v3210 = vunpack.c.l.b16 %v1671
    %v3211 = vunpack.c.h.b16 %v1671
    %v3212 = vunpack.c.l.b16 %v1672
    %v3213 = vunpack.c.h.b16 %v1672
    %v3214 = vunpack.c.l.b16 %v1673
    %v3215 = vunpack.c.h.b16 %v1673
    %v3216 = vunpack.c.l.b16 %v1674
    %v3217 = vunpack.c.h.b16 %v1674
    %v3218 = vunpack.c.l.b16 %v1675
    %v3219 = vunpack.c.h.b16 %v1675
    %v3220 = vunpack.c.l.b16 %v1676
    %v3221 = vunpack.c.h.b16 %v1676
    %v3222 = vunpack.c.l.b16 %v1677
    %v3223 = vunpack.c.h.b16 %v1677
    %v3224 = vunpack.c.l.b16 %v1678
    %v3225 = vunpack.c.h.b16 %v1678
    %v3226 = vunpack.c.l.b16 %v1679
    %v3227 = vunpack.c.h.b16 %v1679
    %v3228 = vunpack.c.l.b16 %v1680
    %v3229 = vunpack.c.h.b16 %v1680
    %v3230 = vunpack.c.l.b16 %v1681
    %v3231 = vunpack.c.h.b16 %v1681
    %v3232 = vunpack.c.l.b16 %v1682
    %v3233 = vunpack.c.h.b16 %v1682
    %v3234 = vunpack.c.l.b16 %v1683
    %v3235 = vunpack.c.h.b16 %v1683
    %v3236 = vunpack.c.l.b16 %v1684
    %v3237 = vunpack.c.h.b16 %v1684
    %v3238 = vunpack.c.l.b16 %v1685
    %v3239 = vunpack.c.h.b16 %v1685
    %v3240 = vunpack.c.l.b16 %v1686
    %v3241 = vunpack.c.h.b16 %v1686
    %v3242 = vunpack.c.l.b16 %v1687
    %v3243 = vunpack.c.h.b16 %v1687
    %v3244 = vunpack.c.l.b16 %v1688
    %v3245 = vunpack.c.h.b16 %v1688
    %v3246 = vunpack.c.l.b16 %v1689
    %v3247 = vunpack.c.h.b16 %v1689
    %v3248 = vunpack.c.l.b16 %v1690
    %v3249 = vunpack.c.h.b16 %v1690
    %v3250 = vunpack.c.l.b16 %v1691
    %v3251 = vunpack.c.h.b16 %v1691
    %v3252 = vunpack.c.l.b16 %v1692
    %v3253 = vunpack.c.h.b16 %v1692
    %v3254 = vunpack.c.l.b16 %v1693
    %v3255 = vunpack.c.h.b16 %v1693
    %v3256 = vunpack.c.l.b16 %v1694
    %v3257 = vunpack.c.h.b16 %v1694
    %v3258 = vunpack.c.l.b16 %v1695
    %v3259 = vunpack.c.h.b16 %v1695
    %v3260 = vunpack.c.l.b16 %v1696
    %v3261 = vunpack.c.h.b16 %v1696
    %v3262 = vunpack.c.l.b16 %v1697
    %v3263 = vunpack.c.h.b16 %v1697
    %v3264 = vunpack.c.l.b16 %v1698
    %v3265 = vunpack.c.h.b16 %v1698
    %v3266 = vunpack.c.l.b16 %v1699
    %v3267 = vunpack.c.h.b16 %v1699
    %v3268 = vunpack.c.l.b16 %v1700
    %v3269 = vunpack.c.h.b16 %v1700
    %v3270 = vunpack.c.l.b16 %v1701
    %v3271 = vunpack.c.h.b16 %v1701
    %v3272 = vunpack.c.l.b16 %v1702
    %v3273 = vunpack.c.h.b16 %v1702
    %v3274 = vunpack.c.l.b16 %v1703
    %v3275 = vunpack.c.h.b16 %v1703
    %v3276 = vunpack.c.l.b16 %v1704
    %v3277 = vunpack.c.h.b16 %v1704
    %v3278 = vunpack.c.l.b16 %v1705
    %v3279 = vunpack.c.h.b16 %v1705
    %v3280 = vunpack.c.l.b16 %v1706
    %v3281 = vunpack.c.h.b16 %v1706
    %v3282 = vunpack.c.l.b16 %v1707
    %v3283 = vunpack.c.h.b16 %v1707
    %v3284 = vunpack.c.l.b16 %v1708
    %v3285 = vunpack.c.h.b16 %v1708
    %v3286 = vunpack.c.l.b16 %v1709
    %v3287 = vunpack.c.h.b16 %v1709
    %v3288 = vpack.c.b16 %v2272, %v2264
    %v3289 = vpack.c.b16 %v2273, %v2265
    %v3290 = vpack.c.b16 %v2274, %v2266
    %v3291 = vpack.c.b16 %v2275, %v2267
    %v3292 = vpack.c.b16 %v2276, %v2268
    %v3293 = vpack.c.b16 %v2277, %v2269
    %v3294 = vpack.c.b16 %v2278, %v2270
    %v3295 = vpack.c.b16 %v2279, %v2271
    %v3296 = vpack.c.b16 %v2288, %v2280
    %v3297 = vpack.c.b16 %v2289, %v2281
    %v3298 = vpack.c.b16 %v2290, %v2282
    %v3299 = vpack.c.b16 %v2291, %v2283
    %v3300 = vpack.c.b16 %v2292, %v2284
    %v3301 = vpack.c.b16 %v2293, %v2285
    %v3302 = vpack.c.b16 %v2294, %v2286
    %v3303 = vpack.c.b16 %v2295, %v2287
    %v3304 = vpack.c.b16 %v2304, %v2296
    %v3305 = vpack.c.b16 %v2305, %v2297
    %v3306 = vpack.c.b16 %v2306, %v2298
    %v3307 = vpack.c.b16 %v2307, %v2299
    %v3308 = vpack.c.b16 %v2308, %v2300
    %v3309 = vpack.c.b16 %v2309, %v2301
    %v3310 = vpack.c.b16 %v2310, %v2302
    %v3311 = vpack.c.b16 %v2311, %v2303
    %v3312 = vpack.c.b16 %v2320, %v2312
    %v3313 = vpack.c.b16 %v2321, %v2313
    %v3314 = vpack.c.b16 %v2322, %v2314
    %v3315 = vpack.c.b16 %v2323, %v2315
    %v3316 = vpack.c.b16 %v2324, %v2316
    %v3317 = vpack.c.b16 %v2325, %v2317
    %v3318 = vpack.c.b16 %v2326, %v2318
    %v3319 = vpack.c.b16 %v2327, %v2319
    %v3320 = vpack.c.b16 %v2336, %v2328
    %v3321 = vpack.c.b16 %v2337, %v2329
    %v3322 = vpack.c.b16 %v2338, %v2330
    %v3323 = vpack.c.b16 %v2339, %v2331
    %v3324 = vpack.c.b16 %v2340, %v2332
    %v3325 = vpack.c.b16 %v2341, %v2333
    %v3326 = vpack.c.b16 %v2342, %v2334
    %v3327 = vpack.c.b16 %v2343, %v2335
    %v3328 = vpack.c.b16 %v2352, %v2344
    %v3329 = vpack.c.b16 %v2353, %v2345
    %v3330 = vpack.c.b16 %v2354, %v2346
    %v3331 = vpack.c.b16 %v2355, %v2347
    %v3332 = vpack.c.b16 %v2356, %v2348
    %v3333 = vpack.c.b16 %v2357, %v2349
    %v3334 = vpack.c.b16 %v2358, %v2350
    %v3335 = vpack.c.b16 %v2359, %v2351
    %v3336 = vpack.c.b16 %v2368, %v2360
    %v3337 = vpack.c.b16 %v2369, %v2361
    %v3338 = vpack.c.b16 %v2370, %v2362
    %v3339 = vpack.c.b16 %v2371, %v2363
    %v3340 = vpack.c.b16 %v2372, %v2364
    %v3341 = vpack.c.b16 %v2373, %v2365
    %v3342 = vpack.c.b16 %v2374, %v2366
    %v3343 = vpack.c.b16 %v2375, %v2367
    %v3344 = vpack.c.b16 %v2384, %v2376
    %v3345 = vpack.c.b16 %v2385, %v2377
    %v3346 = vpack.c.b16 %v2386, %v2378
    %v3347 = vpack.c.b16 %v2387, %v2379
    %v3348 = vpack.c.b16 %v2388, %v2380
    %v3349 = vpack.c.b16 %v2389, %v2381
    %v3350 = vpack.c.b16 %v2390, %v2382
    %v3351 = vpack.c.b16 %v2391, %v2383
    %v3352 = vpack.c.b16 %v2400, %v2392
    %v3353 = vpack.c.b16 %v2401, %v2393
    %v3354 = vpack.c.b16 %v2402, %v2394
    %v3355 = vpack.c.b16 %v2403, %v2395
    %v3356 = vpack.c.b16 %v2404, %v2396
    %v3357 = vpack.c.b16 %v2405, %v2397
    %v3358 = vpack.c.b16 %v2406, %v2398
    %v3359 = vpack.c.b16 %v2407, %v2399
    %v3360 = vpack.c.b16 %v2416, %v2408
    %v3361 = vpack.c.b16 %v2417, %v2409
    %v3362 = vpack.c.b16 %v2418, %v2410
    %v3363 = vpack.c.b16 %v2419, %v2411
    %v3364 = vpack.c.b16 %v2420, %v2412
    %v3365 = vpack.c.b16 %v2421, %v2413
    %v3366 = vpack.c.b16 %v2422, %v2414
    %v3367 = vpack.c.b16 %v2423, %v2415
    %v3368 = vpack.c.b16 %v2432, %v2424
    %v3369 = vpack.c.b16 %v2433, %v2425
    %v3370 = vpack.c.b16 %v2434, %v2426
    %v3371 = vpack.c.b16 %v2435, %v2427
    %v3372 = vpack.c.b16 %v2436, %v2428
    %v3373 = vpack.c.b16 %v2437, %v2429
    %v3374 = vpack.c.b16 %v2438, %v2430
    %v3375 = vpack.c.b16 %v2439, %v2431
    %v3376 = vpack.c.b16 %v2448, %v2440
    %v3377 = vpack.c.b16 %v2449, %v2441
    %v3378 = vpack.c.b16 %v2450, %v2442
    %v3379 = vpack.c.b16 %v2451, %v2443
    %v3380 = vpack.c.b16 %v2452, %v2444
    %v3381 = vpack.c.b16 %v2453, %v2445
    %v3382 = vpack.c.b16 %v2454, %v2446
    %v3383 = vpack.c.b16 %v2455, %v2447
    %v3384 = vpack.c.b16 %v2464, %v2456
    %v3385 = vpack.c.b16 %v2465, %v2457
    %v3386 = vpack.c.b16 %v2466, %v2458
    %v3387 = vpack.c.b16 %v2467, %v2459
    %v3388 = vpack.c.b16 %v2468, %v2460
    %v3389 = vpack.c.b16 %v2469, %v2461
    %v3390 = vpack.c.b16 %v2470, %v2462
    %v3391 = vpack.c.b16 %v2471, %v2463
    %v3392 = vpack.c.b16 %v2480, %v2472
    %v3393 = vpack.c.b16 %v2481, %v2473
    %v3394 = vpack.c.b16 %v2482, %v2474
    %v3395 = vpack.c.b16 %v2483, %v2475
    %v3396 = vpack.c.b16 %v2484, %v2476
    %v3397 = vpack.c.b16 %v2485, %v2477
    %v3398 = vpack.c.b16 %v2486, %v2478
    %v3399 = vpack.c.b16 %v2487, %v2479
    %v3400 = vpack.c.b16 %v2496, %v2488
    %v3401 = vpack.c.b16 %v2497, %v2489
    %v3402 = vpack.c.b16 %v2498, %v2490
    %v3403 = vpack.c.b16 %v2499, %v2491
    %v3404 = vpack.c.b16 %v2500, %v2492
    %v3405 = vpack.c.b16 %v2501, %v2493
    %v3406 = vpack.c.b16 %v2502, %v2494
    %v3407 = vpack.c.b16 %v2503, %v2495
    %v3408 = vpack.c.b16 %v2512, %v2504
    %v3409 = vpack.c.b16 %v2513, %v2505
    %v3410 = vpack.c.b16 %v2514, %v2506
    %v3411 = vpack.c.b16 %v2515, %v2507
    %v3412 = vpack.c.b16 %v2516, %v2508
    %v3413 = vpack.c.b16 %v2517, %v2509
    %v3414 = vpack.c.b16 %v2518, %v2510
    %v3415 = vpack.c.b16 %v2519, %v2511
    %v3416 = vpack.c.b16 %v2528, %v2520
    %v3417 = vpack.c.b16 %v2529, %v2521
    %v3418 = vpack.c.b16 %v2530, %v2522
    %v3419 = vpack.c.b16 %v2531, %v2523
    %v3420 = vpack.c.b16 %v2532, %v2524
    %v3421 = vpack.c.b16 %v2533, %v2525
    %v3422 = vpack.c.b16 %v2534, %v2526
    %v3423 = vpack.c.b16 %v2535, %v2527
    %v3424 = vpack.c.b16 %v2544, %v2536
    %v3425 = vpack.c.b16 %v2545, %v2537
    %v3426 = vpack.c.b16 %v2546, %v2538
    %v3427 = vpack.c.b16 %v2547, %v2539
    %v3428 = vpack.c.b16 %v2548, %v2540
    %v3429 = vpack.c.b16 %v2549, %v2541
    %v3430 = vpack.c.b16 %v2550, %v2542
    %v3431 = vpack.c.b16 %v2551, %v2543
    %v3432 = vpack.c.b16 %v2560, %v2552
    %v3433 = vpack.c.b16 %v2561, %v2553
    %v3434 = vpack.c.b16 %v2562, %v2554
    %v3435 = vpack.c.b16 %v2563, %v2555
    %v3436 = vpack.c.b16 %v2564, %v2556
    %v3437 = vpack.c.b16 %v2565, %v2557
    %v3438 = vpack.c.b16 %v2566, %v2558
    %v3439 = vpack.c.b16 %v2567, %v2559
    %v3440 = vpack.c.b16 %v2576, %v2568
    %v3441 = vpack.c.b16 %v2577, %v2569
    %v3442 = vpack.c.b16 %v2578, %v2570
    %v3443 = vpack.c.b16 %v2579, %v2571
    %v3444 = vpack.c.b16 %v2580, %v2572
    %v3445 = vpack.c.b16 %v2581, %v2573
    %v3446 = vpack.c.b16 %v2582, %v2574
    %v3447 = vpack.c.b16 %v2583, %v2575
    %v3448 = vpack.c.b16 %v2592, %v2584
    %v3449 = vpack.c.b16 %v2593, %v2585
    %v3450 = vpack.c.b16 %v2594, %v2586
    %v3451 = vpack.c.b16 %v2595, %v2587
    %v3452 = vpack.c.b16 %v2596, %v2588
    %v3453 = vpack.c.b16 %v2597, %v2589
    %v3454 = vpack.c.b16 %v2598, %v2590
    %v3455 = vpack.c.b16 %v2599, %v2591
    %v3456 = vpack.c.b16 %v2608, %v2600
    %v3457 = vpack.c.b16 %v2609, %v2601
    %v3458 = vpack.c.b16 %v2610, %v2602
    %v3459 = vpack.c.b16 %v2611, %v2603
    %v3460 = vpack.c.b16 %v2612, %v2604
    %v3461 = vpack.c.b16 %v2613, %v2605
    %v3462 = vpack.c.b16 %v2614, %v2606
    %v3463 = vpack.c.b16 %v2615, %v2607
    %v3464 = vpack.c.b16 %v2624, %v2616
    %v3465 = vpack.c.b16 %v2625, %v2617
    %v3466 = vpack.c.b16 %v2626, %v2618
    %v3467 = vpack.c.b16 %v2627, %v2619
    %v3468 = vpack.c.b16 %v2628, %v2620
    %v3469 = vpack.c.b16 %v2629, %v2621
    %v3470 = vpack.c.b16 %v2630, %v2622
    %v3471 = vpack.c.b16 %v2631, %v2623
    %v3472 = vpack.c.b16 %v2640, %v2632
    %v3473 = vpack.c.b16 %v2641, %v2633
    %v3474 = vpack.c.b16 %v2642, %v2634
    %v3475 = vpack.c.b16 %v2643, %v2635
    %v3476 = vpack.c.b16 %v2644, %v2636
    %v3477 = vpack.c.b16 %v2645, %v2637
    %v3478 = vpack.c.b16 %v2646, %v2638
    %v3479 = vpack.c.b16 %v2647, %v2639
    %v3480 = vpack.c.b16 %v2656, %v2648
    %v3481 = vpack.c.b16 %v2657, %v2649
    %v3482 = vpack.c.b16 %v2658, %v2650
    %v3483 = vpack.c.b16 %v2659, %v2651
    %v3484 = vpack.c.b16 %v2660, %v2652
    %v3485 = vpack.c.b16 %v2661, %v2653
    %v3486 = vpack.c.b16 %v2662, %v2654
    %v3487 = vpack.c.b16 %v2663, %v2655
    %v3488 = vpack.c.b16 %v2672, %v2664
    %v3489 = vpack.c.b16 %v2673, %v2665
    %v3490 = vpack.c.b16 %v2674, %v2666
    %v3491 = vpack.c.b16 %v2675, %v2667
    %v3492 = vpack.c.b16 %v2676, %v2668
    %v3493 = vpack.c.b16 %v2677, %v2669
    %v3494 = vpack.c.b16 %v2678, %v2670
    %v3495 = vpack.c.b16 %v2679, %v2671
    %v3496 = vpack.c.b16 %v2688, %v2680
    %v3497 = vpack.c.b16 %v2689, %v2681
    %v3498 = vpack.c.b16 %v2690, %v2682
    %v3499 = vpack.c.b16 %v2691, %v2683
    %v3500 = vpack.c.b16 %v2692, %v2684
    %v3501 = vpack.c.b16 %v2693, %v2685
    %v3502 = vpack.c.b16 %v2694, %v2686
    %v3503 = vpack.c.b16 %v2695, %v2687
    %v3504 = vpack.c.b16 %v2704, %v2696
    %v3505 = vpack.c.b16 %v2705, %v2697
    %v3506 = vpack.c.b16 %v2706, %v2698
    %v3507 = vpack.c.b16 %v2707, %v2699
    %v3508 = vpack.c.b16 %v2708, %v2700
    %v3509 = vpack.c.b16 %v2709, %v2701
    %v3510 = vpack.c.b16 %v2710, %v2702
    %v3511 = vpack.c.b16 %v2711, %v2703
    %v3512 = vpack.c.b16 %v2720, %v2712
    %v3513 = vpack.c.b16 %v2721, %v2713
    %v3514 = vpack.c.b16 %v2722, %v2714
    %v3515 = vpack.c.b16 %v2723, %v2715
    %v3516 = vpack.c.b16 %v2724, %v2716
    %v3517 = vpack.c.b16 %v2725, %v2717
    %v3518 = vpack.c.b16 %v2726, %v2718
    %v3519 = vpack.c.b16 %v2727, %v2719
    %v3520 = vpack.c.b16 %v2736, %v2728
    %v3521 = vpack.c.b16 %v2737, %v2729
    %v3522 = vpack.c.b16 %v2738, %v2730
    %v3523 = vpack.c.b16 %v2739, %v2731
    %v3524 = vpack.c.b16 %v2740, %v2732
    %v3525 = vpack.c.b16 %v2741, %v2733
    %v3526 = vpack.c.b16 %v2742, %v2734
    %v3527 = vpack.c.b16 %v2743, %v2735
    %v3528 = vpack.c.b16 %v2752, %v2744
    %v3529 = vpack.c.b16 %v2753, %v2745
    %v3530 = vpack.c.b16 %v2754, %v2746
    %v3531 = vpack.c.b16 %v2755, %v2747
    %v3532 = vpack.c.b16 %v2756, %v2748
    %v3533 = vpack.c.b16 %v2757, %v2749
    %v3534 = vpack.c.b16 %v2758, %v2750
    %v3535 = vpack.c.b16 %v2759, %v2751
    %v3536 = vpack.c.b16 %v2768, %v2760
    %v3537 = vpack.c.b16 %v2769, %v2761
    %v3538 = vpack.c.b16 %v2770, %v2762
    %v3539 = vpack.c.b16 %v2771, %v2763
    %v3540 = vpack.c.b16 %v2772, %v2764
    %v3541 = vpack.c.b16 %v2773, %v2765
    %v3542 = vpack.c.b16 %v2774, %v2766
    %v3543 = vpack.c.b16 %v2775, %v2767
    %v3544 = vpack.c.b16 %v2784, %v2776
    %v3545 = vpack.c.b16 %v2785, %v2777
    %v3546 = vpack.c.b16 %v2786, %v2778
    %v3547 = vpack.c.b16 %v2787, %v2779
    %v3548 = vpack.c.b16 %v2788, %v2780
    %v3549 = vpack.c.b16 %v2789, %v2781
    %v3550 = vpack.c.b16 %v2790, %v2782
    %v3551 = vpack.c.b16 %v2791, %v2783
    %v3552 = vpack.c.b16 %v2800, %v2792
    %v3553 = vpack.c.b16 %v2801, %v2793
    %v3554 = vpack.c.b16 %v2802, %v2794
    %v3555 = vpack.c.b16 %v2803, %v2795
    %v3556 = vpack.c.b16 %v2804, %v2796
    %v3557 = vpack.c.b16 %v2805, %v2797
    %v3558 = vpack.c.b16 %v2806, %v2798
    %v3559 = vpack.c.b16 %v2807, %v2799
    %v3560 = vpack.c.b16 %v2816, %v2808
    %v3561 = vpack.c.b16 %v2817, %v2809
    %v3562 = vpack.c.b16 %v2818, %v2810
    %v3563 = vpack.c.b16 %v2819, %v2811
    %v3564 = vpack.c.b16 %v2820, %v2812
    %v3565 = vpack.c.b16 %v2821, %v2813
    %v3566 = vpack.c.b16 %v2822, %v2814
    %v3567 = vpack.c.b16 %v2823, %v2815
    %v3568 = vpack.c.b16 %v2832, %v2824
    %v3569 = vpack.c.b16 %v2833, %v2825
    %v3570 = vpack.c.b16 %v2834, %v2826
    %v3571 = vpack.c.b16 %v2835, %v2827
    %v3572 = vpack.c.b16 %v2836, %v2828
    %v3573 = vpack.c.b16 %v2837, %v2829
    %v3574 = vpack.c.b16 %v2838, %v2830
    %v3575 = vpack.c.b16 %v2839, %v2831
    %v3576 = vpack.c.b16 %v2848, %v2840
    %v3577 = vpack.c.b16 %v2849, %v2841
    %v3578 = vpack.c.b16 %v2850, %v2842
    %v3579 = vpack.c.b16 %v2851, %v2843
    %v3580 = vpack.c.b16 %v2852, %v2844
    %v3581 = vpack.c.b16 %v2853, %v2845
    %v3582 = vpack.c.b16 %v2854, %v2846
    %v3583 = vpack.c.b16 %v2855, %v2847
    %v3584 = vpack.c.b16 %v2864, %v2856
    %v3585 = vpack.c.b16 %v2865, %v2857
    %v3586 = vpack.c.b16 %v2866, %v2858
    %v3587 = vpack.c.b16 %v2867, %v2859
    %v3588 = vpack.c.b16 %v2868, %v2860
    %v3589 = vpack.c.b16 %v2869, %v2861
    %v3590 = vpack.c.b16 %v2870, %v2862
    %v3591 = vpack.c.b16 %v2871, %v2863
    %v3592 = vpack.c.b16 %v2880, %v2872
    %v3593 = vpack.c.b16 %v2881, %v2873
    %v3594 = vpack.c.b16 %v2882, %v2874
    %v3595 = vpack.c.b16 %v2883, %v2875
    %v3596 = vpack.c.b16 %v2884, %v2876
    %v3597 = vpack.c.b16 %v2885, %v2877
    %v3598 = vpack.c.b16 %v2886, %v2878
    %v3599 = vpack.c.b16 %v2887, %v2879
    %v3600 = vpack.c.b16 %v2896, %v2888
    %v3601 = vpack.c.b16 %v2897, %v2889
    %v3602 = vpack.c.b16 %v2898, %v2890
    %v3603 = vpack.c.b16 %v2899, %v2891
    %v3604 = vpack.c.b16 %v2900, %v2892
    %v3605 = vpack.c.b16 %v2901, %v2893
    %v3606 = vpack.c.b16 %v2902, %v2894
    %v3607 = vpack.c.b16 %v2903, %v2895
    %v3608 = vpack.c.b16 %v2912, %v2904
    %v3609 = vpack.c.b16 %v2913, %v2905
    %v3610 = vpack.c.b16 %v2914, %v2906
    %v3611 = vpack.c.b16 %v2915, %v2907
    %v3612 = vpack.c.b16 %v2916, %v2908
    %v3613 = vpack.c.b16 %v2917, %v2909
    %v3614 = vpack.c.b16 %v2918, %v2910
    %v3615 = vpack.c.b16 %v2919, %v2911
    %v3616 = vpack.c.b16 %v2928, %v2920
    %v3617 = vpack.c.b16 %v2929, %v2921
    %v3618 = vpack.c.b16 %v2930, %v2922
    %v3619 = vpack.c.b16 %v2931, %v2923
    %v3620 = vpack.c.b16 %v2932, %v2924
    %v3621 = vpack.c.b16 %v2933, %v2925
    %v3622 = vpack.c.b16 %v2934, %v2926
    %v3623 = vpack.c.b16 %v2935, %v2927
    %v3624 = vpack.c.b16 %v2944, %v2936
    %v3625 = vpack.c.b16 %v2945, %v2937
    %v3626 = vpack.c.b16 %v2946, %v2938
    %v3627 = vpack.c.b16 %v2947, %v2939
    %v3628 = vpack.c.b16 %v2948, %v2940
    %v3629 = vpack.c.b16 %v2949, %v2941
    %v3630 = vpack.c.b16 %v2950, %v2942
    %v3631 = vpack.c.b16 %v2951, %v2943
    %v3632 = vpack.c.b16 %v2960, %v2952
    %v3633 = vpack.c.b16 %v2961, %v2953
    %v3634 = vpack.c.b16 %v2962, %v2954
    %v3635 = vpack.c.b16 %v2963, %v2955
    %v3636 = vpack.c.b16 %v2964, %v2956
    %v3637 = vpack.c.b16 %v2965, %v2957
    %v3638 = vpack.c.b16 %v2966, %v2958
    %v3639 = vpack.c.b16 %v2967, %v2959
    %v3640 = vpack.c.b16 %v2976, %v2968
    %v3641 = vpack.c.b16 %v2977, %v2969
    %v3642 = vpack.c.b16 %v2978, %v2970
    %v3643 = vpack.c.b16 %v2979, %v2971
    %v3644 = vpack.c.b16 %v2980, %v2972
    %v3645 = vpack.c.b16 %v2981, %v2973
    %v3646 = vpack.c.b16 %v2982, %v2974
    %v3647 = vpack.c.b16 %v2983, %v2975
    %v3648 = vpack.c.b16 %v2992, %v2984
    %v3649 = vpack.c.b16 %v2993, %v2985
    %v3650 = vpack.c.b16 %v2994, %v2986
    %v3651 = vpack.c.b16 %v2995, %v2987
    %v3652 = vpack.c.b16 %v2996, %v2988
    %v3653 = vpack.c.b16 %v2997, %v2989
    %v3654 = vpack.c.b16 %v2998, %v2990
    %v3655 = vpack.c.b16 %v2999, %v2991
    %v3656 = vpack.c.b16 %v3008, %v3000
    %v3657 = vpack.c.b16 %v3009, %v3001
    %v3658 = vpack.c.b16 %v3010, %v3002
    %v3659 = vpack.c.b16 %v3011, %v3003
    %v3660 = vpack.c.b16 %v3012, %v3004
    %v3661 = vpack.c.b16 %v3013, %v3005
    %v3662 = vpack.c.b16 %v3014, %v3006
    %v3663 = vpack.c.b16 %v3015, %v3007
    %v3664 = vpack.c.b16 %v3024, %v3016
    %v3665 = vpack.c.b16 %v3025, %v3017
    %v3666 = vpack.c.b16 %v3026, %v3018
    %v3667 = vpack.c.b16 %v3027, %v3019
    %v3668 = vpack.c.b16 %v3028, %v3020
    %v3669 = vpack.c.b16 %v3029, %v3021
    %v3670 = vpack.c.b16 %v3030, %v3022
    %v3671 = vpack.c.b16 %v3031, %v3023
    %v3672 = vpack.c.b16 %v3040, %v3032
    %v3673 = vpack.c.b16 %v3041, %v3033
    %v3674 = vpack.c.b16 %v3042, %v3034
    %v3675 = vpack.c.b16 %v3043, %v3035
    %v3676 = vpack.c.b16 %v3044, %v3036
    %v3677 = vpack.c.b16 %v3045, %v3037
    %v3678 = vpack.c.b16 %v3046, %v3038
    %v3679 = vpack.c.b16 %v3047, %v3039
    %v3680 = vpack.c.b16 %v3056, %v3048
    %v3681 = vpack.c.b16 %v3057, %v3049
    %v3682 = vpack.c.b16 %v3058, %v3050
    %v3683 = vpack.c.b16 %v3059, %v3051
    %v3684 = vpack.c.b16 %v3060, %v3052
    %v3685 = vpack.c.b16 %v3061, %v3053
    %v3686 = vpack.c.b16 %v3062, %v3054
    %v3687 = vpack.c.b16 %v3063, %v3055
    %v3688 = vpack.c.b16 %v3072, %v3064
    %v3689 = vpack.c.b16 %v3073, %v3065
    %v3690 = vpack.c.b16 %v3074, %v3066
    %v3691 = vpack.c.b16 %v3075, %v3067
    %v3692 = vpack.c.b16 %v3076, %v3068
    %v3693 = vpack.c.b16 %v3077, %v3069
    %v3694 = vpack.c.b16 %v3078, %v3070
    %v3695 = vpack.c.b16 %v3079, %v3071
    %v3696 = vpack.c.b16 %v3088, %v3080
    %v3697 = vpack.c.b16 %v3089, %v3081
    %v3698 = vpack.c.b16 %v3090, %v3082
    %v3699 = vpack.c.b16 %v3091, %v3083
    %v3700 = vpack.c.b16 %v3092, %v3084
    %v3701 = vpack.c.b16 %v3093, %v3085
    %v3702 = vpack.c.b16 %v3094, %v3086
    %v3703 = vpack.c.b16 %v3095, %v3087
    %v3704 = vpack.c.b16 %v3104, %v3096
    %v3705 = vpack.c.b16 %v3105, %v3097
    %v3706 = vpack.c.b16 %v3106, %v3098
    %v3707 = vpack.c.b16 %v3107, %v3099
    %v3708 = vpack.c.b16 %v3108, %v3100
    %v3709 = vpack.c.b16 %v3109, %v3101
    %v3710 = vpack.c.b16 %v3110, %v3102
    %v3711 = vpack.c.b16 %v3111, %v3103
    %v3712 = vpack.c.b16 %v3120, %v3112
    %v3713 = vpack.c.b16 %v3121, %v3113
    %v3714 = vpack.c.b16 %v3122, %v3114
    %v3715 = vpack.c.b16 %v3123, %v3115
    %v3716 = vpack.c.b16 %v3124, %v3116
    %v3717 = vpack.c.b16 %v3125, %v3117
    %v3718 = vpack.c.b16 %v3126, %v3118
    %v3719 = vpack.c.b16 %v3127, %v3119
    %v3720 = vpack.c.b16 %v3136, %v3128
    %v3721 = vpack.c.b16 %v3137, %v3129
    %v3722 = vpack.c.b16 %v3138, %v3130
    %v3723 = vpack.c.b16 %v3139, %v3131
    %v3724 = vpack.c.b16 %v3140, %v3132
    %v3725 = vpack.c.b16 %v3141, %v3133
    %v3726 = vpack.c.b16 %v3142, %v3134
    %v3727 = vpack.c.b16 %v3143, %v3135
    %v3728 = vpack.c.b16 %v3152, %v3144
    %v3729 = vpack.c.b16 %v3153, %v3145
    %v3730 = vpack.c.b16 %v3154, %v3146
    %v3731 = vpack.c.b16 %v3155, %v3147
    %v3732 = vpack.c.b16 %v3156, %v3148
    %v3733 = vpack.c.b16 %v3157, %v3149
    %v3734 = vpack.c.b16 %v3158, %v3150
    %v3735 = vpack.c.b16 %v3159, %v3151
    %v3736 = vpack.c.b16 %v3168, %v3160
    %v3737 = vpack.c.b16 %v3169, %v3161
    %v3738 = vpack.c.b16 %v3170, %v3162
    %v3739 = vpack.c.b16 %v3171, %v3163
    %v3740 = vpack.c.b16 %v3172, %v3164
    %v3741 = vpack.c.b16 %v3173, %v3165
    %v3742 = vpack.c.b16 %v3174, %v3166
    %v3743 = vpack.c.b16 %v3175, %v3167
    %v3744 = vpack.c.b16 %v3184, %v3176
    %v3745 = vpack.c.b16 %v3185, %v3177
    %v3746 = vpack.c.b16 %v3186, %v3178
    %v3747 = vpack.c.b16 %v3187, %v3179
    %v3748 = vpack.c.b16 %v3188, %v3180
    %v3749 = vpack.c.b16 %v3189, %v3181
    %v3750 = vpack.c.b16 %v3190, %v3182
    %v3751 = vpack.c.b16 %v3191, %v3183
    %v3752 = vpack.c.b16 %v3200, %v3192
    %v3753 = vpack.c.b16 %v3201, %v3193
    %v3754 = vpack.c.b16 %v3202, %v3194
    %v3755 = vpack.c.b16 %v3203, %v3195
    %v3756 = vpack.c.b16 %v3204, %v3196
    %v3757 = vpack.c.b16 %v3205, %v3197
    %v3758 = vpack.c.b16 %v3206, %v3198
    %v3759 = vpack.c.b16 %v3207, %v3199
    %v3760 = vpack.c.b16 %v3216, %v3208
    %v3761 = vpack.c.b16 %v3217, %v3209
    %v3762 = vpack.c.b16 %v3218, %v3210
    %v3763 = vpack.c.b16 %v3219, %v3211
    %v3764 = vpack.c.b16 %v3220, %v3212
    %v3765 = vpack.c.b16 %v3221, %v3213
    %v3766 = vpack.c.b16 %v3222, %v3214
    %v3767 = vpack.c.b16 %v3223, %v3215
    %v3768 = vpack.c.b16 %v3232, %v3224
    %v3769 = vpack.c.b16 %v3233, %v3225
    %v3770 = vpack.c.b16 %v3234, %v3226
    %v3771 = vpack.c.b16 %v3235, %v3227
    %v3772 = vpack.c.b16 %v3236, %v3228
    %v3773 = vpack.c.b16 %v3237, %v3229
    %v3774 = vpack.c.b16 %v3238, %v3230
    %v3775 = vpack.c.b16 %v3239, %v3231
    %v3776 = vpack.c.b16 %v3248, %v3240
    %v3777 = vpack.c.b16 %v3249, %v3241
    %v3778 = vpack.c.b16 %v3250, %v3242
    %v3779 = vpack.c.b16 %v3251, %v3243
    %v3780 = vpack.c.b16 %v3252, %v3244
    %v3781 = vpack.c.b16 %v3253, %v3245
    %v3782 = vpack.c.b16 %v3254, %v3246
    %v3783 = vpack.c.b16 %v3255, %v3247
    %v3784 = vpack.c.b16 %v3264, %v3256
    %v3785 = vpack.c.b16 %v3265, %v3257
    %v3786 = vpack.c.b16 %v3266, %v3258
    %v3787 = vpack.c.b16 %v3267, %v3259
    %v3788 = vpack.c.b16 %v3268, %v3260
    %v3789 = vpack.c.b16 %v3269, %v3261
    %v3790 = vpack.c.b16 %v3270, %v3262
    %v3791 = vpack.c.b16 %v3271, %v3263
    %v3792 = vpack.c.b16 %v3280, %v3272
    %v3793 = vpack.c.b16 %v3281, %v3273
    %v3794 = vpack.c.b16 %v3282, %v3274
    %v3795 = vpack.c.b16 %v3283, %v3275
    %v3796 = vpack.c.b16 %v3284, %v3276
    %v3797 = vpack.c.b16 %v3285, %v3277
    %v3798 = vpack.c.b16 %v3286, %v3278
    %v3799 = vpack.c.b16 %v3287, %v3279
    %4312 = vmatprep.subr.bf16.mxu0 %v3289
    %4313 = vmatpush1.bf16.msra.mxu0 %v3288
    %4314 = vmatprep.subr.bf16.mxu0 %v3297
    %4315 = vmatpush1.bf16.msra.mxu0 %v3296
    %4316 = vmatprep.subr.bf16.mxu0 %v3305
    %4317 = vmatpush1.bf16.msra.mxu0 %v3304
    %4318 = vmatprep.subr.bf16.mxu0 %v3313
    %4319 = vmatpush1.bf16.msra.mxu0 %v3312
    %4320 = vmatprep.subr.bf16.mxu0 %v3321
    %4321 = vmatpush1.bf16.msra.mxu0 %v3320
    %4322 = vmatprep.subr.bf16.mxu0 %v3329
    %4323 = vmatpush1.bf16.msra.mxu0 %v3328
    %4324 = vmatprep.subr.bf16.mxu0 %v3337
    %4325 = vmatpush1.bf16.msra.mxu0 %v3336
    %4326 = vmatprep.subr.bf16.mxu0 %v3345
    %4327 = vmatpush1.bf16.msra.mxu0 %v3344
    %4328 = vmatprep.subr.bf16.mxu0 %v3353
    %4329 = vmatpush1.bf16.msra.mxu0 %v3352
    %4330 = vmatprep.subr.bf16.mxu0 %v3361
    %4331 = vmatpush1.bf16.msra.mxu0 %v3360
    %4332 = vmatprep.subr.bf16.mxu0 %v3369
    %4333 = vmatpush1.bf16.msra.mxu0 %v3368
    %4334 = vmatprep.subr.bf16.mxu0 %v3377
    %4335 = vmatpush1.bf16.msra.mxu0 %v3376
    %4336 = vmatprep.subr.bf16.mxu0 %v3385
    %4337 = vmatpush1.bf16.msra.mxu0 %v3384
    %4338 = vmatprep.subr.bf16.mxu0 %v3393
    %4339 = vmatpush1.bf16.msra.mxu0 %v3392
    %4340 = vmatprep.subr.bf16.mxu0 %v3401
    %4341 = vmatpush1.bf16.msra.mxu0 %v3400
    %4342 = vmatprep.subr.bf16.mxu0 %v3409
    %4343 = vmatpush1.bf16.msra.mxu0 %v3408
    %4344 = vmatprep.mubr.bf16.mxu0 %v1191
    %4345 = vmatmul.mubr.bf16.gmra.mrb[0].mxu0 %v1190
    %v4346 = vpop.f32.mrb[0].mxu0
    %v4347 = vadd.f32 %v1715, %v4346
    %v4348 = vpop.f32.mrb[0].mxu0
    %v4349 = vadd.f32 %v1719, %v4348
    %v4350 = vpop.f32.mrb[0].mxu0
    %v4351 = vpop.f32.mrb[0].mxu0
    %4352 = vdwg.mxu0
    %4353 = vmatprep.subr.bf16.mxu0 %v3417
    %4354 = vmatpush1.bf16.msra.mxu0 %v3416
    %4355 = vmatprep.subr.bf16.mxu0 %v3425
    %4356 = vmatpush1.bf16.msra.mxu0 %v3424
    %4357 = vmatprep.subr.bf16.mxu0 %v3433
    %4358 = vmatpush1.bf16.msra.mxu0 %v3432
    %4359 = vmatprep.subr.bf16.mxu0 %v3441
    %4360 = vmatpush1.bf16.msra.mxu0 %v3440
    %4361 = vmatprep.subr.bf16.mxu0 %v3449
    %4362 = vmatpush1.bf16.msra.mxu0 %v3448
    %4363 = vmatprep.subr.bf16.mxu0 %v3457
    %4364 = vmatpush1.bf16.msra.mxu0 %v3456
    %4365 = vmatprep.subr.bf16.mxu0 %v3465
    %4366 = vmatpush1.bf16.msra.mxu0 %v3464
    %4367 = vmatprep.subr.bf16.mxu0 %v3473
    %4368 = vmatpush1.bf16.msra.mxu0 %v3472
    %4369 = vmatprep.subr.bf16.mxu0 %v3481
    %4370 = vmatpush1.bf16.msra.mxu0 %v3480
    %4371 = vmatprep.subr.bf16.mxu0 %v3489
    %4372 = vmatpush1.bf16.msra.mxu0 %v3488
    %4373 = vmatprep.subr.bf16.mxu0 %v3497
    %4374 = vmatpush1.bf16.msra.mxu0 %v3496
    %4375 = vmatprep.subr.bf16.mxu0 %v3505
    %4376 = vmatpush1.bf16.msra.mxu0 %v3504
    %4377 = vmatprep.subr.bf16.mxu0 %v3513
    %4378 = vmatpush1.bf16.msra.mxu0 %v3512
    %4379 = vmatprep.subr.bf16.mxu0 %v3521
    %4380 = vmatpush1.bf16.msra.mxu0 %v3520
    %4381 = vmatprep.subr.bf16.mxu0 %v3529
    %4382 = vmatpush1.bf16.msra.mxu0 %v3528
    %4383 = vmatprep.subr.bf16.mxu0 %v3537
    %4384 = vmatpush1.bf16.msra.mxu0 %v3536
    %4385 = vmatprep.mubr.bf16.mxu0 %v1193
    %4386 = vmatmul.mubr.bf16.gmra.mrb[0].mxu0 %v1192
    %v4387 = vpop.f32.mrb[0].mxu0
    %v4388 = vadd.f32 %v4347, %v4387
    %v4389 = vpop.f32.mrb[0].mxu0
    %v4390 = vadd.f32 %v4349, %v4389
    %v4391 = vpop.f32.mrb[0].mxu0
    %v4392 = vpop.f32.mrb[0].mxu0
    %4393 = vdwg.mxu0
    %4394 = vmatprep.subr.bf16.mxu0 %v3545
    %4395 = vmatpush1.bf16.msra.mxu0 %v3544
    %4396 = vmatprep.subr.bf16.mxu0 %v3553
    %4397 = vmatpush1.bf16.msra.mxu0 %v3552
    %4398 = vmatprep.subr.bf16.mxu0 %v3561
    %4399 = vmatpush1.bf16.msra.mxu0 %v3560
    %4400 = vmatprep.subr.bf16.mxu0 %v3569
    %4401 = vmatpush1.bf16.msra.mxu0 %v3568
    %4402 = vmatprep.subr.bf16.mxu0 %v3577
    %4403 = vmatpush1.bf16.msra.mxu0 %v3576
    %4404 = vmatprep.subr.bf16.mxu0 %v3585
    %4405 = vmatpush1.bf16.msra.mxu0 %v3584
    %4406 = vmatprep.subr.bf16.mxu0 %v3593
    %4407 = vmatpush1.bf16.msra.mxu0 %v3592
    %4408 = vmatprep.subr.bf16.mxu0 %v3601
    %4409 = vmatpush1.bf16.msra.mxu0 %v3600
    %4410 = vmatprep.subr.bf16.mxu0 %v3609
    %4411 = vmatpush1.bf16.msra.mxu0 %v3608
    %4412 = vmatprep.subr.bf16.mxu0 %v3617
    %4413 = vmatpush1.bf16.msra.mxu0 %v3616
    %4414 = vmatprep.subr.bf16.mxu0 %v3625
    %4415 = vmatpush1.bf16.msra.mxu0 %v3624
    %4416 = vmatprep.subr.bf16.mxu0 %v3633
    %4417 = vmatpush1.bf16.msra.mxu0 %v3632
    %4418 = vmatprep.subr.bf16.mxu0 %v3641
    %4419 = vmatpush1.bf16.msra.mxu0 %v3640
    %4420 = vmatprep.subr.bf16.mxu0 %v3649
    %4421 = vmatpush1.bf16.msra.mxu0 %v3648
    %4422 = vmatprep.subr.bf16.mxu0 %v3657
    %4423 = vmatpush1.bf16.msra.mxu0 %v3656
    %4424 = vmatprep.subr.bf16.mxu0 %v3665
    %4425 = vmatpush1.bf16.msra.mxu0 %v3664
    %4426 = vmatprep.mubr.bf16.mxu0 %v1195
    %4427 = vmatmul.mubr.bf16.gmra.mrb[0].mxu0 %v1194
    %v4428 = vpop.f32.mrb[0].mxu0
    %v4429 = vadd.f32 %v4388, %v4428
    %v4430 = vpop.f32.mrb[0].mxu0
    %v4431 = vadd.f32 %v4390, %v4430
    %v4432 = vpop.f32.mrb[0].mxu0
    %v4433 = vpop.f32.mrb[0].mxu0
    %4434 = vdwg.mxu0
    %4435 = vmatprep.subr.bf16.mxu0 %v3673
    %4436 = vmatpush1.bf16.msra.mxu0 %v3672
    %4437 = vmatprep.subr.bf16.mxu0 %v3681
    %4438 = vmatpush1.bf16.msra.mxu0 %v3680
    %4439 = vmatprep.subr.bf16.mxu0 %v3689
    %4440 = vmatpush1.bf16.msra.mxu0 %v3688
    %4441 = vmatprep.subr.bf16.mxu0 %v3697
    %4442 = vmatpush1.bf16.msra.mxu0 %v3696
    %4443 = vmatprep.subr.bf16.mxu0 %v3705
    %4444 = vmatpush1.bf16.msra.mxu0 %v3704
    %4445 = vmatprep.subr.bf16.mxu0 %v3713
    %4446 = vmatpush1.bf16.msra.mxu0 %v3712
    %4447 = vmatprep.subr.bf16.mxu0 %v3721
    %4448 = vmatpush1.bf16.msra.mxu0 %v3720
    %4449 = vmatprep.subr.bf16.mxu0 %v3729
    %4450 = vmatpush1.bf16.msra.mxu0 %v3728
    %4451 = vmatprep.subr.bf16.mxu0 %v3737
    %4452 = vmatpush1.bf16.msra.mxu0 %v3736
    %4453 = vmatprep.subr.bf16.mxu0 %v3745
    %4454 = vmatpush1.bf16.msra.mxu0 %v3744
    %4455 = vmatprep.subr.bf16.mxu0 %v3753
    %4456 = vmatpush1.bf16.msra.mxu0 %v3752
    %4457 = vmatprep.subr.bf16.mxu0 %v3761
    %4458 = vmatpush1.bf16.msra.mxu0 %v3760
    %4459 = vmatprep.subr.bf16.mxu0 %v3769
    %4460 = vmatpush1.bf16.msra.mxu0 %v3768
    %4461 = vmatprep.subr.bf16.mxu0 %v3777
    %4462 = vmatpush1.bf16.msra.mxu0 %v3776
    %4463 = vmatprep.subr.bf16.mxu0 %v3785
    %4464 = vmatpush1.bf16.msra.mxu0 %v3784
    %4465 = vmatprep.subr.bf16.mxu0 %v3793
    %4466 = vmatpush1.bf16.msra.mxu0 %v3792
    %4467 = vmatprep.mubr.bf16.mxu0 %v1197
    %4468 = vmatmul.mubr.bf16.gmra.mrb[0].mxu0 %v1196
    %v4469 = vpop.f32.mrb[0].mxu0
    %v4470 = vadd.f32 %v4429, %v4469
    %v4471 = vpop.f32.mrb[0].mxu0
    %v4472 = vadd.f32 %v4431, %v4471
    %v4473 = vpop.f32.mrb[0].mxu0
    %v4474 = vpop.f32.mrb[0].mxu0
    %4475 = vdwg.mxu0
    %4476 = vmatprep.subr.bf16.mxu0 %v3291
    %4477 = vmatpush1.bf16.msra.mxu0 %v3290
    %4478 = vmatprep.subr.bf16.mxu0 %v3299
    %4479 = vmatpush1.bf16.msra.mxu0 %v3298
    %4480 = vmatprep.subr.bf16.mxu0 %v3307
    %4481 = vmatpush1.bf16.msra.mxu0 %v3306
    %4482 = vmatprep.subr.bf16.mxu0 %v3315
    %4483 = vmatpush1.bf16.msra.mxu0 %v3314
    %4484 = vmatprep.subr.bf16.mxu0 %v3323
    %4485 = vmatpush1.bf16.msra.mxu0 %v3322
    %4486 = vmatprep.subr.bf16.mxu0 %v3331
    %4487 = vmatpush1.bf16.msra.mxu0 %v3330
    %4488 = vmatprep.subr.bf16.mxu0 %v3339
    %4489 = vmatpush1.bf16.msra.mxu0 %v3338
    %4490 = vmatprep.subr.bf16.mxu0 %v3347
    %4491 = vmatpush1.bf16.msra.mxu0 %v3346
    %4492 = vmatprep.subr.bf16.mxu0 %v3355
    %4493 = vmatpush1.bf16.msra.mxu0 %v3354
    %4494 = vmatprep.subr.bf16.mxu0 %v3363
    %4495 = vmatpush1.bf16.msra.mxu0 %v3362
    %4496 = vmatprep.subr.bf16.mxu0 %v3371
    %4497 = vmatpush1.bf16.msra.mxu0 %v3370
    %4498 = vmatprep.subr.bf16.mxu0 %v3379
    %4499 = vmatpush1.bf16.msra.mxu0 %v3378
    %4500 = vmatprep.subr.bf16.mxu0 %v3387
    %4501 = vmatpush1.bf16.msra.mxu0 %v3386
    %4502 = vmatprep.subr.bf16.mxu0 %v3395
    %4503 = vmatpush1.bf16.msra.mxu0 %v3394
    %4504 = vmatprep.subr.bf16.mxu0 %v3403
    %4505 = vmatpush1.bf16.msra.mxu0 %v3402
    %4506 = vmatprep.subr.bf16.mxu0 %v3411
    %4507 = vmatpush1.bf16.msra.mxu0 %v3410
    %4508 = vmatprep.mubr.bf16.mxu0 %v1191
    %4509 = vmatmul.mubr.bf16.gmra.mrb[0].mxu0 %v1190
    %v4510 = vpop.f32.mrb[0].mxu0
    %v4511 = vadd.f32 %v1723, %v4510
    %v4512 = vpop.f32.mrb[0].mxu0
    %v4513 = vadd.f32 %v1727, %v4512
    %v4514 = vpop.f32.mrb[0].mxu0
    %v4515 = vpop.f32.mrb[0].mxu0
    %4516 = vdwg.mxu0
    %4517 = vmatprep.subr.bf16.mxu0 %v3419
    %4518 = vmatpush1.bf16.msra.mxu0 %v3418
    %4519 = vmatprep.subr.bf16.mxu0 %v3427
    %4520 = vmatpush1.bf16.msra.mxu0 %v3426
    %4521 = vmatprep.subr.bf16.mxu0 %v3435
    %4522 = vmatpush1.bf16.msra.mxu0 %v3434
    %4523 = vmatprep.subr.bf16.mxu0 %v3443
    %4524 = vmatpush1.bf16.msra.mxu0 %v3442
    %4525 = vmatprep.subr.bf16.mxu0 %v3451
    %4526 = vmatpush1.bf16.msra.mxu0 %v3450
    %4527 = vmatprep.subr.bf16.mxu0 %v3459
    %4528 = vmatpush1.bf16.msra.mxu0 %v3458
    %4529 = vmatprep.subr.bf16.mxu0 %v3467
    %4530 = vmatpush1.bf16.msra.mxu0 %v3466
    %4531 = vmatprep.subr.bf16.mxu0 %v3475
    %4532 = vmatpush1.bf16.msra.mxu0 %v3474
    %4533 = vmatprep.subr.bf16.mxu0 %v3483
    %4534 = vmatpush1.bf16.msra.mxu0 %v3482
    %4535 = vmatprep.subr.bf16.mxu0 %v3491
    %4536 = vmatpush1.bf16.msra.mxu0 %v3490
    %4537 = vmatprep.subr.bf16.mxu0 %v3499
    %4538 = vmatpush1.bf16.msra.mxu0 %v3498
    %4539 = vmatprep.subr.bf16.mxu0 %v3507
    %4540 = vmatpush1.bf16.msra.mxu0 %v3506
    %4541 = vmatprep.subr.bf16.mxu0 %v3515
    %4542 = vmatpush1.bf16.msra.mxu0 %v3514
    %4543 = vmatprep.subr.bf16.mxu0 %v3523
    %4544 = vmatpush1.bf16.msra.mxu0 %v3522
    %4545 = vmatprep.subr.bf16.mxu0 %v3531
    %4546 = vmatpush1.bf16.msra.mxu0 %v3530
    %4547 = vmatprep.subr.bf16.mxu0 %v3539
    %4548 = vmatpush1.bf16.msra.mxu0 %v3538
    %4549 = vmatprep.mubr.bf16.mxu0 %v1193
    %4550 = vmatmul.mubr.bf16.gmra.mrb[0].mxu0 %v1192
    %v4551 = vpop.f32.mrb[0].mxu0
    %v4552 = vadd.f32 %v4511, %v4551
    %v4553 = vpop.f32.mrb[0].mxu0
    %v4554 = vadd.f32 %v4513, %v4553
    %v4555 = vpop.f32.mrb[0].mxu0
    %v4556 = vpop.f32.mrb[0].mxu0
    %4557 = vdwg.mxu0
    %4558 = vmatprep.subr.bf16.mxu0 %v3547
    %4559 = vmatpush1.bf16.msra.mxu0 %v3546
    %4560 = vmatprep.subr.bf16.mxu0 %v3555
    %4561 = vmatpush1.bf16.msra.mxu0 %v3554
    %4562 = vmatprep.subr.bf16.mxu0 %v3563
    %4563 = vmatpush1.bf16.msra.mxu0 %v3562
    %4564 = vmatprep.subr.bf16.mxu0 %v3571
    %4565 = vmatpush1.bf16.msra.mxu0 %v3570
    %4566 = vmatprep.subr.bf16.mxu0 %v3579
    %4567 = vmatpush1.bf16.msra.mxu0 %v3578
    %4568 = vmatprep.subr.bf16.mxu0 %v3587
    %4569 = vmatpush1.bf16.msra.mxu0 %v3586
    %4570 = vmatprep.subr.bf16.mxu0 %v3595
    %4571 = vmatpush1.bf16.msra.mxu0 %v3594
    %4572 = vmatprep.subr.bf16.mxu0 %v3603
    %4573 = vmatpush1.bf16.msra.mxu0 %v3602
    %4574 = vmatprep.subr.bf16.mxu0 %v3611
    %4575 = vmatpush1.bf16.msra.mxu0 %v3610
    %4576 = vmatprep.subr.bf16.mxu0 %v3619
    %4577 = vmatpush1.bf16.msra.mxu0 %v3618
    %4578 = vmatprep.subr.bf16.mxu0 %v3627
    %4579 = vmatpush1.bf16.msra.mxu0 %v3626
    %4580 = vmatprep.subr.bf16.mxu0 %v3635
    %4581 = vmatpush1.bf16.msra.mxu0 %v3634
    %4582 = vmatprep.subr.bf16.mxu0 %v3643
    %4583 = vmatpush1.bf16.msra.mxu0 %v3642
    %4584 = vmatprep.subr.bf16.mxu0 %v3651
    %4585 = vmatpush1.bf16.msra.mxu0 %v3650
    %4586 = vmatprep.subr.bf16.mxu0 %v3659
    %4587 = vmatpush1.bf16.msra.mxu0 %v3658
    %4588 = vmatprep.subr.bf16.mxu0 %v3667
    %4589 = vmatpush1.bf16.msra.mxu0 %v3666
    %4590 = vmatprep.mubr.bf16.mxu0 %v1195
    %4591 = vmatmul.mubr.bf16.gmra.mrb[0].mxu0 %v1194
    %v4592 = vpop.f32.mrb[0].mxu0
    %v4593 = vadd.f32 %v4552, %v4592
    %v4594 = vpop.f32.mrb[0].mxu0
    %v4595 = vadd.f32 %v4554, %v4594
    %v4596 = vpop.f32.mrb[0].mxu0
    %v4597 = vpop.f32.mrb[0].mxu0
    %4598 = vdwg.mxu0
    %4599 = vmatprep.subr.bf16.mxu0 %v3675
    %4600 = vmatpush1.bf16.msra.mxu0 %v3674
    %4601 = vmatprep.subr.bf16.mxu0 %v3683
    %4602 = vmatpush1.bf16.msra.mxu0 %v3682
    %4603 = vmatprep.subr.bf16.mxu0 %v3691
    %4604 = vmatpush1.bf16.msra.mxu0 %v3690
    %4605 = vmatprep.subr.bf16.mxu0 %v3699
    %4606 = vmatpush1.bf16.msra.mxu0 %v3698
    %4607 = vmatprep.subr.bf16.mxu0 %v3707
    %4608 = vmatpush1.bf16.msra.mxu0 %v3706
    %4609 = vmatprep.subr.bf16.mxu0 %v3715
    %4610 = vmatpush1.bf16.msra.mxu0 %v3714
    %4611 = vmatprep.subr.bf16.mxu0 %v3723
    %4612 = vmatpush1.bf16.msra.mxu0 %v3722
    %4613 = vmatprep.subr.bf16.mxu0 %v3731
    %4614 = vmatpush1.bf16.msra.mxu0 %v3730
    %4615 = vmatprep.subr.bf16.mxu0 %v3739
    %4616 = vmatpush1.bf16.msra.mxu0 %v3738
    %4617 = vmatprep.subr.bf16.mxu0 %v3747
    %4618 = vmatpush1.bf16.msra.mxu0 %v3746
    %4619 = vmatprep.subr.bf16.mxu0 %v3755
    %4620 = vmatpush1.bf16.msra.mxu0 %v3754
    %4621 = vmatprep.subr.bf16.mxu0 %v3763
    %4622 = vmatpush1.bf16.msra.mxu0 %v3762
    %4623 = vmatprep.subr.bf16.mxu0 %v3771
    %4624 = vmatpush1.bf16.msra.mxu0 %v3770
    %4625 = vmatprep.subr.bf16.mxu0 %v3779
    %4626 = vmatpush1.bf16.msra.mxu0 %v3778
    %4627 = vmatprep.subr.bf16.mxu0 %v3787
    %4628 = vmatpush1.bf16.msra.mxu0 %v3786
    %4629 = vmatprep.subr.bf16.mxu0 %v3795
    %4630 = vmatpush1.bf16.msra.mxu0 %v3794
    %4631 = vmatprep.mubr.bf16.mxu0 %v1197
    %4632 = vmatmul.mubr.bf16.gmra.mrb[0].mxu0 %v1196
    %v4633 = vpop.f32.mrb[0].mxu0
    %v4634 = vadd.f32 %v4593, %v4633
    %v4635 = vpop.f32.mrb[0].mxu0
    %v4636 = vadd.f32 %v4595, %v4635
    %v4637 = vpop.f32.mrb[0].mxu0
    %v4638 = vpop.f32.mrb[0].mxu0
    %4639 = vdwg.mxu0
    %4640 = vmatprep.subr.bf16.mxu0 %v3293
    %4641 = vmatpush1.bf16.msra.mxu0 %v3292
    %4642 = vmatprep.subr.bf16.mxu0 %v3301
    %4643 = vmatpush1.bf16.msra.mxu0 %v3300
    %4644 = vmatprep.subr.bf16.mxu0 %v3309
    %4645 = vmatpush1.bf16.msra.mxu0 %v3308
    %4646 = vmatprep.subr.bf16.mxu0 %v3317
    %4647 = vmatpush1.bf16.msra.mxu0 %v3316
    %4648 = vmatprep.subr.bf16.mxu0 %v3325
    %4649 = vmatpush1.bf16.msra.mxu0 %v3324
    %4650 = vmatprep.subr.bf16.mxu0 %v3333
    %4651 = vmatpush1.bf16.msra.mxu0 %v3332
    %4652 = vmatprep.subr.bf16.mxu0 %v3341
    %4653 = vmatpush1.bf16.msra.mxu0 %v3340
    %4654 = vmatprep.subr.bf16.mxu0 %v3349
    %4655 = vmatpush1.bf16.msra.mxu0 %v3348
    %4656 = vmatprep.subr.bf16.mxu0 %v3357
    %4657 = vmatpush1.bf16.msra.mxu0 %v3356
    %4658 = vmatprep.subr.bf16.mxu0 %v3365
    %4659 = vmatpush1.bf16.msra.mxu0 %v3364
    %4660 = vmatprep.subr.bf16.mxu0 %v3373
    %4661 = vmatpush1.bf16.msra.mxu0 %v3372
    %4662 = vmatprep.subr.bf16.mxu0 %v3381
    %4663 = vmatpush1.bf16.msra.mxu0 %v3380
    %4664 = vmatprep.subr.bf16.mxu0 %v3389
    %4665 = vmatpush1.bf16.msra.mxu0 %v3388
    %4666 = vmatprep.subr.bf16.mxu0 %v3397
    %4667 = vmatpush1.bf16.msra.mxu0 %v3396
    %4668 = vmatprep.subr.bf16.mxu0 %v3405
    %4669 = vmatpush1.bf16.msra.mxu0 %v3404
    %4670 = vmatprep.subr.bf16.mxu0 %v3413
    %4671 = vmatpush1.bf16.msra.mxu0 %v3412
    %4672 = vmatprep.mubr.bf16.mxu0 %v1191
    %4673 = vmatmul.mubr.bf16.gmra.mrb[0].mxu0 %v1190
    %v4674 = vpop.f32.mrb[0].mxu0
    %v4675 = vadd.f32 %v1731, %v4674
    %v4676 = vpop.f32.mrb[0].mxu0
    %v4677 = vadd.f32 %v1735, %v4676
    %v4678 = vpop.f32.mrb[0].mxu0
    %v4679 = vpop.f32.mrb[0].mxu0
    %4680 = vdwg.mxu0
    %4681 = vmatprep.subr.bf16.mxu0 %v3421
    %4682 = vmatpush1.bf16.msra.mxu0 %v3420
    %4683 = vmatprep.subr.bf16.mxu0 %v3429
    %4684 = vmatpush1.bf16.msra.mxu0 %v3428
    %4685 = vmatprep.subr.bf16.mxu0 %v3437
    %4686 = vmatpush1.bf16.msra.mxu0 %v3436
    %4687 = vmatprep.subr.bf16.mxu0 %v3445
    %4688 = vmatpush1.bf16.msra.mxu0 %v3444
    %4689 = vmatprep.subr.bf16.mxu0 %v3453
    %4690 = vmatpush1.bf16.msra.mxu0 %v3452
    %4691 = vmatprep.subr.bf16.mxu0 %v3461
    %4692 = vmatpush1.bf16.msra.mxu0 %v3460
    %4693 = vmatprep.subr.bf16.mxu0 %v3469
    %4694 = vmatpush1.bf16.msra.mxu0 %v3468
    %4695 = vmatprep.subr.bf16.mxu0 %v3477
    %4696 = vmatpush1.bf16.msra.mxu0 %v3476
    %4697 = vmatprep.subr.bf16.mxu0 %v3485
    %4698 = vmatpush1.bf16.msra.mxu0 %v3484
    %4699 = vmatprep.subr.bf16.mxu0 %v3493
    %4700 = vmatpush1.bf16.msra.mxu0 %v3492
    %4701 = vmatprep.subr.bf16.mxu0 %v3501
    %4702 = vmatpush1.bf16.msra.mxu0 %v3500
    %4703 = vmatprep.subr.bf16.mxu0 %v3509
    %4704 = vmatpush1.bf16.msra.mxu0 %v3508
    %4705 = vmatprep.subr.bf16.mxu0 %v3517
    %4706 = vmatpush1.bf16.msra.mxu0 %v3516
    %4707 = vmatprep.subr.bf16.mxu0 %v3525
    %4708 = vmatpush1.bf16.msra.mxu0 %v3524
    %4709 = vmatprep.subr.bf16.mxu0 %v3533
    %4710 = vmatpush1.bf16.msra.mxu0 %v3532
    %4711 = vmatprep.subr.bf16.mxu0 %v3541
    %4712 = vmatpush1.bf16.msra.mxu0 %v3540
    %4713 = vmatprep.mubr.bf16.mxu0 %v1193
    %4714 = vmatmul.mubr.bf16.gmra.mrb[0].mxu0 %v1192
    %v4715 = vpop.f32.mrb[0].mxu0
    %v4716 = vadd.f32 %v4675, %v4715
    %v4717 = vpop.f32.mrb[0].mxu0
    %v4718 = vadd.f32 %v4677, %v4717
    %v4719 = vpop.f32.mrb[0].mxu0
    %v4720 = vpop.f32.mrb[0].mxu0
    %4721 = vdwg.mxu0
    %4722 = vmatprep.subr.bf16.mxu0 %v3549
    %4723 = vmatpush1.bf16.msra.mxu0 %v3548
    %4724 = vmatprep.subr.bf16.mxu0 %v3557
    %4725 = vmatpush1.bf16.msra.mxu0 %v3556
    %4726 = vmatprep.subr.bf16.mxu0 %v3565
    %4727 = vmatpush1.bf16.msra.mxu0 %v3564
    %4728 = vmatprep.subr.bf16.mxu0 %v3573
    %4729 = vmatpush1.bf16.msra.mxu0 %v3572
    %4730 = vmatprep.subr.bf16.mxu0 %v3581
    %4731 = vmatpush1.bf16.msra.mxu0 %v3580
    %4732 = vmatprep.subr.bf16.mxu0 %v3589
    %4733 = vmatpush1.bf16.msra.mxu0 %v3588
    %4734 = vmatprep.subr.bf16.mxu0 %v3597
    %4735 = vmatpush1.bf16.msra.mxu0 %v3596
    %4736 = vmatprep.subr.bf16.mxu0 %v3605
    %4737 = vmatpush1.bf16.msra.mxu0 %v3604
    %4738 = vmatprep.subr.bf16.mxu0 %v3613
    %4739 = vmatpush1.bf16.msra.mxu0 %v3612
    %4740 = vmatprep.subr.bf16.mxu0 %v3621
    %4741 = vmatpush1.bf16.msra.mxu0 %v3620
    %4742 = vmatprep.subr.bf16.mxu0 %v3629
    %4743 = vmatpush1.bf16.msra.mxu0 %v3628
    %4744 = vmatprep.subr.bf16.mxu0 %v3637
    %4745 = vmatpush1.bf16.msra.mxu0 %v3636
    %4746 = vmatprep.subr.bf16.mxu0 %v3645
    %4747 = vmatpush1.bf16.msra.mxu0 %v3644
    %4748 = vmatprep.subr.bf16.mxu0 %v3653
    %4749 = vmatpush1.bf16.msra.mxu0 %v3652
    %4750 = vmatprep.subr.bf16.mxu0 %v3661
    %4751 = vmatpush1.bf16.msra.mxu0 %v3660
    %4752 = vmatprep.subr.bf16.mxu0 %v3669
    %4753 = vmatpush1.bf16.msra.mxu0 %v3668
    %4754 = vmatprep.mubr.bf16.mxu0 %v1195
    %4755 = vmatmul.mubr.bf16.gmra.mrb[0].mxu0 %v1194
    %v4756 = vpop.f32.mrb[0].mxu0
    %v4757 = vadd.f32 %v4716, %v4756
    %v4758 = vpop.f32.mrb[0].mxu0
    %v4759 = vadd.f32 %v4718, %v4758
    %v4760 = vpop.f32.mrb[0].mxu0
    %v4761 = vpop.f32.mrb[0].mxu0
    %4762 = vdwg.mxu0
    %4763 = vmatprep.subr.bf16.mxu0 %v3677
    %4764 = vmatpush1.bf16.msra.mxu0 %v3676
    %4765 = vmatprep.subr.bf16.mxu0 %v3685
    %4766 = vmatpush1.bf16.msra.mxu0 %v3684
    %4767 = vmatprep.subr.bf16.mxu0 %v3693
    %4768 = vmatpush1.bf16.msra.mxu0 %v3692
    %4769 = vmatprep.subr.bf16.mxu0 %v3701
    %4770 = vmatpush1.bf16.msra.mxu0 %v3700
    %4771 = vmatprep.subr.bf16.mxu0 %v3709
    %4772 = vmatpush1.bf16.msra.mxu0 %v3708
    %4773 = vmatprep.subr.bf16.mxu0 %v3717
    %4774 = vmatpush1.bf16.msra.mxu0 %v3716
    %4775 = vmatprep.subr.bf16.mxu0 %v3725
    %4776 = vmatpush1.bf16.msra.mxu0 %v3724
    %4777 = vmatprep.subr.bf16.mxu0 %v3733
    %4778 = vmatpush1.bf16.msra.mxu0 %v3732
    %4779 = vmatprep.subr.bf16.mxu0 %v3741
    %4780 = vmatpush1.bf16.msra.mxu0 %v3740
    %4781 = vmatprep.subr.bf16.mxu0 %v3749
    %4782 = vmatpush1.bf16.msra.mxu0 %v3748
    %4783 = vmatprep.subr.bf16.mxu0 %v3757
    %4784 = vmatpush1.bf16.msra.mxu0 %v3756
    %4785 = vmatprep.subr.bf16.mxu0 %v3765
    %4786 = vmatpush1.bf16.msra.mxu0 %v3764
    %4787 = vmatprep.subr.bf16.mxu0 %v3773
    %4788 = vmatpush1.bf16.msra.mxu0 %v3772
    %4789 = vmatprep.subr.bf16.mxu0 %v3781
    %4790 = vmatpush1.bf16.msra.mxu0 %v3780
    %4791 = vmatprep.subr.bf16.mxu0 %v3789
    %4792 = vmatpush1.bf16.msra.mxu0 %v3788
    %4793 = vmatprep.subr.bf16.mxu0 %v3797
    %4794 = vmatpush1.bf16.msra.mxu0 %v3796
    %4795 = vmatprep.mubr.bf16.mxu0 %v1197
    %4796 = vmatmul.mubr.bf16.gmra.mrb[0].mxu0 %v1196
    %v4797 = vpop.f32.mrb[0].mxu0
    %v4798 = vadd.f32 %v4757, %v4797
    %v4799 = vpop.f32.mrb[0].mxu0
    %v4800 = vadd.f32 %v4759, %v4799
    %v4801 = vpop.f32.mrb[0].mxu0
    %v4802 = vpop.f32.mrb[0].mxu0
    %4803 = vdwg.mxu0
    %4804 = vmatprep.subr.bf16.mxu0 %v3295
    %4805 = vmatpush1.bf16.msra.mxu0 %v3294
    %4806 = vmatprep.subr.bf16.mxu0 %v3303
    %4807 = vmatpush1.bf16.msra.mxu0 %v3302
    %4808 = vmatprep.subr.bf16.mxu0 %v3311
    %4809 = vmatpush1.bf16.msra.mxu0 %v3310
    %4810 = vmatprep.subr.bf16.mxu0 %v3319
    %4811 = vmatpush1.bf16.msra.mxu0 %v3318
    %4812 = vmatprep.subr.bf16.mxu0 %v3327
    %4813 = vmatpush1.bf16.msra.mxu0 %v3326
    %4814 = vmatprep.subr.bf16.mxu0 %v3335
    %4815 = vmatpush1.bf16.msra.mxu0 %v3334
    %4816 = vmatprep.subr.bf16.mxu0 %v3343
    %4817 = vmatpush1.bf16.msra.mxu0 %v3342
    %4818 = vmatprep.subr.bf16.mxu0 %v3351
    %4819 = vmatpush1.bf16.msra.mxu0 %v3350
    %4820 = vmatprep.subr.bf16.mxu0 %v3359
    %4821 = vmatpush1.bf16.msra.mxu0 %v3358
    %4822 = vmatprep.subr.bf16.mxu0 %v3367
    %4823 = vmatpush1.bf16.msra.mxu0 %v3366
    %4824 = vmatprep.subr.bf16.mxu0 %v3375
    %4825 = vmatpush1.bf16.msra.mxu0 %v3374
    %4826 = vmatprep.subr.bf16.mxu0 %v3383
    %4827 = vmatpush1.bf16.msra.mxu0 %v3382
    %4828 = vmatprep.subr.bf16.mxu0 %v3391
    %4829 = vmatpush1.bf16.msra.mxu0 %v3390
    %4830 = vmatprep.subr.bf16.mxu0 %v3399
    %4831 = vmatpush1.bf16.msra.mxu0 %v3398
    %4832 = vmatprep.subr.bf16.mxu0 %v3407
    %4833 = vmatpush1.bf16.msra.mxu0 %v3406
    %4834 = vmatprep.subr.bf16.mxu0 %v3415
    %4835 = vmatpush1.bf16.msra.mxu0 %v3414
    %4836 = vmatprep.mubr.bf16.mxu0 %v1191
    %4837 = vmatmul.mubr.bf16.gmra.mrb[0].mxu0 %v1190
    %v4838 = vpop.f32.mrb[0].mxu0
    %v4839 = vadd.f32 %v1739, %v4838
    %v4840 = vpop.f32.mrb[0].mxu0
    %v4841 = vadd.f32 %v1743, %v4840
    %v4842 = vpop.f32.mrb[0].mxu0
    %v4843 = vpop.f32.mrb[0].mxu0
    %4844 = vdwg.mxu0
    %4845 = vmatprep.subr.bf16.mxu0 %v3423
    %4846 = vmatpush1.bf16.msra.mxu0 %v3422
    %4847 = vmatprep.subr.bf16.mxu0 %v3431
    %4848 = vmatpush1.bf16.msra.mxu0 %v3430
    %4849 = vmatprep.subr.bf16.mxu0 %v3439
    %4850 = vmatpush1.bf16.msra.mxu0 %v3438
    %4851 = vmatprep.subr.bf16.mxu0 %v3447
    %4852 = vmatpush1.bf16.msra.mxu0 %v3446
    %4853 = vmatprep.subr.bf16.mxu0 %v3455
    %4854 = vmatpush1.bf16.msra.mxu0 %v3454
    %4855 = vmatprep.subr.bf16.mxu0 %v3463
    %4856 = vmatpush1.bf16.msra.mxu0 %v3462
    %4857 = vmatprep.subr.bf16.mxu0 %v3471
    %4858 = vmatpush1.bf16.msra.mxu0 %v3470
    %4859 = vmatprep.subr.bf16.mxu0 %v3479
    %4860 = vmatpush1.bf16.msra.mxu0 %v3478
    %4861 = vmatprep.subr.bf16.mxu0 %v3487
    %4862 = vmatpush1.bf16.msra.mxu0 %v3486
    %4863 = vmatprep.subr.bf16.mxu0 %v3495
    %4864 = vmatpush1.bf16.msra.mxu0 %v3494
    %4865 = vmatprep.subr.bf16.mxu0 %v3503
    %4866 = vmatpush1.bf16.msra.mxu0 %v3502
    %4867 = vmatprep.subr.bf16.mxu0 %v3511
    %4868 = vmatpush1.bf16.msra.mxu0 %v3510
    %4869 = vmatprep.subr.bf16.mxu0 %v3519
    %4870 = vmatpush1.bf16.msra.mxu0 %v3518
    %4871 = vmatprep.subr.bf16.mxu0 %v3527
    %4872 = vmatpush1.bf16.msra.mxu0 %v3526
    %4873 = vmatprep.subr.bf16.mxu0 %v3535
    %4874 = vmatpush1.bf16.msra.mxu0 %v3534
    %4875 = vmatprep.subr.bf16.mxu0 %v3543
    %4876 = vmatpush1.bf16.msra.mxu0 %v3542
    %4877 = vmatprep.mubr.bf16.mxu0 %v1193
    %4878 = vmatmul.mubr.bf16.gmra.mrb[0].mxu0 %v1192
    %v4879 = vpop.f32.mrb[0].mxu0
    %v4880 = vadd.f32 %v4839, %v4879
    %v4881 = vpop.f32.mrb[0].mxu0
    %v4882 = vadd.f32 %v4841, %v4881
    %v4883 = vpop.f32.mrb[0].mxu0
    %v4884 = vpop.f32.mrb[0].mxu0
    %4885 = vdwg.mxu0
    %4886 = vmatprep.subr.bf16.mxu0 %v3551
    %4887 = vmatpush1.bf16.msra.mxu0 %v3550
    %4888 = vmatprep.subr.bf16.mxu0 %v3559
    %4889 = vmatpush1.bf16.msra.mxu0 %v3558
    %4890 = vmatprep.subr.bf16.mxu0 %v3567
    %4891 = vmatpush1.bf16.msra.mxu0 %v3566
    %4892 = vmatprep.subr.bf16.mxu0 %v3575
    %4893 = vmatpush1.bf16.msra.mxu0 %v3574
    %4894 = vmatprep.subr.bf16.mxu0 %v3583
    %4895 = vmatpush1.bf16.msra.mxu0 %v3582
    %4896 = vmatprep.subr.bf16.mxu0 %v3591
    %4897 = vmatpush1.bf16.msra.mxu0 %v3590
    %4898 = vmatprep.subr.bf16.mxu0 %v3599
    %4899 = vmatpush1.bf16.msra.mxu0 %v3598
    %4900 = vmatprep.subr.bf16.mxu0 %v3607
    %4901 = vmatpush1.bf16.msra.mxu0 %v3606
    %4902 = vmatprep.subr.bf16.mxu0 %v3615
    %4903 = vmatpush1.bf16.msra.mxu0 %v3614
    %4904 = vmatprep.subr.bf16.mxu0 %v3623
    %4905 = vmatpush1.bf16.msra.mxu0 %v3622
    %4906 = vmatprep.subr.bf16.mxu0 %v3631
    %4907 = vmatpush1.bf16.msra.mxu0 %v3630
    %4908 = vmatprep.subr.bf16.mxu0 %v3639
    %4909 = vmatpush1.bf16.msra.mxu0 %v3638
    %4910 = vmatprep.subr.bf16.mxu0 %v3647
    %4911 = vmatpush1.bf16.msra.mxu0 %v3646
    %4912 = vmatprep.subr.bf16.mxu0 %v3655
    %4913 = vmatpush1.bf16.msra.mxu0 %v3654
    %4914 = vmatprep.subr.bf16.mxu0 %v3663
    %4915 = vmatpush1.bf16.msra.mxu0 %v3662
    %4916 = vmatprep.subr.bf16.mxu0 %v3671
    %4917 = vmatpush1.bf16.msra.mxu0 %v3670
    %4918 = vmatprep.mubr.bf16.mxu0 %v1195
    %4919 = vmatmul.mubr.bf16.gmra.mrb[0].mxu0 %v1194
    %v4920 = vpop.f32.mrb[0].mxu0
    %v4921 = vadd.f32 %v4880, %v4920
    %v4922 = vpop.f32.mrb[0].mxu0
    %v4923 = vadd.f32 %v4882, %v4922
    %v4924 = vpop.f32.mrb[0].mxu0
    %v4925 = vpop.f32.mrb[0].mxu0
    %4926 = vdwg.mxu0
    %4927 = vmatprep.subr.bf16.mxu0 %v3679
    %4928 = vmatpush1.bf16.msra.mxu0 %v3678
    %4929 = vmatprep.subr.bf16.mxu0 %v3687
    %4930 = vmatpush1.bf16.msra.mxu0 %v3686
    %4931 = vmatprep.subr.bf16.mxu0 %v3695
    %4932 = vmatpush1.bf16.msra.mxu0 %v3694
    %4933 = vmatprep.subr.bf16.mxu0 %v3703
    %4934 = vmatpush1.bf16.msra.mxu0 %v3702
    %4935 = vmatprep.subr.bf16.mxu0 %v3711
    %4936 = vmatpush1.bf16.msra.mxu0 %v3710
    %4937 = vmatprep.subr.bf16.mxu0 %v3719
    %4938 = vmatpush1.bf16.msra.mxu0 %v3718
    %4939 = vmatprep.subr.bf16.mxu0 %v3727
    %4940 = vmatpush1.bf16.msra.mxu0 %v3726
    %4941 = vmatprep.subr.bf16.mxu0 %v3735
    %4942 = vmatpush1.bf16.msra.mxu0 %v3734
    %4943 = vmatprep.subr.bf16.mxu0 %v3743
    %4944 = vmatpush1.bf16.msra.mxu0 %v3742
    %4945 = vmatprep.subr.bf16.mxu0 %v3751
    %4946 = vmatpush1.bf16.msra.mxu0 %v3750
    %4947 = vmatprep.subr.bf16.mxu0 %v3759
    %4948 = vmatpush1.bf16.msra.mxu0 %v3758
    %4949 = vmatprep.subr.bf16.mxu0 %v3767
    %4950 = vmatpush1.bf16.msra.mxu0 %v3766
    %4951 = vmatprep.subr.bf16.mxu0 %v3775
    %4952 = vmatpush1.bf16.msra.mxu0 %v3774
    %4953 = vmatprep.subr.bf16.mxu0 %v3783
    %4954 = vmatpush1.bf16.msra.mxu0 %v3782
    %4955 = vmatprep.subr.bf16.mxu0 %v3791
    %4956 = vmatpush1.bf16.msra.mxu0 %v3790
    %4957 = vmatprep.subr.bf16.mxu0 %v3799
    %4958 = vmatpush1.bf16.msra.mxu0 %v3798
    %4959 = vmatprep.mubr.bf16.mxu0 %v1197
    %4960 = vmatmul.mubr.bf16.gmra.mrb[0].mxu0 %v1196
    %v4961 = vpop.f32.mrb[0].mxu0
    %v4962 = vadd.f32 %v4921, %v4961
    %v4963 = vpop.f32.mrb[0].mxu0
    %v4964 = vadd.f32 %v4923, %v4963
    %v4965 = vpop.f32.mrb[0].mxu0
    %v4966 = vpop.f32.mrb[0].mxu0
    %4967 = vdwg.mxu0
    %v4968 = vxor.u32 %v4470, 2147483648
    %v4969 = vxor.u32 %v4472, 2147483648
    %v4970 = vxor.u32 %v4634, 2147483648
    %v4971 = vxor.u32 %v4636, 2147483648
    %v4972 = vxor.u32 %v4798, 2147483648
    %v4973 = vxor.u32 %v4800, 2147483648
    %v4974 = vxor.u32 %v4962, 2147483648
    %v4975 = vxor.u32 %v4964, 2147483648
    %v4976 = vmul.f32 %v4968, 1.442695
    %v4977 = vpow.pop %v4976
    %v4978 = vmul.f32 %v4969, 1.442695
    %v4979 = vpow.pop %v4978
    %v4980 = vmul.f32 %v4970, 1.442695
    %v4981 = vpow.pop %v4980
    %v4982 = vmul.f32 %v4971, 1.442695
    %v4983 = vpow.pop %v4982
    %v4984 = vmul.f32 %v4972, 1.442695
    %v4985 = vpow.pop %v4984
    %v4986 = vmul.f32 %v4973, 1.442695
    %v4987 = vpow.pop %v4986
    %v4988 = vmul.f32 %v4974, 1.442695
    %v4989 = vpow.pop %v4988
    %v4990 = vmul.f32 %v4975, 1.442695
    %v4991 = vpow.pop %v4990
    %v4992 = vadd.f32 %v4977, 1.0
    %v4993 = vadd.f32 %v4979, 1.0
    %v4994 = vadd.f32 %v4981, 1.0
    %v4995 = vadd.f32 %v4983, 1.0
    %v4996 = vadd.f32 %v4985, 1.0
    %v4997 = vadd.f32 %v4987, 1.0
    %v4998 = vadd.f32 %v4989, 1.0
    %v4999 = vadd.f32 %v4991, 1.0
    %v5000 = vrcp.pop %v4992
    %v5001 = vmul.f32 1.0, %v5000
    %v5002 = vrcp.pop %v4993
    %v5003 = vmul.f32 1.0, %v5002
    %v5004 = vrcp.pop %v4994
    %v5005 = vmul.f32 1.0, %v5004
    %v5006 = vrcp.pop %v4995
    %v5007 = vmul.f32 1.0, %v5006
    %v5008 = vrcp.pop %v4996
    %v5009 = vmul.f32 1.0, %v5008
    %v5010 = vrcp.pop %v4997
    %v5011 = vmul.f32 1.0, %v5010
    %v5012 = vrcp.pop %v4998
    %v5013 = vmul.f32 1.0, %v5012
    %v5014 = vrcp.pop %v4999
    %v5015 = vmul.f32 1.0, %v5014
    %v5016 = vmul.f32 %v4470, %v5001
    %v5017 = vmul.f32 %v4472, %v5003
    %v5018 = vmul.f32 %v4634, %v5005
    %v5019 = vmul.f32 %v4636, %v5007
    %v5020 = vmul.f32 %v4798, %v5009
    %v5021 = vmul.f32 %v4800, %v5011
    %v5022 = vmul.f32 %v4962, %v5013
    %v5023 = vmul.f32 %v4964, %v5015
    %v5024 = vpack.c.bf16 %v5016, %v5016
    %v5025 = vpack.c.bf16 %v5017, %v5017
    %v5026 = vpack.c.bf16 %v5018, %v5018
    %v5027 = vpack.c.bf16 %v5019, %v5019
    %v5028 = vpack.c.bf16 %v5020, %v5020
    %v5029 = vpack.c.bf16 %v5021, %v5021
    %v5030 = vpack.c.bf16 %v5022, %v5022
    %v5031 = vpack.c.bf16 %v5023, %v5023
    %v5032 = vld [vmem:[#allocation11] sm:$0xff]
    %v5033 = vld [vmem:[#allocation11 + $0x8] sm:$0xff]
    %v5034 = vld [vmem:[#allocation11 + $0x10] sm:$0xff]
    %v5035 = vld [vmem:[#allocation11 + $0x18] sm:$0xff]
    %v5036 = vld [vmem:[#allocation11 + $0x20] sm:$0xff]
    %v5037 = vld [vmem:[#allocation11 + $0x28] sm:$0xff]
    %v5038 = vld [vmem:[#allocation11 + $0x30] sm:$0xff]
    %v5039 = vld [vmem:[#allocation11 + $0x38] sm:$0xff]
    %v5040 = vld [vmem:[#allocation11 + $0x40] sm:$0xff]
    %v5041 = vld [vmem:[#allocation11 + $0x48] sm:$0xff]
    %v5042 = vld [vmem:[#allocation11 + $0x50] sm:$0xff]
    %v5043 = vld [vmem:[#allocation11 + $0x58] sm:$0xff]
    %v5044 = vld [vmem:[#allocation11 + $0x60] sm:$0xff]
    %v5045 = vld [vmem:[#allocation11 + $0x68] sm:$0xff]
    %v5046 = vld [vmem:[#allocation11 + $0x70] sm:$0xff]
    %v5047 = vld [vmem:[#allocation11 + $0x78] sm:$0xff]
    %v5048 = vld [vmem:[#allocation11 + $0x80] sm:$0xff]
    %v5049 = vld [vmem:[#allocation11 + $0x88] sm:$0xff]
    %v5050 = vld [vmem:[#allocation11 + $0x90] sm:$0xff]
    %v5051 = vld [vmem:[#allocation11 + $0x98] sm:$0xff]
    %v5052 = vld [vmem:[#allocation11 + $0xa0] sm:$0xff]
    %v5053 = vld [vmem:[#allocation11 + $0xa8] sm:$0xff]
    %v5054 = vld [vmem:[#allocation11 + $0xb0] sm:$0xff]
    %v5055 = vld [vmem:[#allocation11 + $0xb8] sm:$0xff]
    %v5056 = vld [vmem:[#allocation11 + $0xc0] sm:$0xff]
    %v5057 = vld [vmem:[#allocation11 + $0xc8] sm:$0xff]
    %v5058 = vld [vmem:[#allocation11 + $0xd0] sm:$0xff]
    %v5059 = vld [vmem:[#allocation11 + $0xd8] sm:$0xff]
    %v5060 = vld [vmem:[#allocation11 + $0xe0] sm:$0xff]
    %v5061 = vld [vmem:[#allocation11 + $0xe8] sm:$0xff]
    %v5062 = vld [vmem:[#allocation11 + $0xf0] sm:$0xff]
    %v5063 = vld [vmem:[#allocation11 + $0xf8] sm:$0xff]
    %v5064 = vld [vmem:[#allocation11 + $0x100] sm:$0xff]
    %v5065 = vld [vmem:[#allocation11 + $0x108] sm:$0xff]
    %v5066 = vld [vmem:[#allocation11 + $0x110] sm:$0xff]
    %v5067 = vld [vmem:[#allocation11 + $0x118] sm:$0xff]
    %v5068 = vld [vmem:[#allocation11 + $0x120] sm:$0xff]
    %v5069 = vld [vmem:[#allocation11 + $0x128] sm:$0xff]
    %v5070 = vld [vmem:[#allocation11 + $0x130] sm:$0xff]
    %v5071 = vld [vmem:[#allocation11 + $0x138] sm:$0xff]
    %v5072 = vld [vmem:[#allocation11 + $0x140] sm:$0xff]
    %v5073 = vld [vmem:[#allocation11 + $0x148] sm:$0xff]
    %v5074 = vld [vmem:[#allocation11 + $0x150] sm:$0xff]
    %v5075 = vld [vmem:[#allocation11 + $0x158] sm:$0xff]
    %v5076 = vld [vmem:[#allocation11 + $0x160] sm:$0xff]
    %v5077 = vld [vmem:[#allocation11 + $0x168] sm:$0xff]
    %v5078 = vld [vmem:[#allocation11 + $0x170] sm:$0xff]
    %v5079 = vld [vmem:[#allocation11 + $0x178] sm:$0xff]
    %v5080 = vld [vmem:[#allocation11 + $0x180] sm:$0xff]
    %v5081 = vld [vmem:[#allocation11 + $0x188] sm:$0xff]
    %v5082 = vld [vmem:[#allocation11 + $0x190] sm:$0xff]
    %v5083 = vld [vmem:[#allocation11 + $0x198] sm:$0xff]
    %v5084 = vld [vmem:[#allocation11 + $0x1a0] sm:$0xff]
    %v5085 = vld [vmem:[#allocation11 + $0x1a8] sm:$0xff]
    %v5086 = vld [vmem:[#allocation11 + $0x1b0] sm:$0xff]
    %v5087 = vld [vmem:[#allocation11 + $0x1b8] sm:$0xff]
    %v5088 = vld [vmem:[#allocation11 + $0x1c0] sm:$0xff]
    %v5089 = vld [vmem:[#allocation11 + $0x1c8] sm:$0xff]
    %v5090 = vld [vmem:[#allocation11 + $0x1d0] sm:$0xff]
    %v5091 = vld [vmem:[#allocation11 + $0x1d8] sm:$0xff]
    %v5092 = vld [vmem:[#allocation11 + $0x1e0] sm:$0xff]
    %v5093 = vld [vmem:[#allocation11 + $0x1e8] sm:$0xff]
    %v5094 = vld [vmem:[#allocation11 + $0x1f0] sm:$0xff]
    %v5095 = vld [vmem:[#allocation11 + $0x1f8] sm:$0xff]
    %v5096 = vld [vmem:[#allocation11 + $0x200] sm:$0xff]
    %v5097 = vld [vmem:[#allocation11 + $0x208] sm:$0xff]
    %v5098 = vld [vmem:[#allocation11 + $0x210] sm:$0xff]
    %v5099 = vld [vmem:[#allocation11 + $0x218] sm:$0xff]
    %v5100 = vld [vmem:[#allocation11 + $0x220] sm:$0xff]
    %v5101 = vld [vmem:[#allocation11 + $0x228] sm:$0xff]
    %v5102 = vld [vmem:[#allocation11 + $0x230] sm:$0xff]
    %v5103 = vld [vmem:[#allocation11 + $0x238] sm:$0xff]
    %v5104 = vld [vmem:[#allocation11 + $0x240] sm:$0xff]
    %v5105 = vld [vmem:[#allocation11 + $0x248] sm:$0xff]
    %v5106 = vld [vmem:[#allocation11 + $0x250] sm:$0xff]
    %v5107 = vld [vmem:[#allocation11 + $0x258] sm:$0xff]
    %v5108 = vld [vmem:[#allocation11 + $0x260] sm:$0xff]
    %v5109 = vld [vmem:[#allocation11 + $0x268] sm:$0xff]
    %v5110 = vld [vmem:[#allocation11 + $0x270] sm:$0xff]
    %v5111 = vld [vmem:[#allocation11 + $0x278] sm:$0xff]
    %v5112 = vld [vmem:[#allocation11 + $0x280] sm:$0xff]
    %v5113 = vld [vmem:[#allocation11 + $0x288] sm:$0xff]
    %v5114 = vld [vmem:[#allocation11 + $0x290] sm:$0xff]
    %v5115 = vld [vmem:[#allocation11 + $0x298] sm:$0xff]
    %v5116 = vld [vmem:[#allocation11 + $0x2a0] sm:$0xff]
    %v5117 = vld [vmem:[#allocation11 + $0x2a8] sm:$0xff]
    %v5118 = vld [vmem:[#allocation11 + $0x2b0] sm:$0xff]
    %v5119 = vld [vmem:[#allocation11 + $0x2b8] sm:$0xff]
    %v5120 = vld [vmem:[#allocation11 + $0x2c0] sm:$0xff]
    %v5121 = vld [vmem:[#allocation11 + $0x2c8] sm:$0xff]
    %v5122 = vld [vmem:[#allocation11 + $0x2d0] sm:$0xff]
    %v5123 = vld [vmem:[#allocation11 + $0x2d8] sm:$0xff]
    %v5124 = vld [vmem:[#allocation11 + $0x2e0] sm:$0xff]
    %v5125 = vld [vmem:[#allocation11 + $0x2e8] sm:$0xff]
    %v5126 = vld [vmem:[#allocation11 + $0x2f0] sm:$0xff]
    %v5127 = vld [vmem:[#allocation11 + $0x2f8] sm:$0xff]
    %v5128 = vld [vmem:[#allocation11 + $0x300] sm:$0xff]
    %v5129 = vld [vmem:[#allocation11 + $0x308] sm:$0xff]
    %v5130 = vld [vmem:[#allocation11 + $0x310] sm:$0xff]
    %v5131 = vld [vmem:[#allocation11 + $0x318] sm:$0xff]
    %v5132 = vld [vmem:[#allocation11 + $0x320] sm:$0xff]
    %v5133 = vld [vmem:[#allocation11 + $0x328] sm:$0xff]
    %v5134 = vld [vmem:[#allocation11 + $0x330] sm:$0xff]
    %v5135 = vld [vmem:[#allocation11 + $0x338] sm:$0xff]
    %v5136 = vld [vmem:[#allocation11 + $0x340] sm:$0xff]
    %v5137 = vld [vmem:[#allocation11 + $0x348] sm:$0xff]
    %v5138 = vld [vmem:[#allocation11 + $0x350] sm:$0xff]
    %v5139 = vld [vmem:[#allocation11 + $0x358] sm:$0xff]
    %v5140 = vld [vmem:[#allocation11 + $0x360] sm:$0xff]
    %v5141 = vld [vmem:[#allocation11 + $0x368] sm:$0xff]
    %v5142 = vld [vmem:[#allocation11 + $0x370] sm:$0xff]
    %v5143 = vld [vmem:[#allocation11 + $0x378] sm:$0xff]
    %v5144 = vld [vmem:[#allocation11 + $0x380] sm:$0xff]
    %v5145 = vld [vmem:[#allocation11 + $0x388] sm:$0xff]
    %v5146 = vld [vmem:[#allocation11 + $0x390] sm:$0xff]
    %v5147 = vld [vmem:[#allocation11 + $0x398] sm:$0xff]
    %v5148 = vld [vmem:[#allocation11 + $0x3a0] sm:$0xff]
    %v5149 = vld [vmem:[#allocation11 + $0x3a8] sm:$0xff]
    %v5150 = vld [vmem:[#allocation11 + $0x3b0] sm:$0xff]
    %v5151 = vld [vmem:[#allocation11 + $0x3b8] sm:$0xff]
    %v5152 = vld [vmem:[#allocation11 + $0x3c0] sm:$0xff]
    %v5153 = vld [vmem:[#allocation11 + $0x3c8] sm:$0xff]
    %v5154 = vld [vmem:[#allocation11 + $0x3d0] sm:$0xff]
    %v5155 = vld [vmem:[#allocation11 + $0x3d8] sm:$0xff]
    %v5156 = vld [vmem:[#allocation11 + $0x3e0] sm:$0xff]
    %v5157 = vld [vmem:[#allocation11 + $0x3e8] sm:$0xff]
    %v5158 = vld [vmem:[#allocation11 + $0x3f0] sm:$0xff]
    %v5159 = vld [vmem:[#allocation11 + $0x3f8] sm:$0xff]
    %v5160 = vld [vmem:[#allocation11 + $0x400] sm:$0xff]
    %v5161 = vld [vmem:[#allocation11 + $0x408] sm:$0xff]
    %v5162 = vld [vmem:[#allocation11 + $0x410] sm:$0xff]
    %v5163 = vld [vmem:[#allocation11 + $0x418] sm:$0xff]
    %v5164 = vld [vmem:[#allocation11 + $0x420] sm:$0xff]
    %v5165 = vld [vmem:[#allocation11 + $0x428] sm:$0xff]
    %v5166 = vld [vmem:[#allocation11 + $0x430] sm:$0xff]
    %v5167 = vld [vmem:[#allocation11 + $0x438] sm:$0xff]
    %v5168 = vld [vmem:[#allocation11 + $0x440] sm:$0xff]
    %v5169 = vld [vmem:[#allocation11 + $0x448] sm:$0xff]
    %v5170 = vld [vmem:[#allocation11 + $0x450] sm:$0xff]
    %v5171 = vld [vmem:[#allocation11 + $0x458] sm:$0xff]
    %v5172 = vld [vmem:[#allocation11 + $0x460] sm:$0xff]
    %v5173 = vld [vmem:[#allocation11 + $0x468] sm:$0xff]
    %v5174 = vld [vmem:[#allocation11 + $0x470] sm:$0xff]
    %v5175 = vld [vmem:[#allocation11 + $0x478] sm:$0xff]
    %v5176 = vld [vmem:[#allocation11 + $0x480] sm:$0xff]
    %v5177 = vld [vmem:[#allocation11 + $0x488] sm:$0xff]
    %v5178 = vld [vmem:[#allocation11 + $0x490] sm:$0xff]
    %v5179 = vld [vmem:[#allocation11 + $0x498] sm:$0xff]
    %v5180 = vld [vmem:[#allocation11 + $0x4a0] sm:$0xff]
    %v5181 = vld [vmem:[#allocation11 + $0x4a8] sm:$0xff]
    %v5182 = vld [vmem:[#allocation11 + $0x4b0] sm:$0xff]
    %v5183 = vld [vmem:[#allocation11 + $0x4b8] sm:$0xff]
    %v5184 = vld [vmem:[#allocation11 + $0x4c0] sm:$0xff]
    %v5185 = vld [vmem:[#allocation11 + $0x4c8] sm:$0xff]
    %v5186 = vld [vmem:[#allocation11 + $0x4d0] sm:$0xff]
    %v5187 = vld [vmem:[#allocation11 + $0x4d8] sm:$0xff]
    %v5188 = vld [vmem:[#allocation11 + $0x4e0] sm:$0xff]
    %v5189 = vld [vmem:[#allocation11 + $0x4e8] sm:$0xff]
    %v5190 = vld [vmem:[#allocation11 + $0x4f0] sm:$0xff]
    %v5191 = vld [vmem:[#allocation11 + $0x4f8] sm:$0xff]
    %v5192 = vld [vmem:[#allocation11 + $0x500] sm:$0xff]
    %v5193 = vld [vmem:[#allocation11 + $0x508] sm:$0xff]
    %v5194 = vld [vmem:[#allocation11 + $0x510] sm:$0xff]
    %v5195 = vld [vmem:[#allocation11 + $0x518] sm:$0xff]
    %v5196 = vld [vmem:[#allocation11 + $0x520] sm:$0xff]
    %v5197 = vld [vmem:[#allocation11 + $0x528] sm:$0xff]
    %v5198 = vld [vmem:[#allocation11 + $0x530] sm:$0xff]
    %v5199 = vld [vmem:[#allocation11 + $0x538] sm:$0xff]
    %v5200 = vld [vmem:[#allocation11 + $0x540] sm:$0xff]
    %v5201 = vld [vmem:[#allocation11 + $0x548] sm:$0xff]
    %v5202 = vld [vmem:[#allocation11 + $0x550] sm:$0xff]
    %v5203 = vld [vmem:[#allocation11 + $0x558] sm:$0xff]
    %v5204 = vld [vmem:[#allocation11 + $0x560] sm:$0xff]
    %v5205 = vld [vmem:[#allocation11 + $0x568] sm:$0xff]
    %v5206 = vld [vmem:[#allocation11 + $0x570] sm:$0xff]
    %v5207 = vld [vmem:[#allocation11 + $0x578] sm:$0xff]
    %v5208 = vld [vmem:[#allocation11 + $0x580] sm:$0xff]
    %v5209 = vld [vmem:[#allocation11 + $0x588] sm:$0xff]
    %v5210 = vld [vmem:[#allocation11 + $0x590] sm:$0xff]
    %v5211 = vld [vmem:[#allocation11 + $0x598] sm:$0xff]
    %v5212 = vld [vmem:[#allocation11 + $0x5a0] sm:$0xff]
    %v5213 = vld [vmem:[#allocation11 + $0x5a8] sm:$0xff]
    %v5214 = vld [vmem:[#allocation11 + $0x5b0] sm:$0xff]
    %v5215 = vld [vmem:[#allocation11 + $0x5b8] sm:$0xff]
    %v5216 = vld [vmem:[#allocation11 + $0x5c0] sm:$0xff]
    %v5217 = vld [vmem:[#allocation11 + $0x5c8] sm:$0xff]
    %v5218 = vld [vmem:[#allocation11 + $0x5d0] sm:$0xff]
    %v5219 = vld [vmem:[#allocation11 + $0x5d8] sm:$0xff]
    %v5220 = vld [vmem:[#allocation11 + $0x5e0] sm:$0xff]
    %v5221 = vld [vmem:[#allocation11 + $0x5e8] sm:$0xff]
    %v5222 = vld [vmem:[#allocation11 + $0x5f0] sm:$0xff]
    %v5223 = vld [vmem:[#allocation11 + $0x5f8] sm:$0xff]
    %v5224 = vld [vmem:[#allocation11 + $0x600] sm:$0xff]
    %v5225 = vld [vmem:[#allocation11 + $0x608] sm:$0xff]
    %v5226 = vld [vmem:[#allocation11 + $0x610] sm:$0xff]
    %v5227 = vld [vmem:[#allocation11 + $0x618] sm:$0xff]
    %v5228 = vld [vmem:[#allocation11 + $0x620] sm:$0xff]
    %v5229 = vld [vmem:[#allocation11 + $0x628] sm:$0xff]
    %v5230 = vld [vmem:[#allocation11 + $0x630] sm:$0xff]
    %v5231 = vld [vmem:[#allocation11 + $0x638] sm:$0xff]
    %v5232 = vld [vmem:[#allocation11 + $0x640] sm:$0xff]
    %v5233 = vld [vmem:[#allocation11 + $0x648] sm:$0xff]
    %v5234 = vld [vmem:[#allocation11 + $0x650] sm:$0xff]
    %v5235 = vld [vmem:[#allocation11 + $0x658] sm:$0xff]
    %v5236 = vld [vmem:[#allocation11 + $0x660] sm:$0xff]
    %v5237 = vld [vmem:[#allocation11 + $0x668] sm:$0xff]
    %v5238 = vld [vmem:[#allocation11 + $0x670] sm:$0xff]
    %v5239 = vld [vmem:[#allocation11 + $0x678] sm:$0xff]
    %v5240 = vld [vmem:[#allocation11 + $0x680] sm:$0xff]
    %v5241 = vld [vmem:[#allocation11 + $0x688] sm:$0xff]
    %v5242 = vld [vmem:[#allocation11 + $0x690] sm:$0xff]
    %v5243 = vld [vmem:[#allocation11 + $0x698] sm:$0xff]
    %v5244 = vld [vmem:[#allocation11 + $0x6a0] sm:$0xff]
    %v5245 = vld [vmem:[#allocation11 + $0x6a8] sm:$0xff]
    %v5246 = vld [vmem:[#allocation11 + $0x6b0] sm:$0xff]
    %v5247 = vld [vmem:[#allocation11 + $0x6b8] sm:$0xff]
    %v5248 = vld [vmem:[#allocation11 + $0x6c0] sm:$0xff]
    %v5249 = vld [vmem:[#allocation11 + $0x6c8] sm:$0xff]
    %v5250 = vld [vmem:[#allocation11 + $0x6d0] sm:$0xff]
    %v5251 = vld [vmem:[#allocation11 + $0x6d8] sm:$0xff]
    %v5252 = vld [vmem:[#allocation11 + $0x6e0] sm:$0xff]
    %v5253 = vld [vmem:[#allocation11 + $0x6e8] sm:$0xff]
    %v5254 = vld [vmem:[#allocation11 + $0x6f0] sm:$0xff]
    %v5255 = vld [vmem:[#allocation11 + $0x6f8] sm:$0xff]
    %v5256 = vld [vmem:[#allocation11 + $0x700] sm:$0xff]
    %v5257 = vld [vmem:[#allocation11 + $0x708] sm:$0xff]
    %v5258 = vld [vmem:[#allocation11 + $0x710] sm:$0xff]
    %v5259 = vld [vmem:[#allocation11 + $0x718] sm:$0xff]
    %v5260 = vld [vmem:[#allocation11 + $0x720] sm:$0xff]
    %v5261 = vld [vmem:[#allocation11 + $0x728] sm:$0xff]
    %v5262 = vld [vmem:[#allocation11 + $0x730] sm:$0xff]
    %v5263 = vld [vmem:[#allocation11 + $0x738] sm:$0xff]
    %v5264 = vld [vmem:[#allocation11 + $0x740] sm:$0xff]
    %v5265 = vld [vmem:[#allocation11 + $0x748] sm:$0xff]
    %v5266 = vld [vmem:[#allocation11 + $0x750] sm:$0xff]
    %v5267 = vld [vmem:[#allocation11 + $0x758] sm:$0xff]
    %v5268 = vld [vmem:[#allocation11 + $0x760] sm:$0xff]
    %v5269 = vld [vmem:[#allocation11 + $0x768] sm:$0xff]
    %v5270 = vld [vmem:[#allocation11 + $0x770] sm:$0xff]
    %v5271 = vld [vmem:[#allocation11 + $0x778] sm:$0xff]
    %v5272 = vld [vmem:[#allocation11 + $0x780] sm:$0xff]
    %v5273 = vld [vmem:[#allocation11 + $0x788] sm:$0xff]
    %v5274 = vld [vmem:[#allocation11 + $0x790] sm:$0xff]
    %v5275 = vld [vmem:[#allocation11 + $0x798] sm:$0xff]
    %v5276 = vld [vmem:[#allocation11 + $0x7a0] sm:$0xff]
    %v5277 = vld [vmem:[#allocation11 + $0x7a8] sm:$0xff]
    %v5278 = vld [vmem:[#allocation11 + $0x7b0] sm:$0xff]
    %v5279 = vld [vmem:[#allocation11 + $0x7b8] sm:$0xff]
    %v5280 = vld [vmem:[#allocation11 + $0x7c0] sm:$0xff]
    %v5281 = vld [vmem:[#allocation11 + $0x7c8] sm:$0xff]
    %v5282 = vld [vmem:[#allocation11 + $0x7d0] sm:$0xff]
    %v5283 = vld [vmem:[#allocation11 + $0x7d8] sm:$0xff]
    %v5284 = vld [vmem:[#allocation11 + $0x7e0] sm:$0xff]
    %v5285 = vld [vmem:[#allocation11 + $0x7e8] sm:$0xff]
    %v5286 = vld [vmem:[#allocation11 + $0x7f0] sm:$0xff]
    %v5287 = vld [vmem:[#allocation11 + $0x7f8] sm:$0xff]
    %v5288 = vld [vmem:[#allocation13] sm:$0xf]
    %v5290 = vlaneseq
    %v5291 = vshrl.u32 %v5290, 7
    %v5292 = vsub.s32 0, %v5291
    %v5293 = vrot.slane %v5288, %v5292
    %v5294 = vlaneseq
    %v5295 = vshrl.u32 %v5294, 7
    %v5296 = vsub.s32 1, %v5295
    %v5297 = vrot.slane %v5288, %v5296
    %v5298 = vlaneseq
    %v5299 = vshrl.u32 %v5298, 7
    %v5300 = vsub.s32 2, %v5299
    %v5301 = vrot.slane %v5288, %v5300
    %v5302 = vlaneseq
    %v5303 = vshrl.u32 %v5302, 7
    %v5304 = vsub.s32 3, %v5303
    %v5305 = vrot.slane %v5288, %v5304
    %v5566 = vunpack.c.l.b16 %v5032
    %v5567 = vunpack.c.h.b16 %v5032
    %v5568 = vunpack.c.l.b16 %v5033
    %v5569 = vunpack.c.h.b16 %v5033
    %v5570 = vunpack.c.l.b16 %v5034
    %v5571 = vunpack.c.h.b16 %v5034
    %v5572 = vunpack.c.l.b16 %v5035
    %v5573 = vunpack.c.h.b16 %v5035
    %v5574 = vunpack.c.l.b16 %v5036
    %v5575 = vunpack.c.h.b16 %v5036
    %v5576 = vunpack.c.l.b16 %v5037
    %v5577 = vunpack.c.h.b16 %v5037
    %v5578 = vunpack.c.l.b16 %v5038
    %v5579 = vunpack.c.h.b16 %v5038
    %v5580 = vunpack.c.l.b16 %v5039
    %v5581 = vunpack.c.h.b16 %v5039
    %v5582 = vunpack.c.l.b16 %v5040
    %v5583 = vunpack.c.h.b16 %v5040
    %v5584 = vunpack.c.l.b16 %v5041
    %v5585 = vunpack.c.h.b16 %v5041
    %v5586 = vunpack.c.l.b16 %v5042
    %v5587 = vunpack.c.h.b16 %v5042
    %v5588 = vunpack.c.l.b16 %v5043
    %v5589 = vunpack.c.h.b16 %v5043
    %v5590 = vunpack.c.l.b16 %v5044
    %v5591 = vunpack.c.h.b16 %v5044
    %v5592 = vunpack.c.l.b16 %v5045
    %v5593 = vunpack.c.h.b16 %v5045
    %v5594 = vunpack.c.l.b16 %v5046
    %v5595 = vunpack.c.h.b16 %v5046
    %v5596 = vunpack.c.l.b16 %v5047
    %v5597 = vunpack.c.h.b16 %v5047
    %v5598 = vunpack.c.l.b16 %v5048
    %v5599 = vunpack.c.h.b16 %v5048
    %v5600 = vunpack.c.l.b16 %v5049
    %v5601 = vunpack.c.h.b16 %v5049
    %v5602 = vunpack.c.l.b16 %v5050
    %v5603 = vunpack.c.h.b16 %v5050
    %v5604 = vunpack.c.l.b16 %v5051
    %v5605 = vunpack.c.h.b16 %v5051
    %v5606 = vunpack.c.l.b16 %v5052
    %v5607 = vunpack.c.h.b16 %v5052
    %v5608 = vunpack.c.l.b16 %v5053
    %v5609 = vunpack.c.h.b16 %v5053
    %v5610 = vunpack.c.l.b16 %v5054
    %v5611 = vunpack.c.h.b16 %v5054
    %v5612 = vunpack.c.l.b16 %v5055
    %v5613 = vunpack.c.h.b16 %v5055
    %v5614 = vunpack.c.l.b16 %v5056
    %v5615 = vunpack.c.h.b16 %v5056
    %v5616 = vunpack.c.l.b16 %v5057
    %v5617 = vunpack.c.h.b16 %v5057
    %v5618 = vunpack.c.l.b16 %v5058
    %v5619 = vunpack.c.h.b16 %v5058
    %v5620 = vunpack.c.l.b16 %v5059
    %v5621 = vunpack.c.h.b16 %v5059
    %v5622 = vunpack.c.l.b16 %v5060
    %v5623 = vunpack.c.h.b16 %v5060
    %v5624 = vunpack.c.l.b16 %v5061
    %v5625 = vunpack.c.h.b16 %v5061
    %v5626 = vunpack.c.l.b16 %v5062
    %v5627 = vunpack.c.h.b16 %v5062
    %v5628 = vunpack.c.l.b16 %v5063
    %v5629 = vunpack.c.h.b16 %v5063
    %v5630 = vunpack.c.l.b16 %v5064
    %v5631 = vunpack.c.h.b16 %v5064
    %v5632 = vunpack.c.l.b16 %v5065
    %v5633 = vunpack.c.h.b16 %v5065
    %v5634 = vunpack.c.l.b16 %v5066
    %v5635 = vunpack.c.h.b16 %v5066
    %v5636 = vunpack.c.l.b16 %v5067
    %v5637 = vunpack.c.h.b16 %v5067
    %v5638 = vunpack.c.l.b16 %v5068
    %v5639 = vunpack.c.h.b16 %v5068
    %v5640 = vunpack.c.l.b16 %v5069
    %v5641 = vunpack.c.h.b16 %v5069
    %v5642 = vunpack.c.l.b16 %v5070
    %v5643 = vunpack.c.h.b16 %v5070
    %v5644 = vunpack.c.l.b16 %v5071
    %v5645 = vunpack.c.h.b16 %v5071
    %v5646 = vunpack.c.l.b16 %v5072
    %v5647 = vunpack.c.h.b16 %v5072
    %v5648 = vunpack.c.l.b16 %v5073
    %v5649 = vunpack.c.h.b16 %v5073
    %v5650 = vunpack.c.l.b16 %v5074
    %v5651 = vunpack.c.h.b16 %v5074
    %v5652 = vunpack.c.l.b16 %v5075
    %v5653 = vunpack.c.h.b16 %v5075
    %v5654 = vunpack.c.l.b16 %v5076
    %v5655 = vunpack.c.h.b16 %v5076
    %v5656 = vunpack.c.l.b16 %v5077
    %v5657 = vunpack.c.h.b16 %v5077
    %v5658 = vunpack.c.l.b16 %v5078
    %v5659 = vunpack.c.h.b16 %v5078
    %v5660 = vunpack.c.l.b16 %v5079
    %v5661 = vunpack.c.h.b16 %v5079
    %v5662 = vunpack.c.l.b16 %v5080
    %v5663 = vunpack.c.h.b16 %v5080
    %v5664 = vunpack.c.l.b16 %v5081
    %v5665 = vunpack.c.h.b16 %v5081
    %v5666 = vunpack.c.l.b16 %v5082
    %v5667 = vunpack.c.h.b16 %v5082
    %v5668 = vunpack.c.l.b16 %v5083
    %v5669 = vunpack.c.h.b16 %v5083
    %v5670 = vunpack.c.l.b16 %v5084
    %v5671 = vunpack.c.h.b16 %v5084
    %v5672 = vunpack.c.l.b16 %v5085
    %v5673 = vunpack.c.h.b16 %v5085
    %v5674 = vunpack.c.l.b16 %v5086
    %v5675 = vunpack.c.h.b16 %v5086
    %v5676 = vunpack.c.l.b16 %v5087
    %v5677 = vunpack.c.h.b16 %v5087
    %v5678 = vunpack.c.l.b16 %v5088
    %v5679 = vunpack.c.h.b16 %v5088
    %v5680 = vunpack.c.l.b16 %v5089
    %v5681 = vunpack.c.h.b16 %v5089
    %v5682 = vunpack.c.l.b16 %v5090
    %v5683 = vunpack.c.h.b16 %v5090
    %v5684 = vunpack.c.l.b16 %v5091
    %v5685 = vunpack.c.h.b16 %v5091
    %v5686 = vunpack.c.l.b16 %v5092
    %v5687 = vunpack.c.h.b16 %v5092
    %v5688 = vunpack.c.l.b16 %v5093
    %v5689 = vunpack.c.h.b16 %v5093
    %v5690 = vunpack.c.l.b16 %v5094
    %v5691 = vunpack.c.h.b16 %v5094
    %v5692 = vunpack.c.l.b16 %v5095
    %v5693 = vunpack.c.h.b16 %v5095
    %v5694 = vunpack.c.l.b16 %v5096
    %v5695 = vunpack.c.h.b16 %v5096
    %v5696 = vunpack.c.l.b16 %v5097
    %v5697 = vunpack.c.h.b16 %v5097
    %v5698 = vunpack.c.l.b16 %v5098
    %v5699 = vunpack.c.h.b16 %v5098
    %v5700 = vunpack.c.l.b16 %v5099
    %v5701 = vunpack.c.h.b16 %v5099
    %v5702 = vunpack.c.l.b16 %v5100
    %v5703 = vunpack.c.h.b16 %v5100
    %v5704 = vunpack.c.l.b16 %v5101
    %v5705 = vunpack.c.h.b16 %v5101
    %v5706 = vunpack.c.l.b16 %v5102
    %v5707 = vunpack.c.h.b16 %v5102
    %v5708 = vunpack.c.l.b16 %v5103
    %v5709 = vunpack.c.h.b16 %v5103
    %v5710 = vunpack.c.l.b16 %v5104
    %v5711 = vunpack.c.h.b16 %v5104
    %v5712 = vunpack.c.l.b16 %v5105
    %v5713 = vunpack.c.h.b16 %v5105
    %v5714 = vunpack.c.l.b16 %v5106
    %v5715 = vunpack.c.h.b16 %v5106
    %v5716 = vunpack.c.l.b16 %v5107
    %v5717 = vunpack.c.h.b16 %v5107
    %v5718 = vunpack.c.l.b16 %v5108
    %v5719 = vunpack.c.h.b16 %v5108
    %v5720 = vunpack.c.l.b16 %v5109
    %v5721 = vunpack.c.h.b16 %v5109
    %v5722 = vunpack.c.l.b16 %v5110
    %v5723 = vunpack.c.h.b16 %v5110
    %v5724 = vunpack.c.l.b16 %v5111
    %v5725 = vunpack.c.h.b16 %v5111
    %v5726 = vunpack.c.l.b16 %v5112
    %v5727 = vunpack.c.h.b16 %v5112
    %v5728 = vunpack.c.l.b16 %v5113
    %v5729 = vunpack.c.h.b16 %v5113
    %v5730 = vunpack.c.l.b16 %v5114
    %v5731 = vunpack.c.h.b16 %v5114
    %v5732 = vunpack.c.l.b16 %v5115
    %v5733 = vunpack.c.h.b16 %v5115
    %v5734 = vunpack.c.l.b16 %v5116
    %v5735 = vunpack.c.h.b16 %v5116
    %v5736 = vunpack.c.l.b16 %v5117
    %v5737 = vunpack.c.h.b16 %v5117
    %v5738 = vunpack.c.l.b16 %v5118
    %v5739 = vunpack.c.h.b16 %v5118
    %v5740 = vunpack.c.l.b16 %v5119
    %v5741 = vunpack.c.h.b16 %v5119
    %v5742 = vunpack.c.l.b16 %v5120
    %v5743 = vunpack.c.h.b16 %v5120
    %v5744 = vunpack.c.l.b16 %v5121
    %v5745 = vunpack.c.h.b16 %v5121
    %v5746 = vunpack.c.l.b16 %v5122
    %v5747 = vunpack.c.h.b16 %v5122
    %v5748 = vunpack.c.l.b16 %v5123
    %v5749 = vunpack.c.h.b16 %v5123
    %v5750 = vunpack.c.l.b16 %v5124
    %v5751 = vunpack.c.h.b16 %v5124
    %v5752 = vunpack.c.l.b16 %v5125
    %v5753 = vunpack.c.h.b16 %v5125
    %v5754 = vunpack.c.l.b16 %v5126
    %v5755 = vunpack.c.h.b16 %v5126
    %v5756 = vunpack.c.l.b16 %v5127
    %v5757 = vunpack.c.h.b16 %v5127
    %v5758 = vunpack.c.l.b16 %v5128
    %v5759 = vunpack.c.h.b16 %v5128
    %v5760 = vunpack.c.l.b16 %v5129
    %v5761 = vunpack.c.h.b16 %v5129
    %v5762 = vunpack.c.l.b16 %v5130
    %v5763 = vunpack.c.h.b16 %v5130
    %v5764 = vunpack.c.l.b16 %v5131
    %v5765 = vunpack.c.h.b16 %v5131
    %v5766 = vunpack.c.l.b16 %v5132
    %v5767 = vunpack.c.h.b16 %v5132
    %v5768 = vunpack.c.l.b16 %v5133
    %v5769 = vunpack.c.h.b16 %v5133
    %v5770 = vunpack.c.l.b16 %v5134
    %v5771 = vunpack.c.h.b16 %v5134
    %v5772 = vunpack.c.l.b16 %v5135
    %v5773 = vunpack.c.h.b16 %v5135
    %v5774 = vunpack.c.l.b16 %v5136
    %v5775 = vunpack.c.h.b16 %v5136
    %v5776 = vunpack.c.l.b16 %v5137
    %v5777 = vunpack.c.h.b16 %v5137
    %v5778 = vunpack.c.l.b16 %v5138
    %v5779 = vunpack.c.h.b16 %v5138
    %v5780 = vunpack.c.l.b16 %v5139
    %v5781 = vunpack.c.h.b16 %v5139
    %v5782 = vunpack.c.l.b16 %v5140
    %v5783 = vunpack.c.h.b16 %v5140
    %v5784 = vunpack.c.l.b16 %v5141
    %v5785 = vunpack.c.h.b16 %v5141
    %v5786 = vunpack.c.l.b16 %v5142
    %v5787 = vunpack.c.h.b16 %v5142
    %v5788 = vunpack.c.l.b16 %v5143
    %v5789 = vunpack.c.h.b16 %v5143
    %v5790 = vunpack.c.l.b16 %v5144
    %v5791 = vunpack.c.h.b16 %v5144
    %v5792 = vunpack.c.l.b16 %v5145
    %v5793 = vunpack.c.h.b16 %v5145
    %v5794 = vunpack.c.l.b16 %v5146
    %v5795 = vunpack.c.h.b16 %v5146
    %v5796 = vunpack.c.l.b16 %v5147
    %v5797 = vunpack.c.h.b16 %v5147
    %v5798 = vunpack.c.l.b16 %v5148
    %v5799 = vunpack.c.h.b16 %v5148
    %v5800 = vunpack.c.l.b16 %v5149
    %v5801 = vunpack.c.h.b16 %v5149
    %v5802 = vunpack.c.l.b16 %v5150
    %v5803 = vunpack.c.h.b16 %v5150
    %v5804 = vunpack.c.l.b16 %v5151
    %v5805 = vunpack.c.h.b16 %v5151
    %v5806 = vunpack.c.l.b16 %v5152
    %v5807 = vunpack.c.h.b16 %v5152
    %v5808 = vunpack.c.l.b16 %v5153
    %v5809 = vunpack.c.h.b16 %v5153
    %v5810 = vunpack.c.l.b16 %v5154
    %v5811 = vunpack.c.h.b16 %v5154
    %v5812 = vunpack.c.l.b16 %v5155
    %v5813 = vunpack.c.h.b16 %v5155
    %v5814 = vunpack.c.l.b16 %v5156
    %v5815 = vunpack.c.h.b16 %v5156
    %v5816 = vunpack.c.l.b16 %v5157
    %v5817 = vunpack.c.h.b16 %v5157
    %v5818 = vunpack.c.l.b16 %v5158
    %v5819 = vunpack.c.h.b16 %v5158
    %v5820 = vunpack.c.l.b16 %v5159
    %v5821 = vunpack.c.h.b16 %v5159
    %v5822 = vunpack.c.l.b16 %v5160
    %v5823 = vunpack.c.h.b16 %v5160
    %v5824 = vunpack.c.l.b16 %v5161
    %v5825 = vunpack.c.h.b16 %v5161
    %v5826 = vunpack.c.l.b16 %v5162
    %v5827 = vunpack.c.h.b16 %v5162
    %v5828 = vunpack.c.l.b16 %v5163
    %v5829 = vunpack.c.h.b16 %v5163
    %v5830 = vunpack.c.l.b16 %v5164
    %v5831 = vunpack.c.h.b16 %v5164
    %v5832 = vunpack.c.l.b16 %v5165
    %v5833 = vunpack.c.h.b16 %v5165
    %v5834 = vunpack.c.l.b16 %v5166
    %v5835 = vunpack.c.h.b16 %v5166
    %v5836 = vunpack.c.l.b16 %v5167
    %v5837 = vunpack.c.h.b16 %v5167
    %v5838 = vunpack.c.l.b16 %v5168
    %v5839 = vunpack.c.h.b16 %v5168
    %v5840 = vunpack.c.l.b16 %v5169
    %v5841 = vunpack.c.h.b16 %v5169
    %v5842 = vunpack.c.l.b16 %v5170
    %v5843 = vunpack.c.h.b16 %v5170
    %v5844 = vunpack.c.l.b16 %v5171
    %v5845 = vunpack.c.h.b16 %v5171
    %v5846 = vunpack.c.l.b16 %v5172
    %v5847 = vunpack.c.h.b16 %v5172
    %v5848 = vunpack.c.l.b16 %v5173
    %v5849 = vunpack.c.h.b16 %v5173
    %v5850 = vunpack.c.l.b16 %v5174
    %v5851 = vunpack.c.h.b16 %v5174
    %v5852 = vunpack.c.l.b16 %v5175
    %v5853 = vunpack.c.h.b16 %v5175
    %v5854 = vunpack.c.l.b16 %v5176
    %v5855 = vunpack.c.h.b16 %v5176
    %v5856 = vunpack.c.l.b16 %v5177
    %v5857 = vunpack.c.h.b16 %v5177
    %v5858 = vunpack.c.l.b16 %v5178
    %v5859 = vunpack.c.h.b16 %v5178
    %v5860 = vunpack.c.l.b16 %v5179
    %v5861 = vunpack.c.h.b16 %v5179
    %v5862 = vunpack.c.l.b16 %v5180
    %v5863 = vunpack.c.h.b16 %v5180
    %v5864 = vunpack.c.l.b16 %v5181
    %v5865 = vunpack.c.h.b16 %v5181
    %v5866 = vunpack.c.l.b16 %v5182
    %v5867 = vunpack.c.h.b16 %v5182
    %v5868 = vunpack.c.l.b16 %v5183
    %v5869 = vunpack.c.h.b16 %v5183
    %v5870 = vunpack.c.l.b16 %v5184
    %v5871 = vunpack.c.h.b16 %v5184
    %v5872 = vunpack.c.l.b16 %v5185
    %v5873 = vunpack.c.h.b16 %v5185
    %v5874 = vunpack.c.l.b16 %v5186
    %v5875 = vunpack.c.h.b16 %v5186
    %v5876 = vunpack.c.l.b16 %v5187
    %v5877 = vunpack.c.h.b16 %v5187
    %v5878 = vunpack.c.l.b16 %v5188
    %v5879 = vunpack.c.h.b16 %v5188
    %v5880 = vunpack.c.l.b16 %v5189
    %v5881 = vunpack.c.h.b16 %v5189
    %v5882 = vunpack.c.l.b16 %v5190
    %v5883 = vunpack.c.h.b16 %v5190
    %v5884 = vunpack.c.l.b16 %v5191
    %v5885 = vunpack.c.h.b16 %v5191
    %v5886 = vunpack.c.l.b16 %v5192
    %v5887 = vunpack.c.h.b16 %v5192
    %v5888 = vunpack.c.l.b16 %v5193
    %v5889 = vunpack.c.h.b16 %v5193
    %v5890 = vunpack.c.l.b16 %v5194
    %v5891 = vunpack.c.h.b16 %v5194
    %v5892 = vunpack.c.l.b16 %v5195
    %v5893 = vunpack.c.h.b16 %v5195
    %v5894 = vunpack.c.l.b16 %v5196
    %v5895 = vunpack.c.h.b16 %v5196
    %v5896 = vunpack.c.l.b16 %v5197
    %v5897 = vunpack.c.h.b16 %v5197
    %v5898 = vunpack.c.l.b16 %v5198
    %v5899 = vunpack.c.h.b16 %v5198
    %v5900 = vunpack.c.l.b16 %v5199
    %v5901 = vunpack.c.h.b16 %v5199
    %v5902 = vunpack.c.l.b16 %v5200
    %v5903 = vunpack.c.h.b16 %v5200
    %v5904 = vunpack.c.l.b16 %v5201
    %v5905 = vunpack.c.h.b16 %v5201
    %v5906 = vunpack.c.l.b16 %v5202
    %v5907 = vunpack.c.h.b16 %v5202
    %v5908 = vunpack.c.l.b16 %v5203
    %v5909 = vunpack.c.h.b16 %v5203
    %v5910 = vunpack.c.l.b16 %v5204
    %v5911 = vunpack.c.h.b16 %v5204
    %v5912 = vunpack.c.l.b16 %v5205
    %v5913 = vunpack.c.h.b16 %v5205
    %v5914 = vunpack.c.l.b16 %v5206
    %v5915 = vunpack.c.h.b16 %v5206
    %v5916 = vunpack.c.l.b16 %v5207
    %v5917 = vunpack.c.h.b16 %v5207
    %v5918 = vunpack.c.l.b16 %v5208
    %v5919 = vunpack.c.h.b16 %v5208
    %v5920 = vunpack.c.l.b16 %v5209
    %v5921 = vunpack.c.h.b16 %v5209
    %v5922 = vunpack.c.l.b16 %v5210
    %v5923 = vunpack.c.h.b16 %v5210
    %v5924 = vunpack.c.l.b16 %v5211
    %v5925 = vunpack.c.h.b16 %v5211
    %v5926 = vunpack.c.l.b16 %v5212
    %v5927 = vunpack.c.h.b16 %v5212
    %v5928 = vunpack.c.l.b16 %v5213
    %v5929 = vunpack.c.h.b16 %v5213
    %v5930 = vunpack.c.l.b16 %v5214
    %v5931 = vunpack.c.h.b16 %v5214
    %v5932 = vunpack.c.l.b16 %v5215
    %v5933 = vunpack.c.h.b16 %v5215
    %v5934 = vunpack.c.l.b16 %v5216
    %v5935 = vunpack.c.h.b16 %v5216
    %v5936 = vunpack.c.l.b16 %v5217
    %v5937 = vunpack.c.h.b16 %v5217
    %v5938 = vunpack.c.l.b16 %v5218
    %v5939 = vunpack.c.h.b16 %v5218
    %v5940 = vunpack.c.l.b16 %v5219
    %v5941 = vunpack.c.h.b16 %v5219
    %v5942 = vunpack.c.l.b16 %v5220
    %v5943 = vunpack.c.h.b16 %v5220
    %v5944 = vunpack.c.l.b16 %v5221
    %v5945 = vunpack.c.h.b16 %v5221
    %v5946 = vunpack.c.l.b16 %v5222
    %v5947 = vunpack.c.h.b16 %v5222
    %v5948 = vunpack.c.l.b16 %v5223
    %v5949 = vunpack.c.h.b16 %v5223
    %v5950 = vunpack.c.l.b16 %v5224
    %v5951 = vunpack.c.h.b16 %v5224
    %v5952 = vunpack.c.l.b16 %v5225
    %v5953 = vunpack.c.h.b16 %v5225
    %v5954 = vunpack.c.l.b16 %v5226
    %v5955 = vunpack.c.h.b16 %v5226
    %v5956 = vunpack.c.l.b16 %v5227
    %v5957 = vunpack.c.h.b16 %v5227
    %v5958 = vunpack.c.l.b16 %v5228
    %v5959 = vunpack.c.h.b16 %v5228
    %v5960 = vunpack.c.l.b16 %v5229
    %v5961 = vunpack.c.h.b16 %v5229
    %v5962 = vunpack.c.l.b16 %v5230
    %v5963 = vunpack.c.h.b16 %v5230
    %v5964 = vunpack.c.l.b16 %v5231
    %v5965 = vunpack.c.h.b16 %v5231
    %v5966 = vunpack.c.l.b16 %v5232
    %v5967 = vunpack.c.h.b16 %v5232
    %v5968 = vunpack.c.l.b16 %v5233
    %v5969 = vunpack.c.h.b16 %v5233
    %v5970 = vunpack.c.l.b16 %v5234
    %v5971 = vunpack.c.h.b16 %v5234
    %v5972 = vunpack.c.l.b16 %v5235
    %v5973 = vunpack.c.h.b16 %v5235
    %v5974 = vunpack.c.l.b16 %v5236
    %v5975 = vunpack.c.h.b16 %v5236
    %v5976 = vunpack.c.l.b16 %v5237
    %v5977 = vunpack.c.h.b16 %v5237
    %v5978 = vunpack.c.l.b16 %v5238
    %v5979 = vunpack.c.h.b16 %v5238
    %v5980 = vunpack.c.l.b16 %v5239
    %v5981 = vunpack.c.h.b16 %v5239
    %v5982 = vunpack.c.l.b16 %v5240
    %v5983 = vunpack.c.h.b16 %v5240
    %v5984 = vunpack.c.l.b16 %v5241
    %v5985 = vunpack.c.h.b16 %v5241
    %v5986 = vunpack.c.l.b16 %v5242
    %v5987 = vunpack.c.h.b16 %v5242
    %v5988 = vunpack.c.l.b16 %v5243
    %v5989 = vunpack.c.h.b16 %v5243
    %v5990 = vunpack.c.l.b16 %v5244
    %v5991 = vunpack.c.h.b16 %v5244
    %v5992 = vunpack.c.l.b16 %v5245
    %v5993 = vunpack.c.h.b16 %v5245
    %v5994 = vunpack.c.l.b16 %v5246
    %v5995 = vunpack.c.h.b16 %v5246
    %v5996 = vunpack.c.l.b16 %v5247
    %v5997 = vunpack.c.h.b16 %v5247
    %v5998 = vunpack.c.l.b16 %v5248
    %v5999 = vunpack.c.h.b16 %v5248
    %v6000 = vunpack.c.l.b16 %v5249
    %v6001 = vunpack.c.h.b16 %v5249
    %v6002 = vunpack.c.l.b16 %v5250
    %v6003 = vunpack.c.h.b16 %v5250
    %v6004 = vunpack.c.l.b16 %v5251
    %v6005 = vunpack.c.h.b16 %v5251
    %v6006 = vunpack.c.l.b16 %v5252
    %v6007 = vunpack.c.h.b16 %v5252
    %v6008 = vunpack.c.l.b16 %v5253
    %v6009 = vunpack.c.h.b16 %v5253
    %v6010 = vunpack.c.l.b16 %v5254
    %v6011 = vunpack.c.h.b16 %v5254
    %v6012 = vunpack.c.l.b16 %v5255
    %v6013 = vunpack.c.h.b16 %v5255
    %v6014 = vunpack.c.l.b16 %v5256
    %v6015 = vunpack.c.h.b16 %v5256
    %v6016 = vunpack.c.l.b16 %v5257
    %v6017 = vunpack.c.h.b16 %v5257
    %v6018 = vunpack.c.l.b16 %v5258
    %v6019 = vunpack.c.h.b16 %v5258
    %v6020 = vunpack.c.l.b16 %v5259
    %v6021 = vunpack.c.h.b16 %v5259
    %v6022 = vunpack.c.l.b16 %v5260
    %v6023 = vunpack.c.h.b16 %v5260
    %v6024 = vunpack.c.l.b16 %v5261
    %v6025 = vunpack.c.h.b16 %v5261
    %v6026 = vunpack.c.l.b16 %v5262
    %v6027 = vunpack.c.h.b16 %v5262
    %v6028 = vunpack.c.l.b16 %v5263
    %v6029 = vunpack.c.h.b16 %v5263
    %v6030 = vunpack.c.l.b16 %v5264
    %v6031 = vunpack.c.h.b16 %v5264
    %v6032 = vunpack.c.l.b16 %v5265
    %v6033 = vunpack.c.h.b16 %v5265
    %v6034 = vunpack.c.l.b16 %v5266
    %v6035 = vunpack.c.h.b16 %v5266
    %v6036 = vunpack.c.l.b16 %v5267
    %v6037 = vunpack.c.h.b16 %v5267
    %v6038 = vunpack.c.l.b16 %v5268
    %v6039 = vunpack.c.h.b16 %v5268
    %v6040 = vunpack.c.l.b16 %v5269
    %v6041 = vunpack.c.h.b16 %v5269
    %v6042 = vunpack.c.l.b16 %v5270
    %v6043 = vunpack.c.h.b16 %v5270
    %v6044 = vunpack.c.l.b16 %v5271
    %v6045 = vunpack.c.h.b16 %v5271
    %v6046 = vunpack.c.l.b16 %v5272
    %v6047 = vunpack.c.h.b16 %v5272
    %v6048 = vunpack.c.l.b16 %v5273
    %v6049 = vunpack.c.h.b16 %v5273
    %v6050 = vunpack.c.l.b16 %v5274
    %v6051 = vunpack.c.h.b16 %v5274
    %v6052 = vunpack.c.l.b16 %v5275
    %v6053 = vunpack.c.h.b16 %v5275
    %v6054 = vunpack.c.l.b16 %v5276
    %v6055 = vunpack.c.h.b16 %v5276
    %v6056 = vunpack.c.l.b16 %v5277
    %v6057 = vunpack.c.h.b16 %v5277
    %v6058 = vunpack.c.l.b16 %v5278
    %v6059 = vunpack.c.h.b16 %v5278
    %v6060 = vunpack.c.l.b16 %v5279
    %v6061 = vunpack.c.h.b16 %v5279
    %v6062 = vunpack.c.l.b16 %v5280
    %v6063 = vunpack.c.h.b16 %v5280
    %v6064 = vunpack.c.l.b16 %v5281
    %v6065 = vunpack.c.h.b16 %v5281
    %v6066 = vunpack.c.l.b16 %v5282
    %v6067 = vunpack.c.h.b16 %v5282
    %v6068 = vunpack.c.l.b16 %v5283
    %v6069 = vunpack.c.h.b16 %v5283
    %v6070 = vunpack.c.l.b16 %v5284
    %v6071 = vunpack.c.h.b16 %v5284
    %v6072 = vunpack.c.l.b16 %v5285
    %v6073 = vunpack.c.h.b16 %v5285
    %v6074 = vunpack.c.l.b16 %v5286
    %v6075 = vunpack.c.h.b16 %v5286
    %v6076 = vunpack.c.l.b16 %v5287
    %v6077 = vunpack.c.h.b16 %v5287
    %v6078 = vpack.c.b16 %v5570, %v5566
    %v6079 = vpack.c.b16 %v5571, %v5567
    %v6080 = vpack.c.b16 %v5572, %v5568
    %v6081 = vpack.c.b16 %v5573, %v5569
    %v6082 = vpack.c.b16 %v5578, %v5574
    %v6083 = vpack.c.b16 %v5579, %v5575
    %v6084 = vpack.c.b16 %v5580, %v5576
    %v6085 = vpack.c.b16 %v5581, %v5577
    %v6086 = vpack.c.b16 %v5586, %v5582
    %v6087 = vpack.c.b16 %v5587, %v5583
    %v6088 = vpack.c.b16 %v5588, %v5584
    %v6089 = vpack.c.b16 %v5589, %v5585
    %v6090 = vpack.c.b16 %v5594, %v5590
    %v6091 = vpack.c.b16 %v5595, %v5591
    %v6092 = vpack.c.b16 %v5596, %v5592
    %v6093 = vpack.c.b16 %v5597, %v5593
    %v6094 = vpack.c.b16 %v5602, %v5598
    %v6095 = vpack.c.b16 %v5603, %v5599
    %v6096 = vpack.c.b16 %v5604, %v5600
    %v6097 = vpack.c.b16 %v5605, %v5601
    %v6098 = vpack.c.b16 %v5610, %v5606
    %v6099 = vpack.c.b16 %v5611, %v5607
    %v6100 = vpack.c.b16 %v5612, %v5608
    %v6101 = vpack.c.b16 %v5613, %v5609
    %v6102 = vpack.c.b16 %v5618, %v5614
    %v6103 = vpack.c.b16 %v5619, %v5615
    %v6104 = vpack.c.b16 %v5620, %v5616
    %v6105 = vpack.c.b16 %v5621, %v5617
    %v6106 = vpack.c.b16 %v5626, %v5622
    %v6107 = vpack.c.b16 %v5627, %v5623
    %v6108 = vpack.c.b16 %v5628, %v5624
    %v6109 = vpack.c.b16 %v5629, %v5625
    %v6110 = vpack.c.b16 %v5634, %v5630
    %v6111 = vpack.c.b16 %v5635, %v5631
    %v6112 = vpack.c.b16 %v5636, %v5632
    %v6113 = vpack.c.b16 %v5637, %v5633
    %v6114 = vpack.c.b16 %v5642, %v5638
    %v6115 = vpack.c.b16 %v5643, %v5639
    %v6116 = vpack.c.b16 %v5644, %v5640
    %v6117 = vpack.c.b16 %v5645, %v5641
    %v6118 = vpack.c.b16 %v5650, %v5646
    %v6119 = vpack.c.b16 %v5651, %v5647
    %v6120 = vpack.c.b16 %v5652, %v5648
    %v6121 = vpack.c.b16 %v5653, %v5649
    %v6122 = vpack.c.b16 %v5658, %v5654
    %v6123 = vpack.c.b16 %v5659, %v5655
    %v6124 = vpack.c.b16 %v5660, %v5656
    %v6125 = vpack.c.b16 %v5661, %v5657
    %v6126 = vpack.c.b16 %v5666, %v5662
    %v6127 = vpack.c.b16 %v5667, %v5663
    %v6128 = vpack.c.b16 %v5668, %v5664
    %v6129 = vpack.c.b16 %v5669, %v5665
    %v6130 = vpack.c.b16 %v5674, %v5670
    %v6131 = vpack.c.b16 %v5675, %v5671
    %v6132 = vpack.c.b16 %v5676, %v5672
    %v6133 = vpack.c.b16 %v5677, %v5673
    %v6134 = vpack.c.b16 %v5682, %v5678
    %v6135 = vpack.c.b16 %v5683, %v5679
    %v6136 = vpack.c.b16 %v5684, %v5680
    %v6137 = vpack.c.b16 %v5685, %v5681
    %v6138 = vpack.c.b16 %v5690, %v5686
    %v6139 = vpack.c.b16 %v5691, %v5687
    %v6140 = vpack.c.b16 %v5692, %v5688
    %v6141 = vpack.c.b16 %v5693, %v5689
    %v6142 = vpack.c.b16 %v5698, %v5694
    %v6143 = vpack.c.b16 %v5699, %v5695
    %v6144 = vpack.c.b16 %v5700, %v5696
    %v6145 = vpack.c.b16 %v5701, %v5697
    %v6146 = vpack.c.b16 %v5706, %v5702
    %v6147 = vpack.c.b16 %v5707, %v5703
    %v6148 = vpack.c.b16 %v5708, %v5704
    %v6149 = vpack.c.b16 %v5709, %v5705
    %v6150 = vpack.c.b16 %v5714, %v5710
    %v6151 = vpack.c.b16 %v5715, %v5711
    %v6152 = vpack.c.b16 %v5716, %v5712
    %v6153 = vpack.c.b16 %v5717, %v5713
    %v6154 = vpack.c.b16 %v5722, %v5718
    %v6155 = vpack.c.b16 %v5723, %v5719
    %v6156 = vpack.c.b16 %v5724, %v5720
    %v6157 = vpack.c.b16 %v5725, %v5721
    %v6158 = vpack.c.b16 %v5730, %v5726
    %v6159 = vpack.c.b16 %v5731, %v5727
    %v6160 = vpack.c.b16 %v5732, %v5728
    %v6161 = vpack.c.b16 %v5733, %v5729
    %v6162 = vpack.c.b16 %v5738, %v5734
    %v6163 = vpack.c.b16 %v5739, %v5735
    %v6164 = vpack.c.b16 %v5740, %v5736
    %v6165 = vpack.c.b16 %v5741, %v5737
    %v6166 = vpack.c.b16 %v5746, %v5742
    %v6167 = vpack.c.b16 %v5747, %v5743
    %v6168 = vpack.c.b16 %v5748, %v5744
    %v6169 = vpack.c.b16 %v5749, %v5745
    %v6170 = vpack.c.b16 %v5754, %v5750
    %v6171 = vpack.c.b16 %v5755, %v5751
    %v6172 = vpack.c.b16 %v5756, %v5752
    %v6173 = vpack.c.b16 %v5757, %v5753
    %v6174 = vpack.c.b16 %v5762, %v5758
    %v6175 = vpack.c.b16 %v5763, %v5759
    %v6176 = vpack.c.b16 %v5764, %v5760
    %v6177 = vpack.c.b16 %v5765, %v5761
    %v6178 = vpack.c.b16 %v5770, %v5766
    %v6179 = vpack.c.b16 %v5771, %v5767
    %v6180 = vpack.c.b16 %v5772, %v5768
    %v6181 = vpack.c.b16 %v5773, %v5769
    %v6182 = vpack.c.b16 %v5778, %v5774
    %v6183 = vpack.c.b16 %v5779, %v5775
    %v6184 = vpack.c.b16 %v5780, %v5776
    %v6185 = vpack.c.b16 %v5781, %v5777
    %v6186 = vpack.c.b16 %v5786, %v5782
    %v6187 = vpack.c.b16 %v5787, %v5783
    %v6188 = vpack.c.b16 %v5788, %v5784
    %v6189 = vpack.c.b16 %v5789, %v5785
    %v6190 = vpack.c.b16 %v5794, %v5790
    %v6191 = vpack.c.b16 %v5795, %v5791
    %v6192 = vpack.c.b16 %v5796, %v5792
    %v6193 = vpack.c.b16 %v5797, %v5793
    %v6194 = vpack.c.b16 %v5802, %v5798
    %v6195 = vpack.c.b16 %v5803, %v5799
    %v6196 = vpack.c.b16 %v5804, %v5800
    %v6197 = vpack.c.b16 %v5805, %v5801
    %v6198 = vpack.c.b16 %v5810, %v5806
    %v6199 = vpack.c.b16 %v5811, %v5807
    %v6200 = vpack.c.b16 %v5812, %v5808
    %v6201 = vpack.c.b16 %v5813, %v5809
    %v6202 = vpack.c.b16 %v5818, %v5814
    %v6203 = vpack.c.b16 %v5819, %v5815
    %v6204 = vpack.c.b16 %v5820, %v5816
    %v6205 = vpack.c.b16 %v5821, %v5817
    %v6206 = vpack.c.b16 %v5826, %v5822
    %v6207 = vpack.c.b16 %v5827, %v5823
    %v6208 = vpack.c.b16 %v5828, %v5824
    %v6209 = vpack.c.b16 %v5829, %v5825
    %v6210 = vpack.c.b16 %v5834, %v5830
    %v6211 = vpack.c.b16 %v5835, %v5831
    %v6212 = vpack.c.b16 %v5836, %v5832
    %v6213 = vpack.c.b16 %v5837, %v5833
    %v6214 = vpack.c.b16 %v5842, %v5838
    %v6215 = vpack.c.b16 %v5843, %v5839
    %v6216 = vpack.c.b16 %v5844, %v5840
    %v6217 = vpack.c.b16 %v5845, %v5841
    %v6218 = vpack.c.b16 %v5850, %v5846
    %v6219 = vpack.c.b16 %v5851, %v5847
    %v6220 = vpack.c.b16 %v5852, %v5848
    %v6221 = vpack.c.b16 %v5853, %v5849
    %v6222 = vpack.c.b16 %v5858, %v5854
    %v6223 = vpack.c.b16 %v5859, %v5855
    %v6224 = vpack.c.b16 %v5860, %v5856
    %v6225 = vpack.c.b16 %v5861, %v5857
    %v6226 = vpack.c.b16 %v5866, %v5862
    %v6227 = vpack.c.b16 %v5867, %v5863
    %v6228 = vpack.c.b16 %v5868, %v5864
    %v6229 = vpack.c.b16 %v5869, %v5865
    %v6230 = vpack.c.b16 %v5874, %v5870
    %v6231 = vpack.c.b16 %v5875, %v5871
    %v6232 = vpack.c.b16 %v5876, %v5872
    %v6233 = vpack.c.b16 %v5877, %v5873
    %v6234 = vpack.c.b16 %v5882, %v5878
    %v6235 = vpack.c.b16 %v5883, %v5879
    %v6236 = vpack.c.b16 %v5884, %v5880
    %v6237 = vpack.c.b16 %v5885, %v5881
    %v6238 = vpack.c.b16 %v5890, %v5886
    %v6239 = vpack.c.b16 %v5891, %v5887
    %v6240 = vpack.c.b16 %v5892, %v5888
    %v6241 = vpack.c.b16 %v5893, %v5889
    %v6242 = vpack.c.b16 %v5898, %v5894
    %v6243 = vpack.c.b16 %v5899, %v5895
    %v6244 = vpack.c.b16 %v5900, %v5896
    %v6245 = vpack.c.b16 %v5901, %v5897
    %v6246 = vpack.c.b16 %v5906, %v5902
    %v6247 = vpack.c.b16 %v5907, %v5903
    %v6248 = vpack.c.b16 %v5908, %v5904
    %v6249 = vpack.c.b16 %v5909, %v5905
    %v6250 = vpack.c.b16 %v5914, %v5910
    %v6251 = vpack.c.b16 %v5915, %v5911
    %v6252 = vpack.c.b16 %v5916, %v5912
    %v6253 = vpack.c.b16 %v5917, %v5913
    %v6254 = vpack.c.b16 %v5922, %v5918
    %v6255 = vpack.c.b16 %v5923, %v5919
    %v6256 = vpack.c.b16 %v5924, %v5920
    %v6257 = vpack.c.b16 %v5925, %v5921
    %v6258 = vpack.c.b16 %v5930, %v5926
    %v6259 = vpack.c.b16 %v5931, %v5927
    %v6260 = vpack.c.b16 %v5932, %v5928
    %v6261 = vpack.c.b16 %v5933, %v5929
    %v6262 = vpack.c.b16 %v5938, %v5934
    %v6263 = vpack.c.b16 %v5939, %v5935
    %v6264 = vpack.c.b16 %v5940, %v5936
    %v6265 = vpack.c.b16 %v5941, %v5937
    %v6266 = vpack.c.b16 %v5946, %v5942
    %v6267 = vpack.c.b16 %v5947, %v5943
    %v6268 = vpack.c.b16 %v5948, %v5944
    %v6269 = vpack.c.b16 %v5949, %v5945
    %v6270 = vpack.c.b16 %v5954, %v5950
    %v6271 = vpack.c.b16 %v5955, %v5951
    %v6272 = vpack.c.b16 %v5956, %v5952
    %v6273 = vpack.c.b16 %v5957, %v5953
    %v6274 = vpack.c.b16 %v5962, %v5958
    %v6275 = vpack.c.b16 %v5963, %v5959
    %v6276 = vpack.c.b16 %v5964, %v5960
    %v6277 = vpack.c.b16 %v5965, %v5961
    %v6278 = vpack.c.b16 %v5970, %v5966
    %v6279 = vpack.c.b16 %v5971, %v5967
    %v6280 = vpack.c.b16 %v5972, %v5968
    %v6281 = vpack.c.b16 %v5973, %v5969
    %v6282 = vpack.c.b16 %v5978, %v5974
    %v6283 = vpack.c.b16 %v5979, %v5975
    %v6284 = vpack.c.b16 %v5980, %v5976
    %v6285 = vpack.c.b16 %v5981, %v5977
    %v6286 = vpack.c.b16 %v5986, %v5982
    %v6287 = vpack.c.b16 %v5987, %v5983
    %v6288 = vpack.c.b16 %v5988, %v5984
    %v6289 = vpack.c.b16 %v5989, %v5985
    %v6290 = vpack.c.b16 %v5994, %v5990
    %v6291 = vpack.c.b16 %v5995, %v5991
    %v6292 = vpack.c.b16 %v5996, %v5992
    %v6293 = vpack.c.b16 %v5997, %v5993
    %v6294 = vpack.c.b16 %v6002, %v5998
    %v6295 = vpack.c.b16 %v6003, %v5999
    %v6296 = vpack.c.b16 %v6004, %v6000
    %v6297 = vpack.c.b16 %v6005, %v6001
    %v6298 = vpack.c.b16 %v6010, %v6006
    %v6299 = vpack.c.b16 %v6011, %v6007
    %v6300 = vpack.c.b16 %v6012, %v6008
    %v6301 = vpack.c.b16 %v6013, %v6009
    %v6302 = vpack.c.b16 %v6018, %v6014
    %v6303 = vpack.c.b16 %v6019, %v6015
    %v6304 = vpack.c.b16 %v6020, %v6016
    %v6305 = vpack.c.b16 %v6021, %v6017
    %v6306 = vpack.c.b16 %v6026, %v6022
    %v6307 = vpack.c.b16 %v6027, %v6023
    %v6308 = vpack.c.b16 %v6028, %v6024
    %v6309 = vpack.c.b16 %v6029, %v6025
    %v6310 = vpack.c.b16 %v6034, %v6030
    %v6311 = vpack.c.b16 %v6035, %v6031
    %v6312 = vpack.c.b16 %v6036, %v6032
    %v6313 = vpack.c.b16 %v6037, %v6033
    %v6314 = vpack.c.b16 %v6042, %v6038
    %v6315 = vpack.c.b16 %v6043, %v6039
    %v6316 = vpack.c.b16 %v6044, %v6040
    %v6317 = vpack.c.b16 %v6045, %v6041
    %v6318 = vpack.c.b16 %v6050, %v6046
    %v6319 = vpack.c.b16 %v6051, %v6047
    %v6320 = vpack.c.b16 %v6052, %v6048
    %v6321 = vpack.c.b16 %v6053, %v6049
    %v6322 = vpack.c.b16 %v6058, %v6054
    %v6323 = vpack.c.b16 %v6059, %v6055
    %v6324 = vpack.c.b16 %v6060, %v6056
    %v6325 = vpack.c.b16 %v6061, %v6057
    %v6326 = vpack.c.b16 %v6066, %v6062
    %v6327 = vpack.c.b16 %v6067, %v6063
    %v6328 = vpack.c.b16 %v6068, %v6064
    %v6329 = vpack.c.b16 %v6069, %v6065
    %v6330 = vpack.c.b16 %v6074, %v6070
    %v6331 = vpack.c.b16 %v6075, %v6071
    %v6332 = vpack.c.b16 %v6076, %v6072
    %v6333 = vpack.c.b16 %v6077, %v6073
    %6590 = vmatprep.subr.bf16.mxu0 %v6079
    %6591 = vmatpush1.bf16.msra.mxu0 %v6078
    %6592 = vmatprep.subr.bf16.mxu0 %v6083
    %6593 = vmatpush1.bf16.msra.mxu0 %v6082
    %6594 = vmatprep.subr.bf16.mxu0 %v6087
    %6595 = vmatpush1.bf16.msra.mxu0 %v6086
    %6596 = vmatprep.subr.bf16.mxu0 %v6091
    %6597 = vmatpush1.bf16.msra.mxu0 %v6090
    %6598 = vmatprep.subr.bf16.mxu0 %v6095
    %6599 = vmatpush1.bf16.msra.mxu0 %v6094
    %6600 = vmatprep.subr.bf16.mxu0 %v6099
    %6601 = vmatpush1.bf16.msra.mxu0 %v6098
    %6602 = vmatprep.subr.bf16.mxu0 %v6103
    %6603 = vmatpush1.bf16.msra.mxu0 %v6102
    %6604 = vmatprep.subr.bf16.mxu0 %v6107
    %6605 = vmatpush1.bf16.msra.mxu0 %v6106
    %6606 = vmatprep.subr.bf16.mxu0 %v6111
    %6607 = vmatpush1.bf16.msra.mxu0 %v6110
    %6608 = vmatprep.subr.bf16.mxu0 %v6115
    %6609 = vmatpush1.bf16.msra.mxu0 %v6114
    %6610 = vmatprep.subr.bf16.mxu0 %v6119
    %6611 = vmatpush1.bf16.msra.mxu0 %v6118
    %6612 = vmatprep.subr.bf16.mxu0 %v6123
    %6613 = vmatpush1.bf16.msra.mxu0 %v6122
    %6614 = vmatprep.subr.bf16.mxu0 %v6127
    %6615 = vmatpush1.bf16.msra.mxu0 %v6126
    %6616 = vmatprep.subr.bf16.mxu0 %v6131
    %6617 = vmatpush1.bf16.msra.mxu0 %v6130
    %6618 = vmatprep.subr.bf16.mxu0 %v6135
    %6619 = vmatpush1.bf16.msra.mxu0 %v6134
    %6620 = vmatprep.subr.bf16.mxu0 %v6139
    %6621 = vmatpush1.bf16.msra.mxu0 %v6138
    %6622 = vmatprep.mubr.bf16.mxu0 %v5025
    %6623 = vmatmul.mubr.bf16.gmra.mrb[0].mxu0 %v5024
    %v6624 = vpop.f32.mrb[0].mxu0
    %v6625 = vadd.f32 %v5293, %v6624
    %v6626 = vpop.f32.mrb[0].mxu0
    %v6627 = vadd.f32 %v5297, %v6626
    %v6628 = vpop.f32.mrb[0].mxu0
    %v6629 = vpop.f32.mrb[0].mxu0
    %6630 = vdwg.mxu0
    %6631 = vmatprep.subr.bf16.mxu0 %v6143
    %6632 = vmatpush1.bf16.msra.mxu0 %v6142
    %6633 = vmatprep.subr.bf16.mxu0 %v6147
    %6634 = vmatpush1.bf16.msra.mxu0 %v6146
    %6635 = vmatprep.subr.bf16.mxu0 %v6151
    %6636 = vmatpush1.bf16.msra.mxu0 %v6150
    %6637 = vmatprep.subr.bf16.mxu0 %v6155
    %6638 = vmatpush1.bf16.msra.mxu0 %v6154
    %6639 = vmatprep.subr.bf16.mxu0 %v6159
    %6640 = vmatpush1.bf16.msra.mxu0 %v6158
    %6641 = vmatprep.subr.bf16.mxu0 %v6163
    %6642 = vmatpush1.bf16.msra.mxu0 %v6162
    %6643 = vmatprep.subr.bf16.mxu0 %v6167
    %6644 = vmatpush1.bf16.msra.mxu0 %v6166
    %6645 = vmatprep.subr.bf16.mxu0 %v6171
    %6646 = vmatpush1.bf16.msra.mxu0 %v6170
    %6647 = vmatprep.subr.bf16.mxu0 %v6175
    %6648 = vmatpush1.bf16.msra.mxu0 %v6174
    %6649 = vmatprep.subr.bf16.mxu0 %v6179
    %6650 = vmatpush1.bf16.msra.mxu0 %v6178
    %6651 = vmatprep.subr.bf16.mxu0 %v6183
    %6652 = vmatpush1.bf16.msra.mxu0 %v6182
    %6653 = vmatprep.subr.bf16.mxu0 %v6187
    %6654 = vmatpush1.bf16.msra.mxu0 %v6186
    %6655 = vmatprep.subr.bf16.mxu0 %v6191
    %6656 = vmatpush1.bf16.msra.mxu0 %v6190
    %6657 = vmatprep.subr.bf16.mxu0 %v6195
    %6658 = vmatpush1.bf16.msra.mxu0 %v6194
    %6659 = vmatprep.subr.bf16.mxu0 %v6199
    %6660 = vmatpush1.bf16.msra.mxu0 %v6198
    %6661 = vmatprep.subr.bf16.mxu0 %v6203
    %6662 = vmatpush1.bf16.msra.mxu0 %v6202
    %6663 = vmatprep.mubr.bf16.mxu0 %v5027
    %6664 = vmatmul.mubr.bf16.gmra.mrb[0].mxu0 %v5026
    %v6665 = vpop.f32.mrb[0].mxu0
    %v6666 = vadd.f32 %v6625, %v6665
    %v6667 = vpop.f32.mrb[0].mxu0
    %v6668 = vadd.f32 %v6627, %v6667
    %v6669 = vpop.f32.mrb[0].mxu0
    %v6670 = vpop.f32.mrb[0].mxu0
    %6671 = vdwg.mxu0
    %6672 = vmatprep.subr.bf16.mxu0 %v6207
    %6673 = vmatpush1.bf16.msra.mxu0 %v6206
    %6674 = vmatprep.subr.bf16.mxu0 %v6211
    %6675 = vmatpush1.bf16.msra.mxu0 %v6210
    %6676 = vmatprep.subr.bf16.mxu0 %v6215
    %6677 = vmatpush1.bf16.msra.mxu0 %v6214
    %6678 = vmatprep.subr.bf16.mxu0 %v6219
    %6679 = vmatpush1.bf16.msra.mxu0 %v6218
    %6680 = vmatprep.subr.bf16.mxu0 %v6223
    %6681 = vmatpush1.bf16.msra.mxu0 %v6222
    %6682 = vmatprep.subr.bf16.mxu0 %v6227
    %6683 = vmatpush1.bf16.msra.mxu0 %v6226
    %6684 = vmatprep.subr.bf16.mxu0 %v6231
    %6685 = vmatpush1.bf16.msra.mxu0 %v6230
    %6686 = vmatprep.subr.bf16.mxu0 %v6235
    %6687 = vmatpush1.bf16.msra.mxu0 %v6234
    %6688 = vmatprep.subr.bf16.mxu0 %v6239
    %6689 = vmatpush1.bf16.msra.mxu0 %v6238
    %6690 = vmatprep.subr.bf16.mxu0 %v6243
    %6691 = vmatpush1.bf16.msra.mxu0 %v6242
    %6692 = vmatprep.subr.bf16.mxu0 %v6247
    %6693 = vmatpush1.bf16.msra.mxu0 %v6246
    %6694 = vmatprep.subr.bf16.mxu0 %v6251
    %6695 = vmatpush1.bf16.msra.mxu0 %v6250
    %6696 = vmatprep.subr.bf16.mxu0 %v6255
    %6697 = vmatpush1.bf16.msra.mxu0 %v6254
    %6698 = vmatprep.subr.bf16.mxu0 %v6259
    %6699 = vmatpush1.bf16.msra.mxu0 %v6258
    %6700 = vmatprep.subr.bf16.mxu0 %v6263
    %6701 = vmatpush1.bf16.msra.mxu0 %v6262
    %6702 = vmatprep.subr.bf16.mxu0 %v6267
    %6703 = vmatpush1.bf16.msra.mxu0 %v6266
    %6704 = vmatprep.mubr.bf16.mxu0 %v5029
    %6705 = vmatmul.mubr.bf16.gmra.mrb[0].mxu0 %v5028
    %v6706 = vpop.f32.mrb[0].mxu0
    %v6707 = vadd.f32 %v6666, %v6706
    %v6708 = vpop.f32.mrb[0].mxu0
    %v6709 = vadd.f32 %v6668, %v6708
    %v6710 = vpop.f32.mrb[0].mxu0
    %v6711 = vpop.f32.mrb[0].mxu0
    %6712 = vdwg.mxu0
    %6713 = vmatprep.subr.bf16.mxu0 %v6271
    %6714 = vmatpush1.bf16.msra.mxu0 %v6270
    %6715 = vmatprep.subr.bf16.mxu0 %v6275
    %6716 = vmatpush1.bf16.msra.mxu0 %v6274
    %6717 = vmatprep.subr.bf16.mxu0 %v6279
    %6718 = vmatpush1.bf16.msra.mxu0 %v6278
    %6719 = vmatprep.subr.bf16.mxu0 %v6283
    %6720 = vmatpush1.bf16.msra.mxu0 %v6282
    %6721 = vmatprep.subr.bf16.mxu0 %v6287
    %6722 = vmatpush1.bf16.msra.mxu0 %v6286
    %6723 = vmatprep.subr.bf16.mxu0 %v6291
    %6724 = vmatpush1.bf16.msra.mxu0 %v6290
    %6725 = vmatprep.subr.bf16.mxu0 %v6295
    %6726 = vmatpush1.bf16.msra.mxu0 %v6294
    %6727 = vmatprep.subr.bf16.mxu0 %v6299
    %6728 = vmatpush1.bf16.msra.mxu0 %v6298
    %6729 = vmatprep.subr.bf16.mxu0 %v6303
    %6730 = vmatpush1.bf16.msra.mxu0 %v6302
    %6731 = vmatprep.subr.bf16.mxu0 %v6307
    %6732 = vmatpush1.bf16.msra.mxu0 %v6306
    %6733 = vmatprep.subr.bf16.mxu0 %v6311
    %6734 = vmatpush1.bf16.msra.mxu0 %v6310
    %6735 = vmatprep.subr.bf16.mxu0 %v6315
    %6736 = vmatpush1.bf16.msra.mxu0 %v6314
    %6737 = vmatprep.subr.bf16.mxu0 %v6319
    %6738 = vmatpush1.bf16.msra.mxu0 %v6318
    %6739 = vmatprep.subr.bf16.mxu0 %v6323
    %6740 = vmatpush1.bf16.msra.mxu0 %v6322
    %6741 = vmatprep.subr.bf16.mxu0 %v6327
    %6742 = vmatpush1.bf16.msra.mxu0 %v6326
    %6743 = vmatprep.subr.bf16.mxu0 %v6331
    %6744 = vmatpush1.bf16.msra.mxu0 %v6330
    %6745 = vmatprep.mubr.bf16.mxu0 %v5031
    %6746 = vmatmul.mubr.bf16.gmra.mrb[0].mxu0 %v5030
    %v6747 = vpop.f32.mrb[0].mxu0
    %v6748 = vadd.f32 %v6707, %v6747
    %v6749 = vpop.f32.mrb[0].mxu0
    %v6750 = vadd.f32 %v6709, %v6749
    %v6751 = vpop.f32.mrb[0].mxu0
    %v6752 = vpop.f32.mrb[0].mxu0
    %6753 = vdwg.mxu0
    %6754 = vmatprep.subr.bf16.mxu0 %v6081
    %6755 = vmatpush1.bf16.msra.mxu0 %v6080
    %6756 = vmatprep.subr.bf16.mxu0 %v6085
    %6757 = vmatpush1.bf16.msra.mxu0 %v6084
    %6758 = vmatprep.subr.bf16.mxu0 %v6089
    %6759 = vmatpush1.bf16.msra.mxu0 %v6088
    %6760 = vmatprep.subr.bf16.mxu0 %v6093
    %6761 = vmatpush1.bf16.msra.mxu0 %v6092
    %6762 = vmatprep.subr.bf16.mxu0 %v6097
    %6763 = vmatpush1.bf16.msra.mxu0 %v6096
    %6764 = vmatprep.subr.bf16.mxu0 %v6101
    %6765 = vmatpush1.bf16.msra.mxu0 %v6100
    %6766 = vmatprep.subr.bf16.mxu0 %v6105
    %6767 = vmatpush1.bf16.msra.mxu0 %v6104
    %6768 = vmatprep.subr.bf16.mxu0 %v6109
    %6769 = vmatpush1.bf16.msra.mxu0 %v6108
    %6770 = vmatprep.subr.bf16.mxu0 %v6113
    %6771 = vmatpush1.bf16.msra.mxu0 %v6112
    %6772 = vmatprep.subr.bf16.mxu0 %v6117
    %6773 = vmatpush1.bf16.msra.mxu0 %v6116
    %6774 = vmatprep.subr.bf16.mxu0 %v6121
    %6775 = vmatpush1.bf16.msra.mxu0 %v6120
    %6776 = vmatprep.subr.bf16.mxu0 %v6125
    %6777 = vmatpush1.bf16.msra.mxu0 %v6124
    %6778 = vmatprep.subr.bf16.mxu0 %v6129
    %6779 = vmatpush1.bf16.msra.mxu0 %v6128
    %6780 = vmatprep.subr.bf16.mxu0 %v6133
    %6781 = vmatpush1.bf16.msra.mxu0 %v6132
    %6782 = vmatprep.subr.bf16.mxu0 %v6137
    %6783 = vmatpush1.bf16.msra.mxu0 %v6136
    %6784 = vmatprep.subr.bf16.mxu0 %v6141
    %6785 = vmatpush1.bf16.msra.mxu0 %v6140
    %6786 = vmatprep.mubr.bf16.mxu0 %v5025
    %6787 = vmatmul.mubr.bf16.gmra.mrb[0].mxu0 %v5024
    %v6788 = vpop.f32.mrb[0].mxu0
    %v6789 = vadd.f32 %v5301, %v6788
    %v6790 = vpop.f32.mrb[0].mxu0
    %v6791 = vadd.f32 %v5305, %v6790
    %v6792 = vpop.f32.mrb[0].mxu0
    %v6793 = vpop.f32.mrb[0].mxu0
    %6794 = vdwg.mxu0
    %6795 = vmatprep.subr.bf16.mxu0 %v6145
    %6796 = vmatpush1.bf16.msra.mxu0 %v6144
    %6797 = vmatprep.subr.bf16.mxu0 %v6149
    %6798 = vmatpush1.bf16.msra.mxu0 %v6148
    %6799 = vmatprep.subr.bf16.mxu0 %v6153
    %6800 = vmatpush1.bf16.msra.mxu0 %v6152
    %6801 = vmatprep.subr.bf16.mxu0 %v6157
    %6802 = vmatpush1.bf16.msra.mxu0 %v6156
    %6803 = vmatprep.subr.bf16.mxu0 %v6161
    %6804 = vmatpush1.bf16.msra.mxu0 %v6160
    %6805 = vmatprep.subr.bf16.mxu0 %v6165
    %6806 = vmatpush1.bf16.msra.mxu0 %v6164
    %6807 = vmatprep.subr.bf16.mxu0 %v6169
    %6808 = vmatpush1.bf16.msra.mxu0 %v6168
    %6809 = vmatprep.subr.bf16.mxu0 %v6173
    %6810 = vmatpush1.bf16.msra.mxu0 %v6172
    %6811 = vmatprep.subr.bf16.mxu0 %v6177
    %6812 = vmatpush1.bf16.msra.mxu0 %v6176
    %6813 = vmatprep.subr.bf16.mxu0 %v6181
    %6814 = vmatpush1.bf16.msra.mxu0 %v6180
    %6815 = vmatprep.subr.bf16.mxu0 %v6185
    %6816 = vmatpush1.bf16.msra.mxu0 %v6184
    %6817 = vmatprep.subr.bf16.mxu0 %v6189
    %6818 = vmatpush1.bf16.msra.mxu0 %v6188
    %6819 = vmatprep.subr.bf16.mxu0 %v6193
    %6820 = vmatpush1.bf16.msra.mxu0 %v6192
    %6821 = vmatprep.subr.bf16.mxu0 %v6197
    %6822 = vmatpush1.bf16.msra.mxu0 %v6196
    %6823 = vmatprep.subr.bf16.mxu0 %v6201
    %6824 = vmatpush1.bf16.msra.mxu0 %v6200
    %6825 = vmatprep.subr.bf16.mxu0 %v6205
    %6826 = vmatpush1.bf16.msra.mxu0 %v6204
    %6827 = vmatprep.mubr.bf16.mxu0 %v5027
    %6828 = vmatmul.mubr.bf16.gmra.mrb[0].mxu0 %v5026
    %v6829 = vpop.f32.mrb[0].mxu0
    %v6830 = vadd.f32 %v6789, %v6829
    %v6831 = vpop.f32.mrb[0].mxu0
    %v6832 = vadd.f32 %v6791, %v6831
    %v6833 = vpop.f32.mrb[0].mxu0
    %v6834 = vpop.f32.mrb[0].mxu0
    %6835 = vdwg.mxu0
    %6836 = vmatprep.subr.bf16.mxu0 %v6209
    %6837 = vmatpush1.bf16.msra.mxu0 %v6208
    %6838 = vmatprep.subr.bf16.mxu0 %v6213
    %6839 = vmatpush1.bf16.msra.mxu0 %v6212
    %6840 = vmatprep.subr.bf16.mxu0 %v6217
    %6841 = vmatpush1.bf16.msra.mxu0 %v6216
    %6842 = vmatprep.subr.bf16.mxu0 %v6221
    %6843 = vmatpush1.bf16.msra.mxu0 %v6220
    %6844 = vmatprep.subr.bf16.mxu0 %v6225
    %6845 = vmatpush1.bf16.msra.mxu0 %v6224
    %6846 = vmatprep.subr.bf16.mxu0 %v6229
    %6847 = vmatpush1.bf16.msra.mxu0 %v6228
    %6848 = vmatprep.subr.bf16.mxu0 %v6233
    %6849 = vmatpush1.bf16.msra.mxu0 %v6232
    %6850 = vmatprep.subr.bf16.mxu0 %v6237
    %6851 = vmatpush1.bf16.msra.mxu0 %v6236
    %6852 = vmatprep.subr.bf16.mxu0 %v6241
    %6853 = vmatpush1.bf16.msra.mxu0 %v6240
    %6854 = vmatprep.subr.bf16.mxu0 %v6245
    %6855 = vmatpush1.bf16.msra.mxu0 %v6244
    %6856 = vmatprep.subr.bf16.mxu0 %v6249
    %6857 = vmatpush1.bf16.msra.mxu0 %v6248
    %6858 = vmatprep.subr.bf16.mxu0 %v6253
    %6859 = vmatpush1.bf16.msra.mxu0 %v6252
    %6860 = vmatprep.subr.bf16.mxu0 %v6257
    %6861 = vmatpush1.bf16.msra.mxu0 %v6256
    %6862 = vmatprep.subr.bf16.mxu0 %v6261
    %6863 = vmatpush1.bf16.msra.mxu0 %v6260
    %6864 = vmatprep.subr.bf16.mxu0 %v6265
    %6865 = vmatpush1.bf16.msra.mxu0 %v6264
    %6866 = vmatprep.subr.bf16.mxu0 %v6269
    %6867 = vmatpush1.bf16.msra.mxu0 %v6268
    %6868 = vmatprep.mubr.bf16.mxu0 %v5029
    %6869 = vmatmul.mubr.bf16.gmra.mrb[0].mxu0 %v5028
    %v6870 = vpop.f32.mrb[0].mxu0
    %v6871 = vadd.f32 %v6830, %v6870
    %v6872 = vpop.f32.mrb[0].mxu0
    %v6873 = vadd.f32 %v6832, %v6872
    %v6874 = vpop.f32.mrb[0].mxu0
    %v6875 = vpop.f32.mrb[0].mxu0
    %6876 = vdwg.mxu0
    %6877 = vmatprep.subr.bf16.mxu0 %v6273
    %6878 = vmatpush1.bf16.msra.mxu0 %v6272
    %6879 = vmatprep.subr.bf16.mxu0 %v6277
    %6880 = vmatpush1.bf16.msra.mxu0 %v6276
    %6881 = vmatprep.subr.bf16.mxu0 %v6281
    %6882 = vmatpush1.bf16.msra.mxu0 %v6280
    %6883 = vmatprep.subr.bf16.mxu0 %v6285
    %6884 = vmatpush1.bf16.msra.mxu0 %v6284
    %6885 = vmatprep.subr.bf16.mxu0 %v6289
    %6886 = vmatpush1.bf16.msra.mxu0 %v6288
    %6887 = vmatprep.subr.bf16.mxu0 %v6293
    %6888 = vmatpush1.bf16.msra.mxu0 %v6292
    %6889 = vmatprep.subr.bf16.mxu0 %v6297
    %6890 = vmatpush1.bf16.msra.mxu0 %v6296
    %6891 = vmatprep.subr.bf16.mxu0 %v6301
    %6892 = vmatpush1.bf16.msra.mxu0 %v6300
    %6893 = vmatprep.subr.bf16.mxu0 %v6305
    %6894 = vmatpush1.bf16.msra.mxu0 %v6304
    %6895 = vmatprep.subr.bf16.mxu0 %v6309
    %6896 = vmatpush1.bf16.msra.mxu0 %v6308
    %6897 = vmatprep.subr.bf16.mxu0 %v6313
    %6898 = vmatpush1.bf16.msra.mxu0 %v6312
    %6899 = vmatprep.subr.bf16.mxu0 %v6317
    %6900 = vmatpush1.bf16.msra.mxu0 %v6316
    %6901 = vmatprep.subr.bf16.mxu0 %v6321
    %6902 = vmatpush1.bf16.msra.mxu0 %v6320
    %6903 = vmatprep.subr.bf16.mxu0 %v6325
    %6904 = vmatpush1.bf16.msra.mxu0 %v6324
    %6905 = vmatprep.subr.bf16.mxu0 %v6329
    %6906 = vmatpush1.bf16.msra.mxu0 %v6328
    %6907 = vmatprep.subr.bf16.mxu0 %v6333
    %6908 = vmatpush1.bf16.msra.mxu0 %v6332
    %6909 = vmatprep.mubr.bf16.mxu0 %v5031
    %6910 = vmatmul.mubr.bf16.gmra.mrb[0].mxu0 %v5030
    %v6911 = vpop.f32.mrb[0].mxu0
    %v6912 = vadd.f32 %v6871, %v6911
    %v6913 = vpop.f32.mrb[0].mxu0
    %v6914 = vadd.f32 %v6873, %v6913
    %v6915 = vpop.f32.mrb[0].mxu0
    %v6916 = vpop.f32.mrb[0].mxu0
    %6917 = vdwg.mxu0
    %v6918 = vxor.u32 %v6748, 2147483648
    %v6919 = vxor.u32 %v6750, 2147483648
    %v6920 = vxor.u32 %v6912, 2147483648
    %v6921 = vxor.u32 %v6914, 2147483648
    %v6922 = vmul.f32 %v6918, 1.442695
    %v6923 = vpow.pop %v6922
    %v6924 = vmul.f32 %v6919, 1.442695
    %v6925 = vpow.pop %v6924
    %v6926 = vmul.f32 %v6920, 1.442695
    %v6927 = vpow.pop %v6926
    %v6928 = vmul.f32 %v6921, 1.442695
    %v6929 = vpow.pop %v6928
    %v6930 = vadd.f32 %v6923, 1.0
    %v6931 = vadd.f32 %v6925, 1.0
    %v6932 = vadd.f32 %v6927, 1.0
    %v6933 = vadd.f32 %v6929, 1.0
    %v6934 = vrcp.pop %v6930
    %v6935 = vmul.f32 1.0, %v6934
    %v6936 = vrcp.pop %v6931
    %v6937 = vmul.f32 1.0, %v6936
    %v6938 = vrcp.pop %v6932
    %v6939 = vmul.f32 1.0, %v6938
    %v6940 = vrcp.pop %v6933
    %v6941 = vmul.f32 1.0, %v6940
    %v6942 = vmul.f32 %v6748, %v6935
    %v6943 = vmul.f32 %v6750, %v6937
    %v6944 = vmul.f32 %v6912, %v6939
    %v6945 = vmul.f32 %v6914, %v6941
    %v6946 = vpack.c.bf16 %v6942, %v6942
    %v6947 = vpack.c.bf16 %v6943, %v6943
    %v6948 = vpack.c.bf16 %v6944, %v6944
    %v6949 = vpack.c.bf16 %v6945, %v6945
    %v6950 = vld [vmem:[#allocation14] sm:$0xf]
    %v6951 = vld [vmem:[#allocation14 + $0x4] sm:$0xf]
    %v6952 = vld [vmem:[#allocation14 + $0x8] sm:$0xf]
    %v6953 = vld [vmem:[#allocation14 + $0xc] sm:$0xf]
    %v6954 = vld [vmem:[#allocation14 + $0x10] sm:$0xf]
    %v6955 = vld [vmem:[#allocation14 + $0x14] sm:$0xf]
    %v6956 = vld [vmem:[#allocation14 + $0x18] sm:$0xf]
    %v6957 = vld [vmem:[#allocation14 + $0x1c] sm:$0xf]
    %v6958 = vld [vmem:[#allocation14 + $0x20] sm:$0xf]
    %v6959 = vld [vmem:[#allocation14 + $0x24] sm:$0xf]
    %v6960 = vld [vmem:[#allocation14 + $0x28] sm:$0xf]
    %v6961 = vld [vmem:[#allocation14 + $0x2c] sm:$0xf]
    %v6962 = vld [vmem:[#allocation14 + $0x30] sm:$0xf]
    %v6963 = vld [vmem:[#allocation14 + $0x34] sm:$0xf]
    %v6964 = vld [vmem:[#allocation14 + $0x38] sm:$0xf]
    %v6965 = vld [vmem:[#allocation14 + $0x3c] sm:$0xf]
    %v6966 = vld [vmem:[#allocation14 + $0x40] sm:$0xf]
    %v6967 = vld [vmem:[#allocation14 + $0x44] sm:$0xf]
    %v6968 = vld [vmem:[#allocation14 + $0x48] sm:$0xf]
    %v6969 = vld [vmem:[#allocation14 + $0x4c] sm:$0xf]
    %v6970 = vld [vmem:[#allocation14 + $0x50] sm:$0xf]
    %v6971 = vld [vmem:[#allocation14 + $0x54] sm:$0xf]
    %v6972 = vld [vmem:[#allocation14 + $0x58] sm:$0xf]
    %v6973 = vld [vmem:[#allocation14 + $0x5c] sm:$0xf]
    %v6974 = vld [vmem:[#allocation14 + $0x60] sm:$0xf]
    %v6975 = vld [vmem:[#allocation14 + $0x64] sm:$0xf]
    %v6976 = vld [vmem:[#allocation14 + $0x68] sm:$0xf]
    %v6977 = vld [vmem:[#allocation14 + $0x6c] sm:$0xf]
    %v6978 = vld [vmem:[#allocation14 + $0x70] sm:$0xf]
    %v6979 = vld [vmem:[#allocation14 + $0x74] sm:$0xf]
    %v6980 = vld [vmem:[#allocation14 + $0x78] sm:$0xf]
    %v6981 = vld [vmem:[#allocation14 + $0x7c] sm:$0xf]
    %v6982 = vld [vmem:[#allocation14 + $0x80] sm:$0xf]
    %v6983 = vld [vmem:[#allocation14 + $0x84] sm:$0xf]
    %v6984 = vld [vmem:[#allocation14 + $0x88] sm:$0xf]
    %v6985 = vld [vmem:[#allocation14 + $0x8c] sm:$0xf]
    %v6986 = vld [vmem:[#allocation14 + $0x90] sm:$0xf]
    %v6987 = vld [vmem:[#allocation14 + $0x94] sm:$0xf]
    %v6988 = vld [vmem:[#allocation14 + $0x98] sm:$0xf]
    %v6989 = vld [vmem:[#allocation14 + $0x9c] sm:$0xf]
    %v6990 = vld [vmem:[#allocation14 + $0xa0] sm:$0xf]
    %v6991 = vld [vmem:[#allocation14 + $0xa4] sm:$0xf]
    %v6992 = vld [vmem:[#allocation14 + $0xa8] sm:$0xf]
    %v6993 = vld [vmem:[#allocation14 + $0xac] sm:$0xf]
    %v6994 = vld [vmem:[#allocation14 + $0xb0] sm:$0xf]
    %v6995 = vld [vmem:[#allocation14 + $0xb4] sm:$0xf]
    %v6996 = vld [vmem:[#allocation14 + $0xb8] sm:$0xf]
    %v6997 = vld [vmem:[#allocation14 + $0xbc] sm:$0xf]
    %v6998 = vld [vmem:[#allocation14 + $0xc0] sm:$0xf]
    %v6999 = vld [vmem:[#allocation14 + $0xc4] sm:$0xf]
    %v7000 = vld [vmem:[#allocation14 + $0xc8] sm:$0xf]
    %v7001 = vld [vmem:[#allocation14 + $0xcc] sm:$0xf]
    %v7002 = vld [vmem:[#allocation14 + $0xd0] sm:$0xf]
    %v7003 = vld [vmem:[#allocation14 + $0xd4] sm:$0xf]
    %v7004 = vld [vmem:[#allocation14 + $0xd8] sm:$0xf]
    %v7005 = vld [vmem:[#allocation14 + $0xdc] sm:$0xf]
    %v7006 = vld [vmem:[#allocation14 + $0xe0] sm:$0xf]
    %v7007 = vld [vmem:[#allocation14 + $0xe4] sm:$0xf]
    %v7008 = vld [vmem:[#allocation14 + $0xe8] sm:$0xf]
    %v7009 = vld [vmem:[#allocation14 + $0xec] sm:$0xf]
    %v7010 = vld [vmem:[#allocation14 + $0xf0] sm:$0xf]
    %v7011 = vld [vmem:[#allocation14 + $0xf4] sm:$0xf]
    %v7012 = vld [vmem:[#allocation14 + $0xf8] sm:$0xf]
    %v7013 = vld [vmem:[#allocation14 + $0xfc] sm:$0xf]
    %v7014 = vld [vmem:[#allocation16] sm:$0x1]
    %v7016 = vlaneseq
    %v7017 = vshrl.u32 %v7016, 7
    %v7018 = vsub.s32 0, %v7017
    %v7019 = vrot.slane %v7014, %v7018
    %v7085 = vunpack.c.l.b16 %v6950
    %v7086 = vunpack.c.l.b16 %v6951
    %v7087 = vunpack.c.l.b16 %v6952
    %v7088 = vunpack.c.l.b16 %v6953
    %v7089 = vunpack.c.l.b16 %v6954
    %v7090 = vunpack.c.l.b16 %v6955
    %v7091 = vunpack.c.l.b16 %v6956
    %v7092 = vunpack.c.l.b16 %v6957
    %v7093 = vunpack.c.l.b16 %v6958
    %v7094 = vunpack.c.l.b16 %v6959
    %v7095 = vunpack.c.l.b16 %v6960
    %v7096 = vunpack.c.l.b16 %v6961
    %v7097 = vunpack.c.l.b16 %v6962
    %v7098 = vunpack.c.l.b16 %v6963
    %v7099 = vunpack.c.l.b16 %v6964
    %v7100 = vunpack.c.l.b16 %v6965
    %v7101 = vunpack.c.l.b16 %v6966
    %v7102 = vunpack.c.l.b16 %v6967
    %v7103 = vunpack.c.l.b16 %v6968
    %v7104 = vunpack.c.l.b16 %v6969
    %v7105 = vunpack.c.l.b16 %v6970
    %v7106 = vunpack.c.l.b16 %v6971
    %v7107 = vunpack.c.l.b16 %v6972
    %v7108 = vunpack.c.l.b16 %v6973
    %v7109 = vunpack.c.l.b16 %v6974
    %v7110 = vunpack.c.l.b16 %v6975
    %v7111 = vunpack.c.l.b16 %v6976
    %v7112 = vunpack.c.l.b16 %v6977
    %v7113 = vunpack.c.l.b16 %v6978
    %v7114 = vunpack.c.l.b16 %v6979
    %v7115 = vunpack.c.l.b16 %v6980
    %v7116 = vunpack.c.l.b16 %v6981
    %v7117 = vunpack.c.l.b16 %v6982
    %v7118 = vunpack.c.l.b16 %v6983
    %v7119 = vunpack.c.l.b16 %v6984
    %v7120 = vunpack.c.l.b16 %v6985
    %v7121 = vunpack.c.l.b16 %v6986
    %v7122 = vunpack.c.l.b16 %v6987
    %v7123 = vunpack.c.l.b16 %v6988
    %v7124 = vunpack.c.l.b16 %v6989
    %v7125 = vunpack.c.l.b16 %v6990
    %v7126 = vunpack.c.l.b16 %v6991
    %v7127 = vunpack.c.l.b16 %v6992
    %v7128 = vunpack.c.l.b16 %v6993
    %v7129 = vunpack.c.l.b16 %v6994
    %v7130 = vunpack.c.l.b16 %v6995
    %v7131 = vunpack.c.l.b16 %v6996
    %v7132 = vunpack.c.l.b16 %v6997
    %v7133 = vunpack.c.l.b16 %v6998
    %v7134 = vunpack.c.l.b16 %v6999
    %v7135 = vunpack.c.l.b16 %v7000
    %v7136 = vunpack.c.l.b16 %v7001
    %v7137 = vunpack.c.l.b16 %v7002
    %v7138 = vunpack.c.l.b16 %v7003
    %v7139 = vunpack.c.l.b16 %v7004
    %v7140 = vunpack.c.l.b16 %v7005
    %v7141 = vunpack.c.l.b16 %v7006
    %v7142 = vunpack.c.l.b16 %v7007
    %v7143 = vunpack.c.l.b16 %v7008
    %v7144 = vunpack.c.l.b16 %v7009
    %v7145 = vunpack.c.l.b16 %v7010
    %v7146 = vunpack.c.l.b16 %v7011
    %v7147 = vunpack.c.l.b16 %v7012
    %v7148 = vunpack.c.l.b16 %v7013
    %v7149 = vpack.c.b16 %v7086, %v7085
    %v7150 = vpack.c.b16 %v7088, %v7087
    %v7151 = vpack.c.b16 %v7090, %v7089
    %v7152 = vpack.c.b16 %v7092, %v7091
    %v7153 = vpack.c.b16 %v7094, %v7093
    %v7154 = vpack.c.b16 %v7096, %v7095
    %v7155 = vpack.c.b16 %v7098, %v7097
    %v7156 = vpack.c.b16 %v7100, %v7099
    %v7157 = vpack.c.b16 %v7102, %v7101
    %v7158 = vpack.c.b16 %v7104, %v7103
    %v7159 = vpack.c.b16 %v7106, %v7105
    %v7160 = vpack.c.b16 %v7108, %v7107
    %v7161 = vpack.c.b16 %v7110, %v7109
    %v7162 = vpack.c.b16 %v7112, %v7111
    %v7163 = vpack.c.b16 %v7114, %v7113
    %v7164 = vpack.c.b16 %v7116, %v7115
    %v7165 = vpack.c.b16 %v7118, %v7117
    %v7166 = vpack.c.b16 %v7120, %v7119
    %v7167 = vpack.c.b16 %v7122, %v7121
    %v7168 = vpack.c.b16 %v7124, %v7123
    %v7169 = vpack.c.b16 %v7126, %v7125
    %v7170 = vpack.c.b16 %v7128, %v7127
    %v7171 = vpack.c.b16 %v7130, %v7129
    %v7172 = vpack.c.b16 %v7132, %v7131
    %v7173 = vpack.c.b16 %v7134, %v7133
    %v7174 = vpack.c.b16 %v7136, %v7135
    %v7175 = vpack.c.b16 %v7138, %v7137
    %v7176 = vpack.c.b16 %v7140, %v7139
    %v7177 = vpack.c.b16 %v7142, %v7141
    %v7178 = vpack.c.b16 %v7144, %v7143
    %v7179 = vpack.c.b16 %v7146, %v7145
    %v7180 = vpack.c.b16 %v7148, %v7147
    %7213 = vmatprep.subr.bf16.mxu0 0
    %7214 = vmatpush1.bf16.msra.mxu0 %v7149
    %7215 = vmatprep.subr.bf16.mxu0 0
    %7216 = vmatpush1.bf16.msra.mxu0 %v7150
    %7217 = vmatprep.subr.bf16.mxu0 0
    %7218 = vmatpush1.bf16.msra.mxu0 %v7151
    %7219 = vmatprep.subr.bf16.mxu0 0
    %7220 = vmatpush1.bf16.msra.mxu0 %v7152
    %7221 = vmatprep.subr.bf16.mxu0 0
    %7222 = vmatpush1.bf16.msra.mxu0 %v7153
    %7223 = vmatprep.subr.bf16.mxu0 0
    %7224 = vmatpush1.bf16.msra.mxu0 %v7154
    %7225 = vmatprep.subr.bf16.mxu0 0
    %7226 = vmatpush1.bf16.msra.mxu0 %v7155
    %7227 = vmatprep.subr.bf16.mxu0 0
    %7228 = vmatpush1.bf16.msra.mxu0 %v7156
    %7229 = vmatprep.subr.bf16.mxu0 0
    %7230 = vmatpush1.bf16.msra.mxu0 %v7157
    %7231 = vmatprep.subr.bf16.mxu0 0
    %7232 = vmatpush1.bf16.msra.mxu0 %v7158
    %7233 = vmatprep.subr.bf16.mxu0 0
    %7234 = vmatpush1.bf16.msra.mxu0 %v7159
    %7235 = vmatprep.subr.bf16.mxu0 0
    %7236 = vmatpush1.bf16.msra.mxu0 %v7160
    %7237 = vmatprep.subr.bf16.mxu0 0
    %7238 = vmatpush1.bf16.msra.mxu0 %v7161
    %7239 = vmatprep.subr.bf16.mxu0 0
    %7240 = vmatpush1.bf16.msra.mxu0 %v7162
    %7241 = vmatprep.subr.bf16.mxu0 0
    %7242 = vmatpush1.bf16.msra.mxu0 %v7163
    %7243 = vmatprep.subr.bf16.mxu0 0
    %7244 = vmatpush1.bf16.msra.mxu0 %v7164
    %7245 = vmatprep.mubr.bf16.mxu0 %v6947
    %7246 = vmatmul.mubr.bf16.gmra.mrb[0].mxu0 %v6946
    %v7247 = vpop.f32.mrb[0].mxu0
    %v7248 = vadd.f32 %v7019, %v7247
    %v7249 = vpop.f32.mrb[0].mxu0
    %v7250 = vpop.f32.mrb[0].mxu0
    %v7251 = vpop.f32.mrb[0].mxu0
    %7252 = vdwg.mxu0
    %7253 = vmatprep.subr.bf16.mxu0 0
    %7254 = vmatpush1.bf16.msra.mxu0 %v7165
    %7255 = vmatprep.subr.bf16.mxu0 0
    %7256 = vmatpush1.bf16.msra.mxu0 %v7166
    %7257 = vmatprep.subr.bf16.mxu0 0
    %7258 = vmatpush1.bf16.msra.mxu0 %v7167
    %7259 = vmatprep.subr.bf16.mxu0 0
    %7260 = vmatpush1.bf16.msra.mxu0 %v7168
    %7261 = vmatprep.subr.bf16.mxu0 0
    %7262 = vmatpush1.bf16.msra.mxu0 %v7169
    %7263 = vmatprep.subr.bf16.mxu0 0
    %7264 = vmatpush1.bf16.msra.mxu0 %v7170
    %7265 = vmatprep.subr.bf16.mxu0 0
    %7266 = vmatpush1.bf16.msra.mxu0 %v7171
    %7267 = vmatprep.subr.bf16.mxu0 0
    %7268 = vmatpush1.bf16.msra.mxu0 %v7172
    %7269 = vmatprep.subr.bf16.mxu0 0
    %7270 = vmatpush1.bf16.msra.mxu0 %v7173
    %7271 = vmatprep.subr.bf16.mxu0 0
    %7272 = vmatpush1.bf16.msra.mxu0 %v7174
    %7273 = vmatprep.subr.bf16.mxu0 0
    %7274 = vmatpush1.bf16.msra.mxu0 %v7175
    %7275 = vmatprep.subr.bf16.mxu0 0
    %7276 = vmatpush1.bf16.msra.mxu0 %v7176
    %7277 = vmatprep.subr.bf16.mxu0 0
    %7278 = vmatpush1.bf16.msra.mxu0 %v7177
    %7279 = vmatprep.subr.bf16.mxu0 0
    %7280 = vmatpush1.bf16.msra.mxu0 %v7178
    %7281 = vmatprep.subr.bf16.mxu0 0
    %7282 = vmatpush1.bf16.msra.mxu0 %v7179
    %7283 = vmatprep.subr.bf16.mxu0 0
    %7284 = vmatpush1.bf16.msra.mxu0 %v7180
    %7285 = vmatprep.mubr.bf16.mxu0 %v6949
    %7286 = vmatmul.mubr.bf16.gmra.mrb[0].mxu0 %v6948
    %v7287 = vpop.f32.mrb[0].mxu0
    %v7288 = vadd.f32 %v7248, %v7287
    %v7289 = vpop.f32.mrb[0].mxu0
    %v7290 = vpop.f32.mrb[0].mxu0
    %v7291 = vpop.f32.mrb[0].mxu0
    %7292 = vdwg.mxu0
    %v7293 = vxor.u32 %v7288, 2147483648
    %v7294 = vmul.f32 %v7293, 1.442695
    %v7295 = vpow.pop %v7294
    %v7296 = vadd.f32 %v7295, 1.0
    %v7297 = vrcp.pop %v7296
    %v7298 = vmul.f32 1.0, %v7297
    %7299 = vst [vmem:[#allocation17] sm:$0x3] %v7298
    // Predicated region
    $region74: #{cnn1d_without_gru_forward.3} parent=1 // pred_check
      _
    $region75: #{cnn1d_without_gru_forward.3} parent=1 // pred_check_branch
      %7301 = sbr.rel (0) target = $region77
    $region76: #{cnn1d_without_gru_forward.3} parent=1 // pred_region
      %s7303 = ssub.s32 32, 32
      %7304 = vsyncadd [#allocation4], %s7303
      %s7306 = sshll.u32 [#allocation17], 4
      %s7307 = int_to_ptr.vmem [resolvable:$true] %s7306
      %7309 = dma.vmem_to_hbm [thread:$0]  %s7307, 32, %s9, [#allocation4]
    $region77: #{cnn1d_without_gru_forward.3} parent=1 // pred_fallthru
      _
    // Predicated region
    $region78: #{cnn1d_without_gru_forward.3} parent=1 // pred_check
      _
    $region79: #{cnn1d_without_gru_forward.3} parent=1 // pred_check_branch
      %7311 = sbr.rel (0) target = $region81
    $region80: #{cnn1d_without_gru_forward.3} parent=1 // pred_region
      %7312 = dma.done [#allocation4], 32
    $region81: #{cnn1d_without_gru_forward.3} parent=1 // pred_fallthru
      _
    %7313 = vsyncpa [#allocation3], 1
    %7314 = vsyncpa [#allocation6], 1
    %7315 = vsyncpa [#allocation9], 1
    %7316 = vsyncpa [#allocation12], 1
    %7317 = vsyncpa [#allocation15], 1
    %7318 = vsyncpa [#allocation4], 1

</llo_original>
